<compile_context>
chip_gen: v6e
topology: v6e:2x2x1
jax: 0.10.0
libtpu: 0.0.40
codegen_flags: <defaults>
</compile_context>

<pallas_src>
import math

import jax
import jax.numpy as jnp
import numpy as np
from jax import lax
from jax.experimental import pallas as pl
from jax.experimental.pallas import tpu as pltpu


def _round_up(x, m):
    return ((x + m - 1) // m) * m


# ----------------------------------------------------------------------------
# Fused bidirectional-GRU kernel. One grid step processes TB graphs.
#
# Block layouts (time-major so each per-step load/store is a full [TB, Hp] tile):
#   hpad : [T, TB, Hp]   zero-padded raw node hidden states
#   lenf : [TB, 1]       number of valid nodes per graph (f32)
#   bias : [1, Hp]
#   wi   : [Hp, 6Hp]     W_ih^T, columns = fwd(r|z|n) | rev(r|z|n), gate-aligned
#   bi   : [1, 6Hp]
#   whf/whr : [Hp, 3Hp]  W_hh^T per direction (r|z|n)
#   bhf/bhr : [1, 3Hp]
# Outputs: out_f/out_r [T, TB, Hp], pooled_f/pooled_r [TB, Hp]
# Scratch: gif/gir [T, TB, 3Hp]  (hoisted input-gate pre-activations)
# ----------------------------------------------------------------------------
def bigru_kernel(hpad_ref, lenf_ref, bias_ref,
                 wi_ref, bi_ref, whf_ref, bhf_ref, whr_ref, bhr_ref,
                 outf_ref, outr_ref, poolf_ref, poolr_ref,
                 gif_ref, gir_ref):
    T, TB, Hp = hpad_ref.shape
    H3 = 3 * Hp

    hpad = hpad_ref[...]                                    # [T, TB, Hp]
    lenb = lenf_ref[...]                                    # [TB, 1]
    bias3 = bias_ref[...].reshape(1, 1, Hp)

    # validity mask: position t of graph b is a real node iff t < len[b]
    t_ids = lax.broadcasted_iota(jnp.int32, (T, TB, Hp), 0).astype(jnp.float32)
    valid = (t_ids < lenb.reshape(1, TB, 1)).astype(jnp.float32)     # [T, TB, Hp]

    # message = ZeroPad(relu(h + bias))
    msg = jnp.maximum(hpad + bias3, 0.0) * valid                     # [T, TB, Hp]

    # h0 = per-graph max over valid nodes of the raw hidden (shared by both dirs)
    h0 = jnp.max(jnp.where(valid > 0.0, hpad, jnp.float32(-1e9)), axis=0)  # [TB, Hp]

    # Hoisted input-to-hidden projection: one large MXU call (M = T*TB) for both
    # directions and every timestep, instead of 2*T tiny per-step matmuls.
    gi_all = (jnp.dot(msg.reshape(T * TB, Hp), wi_ref[...],
                      preferred_element_type=jnp.float32) + bi_ref[...])   # [T*TB, 6Hp]
    gif_ref[...] = gi_all[:, 0:H3].reshape(T, TB, H3)
    gir_ref[...] = gi_all[:, H3:2 * H3].reshape(T, TB, H3)

    def cell(gi, h, wh_ref, bh_ref):
        # only the recurrent half stays inside the serial loop
        gh = jnp.dot(h, wh_ref[...], preferred_element_type=jnp.float32) + bh_ref[...]
        r = jax.nn.sigmoid(gi[:, 0:Hp] + gh[:, 0:Hp])
        z = jax.nn.sigmoid(gi[:, Hp:2 * Hp] + gh[:, Hp:2 * Hp])
        n = jnp.tanh(gi[:, 2 * Hp:3 * Hp] + r * gh[:, 2 * Hp:3 * Hp])
        return (1.0 - z) * n + z * h

    def body(t, carry):
        h_f, h_r, p_f, p_r = carry
        tr = T - 1 - t
        # fused bidirectional step: the two independent chains interleave (ILP)
        h_f = cell(gif_ref[t], h_f, whf_ref, bhf_ref)
        h_r = cell(gir_ref[tr], h_r, whr_ref, bhr_ref)
        outf_ref[t] = h_f                       # lane-dense full-tile stores
        outr_ref[tr] = h_r
        # incremental masked mean-pool accumulation
        tf = lax.convert_element_type(t, jnp.float32)
        trf = lax.convert_element_type(tr, jnp.float32)
        p_f = p_f + h_f * (tf < lenb).astype(jnp.float32)
        p_r = p_r + h_r * (trf < lenb).astype(jnp.float32)
        return h_f, h_r, p_f, p_r

    zero = jnp.zeros((TB, Hp), jnp.float32)
    unroll = T if T <= 8 else 4
    _, _, p_f, p_r = lax.fori_loop(0, T, body, (h0, h0, zero, zero), unroll=unroll)

    inv = pl.reciprocal(jnp.maximum(lenb, 1.0), approx=True)          # EUP slot
    poolf_ref[...] = p_f * inv
    poolr_ref[...] = p_r * inv


# ----------------------------------------------------------------------------
# pallas_call wrapper: B-tiled parallel grid, resident weights.
# ----------------------------------------------------------------------------
def batch_gru_pallas(hpad_t, lenf, packed, *, tb=8):
    """hpad_t: [T, B_pad, Hp] time-major padded node states; lenf: [B_pad, 1]."""
    T, B_pad, Hp = hpad_t.shape
    assert B_pad % tb == 0 and Hp % 128 == 0
    nb = B_pad // tb
    bias_p, wi_cat, bi_cat, whf_p, bhf_p, whr_p, bhr_p = packed

    grid_spec = pltpu.PrefetchScalarGridSpec(
        num_scalar_prefetch=0,
        grid=(nb,),
        in_specs=[
            pl.BlockSpec((T, tb, Hp), lambda i: (0, i, 0)),     # hpad (time-major)
            pl.BlockSpec((tb, 1), lambda i: (i, 0)),            # graph lengths
            pl.BlockSpec((1, Hp), lambda i: (0, 0)),            # bias (resident)
            pl.BlockSpec((Hp, 6 * Hp), lambda i: (0, 0)),       # W_ih fwd|rev
            pl.BlockSpec((1, 6 * Hp), lambda i: (0, 0)),        # b_ih fwd|rev
            pl.BlockSpec((Hp, 3 * Hp), lambda i: (0, 0)),       # W_hh fwd
            pl.BlockSpec((1, 3 * Hp), lambda i: (0, 0)),        # b_hh fwd
            pl.BlockSpec((Hp, 3 * Hp), lambda i: (0, 0)),       # W_hh rev
            pl.BlockSpec((1, 3 * Hp), lambda i: (0, 0)),        # b_hh rev
        ],
        out_specs=(
            pl.BlockSpec((T, tb, Hp), lambda i: (0, i, 0)),     # out fwd
            pl.BlockSpec((T, tb, Hp), lambda i: (0, i, 0)),     # out rev
            pl.BlockSpec((tb, Hp), lambda i: (i, 0)),           # pooled fwd
            pl.BlockSpec((tb, Hp), lambda i: (i, 0)),           # pooled rev
        ),
        scratch_shapes=[
            pltpu.VMEM((T, tb, 3 * Hp), jnp.float32),           # fwd input gates
            pltpu.VMEM((T, tb, 3 * Hp), jnp.float32),           # rev input gates
        ],
    )
    out_shape = (
        jax.ShapeDtypeStruct((T, B_pad, Hp), jnp.float32),
        jax.ShapeDtypeStruct((T, B_pad, Hp), jnp.float32),
        jax.ShapeDtypeStruct((B_pad, Hp), jnp.float32),
        jax.ShapeDtypeStruct((B_pad, Hp), jnp.float32),
    )
    return pl.pallas_call(
        bigru_kernel,
        out_shape=out_shape,
        grid_spec=grid_spec,
        compiler_params=pltpu.CompilerParams(
            dimension_semantics=("parallel",)),     # graph blocks shard across TCs
    )(hpad_t, lenf, bias_p, wi_cat, bi_cat, whf_p, bhf_p, whr_p, bhr_p)


# ----------------------------------------------------------------------------
# Parameter packing: transpose, pad each gate to Hp lanes, concat directions.
# PyTorch gate order (r, z, n) is preserved.
# ----------------------------------------------------------------------------
def pack_gru_params(bias, gru_params, H, Hp):
    (wif, whf, bif, bhf, wir, whr, bir, bhr) = gru_params
    pad = Hp - H

    def pad_w(w):            # [3H, H] -> [Hp, 3Hp] (transposed, gate-aligned)
        wt = w.T             # [H, 3H]
        gates = [jnp.pad(wt[:, g * H:(g + 1) * H], ((0, pad), (0, pad)))
                 for g in range(3)]
        return jnp.concatenate(gates, axis=1)

    def pad_b(b):            # [3H] -> [1, 3Hp]
        gates = [jnp.pad(b[g * H:(g + 1) * H], (0, pad)) for g in range(3)]
        return jnp.concatenate(gates, axis=0)[None, :]

    bias_p = jnp.pad(bias, (0, pad))[None, :]                        # [1, Hp]
    wi_cat = jnp.concatenate([pad_w(wif), pad_w(wir)], axis=1)       # [Hp, 6Hp]
    bi_cat = jnp.concatenate([pad_b(bif), pad_b(bir)], axis=1)       # [1, 6Hp]
    return (bias_p, wi_cat, bi_cat, pad_w(whf), pad_b(bhf), pad_w(whr), pad_b(bhr))


# ----------------------------------------------------------------------------
# Glue mirroring BatchGRU.forward: one scatter in, one gather out.
# Returns (new node features [N, 2H], dgl.mean_nodes result [B, 2H]).
# ----------------------------------------------------------------------------
def batch_gru_forward(h_nodes, batch_num_nodes, bias, gru_params, *, tb=8):
    nums = np.asarray(batch_num_nodes, np.int64)
    assert np.all(nums > 0)
    B = int(nums.shape[0])
    N = int(nums.sum())
    T = int(nums.max())
    H = int(h_nodes.shape[1])
    Hp = _round_up(H, 128)
    B_pad = _round_up(B, tb)

    # static scatter/gather indices into the time-major padded layout [T, B_pad]
    starts = np.concatenate([[0], np.cumsum(nums)[:-1]])
    graph_id = np.repeat(np.arange(B), nums)                    # [N]
    within = np.arange(N) - starts[graph_id]                    # [N]
    pos = jnp.asarray(within * B_pad + graph_id, jnp.int32)     # [N]

    h_p = jnp.pad(h_nodes.astype(jnp.float32), ((0, 0), (0, Hp - H)))
    hpad_t = jnp.zeros((T * B_pad, Hp), jnp.float32).at[pos].set(h_p)
    hpad_t = hpad_t.reshape(T, B_pad, Hp)                       # time-major

    lenf = jnp.asarray(np.pad(nums.astype(np.float32), (0, B_pad - B))[:, None])

    packed = pack_gru_params(bias, gru_params, H, Hp)
    out_f, out_r, pool_f, pool_r = batch_gru_pallas(hpad_t, lenf, packed, tb=tb)

    out2 = jnp.concatenate([out_f[..., :H], out_r[..., :H]], axis=-1)     # [T,B_pad,2H]
    node_out = out2.reshape(T * B_pad, 2 * H)[pos]                        # [N, 2H]
    pooled = jnp.concatenate([pool_f[:B, :H], pool_r[:B, :H]], axis=-1)   # [B, 2H]
    return node_out, pooled


# ----------------------------------------------------------------------------
# Pure-JAX reference (same math) for a sanity check.
# ----------------------------------------------------------------------------
def _gru_dir_ref(msg, h0, Wi, Wh, bi, bh, reverse):
    B, T, H = msg.shape
    hp = jax.lax.Precision.HIGHEST
    h = h0
    outs = [None] * T
    ts = range(T - 1, -1, -1) if reverse else range(T)
    for t in ts:
        x = msg[:, t, :]
        gi = jnp.matmul(x, Wi.T, precision=hp) + bi
        gh = jnp.matmul(h, Wh.T, precision=hp) + bh
        r = jax.nn.sigmoid(gi[:, :H] + gh[:, :H])
        z = jax.nn.sigmoid(gi[:, H:2 * H] + gh[:, H:2 * H])
        n = jnp.tanh(gi[:, 2 * H:] + r * gh[:, 2 * H:])
        h = (1.0 - z) * n + z * h
        outs[t] = h
    return jnp.stack(outs, axis=1)


def reference_forward(h_nodes, batch_num_nodes, bias, gru_params):
    nums = list(batch_num_nodes)
    T = max(nums)
    H = h_nodes.shape[1]
    starts = np.concatenate([[0], np.cumsum(nums)[:-1]]).astype(int)
    (wif, whf, bif, bhf, wir, whr, bir, bhr) = gru_params

    msg_l, h0_l = [], []
    for s, n in zip(starts, nums):
        cur_h = h_nodes[s:s + n]
        cur_m = jnp.maximum(cur_h + bias[None, :], 0.0)
        h0_l.append(jnp.max(cur_h, axis=0))
        msg_l.append(jnp.pad(cur_m, ((0, T - n), (0, 0))))
    msg = jnp.stack(msg_l, 0)
    h0 = jnp.stack(h0_l, 0)

    fwd = _gru_dir_ref(msg, h0, wif, whf, bif, bhf, reverse=False)
    bwd = _gru_dir_ref(msg, h0, wir, whr, bir, bhr, reverse=True)
    out = jnp.concatenate([fwd, bwd], axis=-1)                # [B, T, 2H]

    node_out = jnp.concatenate([out[i, :n, :] for i, n in enumerate(nums)], axis=0)
    means = jnp.stack([jnp.mean(out[i, :n, :], axis=0) for i, n in enumerate(nums)], 0)
    return node_out, means


# ----------------------------------------------------------------------------
if __name__ == "__main__":
    H = 32                       # hidden_features (small stand-in for 300)
    batch_num_nodes = [6, 8]     # two graphs; total nodes N = 14
    N = sum(batch_num_nodes)

    key = jax.random.PRNGKey(0)
    keys = jax.random.split(key, 11)
    k = 1.0 / math.sqrt(H)

    def u(kk, shape):
        return jax.random.uniform(kk, shape, jnp.float32, -k, k)

    bias = u(keys[0], (H,))                       # self.bias
    # nn.GRU(H, H, bidirectional=True) parameters, PyTorch gate order (r, z, n)
    wif = u(keys[1], (3 * H, H)); whf = u(keys[2], (3 * H, H))
    bif = u(keys[3], (3 * H,));   bhf = u(keys[4], (3 * H,))
    wir = u(keys[5], (3 * H, H)); whr = u(keys[6], (3 * H, H))
    bir = u(keys[7], (3 * H,));   bhr = u(keys[8], (3 * H,))
    gru_params = (wif, whf, bif, bhf, wir, whr, bir, bhr)

    h_nodes = jax.random.normal(keys[9], (N, H), jnp.float32)   # graphs.ndata['h']

    node_out, graph_means = batch_gru_forward(h_nodes, batch_num_nodes, bias, gru_params)
    node_out = jax.block_until_ready(node_out)
    graph_means = jax.block_until_ready(graph_means)

    ref_nodes, ref_means = reference_forward(h_nodes, batch_num_nodes, bias, gru_params)

    assert node_out.shape == (N, 2 * H)
    assert graph_means.shape == (len(batch_num_nodes), 2 * H)
    np.testing.assert_allclose(np.asarray(node_out), np.asarray(ref_nodes),
                               rtol=2e-3, atol=2e-3)
    np.testing.assert_allclose(np.asarray(graph_means), np.asarray(ref_means),
                               rtol=2e-3, atol=2e-3)
    print("KERNEL_OK")
</pallas_src>

<mosaic_0001>
module attributes {stable_mosaic.version = 11 : i64} {
  func.func @bigru_kernel(%arg0: i32, %arg1: memref<8x8x128xf32, #tpu.memory_space<vmem>>, %arg2: memref<8x1xf32, #tpu.memory_space<vmem>>, %arg3: memref<1x128xf32, #tpu.memory_space<vmem>>, %arg4: memref<128x768xf32, #tpu.memory_space<vmem>>, %arg5: memref<1x768xf32, #tpu.memory_space<vmem>>, %arg6: memref<128x384xf32, #tpu.memory_space<vmem>>, %arg7: memref<1x384xf32, #tpu.memory_space<vmem>>, %arg8: memref<128x384xf32, #tpu.memory_space<vmem>>, %arg9: memref<1x384xf32, #tpu.memory_space<vmem>>, %arg10: memref<8x8x128xf32, #tpu.memory_space<vmem>>, %arg11: memref<8x8x128xf32, #tpu.memory_space<vmem>>, %arg12: memref<8x128xf32, #tpu.memory_space<vmem>>, %arg13: memref<8x128xf32, #tpu.memory_space<vmem>>, %arg14: memref<8x8x384xf32, #tpu.memory_space<vmem>>, %arg15: memref<8x8x384xf32, #tpu.memory_space<vmem>>) attributes {dimension_semantics = [#tpu.dimension_semantics<parallel>], iteration_bounds = array<i64: 1>, scalar_prefetch = 0 : i64, scratch_operands = 2 : i64, tpu.core_type = #tpu.core_type<tc>, window_params = [{transform_indices = @transform_0, window_bounds = array<i64: 8, 8, 128>}, {transform_indices = @transform_1, window_bounds = array<i64: 8, 1>}, {pipeline_mode = #tpu.pipeline_mode<synchronous>, transform_indices = @transform_2, window_bounds = array<i64: 1, 128>}, {pipeline_mode = #tpu.pipeline_mode<synchronous>, transform_indices = @transform_3, window_bounds = array<i64: 128, 768>}, {pipeline_mode = #tpu.pipeline_mode<synchronous>, transform_indices = @transform_4, window_bounds = array<i64: 1, 768>}, {pipeline_mode = #tpu.pipeline_mode<synchronous>, transform_indices = @transform_5, window_bounds = array<i64: 128, 384>}, {pipeline_mode = #tpu.pipeline_mode<synchronous>, transform_indices = @transform_6, window_bounds = array<i64: 1, 384>}, {pipeline_mode = #tpu.pipeline_mode<synchronous>, transform_indices = @transform_7, window_bounds = array<i64: 128, 384>}, {pipeline_mode = #tpu.pipeline_mode<synchronous>, transform_indices = @transform_8, window_bounds = array<i64: 1, 384>}, {transform_indices = @transform_9, window_bounds = array<i64: 8, 8, 128>}, {transform_indices = @transform_10, window_bounds = array<i64: 8, 8, 128>}, {transform_indices = @transform_11, window_bounds = array<i64: 8, 128>}, {transform_indices = @transform_12, window_bounds = array<i64: 8, 128>}]} {
    %c0 = arith.constant 0 : index
    %c0_0 = arith.constant 0 : index
    %c0_1 = arith.constant 0 : index
    %0 = vector.load %arg1[%c0, %c0_0, %c0_1] : memref<8x8x128xf32, #tpu.memory_space<vmem>>, vector<8x8x128xf32>
    %c0_2 = arith.constant 0 : index
    %c0_3 = arith.constant 0 : index
    %1 = vector.load %arg2[%c0_2, %c0_3] : memref<8x1xf32, #tpu.memory_space<vmem>>, vector<8x1xf32>
    %c0_4 = arith.constant 0 : index
    %c0_5 = arith.constant 0 : index
    %2 = vector.load %arg3[%c0_4, %c0_5] : memref<1x128xf32, #tpu.memory_space<vmem>>, vector<1x128xf32>
    %3 = vector.shape_cast %2 : vector<1x128xf32> to vector<1x1x128xf32>
    %4 = tpu.iota {dimensions = array<i32: 0>} : vector<8x8x128xi32>
    %5 = arith.sitofp %4 : vector<8x8x128xi32> to vector<8x8x128xf32>
    %6 = vector.shape_cast %1 : vector<8x1xf32> to vector<1x8x1xf32>
    %7 = vector.broadcast %6 : vector<1x8x1xf32> to vector<8x8x128xf32>
    %8 = arith.cmpf olt, %5, %7 : vector<8x8x128xf32>
    %9 = arith.extui %8 : vector<8x8x128xi1> to vector<8x8x128xi32>
    %10 = arith.sitofp %9 : vector<8x8x128xi32> to vector<8x8x128xf32>
    %11 = vector.broadcast %3 : vector<1x1x128xf32> to vector<8x8x128xf32>
    %12 = arith.addf %0, %11 : vector<8x8x128xf32>
    %cst = arith.constant 0.000000e+00 : f32
    %13 = vector.broadcast %cst : f32 to vector<8x8x128xf32>
    %14 = arith.maximumf %12, %13 : vector<8x8x128xf32>
    %15 = arith.mulf %14, %10 : vector<8x8x128xf32>
    %cst_6 = arith.constant 0.000000e+00 : f32
    %16 = vector.broadcast %cst_6 : f32 to vector<8x8x128xf32>
    %17 = arith.cmpf ogt, %10, %16 : vector<8x8x128xf32>
    %cst_7 = arith.constant -1.000000e+09 : f32
    %18 = vector.broadcast %cst_7 : f32 to vector<8x8x128xf32>
    %19 = arith.select %17, %0, %18 : vector<8x8x128xi1>, vector<8x8x128xf32>
    %cst_8 = arith.constant dense<0xFF800000> : vector<8x128xf32>
    %20 = vector.multi_reduction <maximumf>, %19, %cst_8 [0] : vector<8x8x128xf32> to vector<8x128xf32>
    %21 = vector.shape_cast %15 : vector<8x8x128xf32> to vector<64x128xf32>
    %c0_9 = arith.constant 0 : index
    %c0_10 = arith.constant 0 : index
    %22 = vector.load %arg4[%c0_9, %c0_10] : memref<128x768xf32, #tpu.memory_space<vmem>>, vector<128x768xf32>
    %cst_11 = arith.constant dense<0.000000e+00> : vector<64x768xf32>
    %23 = tpu.matmul %21, %22, %cst_11 {dimension_numbers = #tpu.dot_dimension_numbers<[1], [0], [0], [1], [0, 0, 1, 1], [], []>} : vector<64x128xf32>, vector<128x768xf32>, vector<64x768xf32> -> vector<64x768xf32>
    %c0_12 = arith.constant 0 : index
    %c0_13 = arith.constant 0 : index
    %24 = vector.load %arg5[%c0_12, %c0_13] : memref<1x768xf32, #tpu.memory_space<vmem>>, vector<1x768xf32>
    %25 = vector.broadcast %24 : vector<1x768xf32> to vector<64x768xf32>
    %26 = arith.addf %23, %25 : vector<64x768xf32>
    %27 = vector.extract_strided_slice %26 {offsets = [0, 0], sizes = [64, 384], strides = [1, 1]} : vector<64x768xf32> to vector<64x384xf32>
    %28 = vector.shape_cast %27 : vector<64x384xf32> to vector<8x8x384xf32>
    %c0_14 = arith.constant 0 : index
    %c0_15 = arith.constant 0 : index
    %c0_16 = arith.constant 0 : index
    %29 = vector.load %arg14[%c0_14, %c0_15, %c0_16] : memref<8x8x384xf32, #tpu.memory_space<vmem>>, vector<8x8x384xf32>
    tpu.vector_store %arg14[%c0_14, %c0_15, %c0_16], %28 {strides = array<i32>} : memref<8x8x384xf32, #tpu.memory_space<vmem>>, vector<8x8x384xf32>,
    %30 = vector.extract_strided_slice %26 {offsets = [0, 384], sizes = [64, 384], strides = [1, 1]} : vector<64x768xf32> to vector<64x384xf32>
    %31 = vector.shape_cast %30 : vector<64x384xf32> to vector<8x8x384xf32>
    %c0_17 = arith.constant 0 : index
    %c0_18 = arith.constant 0 : index
    %c0_19 = arith.constant 0 : index
    %32 = vector.load %arg15[%c0_17, %c0_18, %c0_19] : memref<8x8x384xf32, #tpu.memory_space<vmem>>, vector<8x8x384xf32>
    tpu.vector_store %arg15[%c0_17, %c0_18, %c0_19], %31 {strides = array<i32>} : memref<8x8x384xf32, #tpu.memory_space<vmem>>, vector<8x8x384xf32>,
    %cst_20 = arith.constant 0.000000e+00 : f32
    %33 = vector.broadcast %cst_20 : f32 to vector<8x128xf32>
    %c0_i32 = arith.constant 0 : i32
    %c7_i32 = arith.constant 7 : i32
    %34 = arith.subi %c7_i32, %c0_i32 : i32
    %35 = arith.index_cast %c0_i32 : i32 to index
    %c0_21 = arith.constant 0 : index
    %c0_22 = arith.constant 0 : index
    %36 = vector.load %arg14[%35, %c0_21, %c0_22] : memref<8x8x384xf32, #tpu.memory_space<vmem>>, vector<1x8x384xf32>
    %37 = vector.shape_cast %36 : vector<1x8x384xf32> to vector<8x384xf32>
    %c0_23 = arith.constant 0 : index
    %c0_24 = arith.constant 0 : index
    %38 = vector.load %arg6[%c0_23, %c0_24] : memref<128x384xf32, #tpu.memory_space<vmem>>, vector<128x384xf32>
    %cst_25 = arith.constant dense<0.000000e+00> : vector<8x384xf32>
    %39 = tpu.matmul %20, %38, %cst_25 {dimension_numbers = #tpu.dot_dimension_numbers<[1], [0], [0], [1], [0, 0, 1, 1], [], []>} : vector<8x128xf32>, vector<128x384xf32>, vector<8x384xf32> -> vector<8x384xf32>
    %c0_26 = arith.constant 0 : index
    %c0_27 = arith.constant 0 : index
    %40 = vector.load %arg7[%c0_26, %c0_27] : memref<1x384xf32, #tpu.memory_space<vmem>>, vector<1x384xf32>
    %41 = vector.broadcast %40 : vector<1x384xf32> to vector<8x384xf32>
    %42 = arith.addf %39, %41 : vector<8x384xf32>
    %43 = vector.extract_strided_slice %37 {offsets = [0, 0], sizes = [8, 128], strides = [1, 1]} : vector<8x384xf32> to vector<8x128xf32>
    %44 = vector.extract_strided_slice %42 {offsets = [0, 0], sizes = [8, 128], strides = [1, 1]} : vector<8x384xf32> to vector<8x128xf32>
    %45 = arith.addf %43, %44 : vector<8x128xf32>
    %46 = arith.negf %45 : vector<8x128xf32>
    %47 = math.exp %46 : vector<8x128xf32>
    %cst_28 = arith.constant 1.000000e+00 : f32
    %48 = vector.broadcast %cst_28 : f32 to vector<8x128xf32>
    %49 = arith.addf %48, %47 : vector<8x128xf32>
    %50 = arith.divf %48, %49 : vector<8x128xf32>
    %51 = vector.extract_strided_slice %37 {offsets = [0, 128], sizes = [8, 128], strides = [1, 1]} : vector<8x384xf32> to vector<8x128xf32>
    %52 = vector.extract_strided_slice %42 {offsets = [0, 128], sizes = [8, 128], strides = [1, 1]} : vector<8x384xf32> to vector<8x128xf32>
    %53 = arith.addf %51, %52 : vector<8x128xf32>
    %54 = arith.negf %53 : vector<8x128xf32>
    %55 = math.exp %54 : vector<8x128xf32>
    %cst_29 = arith.constant 1.000000e+00 : f32
    %56 = vector.broadcast %cst_29 : f32 to vector<8x128xf32>
    %57 = arith.addf %56, %55 : vector<8x128xf32>
    %58 = arith.divf %56, %57 : vector<8x128xf32>
    %59 = vector.extract_strided_slice %37 {offsets = [0, 256], sizes = [8, 128], strides = [1, 1]} : vector<8x384xf32> to vector<8x128xf32>
    %60 = vector.extract_strided_slice %42 {offsets = [0, 256], sizes = [8, 128], strides = [1, 1]} : vector<8x384xf32> to vector<8x128xf32>
    %61 = arith.mulf %50, %60 : vector<8x128xf32>
    %62 = arith.addf %59, %61 : vector<8x128xf32>
    %63 = math.tanh %62 : vector<8x128xf32>
    %cst_30 = arith.constant 1.000000e+00 : f32
    %64 = vector.broadcast %cst_30 : f32 to vector<8x128xf32>
    %65 = arith.subf %64, %58 : vector<8x128xf32>
    %66 = arith.mulf %65, %63 : vector<8x128xf32>
    %67 = arith.mulf %58, %20 : vector<8x128xf32>
    %68 = arith.addf %66, %67 : vector<8x128xf32>
    %69 = arith.index_cast %34 : i32 to index
    %c0_31 = arith.constant 0 : index
    %c0_32 = arith.constant 0 : index
    %70 = vector.load %arg15[%69, %c0_31, %c0_32] : memref<8x8x384xf32, #tpu.memory_space<vmem>>, vector<1x8x384xf32>
    %71 = vector.shape_cast %70 : vector<1x8x384xf32> to vector<8x384xf32>
    %c0_33 = arith.constant 0 : index
    %c0_34 = arith.constant 0 : index
    %72 = vector.load %arg8[%c0_33, %c0_34] : memref<128x384xf32, #tpu.memory_space<vmem>>, vector<128x384xf32>
    %cst_35 = arith.constant dense<0.000000e+00> : vector<8x384xf32>
    %73 = tpu.matmul %20, %72, %cst_35 {dimension_numbers = #tpu.dot_dimension_numbers<[1], [0], [0], [1], [0, 0, 1, 1], [], []>} : vector<8x128xf32>, vector<128x384xf32>, vector<8x384xf32> -> vector<8x384xf32>
    %c0_36 = arith.constant 0 : index
    %c0_37 = arith.constant 0 : index
    %74 = vector.load %arg9[%c0_36, %c0_37] : memref<1x384xf32, #tpu.memory_space<vmem>>, vector<1x384xf32>
    %75 = vector.broadcast %74 : vector<1x384xf32> to vector<8x384xf32>
    %76 = arith.addf %73, %75 : vector<8x384xf32>
    %77 = vector.extract_strided_slice %71 {offsets = [0, 0], sizes = [8, 128], strides = [1, 1]} : vector<8x384xf32> to vector<8x128xf32>
    %78 = vector.extract_strided_slice %76 {offsets = [0, 0], sizes = [8, 128], strides = [1, 1]} : vector<8x384xf32> to vector<8x128xf32>
    %79 = arith.addf %77, %78 : vector<8x128xf32>
    %80 = arith.negf %79 : vector<8x128xf32>
    %81 = math.exp %80 : vector<8x128xf32>
    %cst_38 = arith.constant 1.000000e+00 : f32
    %82 = vector.broadcast %cst_38 : f32 to vector<8x128xf32>
    %83 = arith.addf %82, %81 : vector<8x128xf32>
    %84 = arith.divf %82, %83 : vector<8x128xf32>
    %85 = vector.extract_strided_slice %71 {offsets = [0, 128], sizes = [8, 128], strides = [1, 1]} : vector<8x384xf32> to vector<8x128xf32>
    %86 = vector.extract_strided_slice %76 {offsets = [0, 128], sizes = [8, 128], strides = [1, 1]} : vector<8x384xf32> to vector<8x128xf32>
    %87 = arith.addf %85, %86 : vector<8x128xf32>
    %88 = arith.negf %87 : vector<8x128xf32>
    %89 = math.exp %88 : vector<8x128xf32>
    %cst_39 = arith.constant 1.000000e+00 : f32
    %90 = vector.broadcast %cst_39 : f32 to vector<8x128xf32>
    %91 = arith.addf %90, %89 : vector<8x128xf32>
    %92 = arith.divf %90, %91 : vector<8x128xf32>
    %93 = vector.extract_strided_slice %71 {offsets = [0, 256], sizes = [8, 128], strides = [1, 1]} : vector<8x384xf32> to vector<8x128xf32>
    %94 = vector.extract_strided_slice %76 {offsets = [0, 256], sizes = [8, 128], strides = [1, 1]} : vector<8x384xf32> to vector<8x128xf32>
    %95 = arith.mulf %84, %94 : vector<8x128xf32>
    %96 = arith.addf %93, %95 : vector<8x128xf32>
    %97 = math.tanh %96 : vector<8x128xf32>
    %cst_40 = arith.constant 1.000000e+00 : f32
    %98 = vector.broadcast %cst_40 : f32 to vector<8x128xf32>
    %99 = arith.subf %98, %92 : vector<8x128xf32>
    %100 = arith.mulf %99, %97 : vector<8x128xf32>
    %101 = arith.mulf %92, %20 : vector<8x128xf32>
    %102 = arith.addf %100, %101 : vector<8x128xf32>
    %103 = arith.index_cast %c0_i32 : i32 to index
    %c0_41 = arith.constant 0 : index
    %c0_42 = arith.constant 0 : index
    %104 = vector.load %arg10[%103, %c0_41, %c0_42] : memref<8x8x128xf32, #tpu.memory_space<vmem>>, vector<1x8x128xf32>
    %105 = vector.shape_cast %104 : vector<1x8x128xf32> to vector<8x128xf32>
    %106 = vector.shape_cast %68 : vector<8x128xf32> to vector<1x8x128xf32>
    tpu.vector_store %arg10[%103, %c0_41, %c0_42], %106 {strides = array<i32>} : memref<8x8x128xf32, #tpu.memory_space<vmem>>, vector<1x8x128xf32>,
    %107 = arith.index_cast %34 : i32 to index
    %c0_43 = arith.constant 0 : index
    %c0_44 = arith.constant 0 : index
    %108 = vector.load %arg11[%107, %c0_43, %c0_44] : memref<8x8x128xf32, #tpu.memory_space<vmem>>, vector<1x8x128xf32>
    %109 = vector.shape_cast %108 : vector<1x8x128xf32> to vector<8x128xf32>
    %110 = vector.shape_cast %102 : vector<8x128xf32> to vector<1x8x128xf32>
    tpu.vector_store %arg11[%107, %c0_43, %c0_44], %110 {strides = array<i32>} : memref<8x8x128xf32, #tpu.memory_space<vmem>>, vector<1x8x128xf32>,
    %111 = arith.sitofp %c0_i32 : i32 to f32
    %112 = arith.sitofp %34 : i32 to f32
    %113 = vector.broadcast %111 : f32 to vector<8x1xf32>
    %114 = arith.cmpf olt, %113, %1 : vector<8x1xf32>
    %115 = arith.extui %114 : vector<8x1xi1> to vector<8x1xi32>
    %116 = arith.sitofp %115 : vector<8x1xi32> to vector<8x1xf32>
    %117 = vector.broadcast %116 : vector<8x1xf32> to vector<8x128xf32>
    %118 = arith.mulf %68, %117 : vector<8x128xf32>
    %119 = arith.addf %33, %118 : vector<8x128xf32>
    %120 = vector.broadcast %112 : f32 to vector<8x1xf32>
    %121 = arith.cmpf olt, %120, %1 : vector<8x1xf32>
    %122 = arith.extui %121 : vector<8x1xi1> to vector<8x1xi32>
    %123 = arith.sitofp %122 : vector<8x1xi32> to vector<8x1xf32>
    %124 = vector.broadcast %123 : vector<8x1xf32> to vector<8x128xf32>
    %125 = arith.mulf %102, %124 : vector<8x128xf32>
    %126 = arith.addf %33, %125 : vector<8x128xf32>
    %c1_i32 = arith.constant 1 : i32
    %c7_i32_45 = arith.constant 7 : i32
    %127 = arith.subi %c7_i32_45, %c1_i32 : i32
    %128 = arith.index_cast %c1_i32 : i32 to index
    %c0_46 = arith.constant 0 : index
    %c0_47 = arith.constant 0 : index
    %129 = vector.load %arg14[%128, %c0_46, %c0_47] : memref<8x8x384xf32, #tpu.memory_space<vmem>>, vector<1x8x384xf32>
    %130 = vector.shape_cast %129 : vector<1x8x384xf32> to vector<8x384xf32>
    %c0_48 = arith.constant 0 : index
    %c0_49 = arith.constant 0 : index
    %131 = vector.load %arg6[%c0_48, %c0_49] : memref<128x384xf32, #tpu.memory_space<vmem>>, vector<128x384xf32>
    %cst_50 = arith.constant dense<0.000000e+00> : vector<8x384xf32>
    %132 = tpu.matmul %68, %131, %cst_50 {dimension_numbers = #tpu.dot_dimension_numbers<[1], [0], [0], [1], [0, 0, 1, 1], [], []>} : vector<8x128xf32>, vector<128x384xf32>, vector<8x384xf32> -> vector<8x384xf32>
    %c0_51 = arith.constant 0 : index
    %c0_52 = arith.constant 0 : index
    %133 = vector.load %arg7[%c0_51, %c0_52] : memref<1x384xf32, #tpu.memory_space<vmem>>, vector<1x384xf32>
    %134 = vector.broadcast %133 : vector<1x384xf32> to vector<8x384xf32>
    %135 = arith.addf %132, %134 : vector<8x384xf32>
    %136 = vector.extract_strided_slice %130 {offsets = [0, 0], sizes = [8, 128], strides = [1, 1]} : vector<8x384xf32> to vector<8x128xf32>
    %137 = vector.extract_strided_slice %135 {offsets = [0, 0], sizes = [8, 128], strides = [1, 1]} : vector<8x384xf32> to vector<8x128xf32>
    %138 = arith.addf %136, %137 : vector<8x128xf32>
    %139 = arith.negf %138 : vector<8x128xf32>
    %140 = math.exp %139 : vector<8x128xf32>
    %cst_53 = arith.constant 1.000000e+00 : f32
    %141 = vector.broadcast %cst_53 : f32 to vector<8x128xf32>
    %142 = arith.addf %141, %140 : vector<8x128xf32>
    %143 = arith.divf %141, %142 : vector<8x128xf32>
    %144 = vector.extract_strided_slice %130 {offsets = [0, 128], sizes = [8, 128], strides = [1, 1]} : vector<8x384xf32> to vector<8x128xf32>
    %145 = vector.extract_strided_slice %135 {offsets = [0, 128], sizes = [8, 128], strides = [1, 1]} : vector<8x384xf32> to vector<8x128xf32>
    %146 = arith.addf %144, %145 : vector<8x128xf32>
    %147 = arith.negf %146 : vector<8x128xf32>
    %148 = math.exp %147 : vector<8x128xf32>
    %cst_54 = arith.constant 1.000000e+00 : f32
    %149 = vector.broadcast %cst_54 : f32 to vector<8x128xf32>
    %150 = arith.addf %149, %148 : vector<8x128xf32>
    %151 = arith.divf %149, %150 : vector<8x128xf32>
    %152 = vector.extract_strided_slice %130 {offsets = [0, 256], sizes = [8, 128], strides = [1, 1]} : vector<8x384xf32> to vector<8x128xf32>
    %153 = vector.extract_strided_slice %135 {offsets = [0, 256], sizes = [8, 128], strides = [1, 1]} : vector<8x384xf32> to vector<8x128xf32>
    %154 = arith.mulf %143, %153 : vector<8x128xf32>
    %155 = arith.addf %152, %154 : vector<8x128xf32>
    %156 = math.tanh %155 : vector<8x128xf32>
    %cst_55 = arith.constant 1.000000e+00 : f32
    %157 = vector.broadcast %cst_55 : f32 to vector<8x128xf32>
    %158 = arith.subf %157, %151 : vector<8x128xf32>
    %159 = arith.mulf %158, %156 : vector<8x128xf32>
    %160 = arith.mulf %151, %68 : vector<8x128xf32>
    %161 = arith.addf %159, %160 : vector<8x128xf32>
    %162 = arith.index_cast %127 : i32 to index
    %c0_56 = arith.constant 0 : index
    %c0_57 = arith.constant 0 : index
    %163 = vector.load %arg15[%162, %c0_56, %c0_57] : memref<8x8x384xf32, #tpu.memory_space<vmem>>, vector<1x8x384xf32>
    %164 = vector.shape_cast %163 : vector<1x8x384xf32> to vector<8x384xf32>
    %c0_58 = arith.constant 0 : index
    %c0_59 = arith.constant 0 : index
    %165 = vector.load %arg8[%c0_58, %c0_59] : memref<128x384xf32, #tpu.memory_space<vmem>>, vector<128x384xf32>
    %cst_60 = arith.constant dense<0.000000e+00> : vector<8x384xf32>
    %166 = tpu.matmul %102, %165, %cst_60 {dimension_numbers = #tpu.dot_dimension_numbers<[1], [0], [0], [1], [0, 0, 1, 1], [], []>} : vector<8x128xf32>, vector<128x384xf32>, vector<8x384xf32> -> vector<8x384xf32>
    %c0_61 = arith.constant 0 : index
    %c0_62 = arith.constant 0 : index
    %167 = vector.load %arg9[%c0_61, %c0_62] : memref<1x384xf32, #tpu.memory_space<vmem>>, vector<1x384xf32>
    %168 = vector.broadcast %167 : vector<1x384xf32> to vector<8x384xf32>
    %169 = arith.addf %166, %168 : vector<8x384xf32>
    %170 = vector.extract_strided_slice %164 {offsets = [0, 0], sizes = [8, 128], strides = [1, 1]} : vector<8x384xf32> to vector<8x128xf32>
    %171 = vector.extract_strided_slice %169 {offsets = [0, 0], sizes = [8, 128], strides = [1, 1]} : vector<8x384xf32> to vector<8x128xf32>
    %172 = arith.addf %170, %171 : vector<8x128xf32>
    %173 = arith.negf %172 : vector<8x128xf32>
    %174 = math.exp %173 : vector<8x128xf32>
    %cst_63 = arith.constant 1.000000e+00 : f32
    %175 = vector.broadcast %cst_63 : f32 to vector<8x128xf32>
    %176 = arith.addf %175, %174 : vector<8x128xf32>
    %177 = arith.divf %175, %176 : vector<8x128xf32>
    %178 = vector.extract_strided_slice %164 {offsets = [0, 128], sizes = [8, 128], strides = [1, 1]} : vector<8x384xf32> to vector<8x128xf32>
    %179 = vector.extract_strided_slice %169 {offsets = [0, 128], sizes = [8, 128], strides = [1, 1]} : vector<8x384xf32> to vector<8x128xf32>
    %180 = arith.addf %178, %179 : vector<8x128xf32>
    %181 = arith.negf %180 : vector<8x128xf32>
    %182 = math.exp %181 : vector<8x128xf32>
    %cst_64 = arith.constant 1.000000e+00 : f32
    %183 = vector.broadcast %cst_64 : f32 to vector<8x128xf32>
    %184 = arith.addf %183, %182 : vector<8x128xf32>
    %185 = arith.divf %183, %184 : vector<8x128xf32>
    %186 = vector.extract_strided_slice %164 {offsets = [0, 256], sizes = [8, 128], strides = [1, 1]} : vector<8x384xf32> to vector<8x128xf32>
    %187 = vector.extract_strided_slice %169 {offsets = [0, 256], sizes = [8, 128], strides = [1, 1]} : vector<8x384xf32> to vector<8x128xf32>
    %188 = arith.mulf %177, %187 : vector<8x128xf32>
    %189 = arith.addf %186, %188 : vector<8x128xf32>
    %190 = math.tanh %189 : vector<8x128xf32>
    %cst_65 = arith.constant 1.000000e+00 : f32
    %191 = vector.broadcast %cst_65 : f32 to vector<8x128xf32>
    %192 = arith.subf %191, %185 : vector<8x128xf32>
    %193 = arith.mulf %192, %190 : vector<8x128xf32>
    %194 = arith.mulf %185, %102 : vector<8x128xf32>
    %195 = arith.addf %193, %194 : vector<8x128xf32>
    %196 = arith.index_cast %c1_i32 : i32 to index
    %c0_66 = arith.constant 0 : index
    %c0_67 = arith.constant 0 : index
    %197 = vector.load %arg10[%196, %c0_66, %c0_67] : memref<8x8x128xf32, #tpu.memory_space<vmem>>, vector<1x8x128xf32>
    %198 = vector.shape_cast %197 : vector<1x8x128xf32> to vector<8x128xf32>
    %199 = vector.shape_cast %161 : vector<8x128xf32> to vector<1x8x128xf32>
    tpu.vector_store %arg10[%196, %c0_66, %c0_67], %199 {strides = array<i32>} : memref<8x8x128xf32, #tpu.memory_space<vmem>>, vector<1x8x128xf32>,
    %200 = arith.index_cast %127 : i32 to index
    %c0_68 = arith.constant 0 : index
    %c0_69 = arith.constant 0 : index
    %201 = vector.load %arg11[%200, %c0_68, %c0_69] : memref<8x8x128xf32, #tpu.memory_space<vmem>>, vector<1x8x128xf32>
    %202 = vector.shape_cast %201 : vector<1x8x128xf32> to vector<8x128xf32>
    %203 = vector.shape_cast %195 : vector<8x128xf32> to vector<1x8x128xf32>
    tpu.vector_store %arg11[%200, %c0_68, %c0_69], %203 {strides = array<i32>} : memref<8x8x128xf32, #tpu.memory_space<vmem>>, vector<1x8x128xf32>,
    %204 = arith.sitofp %c1_i32 : i32 to f32
    %205 = arith.sitofp %127 : i32 to f32
    %206 = vector.broadcast %204 : f32 to vector<8x1xf32>
    %207 = arith.cmpf olt, %206, %1 : vector<8x1xf32>
    %208 = arith.extui %207 : vector<8x1xi1> to vector<8x1xi32>
    %209 = arith.sitofp %208 : vector<8x1xi32> to vector<8x1xf32>
    %210 = vector.broadcast %209 : vector<8x1xf32> to vector<8x128xf32>
    %211 = arith.mulf %161, %210 : vector<8x128xf32>
    %212 = arith.addf %119, %211 : vector<8x128xf32>
    %213 = vector.broadcast %205 : f32 to vector<8x1xf32>
    %214 = arith.cmpf olt, %213, %1 : vector<8x1xf32>
    %215 = arith.extui %214 : vector<8x1xi1> to vector<8x1xi32>
    %216 = arith.sitofp %215 : vector<8x1xi32> to vector<8x1xf32>
    %217 = vector.broadcast %216 : vector<8x1xf32> to vector<8x128xf32>
    %218 = arith.mulf %195, %217 : vector<8x128xf32>
    %219 = arith.addf %126, %218 : vector<8x128xf32>
    %c2_i32 = arith.constant 2 : i32
    %c7_i32_70 = arith.constant 7 : i32
    %220 = arith.subi %c7_i32_70, %c2_i32 : i32
    %221 = arith.index_cast %c2_i32 : i32 to index
    %c0_71 = arith.constant 0 : index
    %c0_72 = arith.constant 0 : index
    %222 = vector.load %arg14[%221, %c0_71, %c0_72] : memref<8x8x384xf32, #tpu.memory_space<vmem>>, vector<1x8x384xf32>
    %223 = vector.shape_cast %222 : vector<1x8x384xf32> to vector<8x384xf32>
    %c0_73 = arith.constant 0 : index
    %c0_74 = arith.constant 0 : index
    %224 = vector.load %arg6[%c0_73, %c0_74] : memref<128x384xf32, #tpu.memory_space<vmem>>, vector<128x384xf32>
    %cst_75 = arith.constant dense<0.000000e+00> : vector<8x384xf32>
    %225 = tpu.matmul %161, %224, %cst_75 {dimension_numbers = #tpu.dot_dimension_numbers<[1], [0], [0], [1], [0, 0, 1, 1], [], []>} : vector<8x128xf32>, vector<128x384xf32>, vector<8x384xf32> -> vector<8x384xf32>
    %c0_76 = arith.constant 0 : index
    %c0_77 = arith.constant 0 : index
    %226 = vector.load %arg7[%c0_76, %c0_77] : memref<1x384xf32, #tpu.memory_space<vmem>>, vector<1x384xf32>
    %227 = vector.broadcast %226 : vector<1x384xf32> to vector<8x384xf32>
    %228 = arith.addf %225, %227 : vector<8x384xf32>
    %229 = vector.extract_strided_slice %223 {offsets = [0, 0], sizes = [8, 128], strides = [1, 1]} : vector<8x384xf32> to vector<8x128xf32>
    %230 = vector.extract_strided_slice %228 {offsets = [0, 0], sizes = [8, 128], strides = [1, 1]} : vector<8x384xf32> to vector<8x128xf32>
    %231 = arith.addf %229, %230 : vector<8x128xf32>
    %232 = arith.negf %231 : vector<8x128xf32>
    %233 = math.exp %232 : vector<8x128xf32>
    %cst_78 = arith.constant 1.000000e+00 : f32
    %234 = vector.broadcast %cst_78 : f32 to vector<8x128xf32>
    %235 = arith.addf %234, %233 : vector<8x128xf32>
    %236 = arith.divf %234, %235 : vector<8x128xf32>
    %237 = vector.extract_strided_slice %223 {offsets = [0, 128], sizes = [8, 128], strides = [1, 1]} : vector<8x384xf32> to vector<8x128xf32>
    %238 = vector.extract_strided_slice %228 {offsets = [0, 128], sizes = [8, 128], strides = [1, 1]} : vector<8x384xf32> to vector<8x128xf32>
    %239 = arith.addf %237, %238 : vector<8x128xf32>
    %240 = arith.negf %239 : vector<8x128xf32>
    %241 = math.exp %240 : vector<8x128xf32>
    %cst_79 = arith.constant 1.000000e+00 : f32
    %242 = vector.broadcast %cst_79 : f32 to vector<8x128xf32>
    %243 = arith.addf %242, %241 : vector<8x128xf32>
    %244 = arith.divf %242, %243 : vector<8x128xf32>
    %245 = vector.extract_strided_slice %223 {offsets = [0, 256], sizes = [8, 128], strides = [1, 1]} : vector<8x384xf32> to vector<8x128xf32>
    %246 = vector.extract_strided_slice %228 {offsets = [0, 256], sizes = [8, 128], strides = [1, 1]} : vector<8x384xf32> to vector<8x128xf32>
    %247 = arith.mulf %236, %246 : vector<8x128xf32>
    %248 = arith.addf %245, %247 : vector<8x128xf32>
    %249 = math.tanh %248 : vector<8x128xf32>
    %cst_80 = arith.constant 1.000000e+00 : f32
    %250 = vector.broadcast %cst_80 : f32 to vector<8x128xf32>
    %251 = arith.subf %250, %244 : vector<8x128xf32>
    %252 = arith.mulf %251, %249 : vector<8x128xf32>
    %253 = arith.mulf %244, %161 : vector<8x128xf32>
    %254 = arith.addf %252, %253 : vector<8x128xf32>
    %255 = arith.index_cast %220 : i32 to index
    %c0_81 = arith.constant 0 : index
    %c0_82 = arith.constant 0 : index
    %256 = vector.load %arg15[%255, %c0_81, %c0_82] : memref<8x8x384xf32, #tpu.memory_space<vmem>>, vector<1x8x384xf32>
    %257 = vector.shape_cast %256 : vector<1x8x384xf32> to vector<8x384xf32>
    %c0_83 = arith.constant 0 : index
    %c0_84 = arith.constant 0 : index
    %258 = vector.load %arg8[%c0_83, %c0_84] : memref<128x384xf32, #tpu.memory_space<vmem>>, vector<128x384xf32>
    %cst_85 = arith.constant dense<0.000000e+00> : vector<8x384xf32>
    %259 = tpu.matmul %195, %258, %cst_85 {dimension_numbers = #tpu.dot_dimension_numbers<[1], [0], [0], [1], [0, 0, 1, 1], [], []>} : vector<8x128xf32>, vector<128x384xf32>, vector<8x384xf32> -> vector<8x384xf32>
    %c0_86 = arith.constant 0 : index
    %c0_87 = arith.constant 0 : index
    %260 = vector.load %arg9[%c0_86, %c0_87] : memref<1x384xf32, #tpu.memory_space<vmem>>, vector<1x384xf32>
    %261 = vector.broadcast %260 : vector<1x384xf32> to vector<8x384xf32>
    %262 = arith.addf %259, %261 : vector<8x384xf32>
    %263 = vector.extract_strided_slice %257 {offsets = [0, 0], sizes = [8, 128], strides = [1, 1]} : vector<8x384xf32> to vector<8x128xf32>
    %264 = vector.extract_strided_slice %262 {offsets = [0, 0], sizes = [8, 128], strides = [1, 1]} : vector<8x384xf32> to vector<8x128xf32>
    %265 = arith.addf %263, %264 : vector<8x128xf32>
    %266 = arith.negf %265 : vector<8x128xf32>
    %267 = math.exp %266 : vector<8x128xf32>
    %cst_88 = arith.constant 1.000000e+00 : f32
    %268 = vector.broadcast %cst_88 : f32 to vector<8x128xf32>
    %269 = arith.addf %268, %267 : vector<8x128xf32>
    %270 = arith.divf %268, %269 : vector<8x128xf32>
    %271 = vector.extract_strided_slice %257 {offsets = [0, 128], sizes = [8, 128], strides = [1, 1]} : vector<8x384xf32> to vector<8x128xf32>
    %272 = vector.extract_strided_slice %262 {offsets = [0, 128], sizes = [8, 128], strides = [1, 1]} : vector<8x384xf32> to vector<8x128xf32>
    %273 = arith.addf %271, %272 : vector<8x128xf32>
    %274 = arith.negf %273 : vector<8x128xf32>
    %275 = math.exp %274 : vector<8x128xf32>
    %cst_89 = arith.constant 1.000000e+00 : f32
    %276 = vector.broadcast %cst_89 : f32 to vector<8x128xf32>
    %277 = arith.addf %276, %275 : vector<8x128xf32>
    %278 = arith.divf %276, %277 : vector<8x128xf32>
    %279 = vector.extract_strided_slice %257 {offsets = [0, 256], sizes = [8, 128], strides = [1, 1]} : vector<8x384xf32> to vector<8x128xf32>
    %280 = vector.extract_strided_slice %262 {offsets = [0, 256], sizes = [8, 128], strides = [1, 1]} : vector<8x384xf32> to vector<8x128xf32>
    %281 = arith.mulf %270, %280 : vector<8x128xf32>
    %282 = arith.addf %279, %281 : vector<8x128xf32>
    %283 = math.tanh %282 : vector<8x128xf32>
    %cst_90 = arith.constant 1.000000e+00 : f32
    %284 = vector.broadcast %cst_90 : f32 to vector<8x128xf32>
    %285 = arith.subf %284, %278 : vector<8x128xf32>
    %286 = arith.mulf %285, %283 : vector<8x128xf32>
    %287 = arith.mulf %278, %195 : vector<8x128xf32>
    %288 = arith.addf %286, %287 : vector<8x128xf32>
    %289 = arith.index_cast %c2_i32 : i32 to index
    %c0_91 = arith.constant 0 : index
    %c0_92 = arith.constant 0 : index
    %290 = vector.load %arg10[%289, %c0_91, %c0_92] : memref<8x8x128xf32, #tpu.memory_space<vmem>>, vector<1x8x128xf32>
    %291 = vector.shape_cast %290 : vector<1x8x128xf32> to vector<8x128xf32>
    %292 = vector.shape_cast %254 : vector<8x128xf32> to vector<1x8x128xf32>
    tpu.vector_store %arg10[%289, %c0_91, %c0_92], %292 {strides = array<i32>} : memref<8x8x128xf32, #tpu.memory_space<vmem>>, vector<1x8x128xf32>,
    %293 = arith.index_cast %220 : i32 to index
    %c0_93 = arith.constant 0 : index
    %c0_94 = arith.constant 0 : index
    %294 = vector.load %arg11[%293, %c0_93, %c0_94] : memref<8x8x128xf32, #tpu.memory_space<vmem>>, vector<1x8x128xf32>
    %295 = vector.shape_cast %294 : vector<1x8x128xf32> to vector<8x128xf32>
    %296 = vector.shape_cast %288 : vector<8x128xf32> to vector<1x8x128xf32>
    tpu.vector_store %arg11[%293, %c0_93, %c0_94], %296 {strides = array<i32>} : memref<8x8x128xf32, #tpu.memory_space<vmem>>, vector<1x8x128xf32>,
    %297 = arith.sitofp %c2_i32 : i32 to f32
    %298 = arith.sitofp %220 : i32 to f32
    %299 = vector.broadcast %297 : f32 to vector<8x1xf32>
    %300 = arith.cmpf olt, %299, %1 : vector<8x1xf32>
    %301 = arith.extui %300 : vector<8x1xi1> to vector<8x1xi32>
    %302 = arith.sitofp %301 : vector<8x1xi32> to vector<8x1xf32>
    %303 = vector.broadcast %302 : vector<8x1xf32> to vector<8x128xf32>
    %304 = arith.mulf %254, %303 : vector<8x128xf32>
    %305 = arith.addf %212, %304 : vector<8x128xf32>
    %306 = vector.broadcast %298 : f32 to vector<8x1xf32>
    %307 = arith.cmpf olt, %306, %1 : vector<8x1xf32>
    %308 = arith.extui %307 : vector<8x1xi1> to vector<8x1xi32>
    %309 = arith.sitofp %308 : vector<8x1xi32> to vector<8x1xf32>
    %310 = vector.broadcast %309 : vector<8x1xf32> to vector<8x128xf32>
    %311 = arith.mulf %288, %310 : vector<8x128xf32>
    %312 = arith.addf %219, %311 : vector<8x128xf32>
    %c3_i32 = arith.constant 3 : i32
    %c7_i32_95 = arith.constant 7 : i32
    %313 = arith.subi %c7_i32_95, %c3_i32 : i32
    %314 = arith.index_cast %c3_i32 : i32 to index
    %c0_96 = arith.constant 0 : index
    %c0_97 = arith.constant 0 : index
    %315 = vector.load %arg14[%314, %c0_96, %c0_97] : memref<8x8x384xf32, #tpu.memory_space<vmem>>, vector<1x8x384xf32>
    %316 = vector.shape_cast %315 : vector<1x8x384xf32> to vector<8x384xf32>
    %c0_98 = arith.constant 0 : index
    %c0_99 = arith.constant 0 : index
    %317 = vector.load %arg6[%c0_98, %c0_99] : memref<128x384xf32, #tpu.memory_space<vmem>>, vector<128x384xf32>
    %cst_100 = arith.constant dense<0.000000e+00> : vector<8x384xf32>
    %318 = tpu.matmul %254, %317, %cst_100 {dimension_numbers = #tpu.dot_dimension_numbers<[1], [0], [0], [1], [0, 0, 1, 1], [], []>} : vector<8x128xf32>, vector<128x384xf32>, vector<8x384xf32> -> vector<8x384xf32>
    %c0_101 = arith.constant 0 : index
    %c0_102 = arith.constant 0 : index
    %319 = vector.load %arg7[%c0_101, %c0_102] : memref<1x384xf32, #tpu.memory_space<vmem>>, vector<1x384xf32>
    %320 = vector.broadcast %319 : vector<1x384xf32> to vector<8x384xf32>
    %321 = arith.addf %318, %320 : vector<8x384xf32>
    %322 = vector.extract_strided_slice %316 {offsets = [0, 0], sizes = [8, 128], strides = [1, 1]} : vector<8x384xf32> to vector<8x128xf32>
    %323 = vector.extract_strided_slice %321 {offsets = [0, 0], sizes = [8, 128], strides = [1, 1]} : vector<8x384xf32> to vector<8x128xf32>
    %324 = arith.addf %322, %323 : vector<8x128xf32>
    %325 = arith.negf %324 : vector<8x128xf32>
    %326 = math.exp %325 : vector<8x128xf32>
    %cst_103 = arith.constant 1.000000e+00 : f32
    %327 = vector.broadcast %cst_103 : f32 to vector<8x128xf32>
    %328 = arith.addf %327, %326 : vector<8x128xf32>
    %329 = arith.divf %327, %328 : vector<8x128xf32>
    %330 = vector.extract_strided_slice %316 {offsets = [0, 128], sizes = [8, 128], strides = [1, 1]} : vector<8x384xf32> to vector<8x128xf32>
    %331 = vector.extract_strided_slice %321 {offsets = [0, 128], sizes = [8, 128], strides = [1, 1]} : vector<8x384xf32> to vector<8x128xf32>
    %332 = arith.addf %330, %331 : vector<8x128xf32>
    %333 = arith.negf %332 : vector<8x128xf32>
    %334 = math.exp %333 : vector<8x128xf32>
    %cst_104 = arith.constant 1.000000e+00 : f32
    %335 = vector.broadcast %cst_104 : f32 to vector<8x128xf32>
    %336 = arith.addf %335, %334 : vector<8x128xf32>
    %337 = arith.divf %335, %336 : vector<8x128xf32>
    %338 = vector.extract_strided_slice %316 {offsets = [0, 256], sizes = [8, 128], strides = [1, 1]} : vector<8x384xf32> to vector<8x128xf32>
    %339 = vector.extract_strided_slice %321 {offsets = [0, 256], sizes = [8, 128], strides = [1, 1]} : vector<8x384xf32> to vector<8x128xf32>
    %340 = arith.mulf %329, %339 : vector<8x128xf32>
    %341 = arith.addf %338, %340 : vector<8x128xf32>
    %342 = math.tanh %341 : vector<8x128xf32>
    %cst_105 = arith.constant 1.000000e+00 : f32
    %343 = vector.broadcast %cst_105 : f32 to vector<8x128xf32>
    %344 = arith.subf %343, %337 : vector<8x128xf32>
    %345 = arith.mulf %344, %342 : vector<8x128xf32>
    %346 = arith.mulf %337, %254 : vector<8x128xf32>
    %347 = arith.addf %345, %346 : vector<8x128xf32>
    %348 = arith.index_cast %313 : i32 to index
    %c0_106 = arith.constant 0 : index
    %c0_107 = arith.constant 0 : index
    %349 = vector.load %arg15[%348, %c0_106, %c0_107] : memref<8x8x384xf32, #tpu.memory_space<vmem>>, vector<1x8x384xf32>
    %350 = vector.shape_cast %349 : vector<1x8x384xf32> to vector<8x384xf32>
    %c0_108 = arith.constant 0 : index
    %c0_109 = arith.constant 0 : index
    %351 = vector.load %arg8[%c0_108, %c0_109] : memref<128x384xf32, #tpu.memory_space<vmem>>, vector<128x384xf32>
    %cst_110 = arith.constant dense<0.000000e+00> : vector<8x384xf32>
    %352 = tpu.matmul %288, %351, %cst_110 {dimension_numbers = #tpu.dot_dimension_numbers<[1], [0], [0], [1], [0, 0, 1, 1], [], []>} : vector<8x128xf32>, vector<128x384xf32>, vector<8x384xf32> -> vector<8x384xf32>
    %c0_111 = arith.constant 0 : index
    %c0_112 = arith.constant 0 : index
    %353 = vector.load %arg9[%c0_111, %c0_112] : memref<1x384xf32, #tpu.memory_space<vmem>>, vector<1x384xf32>
    %354 = vector.broadcast %353 : vector<1x384xf32> to vector<8x384xf32>
    %355 = arith.addf %352, %354 : vector<8x384xf32>
    %356 = vector.extract_strided_slice %350 {offsets = [0, 0], sizes = [8, 128], strides = [1, 1]} : vector<8x384xf32> to vector<8x128xf32>
    %357 = vector.extract_strided_slice %355 {offsets = [0, 0], sizes = [8, 128], strides = [1, 1]} : vector<8x384xf32> to vector<8x128xf32>
    %358 = arith.addf %356, %357 : vector<8x128xf32>
    %359 = arith.negf %358 : vector<8x128xf32>
    %360 = math.exp %359 : vector<8x128xf32>
    %cst_113 = arith.constant 1.000000e+00 : f32
    %361 = vector.broadcast %cst_113 : f32 to vector<8x128xf32>
    %362 = arith.addf %361, %360 : vector<8x128xf32>
    %363 = arith.divf %361, %362 : vector<8x128xf32>
    %364 = vector.extract_strided_slice %350 {offsets = [0, 128], sizes = [8, 128], strides = [1, 1]} : vector<8x384xf32> to vector<8x128xf32>
    %365 = vector.extract_strided_slice %355 {offsets = [0, 128], sizes = [8, 128], strides = [1, 1]} : vector<8x384xf32> to vector<8x128xf32>
    %366 = arith.addf %364, %365 : vector<8x128xf32>
    %367 = arith.negf %366 : vector<8x128xf32>
    %368 = math.exp %367 : vector<8x128xf32>
    %cst_114 = arith.constant 1.000000e+00 : f32
    %369 = vector.broadcast %cst_114 : f32 to vector<8x128xf32>
    %370 = arith.addf %369, %368 : vector<8x128xf32>
    %371 = arith.divf %369, %370 : vector<8x128xf32>
    %372 = vector.extract_strided_slice %350 {offsets = [0, 256], sizes = [8, 128], strides = [1, 1]} : vector<8x384xf32> to vector<8x128xf32>
    %373 = vector.extract_strided_slice %355 {offsets = [0, 256], sizes = [8, 128], strides = [1, 1]} : vector<8x384xf32> to vector<8x128xf32>
    %374 = arith.mulf %363, %373 : vector<8x128xf32>
    %375 = arith.addf %372, %374 : vector<8x128xf32>
    %376 = math.tanh %375 : vector<8x128xf32>
    %cst_115 = arith.constant 1.000000e+00 : f32
    %377 = vector.broadcast %cst_115 : f32 to vector<8x128xf32>
    %378 = arith.subf %377, %371 : vector<8x128xf32>
    %379 = arith.mulf %378, %376 : vector<8x128xf32>
    %380 = arith.mulf %371, %288 : vector<8x128xf32>
    %381 = arith.addf %379, %380 : vector<8x128xf32>
    %382 = arith.index_cast %c3_i32 : i32 to index
    %c0_116 = arith.constant 0 : index
    %c0_117 = arith.constant 0 : index
    %383 = vector.load %arg10[%382, %c0_116, %c0_117] : memref<8x8x128xf32, #tpu.memory_space<vmem>>, vector<1x8x128xf32>
    %384 = vector.shape_cast %383 : vector<1x8x128xf32> to vector<8x128xf32>
    %385 = vector.shape_cast %347 : vector<8x128xf32> to vector<1x8x128xf32>
    tpu.vector_store %arg10[%382, %c0_116, %c0_117], %385 {strides = array<i32>} : memref<8x8x128xf32, #tpu.memory_space<vmem>>, vector<1x8x128xf32>,
    %386 = arith.index_cast %313 : i32 to index
    %c0_118 = arith.constant 0 : index
    %c0_119 = arith.constant 0 : index
    %387 = vector.load %arg11[%386, %c0_118, %c0_119] : memref<8x8x128xf32, #tpu.memory_space<vmem>>, vector<1x8x128xf32>
    %388 = vector.shape_cast %387 : vector<1x8x128xf32> to vector<8x128xf32>
    %389 = vector.shape_cast %381 : vector<8x128xf32> to vector<1x8x128xf32>
    tpu.vector_store %arg11[%386, %c0_118, %c0_119], %389 {strides = array<i32>} : memref<8x8x128xf32, #tpu.memory_space<vmem>>, vector<1x8x128xf32>,
    %390 = arith.sitofp %c3_i32 : i32 to f32
    %391 = arith.sitofp %313 : i32 to f32
    %392 = vector.broadcast %390 : f32 to vector<8x1xf32>
    %393 = arith.cmpf olt, %392, %1 : vector<8x1xf32>
    %394 = arith.extui %393 : vector<8x1xi1> to vector<8x1xi32>
    %395 = arith.sitofp %394 : vector<8x1xi32> to vector<8x1xf32>
    %396 = vector.broadcast %395 : vector<8x1xf32> to vector<8x128xf32>
    %397 = arith.mulf %347, %396 : vector<8x128xf32>
    %398 = arith.addf %305, %397 : vector<8x128xf32>
    %399 = vector.broadcast %391 : f32 to vector<8x1xf32>
    %400 = arith.cmpf olt, %399, %1 : vector<8x1xf32>
    %401 = arith.extui %400 : vector<8x1xi1> to vector<8x1xi32>
    %402 = arith.sitofp %401 : vector<8x1xi32> to vector<8x1xf32>
    %403 = vector.broadcast %402 : vector<8x1xf32> to vector<8x128xf32>
    %404 = arith.mulf %381, %403 : vector<8x128xf32>
    %405 = arith.addf %312, %404 : vector<8x128xf32>
    %c4_i32 = arith.constant 4 : i32
    %c7_i32_120 = arith.constant 7 : i32
    %406 = arith.subi %c7_i32_120, %c4_i32 : i32
    %407 = arith.index_cast %c4_i32 : i32 to index
    %c0_121 = arith.constant 0 : index
    %c0_122 = arith.constant 0 : index
    %408 = vector.load %arg14[%407, %c0_121, %c0_122] : memref<8x8x384xf32, #tpu.memory_space<vmem>>, vector<1x8x384xf32>
    %409 = vector.shape_cast %408 : vector<1x8x384xf32> to vector<8x384xf32>
    %c0_123 = arith.constant 0 : index
    %c0_124 = arith.constant 0 : index
    %410 = vector.load %arg6[%c0_123, %c0_124] : memref<128x384xf32, #tpu.memory_space<vmem>>, vector<128x384xf32>
    %cst_125 = arith.constant dense<0.000000e+00> : vector<8x384xf32>
    %411 = tpu.matmul %347, %410, %cst_125 {dimension_numbers = #tpu.dot_dimension_numbers<[1], [0], [0], [1], [0, 0, 1, 1], [], []>} : vector<8x128xf32>, vector<128x384xf32>, vector<8x384xf32> -> vector<8x384xf32>
    %c0_126 = arith.constant 0 : index
    %c0_127 = arith.constant 0 : index
    %412 = vector.load %arg7[%c0_126, %c0_127] : memref<1x384xf32, #tpu.memory_space<vmem>>, vector<1x384xf32>
    %413 = vector.broadcast %412 : vector<1x384xf32> to vector<8x384xf32>
    %414 = arith.addf %411, %413 : vector<8x384xf32>
    %415 = vector.extract_strided_slice %409 {offsets = [0, 0], sizes = [8, 128], strides = [1, 1]} : vector<8x384xf32> to vector<8x128xf32>
    %416 = vector.extract_strided_slice %414 {offsets = [0, 0], sizes = [8, 128], strides = [1, 1]} : vector<8x384xf32> to vector<8x128xf32>
    %417 = arith.addf %415, %416 : vector<8x128xf32>
    %418 = arith.negf %417 : vector<8x128xf32>
    %419 = math.exp %418 : vector<8x128xf32>
    %cst_128 = arith.constant 1.000000e+00 : f32
    %420 = vector.broadcast %cst_128 : f32 to vector<8x128xf32>
    %421 = arith.addf %420, %419 : vector<8x128xf32>
    %422 = arith.divf %420, %421 : vector<8x128xf32>
    %423 = vector.extract_strided_slice %409 {offsets = [0, 128], sizes = [8, 128], strides = [1, 1]} : vector<8x384xf32> to vector<8x128xf32>
    %424 = vector.extract_strided_slice %414 {offsets = [0, 128], sizes = [8, 128], strides = [1, 1]} : vector<8x384xf32> to vector<8x128xf32>
    %425 = arith.addf %423, %424 : vector<8x128xf32>
    %426 = arith.negf %425 : vector<8x128xf32>
    %427 = math.exp %426 : vector<8x128xf32>
    %cst_129 = arith.constant 1.000000e+00 : f32
    %428 = vector.broadcast %cst_129 : f32 to vector<8x128xf32>
    %429 = arith.addf %428, %427 : vector<8x128xf32>
    %430 = arith.divf %428, %429 : vector<8x128xf32>
    %431 = vector.extract_strided_slice %409 {offsets = [0, 256], sizes = [8, 128], strides = [1, 1]} : vector<8x384xf32> to vector<8x128xf32>
    %432 = vector.extract_strided_slice %414 {offsets = [0, 256], sizes = [8, 128], strides = [1, 1]} : vector<8x384xf32> to vector<8x128xf32>
    %433 = arith.mulf %422, %432 : vector<8x128xf32>
    %434 = arith.addf %431, %433 : vector<8x128xf32>
    %435 = math.tanh %434 : vector<8x128xf32>
    %cst_130 = arith.constant 1.000000e+00 : f32
    %436 = vector.broadcast %cst_130 : f32 to vector<8x128xf32>
    %437 = arith.subf %436, %430 : vector<8x128xf32>
    %438 = arith.mulf %437, %435 : vector<8x128xf32>
    %439 = arith.mulf %430, %347 : vector<8x128xf32>
    %440 = arith.addf %438, %439 : vector<8x128xf32>
    %441 = arith.index_cast %406 : i32 to index
    %c0_131 = arith.constant 0 : index
    %c0_132 = arith.constant 0 : index
    %442 = vector.load %arg15[%441, %c0_131, %c0_132] : memref<8x8x384xf32, #tpu.memory_space<vmem>>, vector<1x8x384xf32>
    %443 = vector.shape_cast %442 : vector<1x8x384xf32> to vector<8x384xf32>
    %c0_133 = arith.constant 0 : index
    %c0_134 = arith.constant 0 : index
    %444 = vector.load %arg8[%c0_133, %c0_134] : memref<128x384xf32, #tpu.memory_space<vmem>>, vector<128x384xf32>
    %cst_135 = arith.constant dense<0.000000e+00> : vector<8x384xf32>
    %445 = tpu.matmul %381, %444, %cst_135 {dimension_numbers = #tpu.dot_dimension_numbers<[1], [0], [0], [1], [0, 0, 1, 1], [], []>} : vector<8x128xf32>, vector<128x384xf32>, vector<8x384xf32> -> vector<8x384xf32>
    %c0_136 = arith.constant 0 : index
    %c0_137 = arith.constant 0 : index
    %446 = vector.load %arg9[%c0_136, %c0_137] : memref<1x384xf32, #tpu.memory_space<vmem>>, vector<1x384xf32>
    %447 = vector.broadcast %446 : vector<1x384xf32> to vector<8x384xf32>
    %448 = arith.addf %445, %447 : vector<8x384xf32>
    %449 = vector.extract_strided_slice %443 {offsets = [0, 0], sizes = [8, 128], strides = [1, 1]} : vector<8x384xf32> to vector<8x128xf32>
    %450 = vector.extract_strided_slice %448 {offsets = [0, 0], sizes = [8, 128], strides = [1, 1]} : vector<8x384xf32> to vector<8x128xf32>
    %451 = arith.addf %449, %450 : vector<8x128xf32>
    %452 = arith.negf %451 : vector<8x128xf32>
    %453 = math.exp %452 : vector<8x128xf32>
    %cst_138 = arith.constant 1.000000e+00 : f32
    %454 = vector.broadcast %cst_138 : f32 to vector<8x128xf32>
    %455 = arith.addf %454, %453 : vector<8x128xf32>
    %456 = arith.divf %454, %455 : vector<8x128xf32>
    %457 = vector.extract_strided_slice %443 {offsets = [0, 128], sizes = [8, 128], strides = [1, 1]} : vector<8x384xf32> to vector<8x128xf32>
    %458 = vector.extract_strided_slice %448 {offsets = [0, 128], sizes = [8, 128], strides = [1, 1]} : vector<8x384xf32> to vector<8x128xf32>
    %459 = arith.addf %457, %458 : vector<8x128xf32>
    %460 = arith.negf %459 : vector<8x128xf32>
    %461 = math.exp %460 : vector<8x128xf32>
    %cst_139 = arith.constant 1.000000e+00 : f32
    %462 = vector.broadcast %cst_139 : f32 to vector<8x128xf32>
    %463 = arith.addf %462, %461 : vector<8x128xf32>
    %464 = arith.divf %462, %463 : vector<8x128xf32>
    %465 = vector.extract_strided_slice %443 {offsets = [0, 256], sizes = [8, 128], strides = [1, 1]} : vector<8x384xf32> to vector<8x128xf32>
    %466 = vector.extract_strided_slice %448 {offsets = [0, 256], sizes = [8, 128], strides = [1, 1]} : vector<8x384xf32> to vector<8x128xf32>
    %467 = arith.mulf %456, %466 : vector<8x128xf32>
    %468 = arith.addf %465, %467 : vector<8x128xf32>
    %469 = math.tanh %468 : vector<8x128xf32>
    %cst_140 = arith.constant 1.000000e+00 : f32
    %470 = vector.broadcast %cst_140 : f32 to vector<8x128xf32>
    %471 = arith.subf %470, %464 : vector<8x128xf32>
    %472 = arith.mulf %471, %469 : vector<8x128xf32>
    %473 = arith.mulf %464, %381 : vector<8x128xf32>
    %474 = arith.addf %472, %473 : vector<8x128xf32>
    %475 = arith.index_cast %c4_i32 : i32 to index
    %c0_141 = arith.constant 0 : index
    %c0_142 = arith.constant 0 : index
    %476 = vector.load %arg10[%475, %c0_141, %c0_142] : memref<8x8x128xf32, #tpu.memory_space<vmem>>, vector<1x8x128xf32>
    %477 = vector.shape_cast %476 : vector<1x8x128xf32> to vector<8x128xf32>
    %478 = vector.shape_cast %440 : vector<8x128xf32> to vector<1x8x128xf32>
    tpu.vector_store %arg10[%475, %c0_141, %c0_142], %478 {strides = array<i32>} : memref<8x8x128xf32, #tpu.memory_space<vmem>>, vector<1x8x128xf32>,
    %479 = arith.index_cast %406 : i32 to index
    %c0_143 = arith.constant 0 : index
    %c0_144 = arith.constant 0 : index
    %480 = vector.load %arg11[%479, %c0_143, %c0_144] : memref<8x8x128xf32, #tpu.memory_space<vmem>>, vector<1x8x128xf32>
    %481 = vector.shape_cast %480 : vector<1x8x128xf32> to vector<8x128xf32>
    %482 = vector.shape_cast %474 : vector<8x128xf32> to vector<1x8x128xf32>
    tpu.vector_store %arg11[%479, %c0_143, %c0_144], %482 {strides = array<i32>} : memref<8x8x128xf32, #tpu.memory_space<vmem>>, vector<1x8x128xf32>,
    %483 = arith.sitofp %c4_i32 : i32 to f32
    %484 = arith.sitofp %406 : i32 to f32
    %485 = vector.broadcast %483 : f32 to vector<8x1xf32>
    %486 = arith.cmpf olt, %485, %1 : vector<8x1xf32>
    %487 = arith.extui %486 : vector<8x1xi1> to vector<8x1xi32>
    %488 = arith.sitofp %487 : vector<8x1xi32> to vector<8x1xf32>
    %489 = vector.broadcast %488 : vector<8x1xf32> to vector<8x128xf32>
    %490 = arith.mulf %440, %489 : vector<8x128xf32>
    %491 = arith.addf %398, %490 : vector<8x128xf32>
    %492 = vector.broadcast %484 : f32 to vector<8x1xf32>
    %493 = arith.cmpf olt, %492, %1 : vector<8x1xf32>
    %494 = arith.extui %493 : vector<8x1xi1> to vector<8x1xi32>
    %495 = arith.sitofp %494 : vector<8x1xi32> to vector<8x1xf32>
    %496 = vector.broadcast %495 : vector<8x1xf32> to vector<8x128xf32>
    %497 = arith.mulf %474, %496 : vector<8x128xf32>
    %498 = arith.addf %405, %497 : vector<8x128xf32>
    %c5_i32 = arith.constant 5 : i32
    %c7_i32_145 = arith.constant 7 : i32
    %499 = arith.subi %c7_i32_145, %c5_i32 : i32
    %500 = arith.index_cast %c5_i32 : i32 to index
    %c0_146 = arith.constant 0 : index
    %c0_147 = arith.constant 0 : index
    %501 = vector.load %arg14[%500, %c0_146, %c0_147] : memref<8x8x384xf32, #tpu.memory_space<vmem>>, vector<1x8x384xf32>
    %502 = vector.shape_cast %501 : vector<1x8x384xf32> to vector<8x384xf32>
    %c0_148 = arith.constant 0 : index
    %c0_149 = arith.constant 0 : index
    %503 = vector.load %arg6[%c0_148, %c0_149] : memref<128x384xf32, #tpu.memory_space<vmem>>, vector<128x384xf32>
    %cst_150 = arith.constant dense<0.000000e+00> : vector<8x384xf32>
    %504 = tpu.matmul %440, %503, %cst_150 {dimension_numbers = #tpu.dot_dimension_numbers<[1], [0], [0], [1], [0, 0, 1, 1], [], []>} : vector<8x128xf32>, vector<128x384xf32>, vector<8x384xf32> -> vector<8x384xf32>
    %c0_151 = arith.constant 0 : index
    %c0_152 = arith.constant 0 : index
    %505 = vector.load %arg7[%c0_151, %c0_152] : memref<1x384xf32, #tpu.memory_space<vmem>>, vector<1x384xf32>
    %506 = vector.broadcast %505 : vector<1x384xf32> to vector<8x384xf32>
    %507 = arith.addf %504, %506 : vector<8x384xf32>
    %508 = vector.extract_strided_slice %502 {offsets = [0, 0], sizes = [8, 128], strides = [1, 1]} : vector<8x384xf32> to vector<8x128xf32>
    %509 = vector.extract_strided_slice %507 {offsets = [0, 0], sizes = [8, 128], strides = [1, 1]} : vector<8x384xf32> to vector<8x128xf32>
    %510 = arith.addf %508, %509 : vector<8x128xf32>
    %511 = arith.negf %510 : vector<8x128xf32>
    %512 = math.exp %511 : vector<8x128xf32>
    %cst_153 = arith.constant 1.000000e+00 : f32
    %513 = vector.broadcast %cst_153 : f32 to vector<8x128xf32>
    %514 = arith.addf %513, %512 : vector<8x128xf32>
    %515 = arith.divf %513, %514 : vector<8x128xf32>
    %516 = vector.extract_strided_slice %502 {offsets = [0, 128], sizes = [8, 128], strides = [1, 1]} : vector<8x384xf32> to vector<8x128xf32>
    %517 = vector.extract_strided_slice %507 {offsets = [0, 128], sizes = [8, 128], strides = [1, 1]} : vector<8x384xf32> to vector<8x128xf32>
    %518 = arith.addf %516, %517 : vector<8x128xf32>
    %519 = arith.negf %518 : vector<8x128xf32>
    %520 = math.exp %519 : vector<8x128xf32>
    %cst_154 = arith.constant 1.000000e+00 : f32
    %521 = vector.broadcast %cst_154 : f32 to vector<8x128xf32>
    %522 = arith.addf %521, %520 : vector<8x128xf32>
    %523 = arith.divf %521, %522 : vector<8x128xf32>
    %524 = vector.extract_strided_slice %502 {offsets = [0, 256], sizes = [8, 128], strides = [1, 1]} : vector<8x384xf32> to vector<8x128xf32>
    %525 = vector.extract_strided_slice %507 {offsets = [0, 256], sizes = [8, 128], strides = [1, 1]} : vector<8x384xf32> to vector<8x128xf32>
    %526 = arith.mulf %515, %525 : vector<8x128xf32>
    %527 = arith.addf %524, %526 : vector<8x128xf32>
    %528 = math.tanh %527 : vector<8x128xf32>
    %cst_155 = arith.constant 1.000000e+00 : f32
    %529 = vector.broadcast %cst_155 : f32 to vector<8x128xf32>
    %530 = arith.subf %529, %523 : vector<8x128xf32>
    %531 = arith.mulf %530, %528 : vector<8x128xf32>
    %532 = arith.mulf %523, %440 : vector<8x128xf32>
    %533 = arith.addf %531, %532 : vector<8x128xf32>
    %534 = arith.index_cast %499 : i32 to index
    %c0_156 = arith.constant 0 : index
    %c0_157 = arith.constant 0 : index
    %535 = vector.load %arg15[%534, %c0_156, %c0_157] : memref<8x8x384xf32, #tpu.memory_space<vmem>>, vector<1x8x384xf32>
    %536 = vector.shape_cast %535 : vector<1x8x384xf32> to vector<8x384xf32>
    %c0_158 = arith.constant 0 : index
    %c0_159 = arith.constant 0 : index
    %537 = vector.load %arg8[%c0_158, %c0_159] : memref<128x384xf32, #tpu.memory_space<vmem>>, vector<128x384xf32>
    %cst_160 = arith.constant dense<0.000000e+00> : vector<8x384xf32>
    %538 = tpu.matmul %474, %537, %cst_160 {dimension_numbers = #tpu.dot_dimension_numbers<[1], [0], [0], [1], [0, 0, 1, 1], [], []>} : vector<8x128xf32>, vector<128x384xf32>, vector<8x384xf32> -> vector<8x384xf32>
    %c0_161 = arith.constant 0 : index
    %c0_162 = arith.constant 0 : index
    %539 = vector.load %arg9[%c0_161, %c0_162] : memref<1x384xf32, #tpu.memory_space<vmem>>, vector<1x384xf32>
    %540 = vector.broadcast %539 : vector<1x384xf32> to vector<8x384xf32>
    %541 = arith.addf %538, %540 : vector<8x384xf32>
    %542 = vector.extract_strided_slice %536 {offsets = [0, 0], sizes = [8, 128], strides = [1, 1]} : vector<8x384xf32> to vector<8x128xf32>
    %543 = vector.extract_strided_slice %541 {offsets = [0, 0], sizes = [8, 128], strides = [1, 1]} : vector<8x384xf32> to vector<8x128xf32>
    %544 = arith.addf %542, %543 : vector<8x128xf32>
    %545 = arith.negf %544 : vector<8x128xf32>
    %546 = math.exp %545 : vector<8x128xf32>
    %cst_163 = arith.constant 1.000000e+00 : f32
    %547 = vector.broadcast %cst_163 : f32 to vector<8x128xf32>
    %548 = arith.addf %547, %546 : vector<8x128xf32>
    %549 = arith.divf %547, %548 : vector<8x128xf32>
    %550 = vector.extract_strided_slice %536 {offsets = [0, 128], sizes = [8, 128], strides = [1, 1]} : vector<8x384xf32> to vector<8x128xf32>
    %551 = vector.extract_strided_slice %541 {offsets = [0, 128], sizes = [8, 128], strides = [1, 1]} : vector<8x384xf32> to vector<8x128xf32>
    %552 = arith.addf %550, %551 : vector<8x128xf32>
    %553 = arith.negf %552 : vector<8x128xf32>
    %554 = math.exp %553 : vector<8x128xf32>
    %cst_164 = arith.constant 1.000000e+00 : f32
    %555 = vector.broadcast %cst_164 : f32 to vector<8x128xf32>
    %556 = arith.addf %555, %554 : vector<8x128xf32>
    %557 = arith.divf %555, %556 : vector<8x128xf32>
    %558 = vector.extract_strided_slice %536 {offsets = [0, 256], sizes = [8, 128], strides = [1, 1]} : vector<8x384xf32> to vector<8x128xf32>
    %559 = vector.extract_strided_slice %541 {offsets = [0, 256], sizes = [8, 128], strides = [1, 1]} : vector<8x384xf32> to vector<8x128xf32>
    %560 = arith.mulf %549, %559 : vector<8x128xf32>
    %561 = arith.addf %558, %560 : vector<8x128xf32>
    %562 = math.tanh %561 : vector<8x128xf32>
    %cst_165 = arith.constant 1.000000e+00 : f32
    %563 = vector.broadcast %cst_165 : f32 to vector<8x128xf32>
    %564 = arith.subf %563, %557 : vector<8x128xf32>
    %565 = arith.mulf %564, %562 : vector<8x128xf32>
    %566 = arith.mulf %557, %474 : vector<8x128xf32>
    %567 = arith.addf %565, %566 : vector<8x128xf32>
    %568 = arith.index_cast %c5_i32 : i32 to index
    %c0_166 = arith.constant 0 : index
    %c0_167 = arith.constant 0 : index
    %569 = vector.load %arg10[%568, %c0_166, %c0_167] : memref<8x8x128xf32, #tpu.memory_space<vmem>>, vector<1x8x128xf32>
    %570 = vector.shape_cast %569 : vector<1x8x128xf32> to vector<8x128xf32>
    %571 = vector.shape_cast %533 : vector<8x128xf32> to vector<1x8x128xf32>
    tpu.vector_store %arg10[%568, %c0_166, %c0_167], %571 {strides = array<i32>} : memref<8x8x128xf32, #tpu.memory_space<vmem>>, vector<1x8x128xf32>,
    %572 = arith.index_cast %499 : i32 to index
    %c0_168 = arith.constant 0 : index
    %c0_169 = arith.constant 0 : index
    %573 = vector.load %arg11[%572, %c0_168, %c0_169] : memref<8x8x128xf32, #tpu.memory_space<vmem>>, vector<1x8x128xf32>
    %574 = vector.shape_cast %573 : vector<1x8x128xf32> to vector<8x128xf32>
    %575 = vector.shape_cast %567 : vector<8x128xf32> to vector<1x8x128xf32>
    tpu.vector_store %arg11[%572, %c0_168, %c0_169], %575 {strides = array<i32>} : memref<8x8x128xf32, #tpu.memory_space<vmem>>, vector<1x8x128xf32>,
    %576 = arith.sitofp %c5_i32 : i32 to f32
    %577 = arith.sitofp %499 : i32 to f32
    %578 = vector.broadcast %576 : f32 to vector<8x1xf32>
    %579 = arith.cmpf olt, %578, %1 : vector<8x1xf32>
    %580 = arith.extui %579 : vector<8x1xi1> to vector<8x1xi32>
    %581 = arith.sitofp %580 : vector<8x1xi32> to vector<8x1xf32>
    %582 = vector.broadcast %581 : vector<8x1xf32> to vector<8x128xf32>
    %583 = arith.mulf %533, %582 : vector<8x128xf32>
    %584 = arith.addf %491, %583 : vector<8x128xf32>
    %585 = vector.broadcast %577 : f32 to vector<8x1xf32>
    %586 = arith.cmpf olt, %585, %1 : vector<8x1xf32>
    %587 = arith.extui %586 : vector<8x1xi1> to vector<8x1xi32>
    %588 = arith.sitofp %587 : vector<8x1xi32> to vector<8x1xf32>
    %589 = vector.broadcast %588 : vector<8x1xf32> to vector<8x128xf32>
    %590 = arith.mulf %567, %589 : vector<8x128xf32>
    %591 = arith.addf %498, %590 : vector<8x128xf32>
    %c6_i32 = arith.constant 6 : i32
    %c7_i32_170 = arith.constant 7 : i32
    %592 = arith.subi %c7_i32_170, %c6_i32 : i32
    %593 = arith.index_cast %c6_i32 : i32 to index
    %c0_171 = arith.constant 0 : index
    %c0_172 = arith.constant 0 : index
    %594 = vector.load %arg14[%593, %c0_171, %c0_172] : memref<8x8x384xf32, #tpu.memory_space<vmem>>, vector<1x8x384xf32>
    %595 = vector.shape_cast %594 : vector<1x8x384xf32> to vector<8x384xf32>
    %c0_173 = arith.constant 0 : index
    %c0_174 = arith.constant 0 : index
    %596 = vector.load %arg6[%c0_173, %c0_174] : memref<128x384xf32, #tpu.memory_space<vmem>>, vector<128x384xf32>
    %cst_175 = arith.constant dense<0.000000e+00> : vector<8x384xf32>
    %597 = tpu.matmul %533, %596, %cst_175 {dimension_numbers = #tpu.dot_dimension_numbers<[1], [0], [0], [1], [0, 0, 1, 1], [], []>} : vector<8x128xf32>, vector<128x384xf32>, vector<8x384xf32> -> vector<8x384xf32>
    %c0_176 = arith.constant 0 : index
    %c0_177 = arith.constant 0 : index
    %598 = vector.load %arg7[%c0_176, %c0_177] : memref<1x384xf32, #tpu.memory_space<vmem>>, vector<1x384xf32>
    %599 = vector.broadcast %598 : vector<1x384xf32> to vector<8x384xf32>
    %600 = arith.addf %597, %599 : vector<8x384xf32>
    %601 = vector.extract_strided_slice %595 {offsets = [0, 0], sizes = [8, 128], strides = [1, 1]} : vector<8x384xf32> to vector<8x128xf32>
    %602 = vector.extract_strided_slice %600 {offsets = [0, 0], sizes = [8, 128], strides = [1, 1]} : vector<8x384xf32> to vector<8x128xf32>
    %603 = arith.addf %601, %602 : vector<8x128xf32>
    %604 = arith.negf %603 : vector<8x128xf32>
    %605 = math.exp %604 : vector<8x128xf32>
    %cst_178 = arith.constant 1.000000e+00 : f32
    %606 = vector.broadcast %cst_178 : f32 to vector<8x128xf32>
    %607 = arith.addf %606, %605 : vector<8x128xf32>
    %608 = arith.divf %606, %607 : vector<8x128xf32>
    %609 = vector.extract_strided_slice %595 {offsets = [0, 128], sizes = [8, 128], strides = [1, 1]} : vector<8x384xf32> to vector<8x128xf32>
    %610 = vector.extract_strided_slice %600 {offsets = [0, 128], sizes = [8, 128], strides = [1, 1]} : vector<8x384xf32> to vector<8x128xf32>
    %611 = arith.addf %609, %610 : vector<8x128xf32>
    %612 = arith.negf %611 : vector<8x128xf32>
    %613 = math.exp %612 : vector<8x128xf32>
    %cst_179 = arith.constant 1.000000e+00 : f32
    %614 = vector.broadcast %cst_179 : f32 to vector<8x128xf32>
    %615 = arith.addf %614, %613 : vector<8x128xf32>
    %616 = arith.divf %614, %615 : vector<8x128xf32>
    %617 = vector.extract_strided_slice %595 {offsets = [0, 256], sizes = [8, 128], strides = [1, 1]} : vector<8x384xf32> to vector<8x128xf32>
    %618 = vector.extract_strided_slice %600 {offsets = [0, 256], sizes = [8, 128], strides = [1, 1]} : vector<8x384xf32> to vector<8x128xf32>
    %619 = arith.mulf %608, %618 : vector<8x128xf32>
    %620 = arith.addf %617, %619 : vector<8x128xf32>
    %621 = math.tanh %620 : vector<8x128xf32>
    %cst_180 = arith.constant 1.000000e+00 : f32
    %622 = vector.broadcast %cst_180 : f32 to vector<8x128xf32>
    %623 = arith.subf %622, %616 : vector<8x128xf32>
    %624 = arith.mulf %623, %621 : vector<8x128xf32>
    %625 = arith.mulf %616, %533 : vector<8x128xf32>
    %626 = arith.addf %624, %625 : vector<8x128xf32>
    %627 = arith.index_cast %592 : i32 to index
    %c0_181 = arith.constant 0 : index
    %c0_182 = arith.constant 0 : index
    %628 = vector.load %arg15[%627, %c0_181, %c0_182] : memref<8x8x384xf32, #tpu.memory_space<vmem>>, vector<1x8x384xf32>
    %629 = vector.shape_cast %628 : vector<1x8x384xf32> to vector<8x384xf32>
    %c0_183 = arith.constant 0 : index
    %c0_184 = arith.constant 0 : index
    %630 = vector.load %arg8[%c0_183, %c0_184] : memref<128x384xf32, #tpu.memory_space<vmem>>, vector<128x384xf32>
    %cst_185 = arith.constant dense<0.000000e+00> : vector<8x384xf32>
    %631 = tpu.matmul %567, %630, %cst_185 {dimension_numbers = #tpu.dot_dimension_numbers<[1], [0], [0], [1], [0, 0, 1, 1], [], []>} : vector<8x128xf32>, vector<128x384xf32>, vector<8x384xf32> -> vector<8x384xf32>
    %c0_186 = arith.constant 0 : index
    %c0_187 = arith.constant 0 : index
    %632 = vector.load %arg9[%c0_186, %c0_187] : memref<1x384xf32, #tpu.memory_space<vmem>>, vector<1x384xf32>
    %633 = vector.broadcast %632 : vector<1x384xf32> to vector<8x384xf32>
    %634 = arith.addf %631, %633 : vector<8x384xf32>
    %635 = vector.extract_strided_slice %629 {offsets = [0, 0], sizes = [8, 128], strides = [1, 1]} : vector<8x384xf32> to vector<8x128xf32>
    %636 = vector.extract_strided_slice %634 {offsets = [0, 0], sizes = [8, 128], strides = [1, 1]} : vector<8x384xf32> to vector<8x128xf32>
    %637 = arith.addf %635, %636 : vector<8x128xf32>
    %638 = arith.negf %637 : vector<8x128xf32>
    %639 = math.exp %638 : vector<8x128xf32>
    %cst_188 = arith.constant 1.000000e+00 : f32
    %640 = vector.broadcast %cst_188 : f32 to vector<8x128xf32>
    %641 = arith.addf %640, %639 : vector<8x128xf32>
    %642 = arith.divf %640, %641 : vector<8x128xf32>
    %643 = vector.extract_strided_slice %629 {offsets = [0, 128], sizes = [8, 128], strides = [1, 1]} : vector<8x384xf32> to vector<8x128xf32>
    %644 = vector.extract_strided_slice %634 {offsets = [0, 128], sizes = [8, 128], strides = [1, 1]} : vector<8x384xf32> to vector<8x128xf32>
    %645 = arith.addf %643, %644 : vector<8x128xf32>
    %646 = arith.negf %645 : vector<8x128xf32>
    %647 = math.exp %646 : vector<8x128xf32>
    %cst_189 = arith.constant 1.000000e+00 : f32
    %648 = vector.broadcast %cst_189 : f32 to vector<8x128xf32>
    %649 = arith.addf %648, %647 : vector<8x128xf32>
    %650 = arith.divf %648, %649 : vector<8x128xf32>
    %651 = vector.extract_strided_slice %629 {offsets = [0, 256], sizes = [8, 128], strides = [1, 1]} : vector<8x384xf32> to vector<8x128xf32>
    %652 = vector.extract_strided_slice %634 {offsets = [0, 256], sizes = [8, 128], strides = [1, 1]} : vector<8x384xf32> to vector<8x128xf32>
    %653 = arith.mulf %642, %652 : vector<8x128xf32>
    %654 = arith.addf %651, %653 : vector<8x128xf32>
    %655 = math.tanh %654 : vector<8x128xf32>
    %cst_190 = arith.constant 1.000000e+00 : f32
    %656 = vector.broadcast %cst_190 : f32 to vector<8x128xf32>
    %657 = arith.subf %656, %650 : vector<8x128xf32>
    %658 = arith.mulf %657, %655 : vector<8x128xf32>
    %659 = arith.mulf %650, %567 : vector<8x128xf32>
    %660 = arith.addf %658, %659 : vector<8x128xf32>
    %661 = arith.index_cast %c6_i32 : i32 to index
    %c0_191 = arith.constant 0 : index
    %c0_192 = arith.constant 0 : index
    %662 = vector.load %arg10[%661, %c0_191, %c0_192] : memref<8x8x128xf32, #tpu.memory_space<vmem>>, vector<1x8x128xf32>
    %663 = vector.shape_cast %662 : vector<1x8x128xf32> to vector<8x128xf32>
    %664 = vector.shape_cast %626 : vector<8x128xf32> to vector<1x8x128xf32>
    tpu.vector_store %arg10[%661, %c0_191, %c0_192], %664 {strides = array<i32>} : memref<8x8x128xf32, #tpu.memory_space<vmem>>, vector<1x8x128xf32>,
    %665 = arith.index_cast %592 : i32 to index
    %c0_193 = arith.constant 0 : index
    %c0_194 = arith.constant 0 : index
    %666 = vector.load %arg11[%665, %c0_193, %c0_194] : memref<8x8x128xf32, #tpu.memory_space<vmem>>, vector<1x8x128xf32>
    %667 = vector.shape_cast %666 : vector<1x8x128xf32> to vector<8x128xf32>
    %668 = vector.shape_cast %660 : vector<8x128xf32> to vector<1x8x128xf32>
    tpu.vector_store %arg11[%665, %c0_193, %c0_194], %668 {strides = array<i32>} : memref<8x8x128xf32, #tpu.memory_space<vmem>>, vector<1x8x128xf32>,
    %669 = arith.sitofp %c6_i32 : i32 to f32
    %670 = arith.sitofp %592 : i32 to f32
    %671 = vector.broadcast %669 : f32 to vector<8x1xf32>
    %672 = arith.cmpf olt, %671, %1 : vector<8x1xf32>
    %673 = arith.extui %672 : vector<8x1xi1> to vector<8x1xi32>
    %674 = arith.sitofp %673 : vector<8x1xi32> to vector<8x1xf32>
    %675 = vector.broadcast %674 : vector<8x1xf32> to vector<8x128xf32>
    %676 = arith.mulf %626, %675 : vector<8x128xf32>
    %677 = arith.addf %584, %676 : vector<8x128xf32>
    %678 = vector.broadcast %670 : f32 to vector<8x1xf32>
    %679 = arith.cmpf olt, %678, %1 : vector<8x1xf32>
    %680 = arith.extui %679 : vector<8x1xi1> to vector<8x1xi32>
    %681 = arith.sitofp %680 : vector<8x1xi32> to vector<8x1xf32>
    %682 = vector.broadcast %681 : vector<8x1xf32> to vector<8x128xf32>
    %683 = arith.mulf %660, %682 : vector<8x128xf32>
    %684 = arith.addf %591, %683 : vector<8x128xf32>
    %c7_i32_195 = arith.constant 7 : i32
    %c7_i32_196 = arith.constant 7 : i32
    %685 = arith.subi %c7_i32_196, %c7_i32_195 : i32
    %686 = arith.index_cast %c7_i32_195 : i32 to index
    %c0_197 = arith.constant 0 : index
    %c0_198 = arith.constant 0 : index
    %687 = vector.load %arg14[%686, %c0_197, %c0_198] : memref<8x8x384xf32, #tpu.memory_space<vmem>>, vector<1x8x384xf32>
    %688 = vector.shape_cast %687 : vector<1x8x384xf32> to vector<8x384xf32>
    %c0_199 = arith.constant 0 : index
    %c0_200 = arith.constant 0 : index
    %689 = vector.load %arg6[%c0_199, %c0_200] : memref<128x384xf32, #tpu.memory_space<vmem>>, vector<128x384xf32>
    %cst_201 = arith.constant dense<0.000000e+00> : vector<8x384xf32>
    %690 = tpu.matmul %626, %689, %cst_201 {dimension_numbers = #tpu.dot_dimension_numbers<[1], [0], [0], [1], [0, 0, 1, 1], [], []>} : vector<8x128xf32>, vector<128x384xf32>, vector<8x384xf32> -> vector<8x384xf32>
    %c0_202 = arith.constant 0 : index
    %c0_203 = arith.constant 0 : index
    %691 = vector.load %arg7[%c0_202, %c0_203] : memref<1x384xf32, #tpu.memory_space<vmem>>, vector<1x384xf32>
    %692 = vector.broadcast %691 : vector<1x384xf32> to vector<8x384xf32>
    %693 = arith.addf %690, %692 : vector<8x384xf32>
    %694 = vector.extract_strided_slice %688 {offsets = [0, 0], sizes = [8, 128], strides = [1, 1]} : vector<8x384xf32> to vector<8x128xf32>
    %695 = vector.extract_strided_slice %693 {offsets = [0, 0], sizes = [8, 128], strides = [1, 1]} : vector<8x384xf32> to vector<8x128xf32>
    %696 = arith.addf %694, %695 : vector<8x128xf32>
    %697 = arith.negf %696 : vector<8x128xf32>
    %698 = math.exp %697 : vector<8x128xf32>
    %cst_204 = arith.constant 1.000000e+00 : f32
    %699 = vector.broadcast %cst_204 : f32 to vector<8x128xf32>
    %700 = arith.addf %699, %698 : vector<8x128xf32>
    %701 = arith.divf %699, %700 : vector<8x128xf32>
    %702 = vector.extract_strided_slice %688 {offsets = [0, 128], sizes = [8, 128], strides = [1, 1]} : vector<8x384xf32> to vector<8x128xf32>
    %703 = vector.extract_strided_slice %693 {offsets = [0, 128], sizes = [8, 128], strides = [1, 1]} : vector<8x384xf32> to vector<8x128xf32>
    %704 = arith.addf %702, %703 : vector<8x128xf32>
    %705 = arith.negf %704 : vector<8x128xf32>
    %706 = math.exp %705 : vector<8x128xf32>
    %cst_205 = arith.constant 1.000000e+00 : f32
    %707 = vector.broadcast %cst_205 : f32 to vector<8x128xf32>
    %708 = arith.addf %707, %706 : vector<8x128xf32>
    %709 = arith.divf %707, %708 : vector<8x128xf32>
    %710 = vector.extract_strided_slice %688 {offsets = [0, 256], sizes = [8, 128], strides = [1, 1]} : vector<8x384xf32> to vector<8x128xf32>
    %711 = vector.extract_strided_slice %693 {offsets = [0, 256], sizes = [8, 128], strides = [1, 1]} : vector<8x384xf32> to vector<8x128xf32>
    %712 = arith.mulf %701, %711 : vector<8x128xf32>
    %713 = arith.addf %710, %712 : vector<8x128xf32>
    %714 = math.tanh %713 : vector<8x128xf32>
    %cst_206 = arith.constant 1.000000e+00 : f32
    %715 = vector.broadcast %cst_206 : f32 to vector<8x128xf32>
    %716 = arith.subf %715, %709 : vector<8x128xf32>
    %717 = arith.mulf %716, %714 : vector<8x128xf32>
    %718 = arith.mulf %709, %626 : vector<8x128xf32>
    %719 = arith.addf %717, %718 : vector<8x128xf32>
    %720 = arith.index_cast %685 : i32 to index
    %c0_207 = arith.constant 0 : index
    %c0_208 = arith.constant 0 : index
    %721 = vector.load %arg15[%720, %c0_207, %c0_208] : memref<8x8x384xf32, #tpu.memory_space<vmem>>, vector<1x8x384xf32>
    %722 = vector.shape_cast %721 : vector<1x8x384xf32> to vector<8x384xf32>
    %c0_209 = arith.constant 0 : index
    %c0_210 = arith.constant 0 : index
    %723 = vector.load %arg8[%c0_209, %c0_210] : memref<128x384xf32, #tpu.memory_space<vmem>>, vector<128x384xf32>
    %cst_211 = arith.constant dense<0.000000e+00> : vector<8x384xf32>
    %724 = tpu.matmul %660, %723, %cst_211 {dimension_numbers = #tpu.dot_dimension_numbers<[1], [0], [0], [1], [0, 0, 1, 1], [], []>} : vector<8x128xf32>, vector<128x384xf32>, vector<8x384xf32> -> vector<8x384xf32>
    %c0_212 = arith.constant 0 : index
    %c0_213 = arith.constant 0 : index
    %725 = vector.load %arg9[%c0_212, %c0_213] : memref<1x384xf32, #tpu.memory_space<vmem>>, vector<1x384xf32>
    %726 = vector.broadcast %725 : vector<1x384xf32> to vector<8x384xf32>
    %727 = arith.addf %724, %726 : vector<8x384xf32>
    %728 = vector.extract_strided_slice %722 {offsets = [0, 0], sizes = [8, 128], strides = [1, 1]} : vector<8x384xf32> to vector<8x128xf32>
    %729 = vector.extract_strided_slice %727 {offsets = [0, 0], sizes = [8, 128], strides = [1, 1]} : vector<8x384xf32> to vector<8x128xf32>
    %730 = arith.addf %728, %729 : vector<8x128xf32>
    %731 = arith.negf %730 : vector<8x128xf32>
    %732 = math.exp %731 : vector<8x128xf32>
    %cst_214 = arith.constant 1.000000e+00 : f32
    %733 = vector.broadcast %cst_214 : f32 to vector<8x128xf32>
    %734 = arith.addf %733, %732 : vector<8x128xf32>
    %735 = arith.divf %733, %734 : vector<8x128xf32>
    %736 = vector.extract_strided_slice %722 {offsets = [0, 128], sizes = [8, 128], strides = [1, 1]} : vector<8x384xf32> to vector<8x128xf32>
    %737 = vector.extract_strided_slice %727 {offsets = [0, 128], sizes = [8, 128], strides = [1, 1]} : vector<8x384xf32> to vector<8x128xf32>
    %738 = arith.addf %736, %737 : vector<8x128xf32>
    %739 = arith.negf %738 : vector<8x128xf32>
    %740 = math.exp %739 : vector<8x128xf32>
    %cst_215 = arith.constant 1.000000e+00 : f32
    %741 = vector.broadcast %cst_215 : f32 to vector<8x128xf32>
    %742 = arith.addf %741, %740 : vector<8x128xf32>
    %743 = arith.divf %741, %742 : vector<8x128xf32>
    %744 = vector.extract_strided_slice %722 {offsets = [0, 256], sizes = [8, 128], strides = [1, 1]} : vector<8x384xf32> to vector<8x128xf32>
    %745 = vector.extract_strided_slice %727 {offsets = [0, 256], sizes = [8, 128], strides = [1, 1]} : vector<8x384xf32> to vector<8x128xf32>
    %746 = arith.mulf %735, %745 : vector<8x128xf32>
    %747 = arith.addf %744, %746 : vector<8x128xf32>
    %748 = math.tanh %747 : vector<8x128xf32>
    %cst_216 = arith.constant 1.000000e+00 : f32
    %749 = vector.broadcast %cst_216 : f32 to vector<8x128xf32>
    %750 = arith.subf %749, %743 : vector<8x128xf32>
    %751 = arith.mulf %750, %748 : vector<8x128xf32>
    %752 = arith.mulf %743, %660 : vector<8x128xf32>
    %753 = arith.addf %751, %752 : vector<8x128xf32>
    %754 = arith.index_cast %c7_i32_195 : i32 to index
    %c0_217 = arith.constant 0 : index
    %c0_218 = arith.constant 0 : index
    %755 = vector.load %arg10[%754, %c0_217, %c0_218] : memref<8x8x128xf32, #tpu.memory_space<vmem>>, vector<1x8x128xf32>
    %756 = vector.shape_cast %755 : vector<1x8x128xf32> to vector<8x128xf32>
    %757 = vector.shape_cast %719 : vector<8x128xf32> to vector<1x8x128xf32>
    tpu.vector_store %arg10[%754, %c0_217, %c0_218], %757 {strides = array<i32>} : memref<8x8x128xf32, #tpu.memory_space<vmem>>, vector<1x8x128xf32>,
    %758 = arith.index_cast %685 : i32 to index
    %c0_219 = arith.constant 0 : index
    %c0_220 = arith.constant 0 : index
    %759 = vector.load %arg11[%758, %c0_219, %c0_220] : memref<8x8x128xf32, #tpu.memory_space<vmem>>, vector<1x8x128xf32>
    %760 = vector.shape_cast %759 : vector<1x8x128xf32> to vector<8x128xf32>
    %761 = vector.shape_cast %753 : vector<8x128xf32> to vector<1x8x128xf32>
    tpu.vector_store %arg11[%758, %c0_219, %c0_220], %761 {strides = array<i32>} : memref<8x8x128xf32, #tpu.memory_space<vmem>>, vector<1x8x128xf32>,
    %762 = arith.sitofp %c7_i32_195 : i32 to f32
    %763 = arith.sitofp %685 : i32 to f32
    %764 = vector.broadcast %762 : f32 to vector<8x1xf32>
    %765 = arith.cmpf olt, %764, %1 : vector<8x1xf32>
    %766 = arith.extui %765 : vector<8x1xi1> to vector<8x1xi32>
    %767 = arith.sitofp %766 : vector<8x1xi32> to vector<8x1xf32>
    %768 = vector.broadcast %767 : vector<8x1xf32> to vector<8x128xf32>
    %769 = arith.mulf %719, %768 : vector<8x128xf32>
    %770 = arith.addf %677, %769 : vector<8x128xf32>
    %771 = vector.broadcast %763 : f32 to vector<8x1xf32>
    %772 = arith.cmpf olt, %771, %1 : vector<8x1xf32>
    %773 = arith.extui %772 : vector<8x1xi1> to vector<8x1xi32>
    %774 = arith.sitofp %773 : vector<8x1xi32> to vector<8x1xf32>
    %775 = vector.broadcast %774 : vector<8x1xf32> to vector<8x128xf32>
    %776 = arith.mulf %753, %775 : vector<8x128xf32>
    %777 = arith.addf %684, %776 : vector<8x128xf32>
    %c8_i32 = arith.constant 8 : i32
    %cst_221 = arith.constant 1.000000e+00 : f32
    %778 = vector.broadcast %cst_221 : f32 to vector<8x1xf32>
    %779 = arith.maximumf %1, %778 : vector<8x1xf32>
    %780 = tpu.reciprocal %779 {approx = true} : vector<8x1xf32> -> vector<8x1xf32>
    %781 = vector.broadcast %780 : vector<8x1xf32> to vector<8x128xf32>
    %782 = arith.mulf %770, %781 : vector<8x128xf32>
    %c0_222 = arith.constant 0 : index
    %c0_223 = arith.constant 0 : index
    %783 = vector.load %arg12[%c0_222, %c0_223] : memref<8x128xf32, #tpu.memory_space<vmem>>, vector<8x128xf32>
    tpu.vector_store %arg12[%c0_222, %c0_223], %782 {strides = array<i32>} : memref<8x128xf32, #tpu.memory_space<vmem>>, vector<8x128xf32>,
    %784 = vector.broadcast %780 : vector<8x1xf32> to vector<8x128xf32>
    %785 = arith.mulf %777, %784 : vector<8x128xf32>
    %c0_224 = arith.constant 0 : index
    %c0_225 = arith.constant 0 : index
    %786 = vector.load %arg13[%c0_224, %c0_225] : memref<8x128xf32, #tpu.memory_space<vmem>>, vector<8x128xf32>
    tpu.vector_store %arg13[%c0_224, %c0_225], %785 {strides = array<i32>} : memref<8x128xf32, #tpu.memory_space<vmem>>, vector<8x128xf32>,
    return
  }
  func.func @transform_0(%arg0: i32) -> (i32, i32, i32) {
    %c0_i32 = arith.constant 0 : i32
    %c0_i32_0 = arith.constant 0 : i32
    %c0_i32_1 = arith.constant 0 : i32
    return %c0_i32, %arg0, %c0_i32_0 : i32, i32, i32
  }
  func.func @transform_1(%arg0: i32) -> (i32, i32) {
    %c0_i32 = arith.constant 0 : i32
    %c0_i32_0 = arith.constant 0 : i32
    return %arg0, %c0_i32 : i32, i32
  }
  func.func @transform_2(%arg0: i32) -> (i32, i32) {
    %c0_i32 = arith.constant 0 : i32
    %c0_i32_0 = arith.constant 0 : i32
    %c0_i32_1 = arith.constant 0 : i32
    return %c0_i32, %c0_i32_0 : i32, i32
  }
  func.func @transform_3(%arg0: i32) -> (i32, i32) {
    %c0_i32 = arith.constant 0 : i32
    %c0_i32_0 = arith.constant 0 : i32
    %c0_i32_1 = arith.constant 0 : i32
    return %c0_i32, %c0_i32_0 : i32, i32
  }
  func.func @transform_4(%arg0: i32) -> (i32, i32) {
    %c0_i32 = arith.constant 0 : i32
    %c0_i32_0 = arith.constant 0 : i32
    %c0_i32_1 = arith.constant 0 : i32
    return %c0_i32, %c0_i32_0 : i32, i32
  }
  func.func @transform_5(%arg0: i32) -> (i32, i32) {
    %c0_i32 = arith.constant 0 : i32
    %c0_i32_0 = arith.constant 0 : i32
    %c0_i32_1 = arith.constant 0 : i32
    return %c0_i32, %c0_i32_0 : i32, i32
  }
  func.func @transform_6(%arg0: i32) -> (i32, i32) {
    %c0_i32 = arith.constant 0 : i32
    %c0_i32_0 = arith.constant 0 : i32
    %c0_i32_1 = arith.constant 0 : i32
    return %c0_i32, %c0_i32_0 : i32, i32
  }
  func.func @transform_7(%arg0: i32) -> (i32, i32) {
    %c0_i32 = arith.constant 0 : i32
    %c0_i32_0 = arith.constant 0 : i32
    %c0_i32_1 = arith.constant 0 : i32
    return %c0_i32, %c0_i32_0 : i32, i32
  }
  func.func @transform_8(%arg0: i32) -> (i32, i32) {
    %c0_i32 = arith.constant 0 : i32
    %c0_i32_0 = arith.constant 0 : i32
    %c0_i32_1 = arith.constant 0 : i32
    return %c0_i32, %c0_i32_0 : i32, i32
  }
  func.func @transform_9(%arg0: i32) -> (i32, i32, i32) {
    %c0_i32 = arith.constant 0 : i32
    %c0_i32_0 = arith.constant 0 : i32
    %c0_i32_1 = arith.constant 0 : i32
    return %c0_i32, %arg0, %c0_i32_0 : i32, i32, i32
  }
  func.func @transform_10(%arg0: i32) -> (i32, i32, i32) {
    %c0_i32 = arith.constant 0 : i32
    %c0_i32_0 = arith.constant 0 : i32
    %c0_i32_1 = arith.constant 0 : i32
    return %c0_i32, %arg0, %c0_i32_0 : i32, i32, i32
  }
  func.func @transform_11(%arg0: i32) -> (i32, i32) {
    %c0_i32 = arith.constant 0 : i32
    %c0_i32_0 = arith.constant 0 : i32
    return %arg0, %c0_i32 : i32, i32
  }
  func.func @transform_12(%arg0: i32) -> (i32, i32) {
    %c0_i32 = arith.constant 0 : i32
    %c0_i32_0 = arith.constant 0 : i32
    return %arg0, %c0_i32 : i32, i32
  }
}

</mosaic_0001>

<llo_original>
// kernel: tpu_custom_call.1
$region0: #{tpu_custom_call.1}
  #allocation0 [shape = 'u32[]', space=smem, size = 0x4, offset = 0x4, fixed_abs, tag = 'smem constant byte address 0x4 - core index']
  #allocation1 [shape = 'u32[144,128]{1,0:T(1,128)}', space=vmem, size = 0x12000, scoped, tag = 'internal scratch']
  #allocation2 [shape = 'f32[8,8,384]{2,1,0:T(8,128)}', space=vmem, size = 0x18000, scoped, tag = 'scratch operand']
  #allocation3 [shape = 'f32[8,8,384]{2,1,0:T(8,128)}', space=vmem, size = 0x18000, scoped, tag = 'scratch operand']
  %s0 = inlined_call_operand.hbm [shape: f32[8,8,128], index: 0, kind: input, shape index: {}]
  %s1 = inlined_call_operand.vmem [shape: f32[8,1], index: 1, kind: input, shape index: {}]
  %s2 = inlined_call_operand.hbm [shape: f32[1,128], index: 2, kind: input, shape index: {}]
  %s3 = inlined_call_operand.hbm [shape: f32[128,768], index: 3, kind: input, shape index: {}]
  %s4 = inlined_call_operand.vmem [shape: f32[1,768], index: 4, kind: input, shape index: {}]
  %s5 = inlined_call_operand.hbm [shape: f32[128,384], index: 5, kind: input, shape index: {}]
  %s6 = inlined_call_operand.vmem [shape: f32[1,384], index: 6, kind: input, shape index: {}]
  %s7 = inlined_call_operand.hbm [shape: f32[128,384], index: 7, kind: input, shape index: {}]
  %s8 = inlined_call_operand.vmem [shape: f32[1,384], index: 8, kind: input, shape index: {}]
  %s9 = inlined_call_operand.hbm [shape: f32[8,8,128], index: 9, kind: output, shape index: {0}]
  %s10 = inlined_call_operand.hbm [shape: f32[8,8,128], index: 10, kind: output, shape index: {1}]
  %s11 = inlined_call_operand.hbm [shape: f32[8,128], index: 11, kind: output, shape index: {2}]
  %s12 = inlined_call_operand.hbm [shape: f32[8,128], index: 12, kind: output, shape index: {3}]
  %13 = xla_tuple %s9, %s10, %s11, %s12
  %s14 = sld [smem:[#allocation0]]
  $region90: #{tpu_custom_call.1} parent=0
    _
  %s16 = ssub.s32 1, %s14
  %s17 = scalar_select 0, %s16, %s14
  $region1: #{tpu_custom_call.1} parent=0
    #allocation4 [shape = 'u8[32768]{0}', space=vmem, size = 0x8000, scoped, tag = 'input window, operand 0, single buffered']
    #allocation5 [shape = 's32[1]{0}', space=sflag, size = 0x4, scoped, tag = 'scoped memory for tpu_custom_call.1']
    #allocation6 [shape = 's32[1]{0}', space=sflag, size = 0x4, scoped, tag = 'scoped memory for tpu_custom_call.1']
    #allocation7 [shape = 'u8[512]{0}', space=vmem, size = 0x400, scoped, tag = 'input window, operand 2, single buffered']
    #allocation8 [shape = 's32[1]{0}', space=sflag, size = 0x4, scoped, tag = 'scoped memory for tpu_custom_call.1']
    #allocation9 [shape = 'u8[393216]{0}', space=vmem, size = 0x60000, scoped, tag = 'input window, operand 3, single buffered']
    #allocation10 [shape = 'u8[196608]{0}', space=vmem, size = 0x30000, scoped, tag = 'input window, operand 5, single buffered']
    #allocation11 [shape = 's32[1]{0}', space=sflag, size = 0x4, scoped, tag = 'scoped memory for tpu_custom_call.1']
    #allocation12 [shape = 'u8[196608]{0}', space=vmem, size = 0x30000, scoped, tag = 'input window, operand 7, single buffered']
    #allocation13 [shape = 'u8[32768]{0}', space=vmem, size = 0x8000, scoped, tag = 'output window, operand 0, single buffered']
    #allocation14 [shape = 'u8[32768]{0}', space=vmem, size = 0x8000, scoped, tag = 'output window, operand 1, single buffered']
    #allocation15 [shape = 's32[1]{0}', space=sflag, size = 0x4, scoped, tag = 'scoped memory for tpu_custom_call.1']
    #allocation16 [shape = 'u8[4096]{0}', space=vmem, size = 0x1000, scoped, tag = 'output window, operand 2, single buffered']
    #allocation17 [shape = 'u8[4096]{0}', space=vmem, size = 0x1000, scoped, tag = 'output window, operand 3, single buffered']
    #allocation18 [shape = 's32[1]{0}', space=sflag, size = 0x4, scoped, tag = 'scoped memory for tpu_custom_call.1']
    %18 = vsyncpa [#allocation5], 0
    %19 = vsyncpa [#allocation8], 0
    %20 = vsyncpa [#allocation11], 0
    %21 = vsyncpa [#allocation6], 0
    %22 = vsyncpa [#allocation15], 0
    %23 = vsyncpa [#allocation18], 0
    // Predicated region
    $region2: #{tpu_custom_call.1} parent=1 // pred_check
      _
    $region3: #{tpu_custom_call.1} parent=1 // pred_check_branch
      %25 = sbr.rel (0) target = $region5
    $region4: #{tpu_custom_call.1} parent=1 // pred_region
      %s27 = ssub.s32 1024, 1024
      %28 = vsyncadd [#allocation5], %s27
      %s29 = sshll.u32 [#allocation4], 4
      %s30 = int_to_ptr.vmem [resolvable:$true] %s29
      %35 = dma.hbm_to_vmem [thread:$0]  %s0, 1024, %s30, [#allocation5], 128, 128, 8
    $region5: #{tpu_custom_call.1} parent=1 // pred_fallthru
      _
    // Predicated region
    $region6: #{tpu_custom_call.1} parent=1 // pred_check
      _
    $region7: #{tpu_custom_call.1} parent=1 // pred_check_branch
      %37 = sbr.rel (0) target = $region9
    $region8: #{tpu_custom_call.1} parent=1 // pred_region
      _
    $region9: #{tpu_custom_call.1} parent=1 // pred_fallthru
      _
    // Predicated region
    $region10: #{tpu_custom_call.1} parent=1 // pred_check
      _
    $region11: #{tpu_custom_call.1} parent=1 // pred_check_branch
      %39 = sbr.rel (0) target = $region13
    $region12: #{tpu_custom_call.1} parent=1 // pred_region
      %s41 = ssub.s32 16, 16
      %42 = vsyncadd [#allocation8], %s41
      %s44 = sshll.u32 [#allocation7], 4
      %s45 = int_to_ptr.vmem [resolvable:$true] %s44
      %47 = dma.hbm_to_vmem [thread:$0]  %s2, 16, %s45, [#allocation8]
    $region13: #{tpu_custom_call.1} parent=1 // pred_fallthru
      _
    // Predicated region
    $region14: #{tpu_custom_call.1} parent=1 // pred_check
      _
    $region15: #{tpu_custom_call.1} parent=1 // pred_check_branch
      %49 = sbr.rel (0) target = $region17
    $region16: #{tpu_custom_call.1} parent=1 // pred_region
      %s51 = ssub.s32 12288, 12288
      %52 = vsyncadd [#allocation8], %s51
      %s53 = sshll.u32 [#allocation9], 4
      %s54 = int_to_ptr.vmem [resolvable:$true] %s53
      %59 = dma.hbm_to_vmem [thread:$0]  %s3, 12288, %s54, [#allocation8], 768, 768, 48
    $region17: #{tpu_custom_call.1} parent=1 // pred_fallthru
      _
    // Predicated region
    $region18: #{tpu_custom_call.1} parent=1 // pred_check
      _
    $region19: #{tpu_custom_call.1} parent=1 // pred_check_branch
      %61 = sbr.rel (0) target = $region21
    $region20: #{tpu_custom_call.1} parent=1 // pred_region
      _
    $region21: #{tpu_custom_call.1} parent=1 // pred_fallthru
      _
    // Predicated region
    $region22: #{tpu_custom_call.1} parent=1 // pred_check
      _
    $region23: #{tpu_custom_call.1} parent=1 // pred_check_branch
      %63 = sbr.rel (0) target = $region25
    $region24: #{tpu_custom_call.1} parent=1 // pred_region
      %s65 = ssub.s32 6144, 6144
      %66 = vsyncadd [#allocation11], %s65
      %s67 = sshll.u32 [#allocation10], 4
      %s68 = int_to_ptr.vmem [resolvable:$true] %s67
      %73 = dma.hbm_to_vmem [thread:$0]  %s5, 6144, %s68, [#allocation11], 384, 384, 24
    $region25: #{tpu_custom_call.1} parent=1 // pred_fallthru
      _
    // Predicated region
    $region26: #{tpu_custom_call.1} parent=1 // pred_check
      _
    $region27: #{tpu_custom_call.1} parent=1 // pred_check_branch
      %75 = sbr.rel (0) target = $region29
    $region28: #{tpu_custom_call.1} parent=1 // pred_region
      _
    $region29: #{tpu_custom_call.1} parent=1 // pred_fallthru
      _
    // Predicated region
    $region30: #{tpu_custom_call.1} parent=1 // pred_check
      _
    $region31: #{tpu_custom_call.1} parent=1 // pred_check_branch
      %77 = sbr.rel (0) target = $region33
    $region32: #{tpu_custom_call.1} parent=1 // pred_region
      %s79 = ssub.s32 6144, 6144
      %80 = vsyncadd [#allocation11], %s79
      %s81 = sshll.u32 [#allocation12], 4
      %s82 = int_to_ptr.vmem [resolvable:$true] %s81
      %87 = dma.hbm_to_vmem [thread:$0]  %s7, 6144, %s82, [#allocation11], 384, 384, 24
    $region33: #{tpu_custom_call.1} parent=1 // pred_fallthru
      _
    // Predicated region
    $region34: #{tpu_custom_call.1} parent=1 // pred_check
      _
    $region35: #{tpu_custom_call.1} parent=1 // pred_check_branch
      %89 = sbr.rel (0) target = $region37
    $region36: #{tpu_custom_call.1} parent=1 // pred_region
      _
    $region37: #{tpu_custom_call.1} parent=1 // pred_fallthru
      _
    // Predicated region
    $region38: #{tpu_custom_call.1} parent=1 // pred_check
      _
    $region39: #{tpu_custom_call.1} parent=1 // pred_check_branch
      %91 = sbr.rel (0) target = $region41
    $region40: #{tpu_custom_call.1} parent=1 // pred_region
      %92 = dma.done [#allocation5], 1024
    $region41: #{tpu_custom_call.1} parent=1 // pred_fallthru
      _
    // Predicated region
    $region42: #{tpu_custom_call.1} parent=1 // pred_check
      _
    $region43: #{tpu_custom_call.1} parent=1 // pred_check_branch
      %94 = sbr.rel (0) target = $region45
    $region44: #{tpu_custom_call.1} parent=1 // pred_region
      %95 = dma.done [#allocation8], 16
    $region45: #{tpu_custom_call.1} parent=1 // pred_fallthru
      _
    // Predicated region
    $region46: #{tpu_custom_call.1} parent=1 // pred_check
      _
    $region47: #{tpu_custom_call.1} parent=1 // pred_check_branch
      %97 = sbr.rel (0) target = $region49
    $region48: #{tpu_custom_call.1} parent=1 // pred_region
      %98 = dma.done [#allocation8], 12288
    $region49: #{tpu_custom_call.1} parent=1 // pred_fallthru
      _
    // Predicated region
    $region50: #{tpu_custom_call.1} parent=1 // pred_check
      _
    $region51: #{tpu_custom_call.1} parent=1 // pred_check_branch
      %100 = sbr.rel (0) target = $region53
    $region52: #{tpu_custom_call.1} parent=1 // pred_region
      %101 = dma.done [#allocation11], 6144
    $region53: #{tpu_custom_call.1} parent=1 // pred_fallthru
      _
    // Predicated region
    $region54: #{tpu_custom_call.1} parent=1 // pred_check
      _
    $region55: #{tpu_custom_call.1} parent=1 // pred_check_branch
      %103 = sbr.rel (0) target = $region57
    $region56: #{tpu_custom_call.1} parent=1 // pred_region
      %104 = dma.done [#allocation11], 6144
    $region57: #{tpu_custom_call.1} parent=1 // pred_fallthru
      _
    %v105 = vld [vmem:[#allocation4] sm:$0xff]
    %v106 = vld [vmem:[#allocation4 + $0x8] sm:$0xff]
    %v107 = vld [vmem:[#allocation4 + $0x10] sm:$0xff]
    %v108 = vld [vmem:[#allocation4 + $0x18] sm:$0xff]
    %v109 = vld [vmem:[#allocation4 + $0x20] sm:$0xff]
    %v110 = vld [vmem:[#allocation4 + $0x28] sm:$0xff]
    %v111 = vld [vmem:[#allocation4 + $0x30] sm:$0xff]
    %v112 = vld [vmem:[#allocation4 + $0x38] sm:$0xff]
    %v113 = vld [vmem:[%s1] sm:$0xff]
    %v114 = vld [vmem:[#allocation7] sm:$0x1]
    %v115 = vcvt.s32.f32 0
    %v116 = vcvt.s32.f32 1
    %v117 = vcvt.s32.f32 2
    %v118 = vcvt.s32.f32 3
    %v119 = vcvt.s32.f32 4
    %v120 = vcvt.s32.f32 5
    %v121 = vcvt.s32.f32 6
    %v122 = vcvt.s32.f32 7
    %124 = vset.pattern.permute.xlu0 0
    %125 = vperm.xlu0 %124, %v113
    %v126 = vpop.permute.xlu0 %125
    %vm128 = vcmp.lt.f32.partialorder %v115, %v126
    %vm129 = vcmp.lt.f32.partialorder %v116, %v126
    %vm130 = vcmp.lt.f32.partialorder %v117, %v126
    %vm131 = vcmp.lt.f32.partialorder %v118, %v126
    %vm132 = vcmp.lt.f32.partialorder %v119, %v126
    %vm133 = vcmp.lt.f32.partialorder %v120, %v126
    %vm134 = vcmp.lt.f32.partialorder %v121, %v126
    %vm135 = vcmp.lt.f32.partialorder %v122, %v126
    %v136 = vsel %vm128, 1, 0
    %v137 = vsel %vm129, 1, 0
    %v138 = vsel %vm130, 1, 0
    %v139 = vsel %vm131, 1, 0
    %v140 = vsel %vm132, 1, 0
    %v141 = vsel %vm133, 1, 0
    %v142 = vsel %vm134, 1, 0
    %v143 = vsel %vm135, 1, 0
    %v144 = vcvt.s32.f32 %v136
    %v145 = vcvt.s32.f32 %v137
    %v146 = vcvt.s32.f32 %v138
    %v147 = vcvt.s32.f32 %v139
    %v148 = vcvt.s32.f32 %v140
    %v149 = vcvt.s32.f32 %v141
    %v150 = vcvt.s32.f32 %v142
    %v151 = vcvt.s32.f32 %v143
    %v153 = vlaneseq
    %v154 = vshrl.u32 %v153, 7
    %v155 = vsub.s32 0, %v154
    %v156 = vrot.slane %v114, %v155
    %v158 = vadd.f32 %v105, %v156
    %v159 = vadd.f32 %v106, %v156
    %v160 = vadd.f32 %v107, %v156
    %v161 = vadd.f32 %v108, %v156
    %v162 = vadd.f32 %v109, %v156
    %v163 = vadd.f32 %v110, %v156
    %v164 = vadd.f32 %v111, %v156
    %v165 = vadd.f32 %v112, %v156
    %v166 = vmax.f32 %v158, 0.0
    %v167 = vmax.f32 %v159, 0.0
    %v168 = vmax.f32 %v160, 0.0
    %v169 = vmax.f32 %v161, 0.0
    %v170 = vmax.f32 %v162, 0.0
    %v171 = vmax.f32 %v163, 0.0
    %v172 = vmax.f32 %v164, 0.0
    %v173 = vmax.f32 %v165, 0.0
    %v174 = vmul.f32 %v166, %v144
    %v175 = vmul.f32 %v167, %v145
    %v176 = vmul.f32 %v168, %v146
    %v177 = vmul.f32 %v169, %v147
    %v178 = vmul.f32 %v170, %v148
    %v179 = vmul.f32 %v171, %v149
    %v180 = vmul.f32 %v172, %v150
    %v181 = vmul.f32 %v173, %v151
    %vm182 = vcmp.gt.f32.partialorder %v144, 0.0
    %vm183 = vcmp.gt.f32.partialorder %v145, 0.0
    %vm184 = vcmp.gt.f32.partialorder %v146, 0.0
    %vm185 = vcmp.gt.f32.partialorder %v147, 0.0
    %vm186 = vcmp.gt.f32.partialorder %v148, 0.0
    %vm187 = vcmp.gt.f32.partialorder %v149, 0.0
    %vm188 = vcmp.gt.f32.partialorder %v150, 0.0
    %vm189 = vcmp.gt.f32.partialorder %v151, 0.0
    %v190 = vsel %vm182, %v105, -1e+09
    %v191 = vsel %vm183, %v106, -1e+09
    %v192 = vsel %vm184, %v107, -1e+09
    %v193 = vsel %vm185, %v108, -1e+09
    %v194 = vsel %vm186, %v109, -1e+09
    %v195 = vsel %vm187, %v110, -1e+09
    %v196 = vsel %vm188, %v111, -1e+09
    %v197 = vsel %vm189, %v112, -1e+09
    %v198 = vmax.f32 %v190, %v194
    %v199 = vmax.f32 %v191, %v195
    %v200 = vmax.f32 %v192, %v196
    %v201 = vmax.f32 %v193, %v197
    %v202 = vmax.f32 %v198, %v199
    %v203 = vmax.f32 %v200, %v201
    %v204 = vmax.f32 %v202, %v203
    %v205 = vld [vmem:[#allocation9] sm:$0xff]
    %v206 = vld [vmem:[#allocation9 + $0x8] sm:$0xff]
    %v207 = vld [vmem:[#allocation9 + $0x10] sm:$0xff]
    %v208 = vld [vmem:[#allocation9 + $0x18] sm:$0xff]
    %v209 = vld [vmem:[#allocation9 + $0x20] sm:$0xff]
    %v210 = vld [vmem:[#allocation9 + $0x28] sm:$0xff]
    %v211 = vld [vmem:[#allocation9 + $0x30] sm:$0xff]
    %v212 = vld [vmem:[#allocation9 + $0x38] sm:$0xff]
    %v213 = vld [vmem:[#allocation9 + $0x40] sm:$0xff]
    %v214 = vld [vmem:[#allocation9 + $0x48] sm:$0xff]
    %v215 = vld [vmem:[#allocation9 + $0x50] sm:$0xff]
    %v216 = vld [vmem:[#allocation9 + $0x58] sm:$0xff]
    %v217 = vld [vmem:[#allocation9 + $0x60] sm:$0xff]
    %v218 = vld [vmem:[#allocation9 + $0x68] sm:$0xff]
    %v219 = vld [vmem:[#allocation9 + $0x70] sm:$0xff]
    %v220 = vld [vmem:[#allocation9 + $0x78] sm:$0xff]
    %v221 = vld [vmem:[#allocation9 + $0x80] sm:$0xff]
    %v222 = vld [vmem:[#allocation9 + $0x88] sm:$0xff]
    %v223 = vld [vmem:[#allocation9 + $0x90] sm:$0xff]
    %v224 = vld [vmem:[#allocation9 + $0x98] sm:$0xff]
    %v225 = vld [vmem:[#allocation9 + $0xa0] sm:$0xff]
    %v226 = vld [vmem:[#allocation9 + $0xa8] sm:$0xff]
    %v227 = vld [vmem:[#allocation9 + $0xb0] sm:$0xff]
    %v228 = vld [vmem:[#allocation9 + $0xb8] sm:$0xff]
    %v229 = vld [vmem:[#allocation9 + $0xc0] sm:$0xff]
    %v230 = vld [vmem:[#allocation9 + $0xc8] sm:$0xff]
    %v231 = vld [vmem:[#allocation9 + $0xd0] sm:$0xff]
    %v232 = vld [vmem:[#allocation9 + $0xd8] sm:$0xff]
    %v233 = vld [vmem:[#allocation9 + $0xe0] sm:$0xff]
    %v234 = vld [vmem:[#allocation9 + $0xe8] sm:$0xff]
    %v235 = vld [vmem:[#allocation9 + $0xf0] sm:$0xff]
    %v236 = vld [vmem:[#allocation9 + $0xf8] sm:$0xff]
    %v237 = vld [vmem:[#allocation9 + $0x100] sm:$0xff]
    %v238 = vld [vmem:[#allocation9 + $0x108] sm:$0xff]
    %v239 = vld [vmem:[#allocation9 + $0x110] sm:$0xff]
    %v240 = vld [vmem:[#allocation9 + $0x118] sm:$0xff]
    %v241 = vld [vmem:[#allocation9 + $0x120] sm:$0xff]
    %v242 = vld [vmem:[#allocation9 + $0x128] sm:$0xff]
    %v243 = vld [vmem:[#allocation9 + $0x130] sm:$0xff]
    %v244 = vld [vmem:[#allocation9 + $0x138] sm:$0xff]
    %v245 = vld [vmem:[#allocation9 + $0x140] sm:$0xff]
    %v246 = vld [vmem:[#allocation9 + $0x148] sm:$0xff]
    %v247 = vld [vmem:[#allocation9 + $0x150] sm:$0xff]
    %v248 = vld [vmem:[#allocation9 + $0x158] sm:$0xff]
    %v249 = vld [vmem:[#allocation9 + $0x160] sm:$0xff]
    %v250 = vld [vmem:[#allocation9 + $0x168] sm:$0xff]
    %v251 = vld [vmem:[#allocation9 + $0x170] sm:$0xff]
    %v252 = vld [vmem:[#allocation9 + $0x178] sm:$0xff]
    %v253 = vld [vmem:[#allocation9 + $0x180] sm:$0xff]
    %v254 = vld [vmem:[#allocation9 + $0x188] sm:$0xff]
    %v255 = vld [vmem:[#allocation9 + $0x190] sm:$0xff]
    %v256 = vld [vmem:[#allocation9 + $0x198] sm:$0xff]
    %v257 = vld [vmem:[#allocation9 + $0x1a0] sm:$0xff]
    %v258 = vld [vmem:[#allocation9 + $0x1a8] sm:$0xff]
    %v259 = vld [vmem:[#allocation9 + $0x1b0] sm:$0xff]
    %v260 = vld [vmem:[#allocation9 + $0x1b8] sm:$0xff]
    %v261 = vld [vmem:[#allocation9 + $0x1c0] sm:$0xff]
    %v262 = vld [vmem:[#allocation9 + $0x1c8] sm:$0xff]
    %v263 = vld [vmem:[#allocation9 + $0x1d0] sm:$0xff]
    %v264 = vld [vmem:[#allocation9 + $0x1d8] sm:$0xff]
    %v265 = vld [vmem:[#allocation9 + $0x1e0] sm:$0xff]
    %v266 = vld [vmem:[#allocation9 + $0x1e8] sm:$0xff]
    %v267 = vld [vmem:[#allocation9 + $0x1f0] sm:$0xff]
    %v268 = vld [vmem:[#allocation9 + $0x1f8] sm:$0xff]
    %v269 = vld [vmem:[#allocation9 + $0x200] sm:$0xff]
    %v270 = vld [vmem:[#allocation9 + $0x208] sm:$0xff]
    %v271 = vld [vmem:[#allocation9 + $0x210] sm:$0xff]
    %v272 = vld [vmem:[#allocation9 + $0x218] sm:$0xff]
    %v273 = vld [vmem:[#allocation9 + $0x220] sm:$0xff]
    %v274 = vld [vmem:[#allocation9 + $0x228] sm:$0xff]
    %v275 = vld [vmem:[#allocation9 + $0x230] sm:$0xff]
    %v276 = vld [vmem:[#allocation9 + $0x238] sm:$0xff]
    %v277 = vld [vmem:[#allocation9 + $0x240] sm:$0xff]
    %v278 = vld [vmem:[#allocation9 + $0x248] sm:$0xff]
    %v279 = vld [vmem:[#allocation9 + $0x250] sm:$0xff]
    %v280 = vld [vmem:[#allocation9 + $0x258] sm:$0xff]
    %v281 = vld [vmem:[#allocation9 + $0x260] sm:$0xff]
    %v282 = vld [vmem:[#allocation9 + $0x268] sm:$0xff]
    %v283 = vld [vmem:[#allocation9 + $0x270] sm:$0xff]
    %v284 = vld [vmem:[#allocation9 + $0x278] sm:$0xff]
    %v285 = vld [vmem:[#allocation9 + $0x280] sm:$0xff]
    %v286 = vld [vmem:[#allocation9 + $0x288] sm:$0xff]
    %v287 = vld [vmem:[#allocation9 + $0x290] sm:$0xff]
    %v288 = vld [vmem:[#allocation9 + $0x298] sm:$0xff]
    %v289 = vld [vmem:[#allocation9 + $0x2a0] sm:$0xff]
    %v290 = vld [vmem:[#allocation9 + $0x2a8] sm:$0xff]
    %v291 = vld [vmem:[#allocation9 + $0x2b0] sm:$0xff]
    %v292 = vld [vmem:[#allocation9 + $0x2b8] sm:$0xff]
    %v293 = vld [vmem:[#allocation9 + $0x2c0] sm:$0xff]
    %v294 = vld [vmem:[#allocation9 + $0x2c8] sm:$0xff]
    %v295 = vld [vmem:[#allocation9 + $0x2d0] sm:$0xff]
    %v296 = vld [vmem:[#allocation9 + $0x2d8] sm:$0xff]
    %v297 = vld [vmem:[#allocation9 + $0x2e0] sm:$0xff]
    %v298 = vld [vmem:[#allocation9 + $0x2e8] sm:$0xff]
    %v299 = vld [vmem:[#allocation9 + $0x2f0] sm:$0xff]
    %v300 = vld [vmem:[#allocation9 + $0x2f8] sm:$0xff]
    %v301 = vld [vmem:[%s4] sm:$0x3f]
    %v303 = vlaneseq
    %v304 = vshrl.u32 %v303, 7
    %v305 = vsub.s32 0, %v304
    %v306 = vrot.slane %v301, %v305
    %v307 = vlaneseq
    %v308 = vshrl.u32 %v307, 7
    %v309 = vsub.s32 1, %v308
    %v310 = vrot.slane %v301, %v309
    %v311 = vlaneseq
    %v312 = vshrl.u32 %v311, 7
    %v313 = vsub.s32 2, %v312
    %v314 = vrot.slane %v301, %v313
    %v315 = vlaneseq
    %v316 = vshrl.u32 %v315, 7
    %v317 = vsub.s32 3, %v316
    %v318 = vrot.slane %v301, %v317
    %v319 = vlaneseq
    %v320 = vshrl.u32 %v319, 7
    %v321 = vsub.s32 4, %v320
    %v322 = vrot.slane %v301, %v321
    %v323 = vlaneseq
    %v324 = vshrl.u32 %v323, 7
    %v325 = vsub.s32 5, %v324
    %v326 = vrot.slane %v301, %v325
    %333 = vmatprep.subr.mxu0 %v296
    %334 = vmatpush1.msra.mxu0 %v295
    %335 = vmatprep.subr.mxu0 %v290
    %336 = vmatpush1.msra.mxu0 %v289
    %337 = vmatprep.subr.mxu0 %v284
    %338 = vmatpush1.msra.mxu0 %v283
    %339 = vmatprep.subr.mxu0 %v278
    %340 = vmatpush1.msra.mxu0 %v277
    %341 = vmatprep.subr.mxu0 %v272
    %342 = vmatpush1.msra.mxu0 %v271
    %343 = vmatprep.subr.mxu0 %v266
    %344 = vmatpush1.msra.mxu0 %v265
    %345 = vmatprep.subr.mxu0 %v260
    %346 = vmatpush1.msra.mxu0 %v259
    %347 = vmatprep.subr.mxu0 %v254
    %348 = vmatpush1.msra.mxu0 %v253
    %349 = vmatprep.subr.mxu0 %v248
    %350 = vmatpush1.msra.mxu0 %v247
    %351 = vmatprep.subr.mxu0 %v242
    %352 = vmatpush1.msra.mxu0 %v241
    %353 = vmatprep.subr.mxu0 %v236
    %354 = vmatpush1.msra.mxu0 %v235
    %355 = vmatprep.subr.mxu0 %v230
    %356 = vmatpush1.msra.mxu0 %v229
    %357 = vmatprep.subr.mxu0 %v224
    %358 = vmatpush1.msra.mxu0 %v223
    %359 = vmatprep.subr.mxu0 %v218
    %360 = vmatpush1.msra.mxu0 %v217
    %361 = vmatprep.subr.mxu0 %v212
    %362 = vmatpush1.msra.mxu0 %v211
    %363 = vmatprep.subr.mxu0 %v206
    %364 = vmatpush1.msra.mxu0 %v205
    %365 = vmatprep.subr.mxu0 0.0
    %366 = vmatpush2.msra.mxu0 0.0
    %367 = vmatprep.subr.mxu0 0.0
    %368 = vmatpush2.msra.mxu0 0.0
    %369 = vmatprep.subr.mxu0 0.0
    %370 = vmatpush2.msra.mxu0 0.0
    %371 = vmatprep.subr.mxu0 0.0
    %372 = vmatpush2.msra.mxu0 0.0
    %373 = vmatprep.subr.mxu0 0.0
    %374 = vmatpush2.msra.mxu0 0.0
    %375 = vmatprep.subr.mxu0 0.0
    %376 = vmatpush2.msra.mxu0 0.0
    %377 = vmatprep.subr.mxu0 0.0
    %378 = vmatpush2.msra.mxu0 0.0
    %379 = vmatprep.subr.mxu0 0.0
    %380 = vmatpush2.msra.mxu0 0.0
    %381 = vmatprep.subr.mxu0 0.0
    %382 = vmatpush2.msra.mxu0 0.0
    %383 = vmatprep.subr.mxu0 0.0
    %384 = vmatpush2.msra.mxu0 0.0
    %385 = vmatprep.subr.mxu0 0.0
    %386 = vmatpush2.msra.mxu0 0.0
    %387 = vmatprep.subr.mxu0 0.0
    %388 = vmatpush2.msra.mxu0 0.0
    %389 = vmatprep.subr.mxu0 0.0
    %390 = vmatpush2.msra.mxu0 0.0
    %391 = vmatprep.subr.mxu0 0.0
    %392 = vmatpush2.msra.mxu0 0.0
    %393 = vmatprep.subr.mxu0 0.0
    %394 = vmatpush2.msra.mxu0 0.0
    %395 = vmatprep.subr.mxu0 0.0
    %396 = vmatpush2.msra.mxu0 0.0
    %397 = vmatprep.mubr.f32.mxu0 0.0
    %398 = vmatmul.mubr.f32.gmra.mxu0 %v174
    %v399 = vpop.f32.mrf.mxu0
    %v400 = vadd.f32 %v306, %v399
    %v401 = vpop.f32.mrf.mxu0
    %v402 = vadd.f32 %v310, %v401
    %403 = vmatprep.mubr.f32.mxu0 0.0
    %404 = vmatmul.mubr.f32.gmra.mxu0 %v175
    %v405 = vpop.f32.mrf.mxu0
    %v406 = vadd.f32 %v306, %v405
    %v407 = vpop.f32.mrf.mxu0
    %v408 = vadd.f32 %v310, %v407
    %409 = vmatprep.mubr.f32.mxu0 0.0
    %410 = vmatmul.mubr.f32.gmra.mxu0 %v176
    %v411 = vpop.f32.mrf.mxu0
    %v412 = vadd.f32 %v306, %v411
    %v413 = vpop.f32.mrf.mxu0
    %v414 = vadd.f32 %v310, %v413
    %415 = vmatprep.mubr.f32.mxu0 0.0
    %416 = vmatmul.mubr.f32.gmra.mxu0 %v177
    %v417 = vpop.f32.mrf.mxu0
    %v418 = vadd.f32 %v306, %v417
    %v419 = vpop.f32.mrf.mxu0
    %v420 = vadd.f32 %v310, %v419
    %421 = vmatprep.mubr.f32.mxu0 0.0
    %422 = vmatmul.mubr.f32.gmra.mxu0 %v178
    %v423 = vpop.f32.mrf.mxu0
    %v424 = vadd.f32 %v306, %v423
    %v425 = vpop.f32.mrf.mxu0
    %v426 = vadd.f32 %v310, %v425
    %427 = vmatprep.mubr.f32.mxu0 0.0
    %428 = vmatmul.mubr.f32.gmra.mxu0 %v179
    %v429 = vpop.f32.mrf.mxu0
    %v430 = vadd.f32 %v306, %v429
    %v431 = vpop.f32.mrf.mxu0
    %v432 = vadd.f32 %v310, %v431
    %433 = vmatprep.mubr.f32.mxu0 0.0
    %434 = vmatmul.mubr.f32.gmra.mxu0 %v180
    %v435 = vpop.f32.mrf.mxu0
    %v436 = vadd.f32 %v306, %v435
    %v437 = vpop.f32.mrf.mxu0
    %v438 = vadd.f32 %v310, %v437
    %439 = vmatprep.mubr.f32.mxu0 0.0
    %440 = vmatmul.mubr.f32.gmra.mxu0 %v181
    %v441 = vpop.f32.mrf.mxu0
    %v442 = vadd.f32 %v306, %v441
    %v443 = vpop.f32.mrf.mxu0
    %v444 = vadd.f32 %v310, %v443
    %445 = vdwg.mxu0
    %446 = vmatprep.subr.mxu0 %v298
    %447 = vmatpush1.msra.mxu0 %v297
    %448 = vmatprep.subr.mxu0 %v292
    %449 = vmatpush1.msra.mxu0 %v291
    %450 = vmatprep.subr.mxu0 %v286
    %451 = vmatpush1.msra.mxu0 %v285
    %452 = vmatprep.subr.mxu0 %v280
    %453 = vmatpush1.msra.mxu0 %v279
    %454 = vmatprep.subr.mxu0 %v274
    %455 = vmatpush1.msra.mxu0 %v273
    %456 = vmatprep.subr.mxu0 %v268
    %457 = vmatpush1.msra.mxu0 %v267
    %458 = vmatprep.subr.mxu0 %v262
    %459 = vmatpush1.msra.mxu0 %v261
    %460 = vmatprep.subr.mxu0 %v256
    %461 = vmatpush1.msra.mxu0 %v255
    %462 = vmatprep.subr.mxu0 %v250
    %463 = vmatpush1.msra.mxu0 %v249
    %464 = vmatprep.subr.mxu0 %v244
    %465 = vmatpush1.msra.mxu0 %v243
    %466 = vmatprep.subr.mxu0 %v238
    %467 = vmatpush1.msra.mxu0 %v237
    %468 = vmatprep.subr.mxu0 %v232
    %469 = vmatpush1.msra.mxu0 %v231
    %470 = vmatprep.subr.mxu0 %v226
    %471 = vmatpush1.msra.mxu0 %v225
    %472 = vmatprep.subr.mxu0 %v220
    %473 = vmatpush1.msra.mxu0 %v219
    %474 = vmatprep.subr.mxu0 %v214
    %475 = vmatpush1.msra.mxu0 %v213
    %476 = vmatprep.subr.mxu0 %v208
    %477 = vmatpush1.msra.mxu0 %v207
    %478 = vmatprep.subr.mxu0 0.0
    %479 = vmatpush2.msra.mxu0 0.0
    %480 = vmatprep.subr.mxu0 0.0
    %481 = vmatpush2.msra.mxu0 0.0
    %482 = vmatprep.subr.mxu0 0.0
    %483 = vmatpush2.msra.mxu0 0.0
    %484 = vmatprep.subr.mxu0 0.0
    %485 = vmatpush2.msra.mxu0 0.0
    %486 = vmatprep.subr.mxu0 0.0
    %487 = vmatpush2.msra.mxu0 0.0
    %488 = vmatprep.subr.mxu0 0.0
    %489 = vmatpush2.msra.mxu0 0.0
    %490 = vmatprep.subr.mxu0 0.0
    %491 = vmatpush2.msra.mxu0 0.0
    %492 = vmatprep.subr.mxu0 0.0
    %493 = vmatpush2.msra.mxu0 0.0
    %494 = vmatprep.subr.mxu0 0.0
    %495 = vmatpush2.msra.mxu0 0.0
    %496 = vmatprep.subr.mxu0 0.0
    %497 = vmatpush2.msra.mxu0 0.0
    %498 = vmatprep.subr.mxu0 0.0
    %499 = vmatpush2.msra.mxu0 0.0
    %500 = vmatprep.subr.mxu0 0.0
    %501 = vmatpush2.msra.mxu0 0.0
    %502 = vmatprep.subr.mxu0 0.0
    %503 = vmatpush2.msra.mxu0 0.0
    %504 = vmatprep.subr.mxu0 0.0
    %505 = vmatpush2.msra.mxu0 0.0
    %506 = vmatprep.subr.mxu0 0.0
    %507 = vmatpush2.msra.mxu0 0.0
    %508 = vmatprep.subr.mxu0 0.0
    %509 = vmatpush2.msra.mxu0 0.0
    %510 = vmatprep.mubr.f32.mxu0 0.0
    %511 = vmatmul.mubr.f32.gmra.mxu0 %v174
    %v512 = vpop.f32.mrf.mxu0
    %v513 = vadd.f32 %v314, %v512
    %v514 = vpop.f32.mrf.mxu0
    %v515 = vadd.f32 %v318, %v514
    %516 = vmatprep.mubr.f32.mxu0 0.0
    %517 = vmatmul.mubr.f32.gmra.mxu0 %v175
    %v518 = vpop.f32.mrf.mxu0
    %v519 = vadd.f32 %v314, %v518
    %v520 = vpop.f32.mrf.mxu0
    %v521 = vadd.f32 %v318, %v520
    %522 = vmatprep.mubr.f32.mxu0 0.0
    %523 = vmatmul.mubr.f32.gmra.mxu0 %v176
    %v524 = vpop.f32.mrf.mxu0
    %v525 = vadd.f32 %v314, %v524
    %v526 = vpop.f32.mrf.mxu0
    %v527 = vadd.f32 %v318, %v526
    %528 = vmatprep.mubr.f32.mxu0 0.0
    %529 = vmatmul.mubr.f32.gmra.mxu0 %v177
    %v530 = vpop.f32.mrf.mxu0
    %v531 = vadd.f32 %v314, %v530
    %v532 = vpop.f32.mrf.mxu0
    %v533 = vadd.f32 %v318, %v532
    %534 = vmatprep.mubr.f32.mxu0 0.0
    %535 = vmatmul.mubr.f32.gmra.mxu0 %v178
    %v536 = vpop.f32.mrf.mxu0
    %v537 = vadd.f32 %v314, %v536
    %v538 = vpop.f32.mrf.mxu0
    %v539 = vadd.f32 %v318, %v538
    %540 = vmatprep.mubr.f32.mxu0 0.0
    %541 = vmatmul.mubr.f32.gmra.mxu0 %v179
    %v542 = vpop.f32.mrf.mxu0
    %v543 = vadd.f32 %v314, %v542
    %v544 = vpop.f32.mrf.mxu0
    %v545 = vadd.f32 %v318, %v544
    %546 = vmatprep.mubr.f32.mxu0 0.0
    %547 = vmatmul.mubr.f32.gmra.mxu0 %v180
    %v548 = vpop.f32.mrf.mxu0
    %v549 = vadd.f32 %v314, %v548
    %v550 = vpop.f32.mrf.mxu0
    %v551 = vadd.f32 %v318, %v550
    %552 = vmatprep.mubr.f32.mxu0 0.0
    %553 = vmatmul.mubr.f32.gmra.mxu0 %v181
    %v554 = vpop.f32.mrf.mxu0
    %v555 = vadd.f32 %v314, %v554
    %v556 = vpop.f32.mrf.mxu0
    %v557 = vadd.f32 %v318, %v556
    %558 = vdwg.mxu0
    %559 = vmatprep.subr.mxu0 %v300
    %560 = vmatpush1.msra.mxu0 %v299
    %561 = vmatprep.subr.mxu0 %v294
    %562 = vmatpush1.msra.mxu0 %v293
    %563 = vmatprep.subr.mxu0 %v288
    %564 = vmatpush1.msra.mxu0 %v287
    %565 = vmatprep.subr.mxu0 %v282
    %566 = vmatpush1.msra.mxu0 %v281
    %567 = vmatprep.subr.mxu0 %v276
    %568 = vmatpush1.msra.mxu0 %v275
    %569 = vmatprep.subr.mxu0 %v270
    %570 = vmatpush1.msra.mxu0 %v269
    %571 = vmatprep.subr.mxu0 %v264
    %572 = vmatpush1.msra.mxu0 %v263
    %573 = vmatprep.subr.mxu0 %v258
    %574 = vmatpush1.msra.mxu0 %v257
    %575 = vmatprep.subr.mxu0 %v252
    %576 = vmatpush1.msra.mxu0 %v251
    %577 = vmatprep.subr.mxu0 %v246
    %578 = vmatpush1.msra.mxu0 %v245
    %579 = vmatprep.subr.mxu0 %v240
    %580 = vmatpush1.msra.mxu0 %v239
    %581 = vmatprep.subr.mxu0 %v234
    %582 = vmatpush1.msra.mxu0 %v233
    %583 = vmatprep.subr.mxu0 %v228
    %584 = vmatpush1.msra.mxu0 %v227
    %585 = vmatprep.subr.mxu0 %v222
    %586 = vmatpush1.msra.mxu0 %v221
    %587 = vmatprep.subr.mxu0 %v216
    %588 = vmatpush1.msra.mxu0 %v215
    %589 = vmatprep.subr.mxu0 %v210
    %590 = vmatpush1.msra.mxu0 %v209
    %591 = vmatprep.subr.mxu0 0.0
    %592 = vmatpush2.msra.mxu0 0.0
    %593 = vmatprep.subr.mxu0 0.0
    %594 = vmatpush2.msra.mxu0 0.0
    %595 = vmatprep.subr.mxu0 0.0
    %596 = vmatpush2.msra.mxu0 0.0
    %597 = vmatprep.subr.mxu0 0.0
    %598 = vmatpush2.msra.mxu0 0.0
    %599 = vmatprep.subr.mxu0 0.0
    %600 = vmatpush2.msra.mxu0 0.0
    %601 = vmatprep.subr.mxu0 0.0
    %602 = vmatpush2.msra.mxu0 0.0
    %603 = vmatprep.subr.mxu0 0.0
    %604 = vmatpush2.msra.mxu0 0.0
    %605 = vmatprep.subr.mxu0 0.0
    %606 = vmatpush2.msra.mxu0 0.0
    %607 = vmatprep.subr.mxu0 0.0
    %608 = vmatpush2.msra.mxu0 0.0
    %609 = vmatprep.subr.mxu0 0.0
    %610 = vmatpush2.msra.mxu0 0.0
    %611 = vmatprep.subr.mxu0 0.0
    %612 = vmatpush2.msra.mxu0 0.0
    %613 = vmatprep.subr.mxu0 0.0
    %614 = vmatpush2.msra.mxu0 0.0
    %615 = vmatprep.subr.mxu0 0.0
    %616 = vmatpush2.msra.mxu0 0.0
    %617 = vmatprep.subr.mxu0 0.0
    %618 = vmatpush2.msra.mxu0 0.0
    %619 = vmatprep.subr.mxu0 0.0
    %620 = vmatpush2.msra.mxu0 0.0
    %621 = vmatprep.subr.mxu0 0.0
    %622 = vmatpush2.msra.mxu0 0.0
    %623 = vmatprep.mubr.f32.mxu0 0.0
    %624 = vmatmul.mubr.f32.gmra.mxu0 %v174
    %v625 = vpop.f32.mrf.mxu0
    %v626 = vadd.f32 %v322, %v625
    %v627 = vpop.f32.mrf.mxu0
    %v628 = vadd.f32 %v326, %v627
    %629 = vmatprep.mubr.f32.mxu0 0.0
    %630 = vmatmul.mubr.f32.gmra.mxu0 %v175
    %v631 = vpop.f32.mrf.mxu0
    %v632 = vadd.f32 %v322, %v631
    %v633 = vpop.f32.mrf.mxu0
    %v634 = vadd.f32 %v326, %v633
    %635 = vmatprep.mubr.f32.mxu0 0.0
    %636 = vmatmul.mubr.f32.gmra.mxu0 %v176
    %v637 = vpop.f32.mrf.mxu0
    %v638 = vadd.f32 %v322, %v637
    %v639 = vpop.f32.mrf.mxu0
    %v640 = vadd.f32 %v326, %v639
    %641 = vmatprep.mubr.f32.mxu0 0.0
    %642 = vmatmul.mubr.f32.gmra.mxu0 %v177
    %v643 = vpop.f32.mrf.mxu0
    %v644 = vadd.f32 %v322, %v643
    %v645 = vpop.f32.mrf.mxu0
    %v646 = vadd.f32 %v326, %v645
    %647 = vmatprep.mubr.f32.mxu0 0.0
    %648 = vmatmul.mubr.f32.gmra.mxu0 %v178
    %v649 = vpop.f32.mrf.mxu0
    %v650 = vadd.f32 %v322, %v649
    %v651 = vpop.f32.mrf.mxu0
    %v652 = vadd.f32 %v326, %v651
    %653 = vmatprep.mubr.f32.mxu0 0.0
    %654 = vmatmul.mubr.f32.gmra.mxu0 %v179
    %v655 = vpop.f32.mrf.mxu0
    %v656 = vadd.f32 %v322, %v655
    %v657 = vpop.f32.mrf.mxu0
    %v658 = vadd.f32 %v326, %v657
    %659 = vmatprep.mubr.f32.mxu0 0.0
    %660 = vmatmul.mubr.f32.gmra.mxu0 %v180
    %v661 = vpop.f32.mrf.mxu0
    %v662 = vadd.f32 %v322, %v661
    %v663 = vpop.f32.mrf.mxu0
    %v664 = vadd.f32 %v326, %v663
    %665 = vmatprep.mubr.f32.mxu0 0.0
    %666 = vmatmul.mubr.f32.gmra.mxu0 %v181
    %v667 = vpop.f32.mrf.mxu0
    %v668 = vadd.f32 %v322, %v667
    %v669 = vpop.f32.mrf.mxu0
    %v670 = vadd.f32 %v326, %v669
    %671 = vdwg.mxu0
    %672 = vst [vmem:[#allocation2] sm:$0xff] %v400
    %673 = vst [vmem:[#allocation2 + $0x8] sm:$0xff] %v402
    %674 = vst [vmem:[#allocation2 + $0x10] sm:$0xff] %v513
    %675 = vst [vmem:[#allocation2 + $0x18] sm:$0xff] %v406
    %676 = vst [vmem:[#allocation2 + $0x20] sm:$0xff] %v408
    %677 = vst [vmem:[#allocation2 + $0x28] sm:$0xff] %v519
    %678 = vst [vmem:[#allocation2 + $0x30] sm:$0xff] %v412
    %679 = vst [vmem:[#allocation2 + $0x38] sm:$0xff] %v414
    %680 = vst [vmem:[#allocation2 + $0x40] sm:$0xff] %v525
    %681 = vst [vmem:[#allocation2 + $0x48] sm:$0xff] %v418
    %682 = vst [vmem:[#allocation2 + $0x50] sm:$0xff] %v420
    %683 = vst [vmem:[#allocation2 + $0x58] sm:$0xff] %v531
    %684 = vst [vmem:[#allocation2 + $0x60] sm:$0xff] %v424
    %685 = vst [vmem:[#allocation2 + $0x68] sm:$0xff] %v426
    %686 = vst [vmem:[#allocation2 + $0x70] sm:$0xff] %v537
    %687 = vst [vmem:[#allocation2 + $0x78] sm:$0xff] %v430
    %688 = vst [vmem:[#allocation2 + $0x80] sm:$0xff] %v432
    %689 = vst [vmem:[#allocation2 + $0x88] sm:$0xff] %v543
    %690 = vst [vmem:[#allocation2 + $0x90] sm:$0xff] %v436
    %691 = vst [vmem:[#allocation2 + $0x98] sm:$0xff] %v438
    %692 = vst [vmem:[#allocation2 + $0xa0] sm:$0xff] %v549
    %693 = vst [vmem:[#allocation2 + $0xa8] sm:$0xff] %v442
    %694 = vst [vmem:[#allocation2 + $0xb0] sm:$0xff] %v444
    %695 = vst [vmem:[#allocation2 + $0xb8] sm:$0xff] %v555
    %696 = vst [vmem:[#allocation3] sm:$0xff] %v515
    %697 = vst [vmem:[#allocation3 + $0x8] sm:$0xff] %v626
    %698 = vst [vmem:[#allocation3 + $0x10] sm:$0xff] %v628
    %699 = vst [vmem:[#allocation3 + $0x18] sm:$0xff] %v521
    %700 = vst [vmem:[#allocation3 + $0x20] sm:$0xff] %v632
    %701 = vst [vmem:[#allocation3 + $0x28] sm:$0xff] %v634
    %702 = vst [vmem:[#allocation3 + $0x30] sm:$0xff] %v527
    %703 = vst [vmem:[#allocation3 + $0x38] sm:$0xff] %v638
    %704 = vst [vmem:[#allocation3 + $0x40] sm:$0xff] %v640
    %705 = vst [vmem:[#allocation3 + $0x48] sm:$0xff] %v533
    %706 = vst [vmem:[#allocation3 + $0x50] sm:$0xff] %v644
    %707 = vst [vmem:[#allocation3 + $0x58] sm:$0xff] %v646
    %708 = vst [vmem:[#allocation3 + $0x60] sm:$0xff] %v539
    %709 = vst [vmem:[#allocation3 + $0x68] sm:$0xff] %v650
    %710 = vst [vmem:[#allocation3 + $0x70] sm:$0xff] %v652
    %711 = vst [vmem:[#allocation3 + $0x78] sm:$0xff] %v545
    %712 = vst [vmem:[#allocation3 + $0x80] sm:$0xff] %v656
    %713 = vst [vmem:[#allocation3 + $0x88] sm:$0xff] %v658
    %714 = vst [vmem:[#allocation3 + $0x90] sm:$0xff] %v551
    %715 = vst [vmem:[#allocation3 + $0x98] sm:$0xff] %v662
    %716 = vst [vmem:[#allocation3 + $0xa0] sm:$0xff] %v664
    %717 = vst [vmem:[#allocation3 + $0xa8] sm:$0xff] %v557
    %718 = vst [vmem:[#allocation3 + $0xb0] sm:$0xff] %v668
    %719 = vst [vmem:[#allocation3 + $0xb8] sm:$0xff] %v670
    %v720 = vld [vmem:[#allocation2] sm:$0xff]
    %v721 = vld [vmem:[#allocation2 + $0x8] sm:$0xff]
    %v722 = vld [vmem:[#allocation2 + $0x10] sm:$0xff]
    %v723 = vld [vmem:[#allocation10] sm:$0xff]
    %v724 = vld [vmem:[#allocation10 + $0x8] sm:$0xff]
    %v725 = vld [vmem:[#allocation10 + $0x10] sm:$0xff]
    %v726 = vld [vmem:[#allocation10 + $0x18] sm:$0xff]
    %v727 = vld [vmem:[#allocation10 + $0x20] sm:$0xff]
    %v728 = vld [vmem:[#allocation10 + $0x28] sm:$0xff]
    %v729 = vld [vmem:[#allocation10 + $0x30] sm:$0xff]
    %v730 = vld [vmem:[#allocation10 + $0x38] sm:$0xff]
    %v731 = vld [vmem:[#allocation10 + $0x40] sm:$0xff]
    %v732 = vld [vmem:[#allocation10 + $0x48] sm:$0xff]
    %v733 = vld [vmem:[#allocation10 + $0x50] sm:$0xff]
    %v734 = vld [vmem:[#allocation10 + $0x58] sm:$0xff]
    %v735 = vld [vmem:[#allocation10 + $0x60] sm:$0xff]
    %v736 = vld [vmem:[#allocation10 + $0x68] sm:$0xff]
    %v737 = vld [vmem:[#allocation10 + $0x70] sm:$0xff]
    %v738 = vld [vmem:[#allocation10 + $0x78] sm:$0xff]
    %v739 = vld [vmem:[#allocation10 + $0x80] sm:$0xff]
    %v740 = vld [vmem:[#allocation10 + $0x88] sm:$0xff]
    %v741 = vld [vmem:[#allocation10 + $0x90] sm:$0xff]
    %v742 = vld [vmem:[#allocation10 + $0x98] sm:$0xff]
    %v743 = vld [vmem:[#allocation10 + $0xa0] sm:$0xff]
    %v744 = vld [vmem:[#allocation10 + $0xa8] sm:$0xff]
    %v745 = vld [vmem:[#allocation10 + $0xb0] sm:$0xff]
    %v746 = vld [vmem:[#allocation10 + $0xb8] sm:$0xff]
    %v747 = vld [vmem:[#allocation10 + $0xc0] sm:$0xff]
    %v748 = vld [vmem:[#allocation10 + $0xc8] sm:$0xff]
    %v749 = vld [vmem:[#allocation10 + $0xd0] sm:$0xff]
    %v750 = vld [vmem:[#allocation10 + $0xd8] sm:$0xff]
    %v751 = vld [vmem:[#allocation10 + $0xe0] sm:$0xff]
    %v752 = vld [vmem:[#allocation10 + $0xe8] sm:$0xff]
    %v753 = vld [vmem:[#allocation10 + $0xf0] sm:$0xff]
    %v754 = vld [vmem:[#allocation10 + $0xf8] sm:$0xff]
    %v755 = vld [vmem:[#allocation10 + $0x100] sm:$0xff]
    %v756 = vld [vmem:[#allocation10 + $0x108] sm:$0xff]
    %v757 = vld [vmem:[#allocation10 + $0x110] sm:$0xff]
    %v758 = vld [vmem:[#allocation10 + $0x118] sm:$0xff]
    %v759 = vld [vmem:[#allocation10 + $0x120] sm:$0xff]
    %v760 = vld [vmem:[#allocation10 + $0x128] sm:$0xff]
    %v761 = vld [vmem:[#allocation10 + $0x130] sm:$0xff]
    %v762 = vld [vmem:[#allocation10 + $0x138] sm:$0xff]
    %v763 = vld [vmem:[#allocation10 + $0x140] sm:$0xff]
    %v764 = vld [vmem:[#allocation10 + $0x148] sm:$0xff]
    %v765 = vld [vmem:[#allocation10 + $0x150] sm:$0xff]
    %v766 = vld [vmem:[#allocation10 + $0x158] sm:$0xff]
    %v767 = vld [vmem:[#allocation10 + $0x160] sm:$0xff]
    %v768 = vld [vmem:[#allocation10 + $0x168] sm:$0xff]
    %v769 = vld [vmem:[#allocation10 + $0x170] sm:$0xff]
    %v770 = vld [vmem:[#allocation10 + $0x178] sm:$0xff]
    %v771 = vld [vmem:[%s6] sm:$0x7]
    %v773 = vlaneseq
    %v774 = vshrl.u32 %v773, 7
    %v775 = vsub.s32 0, %v774
    %v776 = vrot.slane %v771, %v775
    %v777 = vlaneseq
    %v778 = vshrl.u32 %v777, 7
    %v779 = vsub.s32 1, %v778
    %v780 = vrot.slane %v771, %v779
    %v781 = vlaneseq
    %v782 = vshrl.u32 %v781, 7
    %v783 = vsub.s32 2, %v782
    %v784 = vrot.slane %v771, %v783
    %788 = vmatprep.subr.mxu0 %v769
    %789 = vmatpush1.msra.mxu0 %v768
    %790 = vmatprep.subr.mxu0 %v766
    %791 = vmatpush1.msra.mxu0 %v765
    %792 = vmatprep.subr.mxu0 %v763
    %793 = vmatpush1.msra.mxu0 %v762
    %794 = vmatprep.subr.mxu0 %v760
    %795 = vmatpush1.msra.mxu0 %v759
    %796 = vmatprep.subr.mxu0 %v757
    %797 = vmatpush1.msra.mxu0 %v756
    %798 = vmatprep.subr.mxu0 %v754
    %799 = vmatpush1.msra.mxu0 %v753
    %800 = vmatprep.subr.mxu0 %v751
    %801 = vmatpush1.msra.mxu0 %v750
    %802 = vmatprep.subr.mxu0 %v748
    %803 = vmatpush1.msra.mxu0 %v747
    %804 = vmatprep.subr.mxu0 %v745
    %805 = vmatpush1.msra.mxu0 %v744
    %806 = vmatprep.subr.mxu0 %v742
    %807 = vmatpush1.msra.mxu0 %v741
    %808 = vmatprep.subr.mxu0 %v739
    %809 = vmatpush1.msra.mxu0 %v738
    %810 = vmatprep.subr.mxu0 %v736
    %811 = vmatpush1.msra.mxu0 %v735
    %812 = vmatprep.subr.mxu0 %v733
    %813 = vmatpush1.msra.mxu0 %v732
    %814 = vmatprep.subr.mxu0 %v730
    %815 = vmatpush1.msra.mxu0 %v729
    %816 = vmatprep.subr.mxu0 %v727
    %817 = vmatpush1.msra.mxu0 %v726
    %818 = vmatprep.subr.mxu0 %v724
    %819 = vmatpush1.msra.mxu0 %v723
    %820 = vmatprep.subr.mxu0 0.0
    %821 = vmatpush2.msra.mxu0 0.0
    %822 = vmatprep.subr.mxu0 0.0
    %823 = vmatpush2.msra.mxu0 0.0
    %824 = vmatprep.subr.mxu0 0.0
    %825 = vmatpush2.msra.mxu0 0.0
    %826 = vmatprep.subr.mxu0 0.0
    %827 = vmatpush2.msra.mxu0 0.0
    %828 = vmatprep.subr.mxu0 0.0
    %829 = vmatpush2.msra.mxu0 0.0
    %830 = vmatprep.subr.mxu0 0.0
    %831 = vmatpush2.msra.mxu0 0.0
    %832 = vmatprep.subr.mxu0 0.0
    %833 = vmatpush2.msra.mxu0 0.0
    %834 = vmatprep.subr.mxu0 0.0
    %835 = vmatpush2.msra.mxu0 0.0
    %836 = vmatprep.subr.mxu0 0.0
    %837 = vmatpush2.msra.mxu0 0.0
    %838 = vmatprep.subr.mxu0 0.0
    %839 = vmatpush2.msra.mxu0 0.0
    %840 = vmatprep.subr.mxu0 0.0
    %841 = vmatpush2.msra.mxu0 0.0
    %842 = vmatprep.subr.mxu0 0.0
    %843 = vmatpush2.msra.mxu0 0.0
    %844 = vmatprep.subr.mxu0 0.0
    %845 = vmatpush2.msra.mxu0 0.0
    %846 = vmatprep.subr.mxu0 0.0
    %847 = vmatpush2.msra.mxu0 0.0
    %848 = vmatprep.subr.mxu0 0.0
    %849 = vmatpush2.msra.mxu0 0.0
    %850 = vmatprep.subr.mxu0 0.0
    %851 = vmatpush2.msra.mxu0 0.0
    %852 = vmatprep.mubr.f32.mxu0 0.0
    %853 = vmatmul.mubr.f32.gmra.mxu0 %v204
    %v854 = vpop.f32.mrf.mxu0
    %v855 = vadd.f32 %v776, %v854
    %v856 = vpop.f32.mrf.mxu0
    %v857 = vadd.f32 %v780, %v856
    %858 = vdwg.mxu0
    %859 = vmatprep.subr.mxu0 0.0
    %860 = vmatpush1.msra.mxu0 %v770
    %861 = vmatprep.subr.mxu0 0.0
    %862 = vmatpush1.msra.mxu0 %v767
    %863 = vmatprep.subr.mxu0 0.0
    %864 = vmatpush1.msra.mxu0 %v764
    %865 = vmatprep.subr.mxu0 0.0
    %866 = vmatpush1.msra.mxu0 %v761
    %867 = vmatprep.subr.mxu0 0.0
    %868 = vmatpush1.msra.mxu0 %v758
    %869 = vmatprep.subr.mxu0 0.0
    %870 = vmatpush1.msra.mxu0 %v755
    %871 = vmatprep.subr.mxu0 0.0
    %872 = vmatpush1.msra.mxu0 %v752
    %873 = vmatprep.subr.mxu0 0.0
    %874 = vmatpush1.msra.mxu0 %v749
    %875 = vmatprep.subr.mxu0 0.0
    %876 = vmatpush1.msra.mxu0 %v746
    %877 = vmatprep.subr.mxu0 0.0
    %878 = vmatpush1.msra.mxu0 %v743
    %879 = vmatprep.subr.mxu0 0.0
    %880 = vmatpush1.msra.mxu0 %v740
    %881 = vmatprep.subr.mxu0 0.0
    %882 = vmatpush1.msra.mxu0 %v737
    %883 = vmatprep.subr.mxu0 0.0
    %884 = vmatpush1.msra.mxu0 %v734
    %885 = vmatprep.subr.mxu0 0.0
    %886 = vmatpush1.msra.mxu0 %v731
    %887 = vmatprep.subr.mxu0 0.0
    %888 = vmatpush1.msra.mxu0 %v728
    %889 = vmatprep.subr.mxu0 0.0
    %890 = vmatpush1.msra.mxu0 %v725
    %891 = vmatprep.subr.mxu0 0.0
    %892 = vmatpush2.msra.mxu0 0.0
    %893 = vmatprep.subr.mxu0 0.0
    %894 = vmatpush2.msra.mxu0 0.0
    %895 = vmatprep.subr.mxu0 0.0
    %896 = vmatpush2.msra.mxu0 0.0
    %897 = vmatprep.subr.mxu0 0.0
    %898 = vmatpush2.msra.mxu0 0.0
    %899 = vmatprep.subr.mxu0 0.0
    %900 = vmatpush2.msra.mxu0 0.0
    %901 = vmatprep.subr.mxu0 0.0
    %902 = vmatpush2.msra.mxu0 0.0
    %903 = vmatprep.subr.mxu0 0.0
    %904 = vmatpush2.msra.mxu0 0.0
    %905 = vmatprep.subr.mxu0 0.0
    %906 = vmatpush2.msra.mxu0 0.0
    %907 = vmatprep.subr.mxu0 0.0
    %908 = vmatpush2.msra.mxu0 0.0
    %909 = vmatprep.subr.mxu0 0.0
    %910 = vmatpush2.msra.mxu0 0.0
    %911 = vmatprep.subr.mxu0 0.0
    %912 = vmatpush2.msra.mxu0 0.0
    %913 = vmatprep.subr.mxu0 0.0
    %914 = vmatpush2.msra.mxu0 0.0
    %915 = vmatprep.subr.mxu0 0.0
    %916 = vmatpush2.msra.mxu0 0.0
    %917 = vmatprep.subr.mxu0 0.0
    %918 = vmatpush2.msra.mxu0 0.0
    %919 = vmatprep.subr.mxu0 0.0
    %920 = vmatpush2.msra.mxu0 0.0
    %921 = vmatprep.subr.mxu0 0.0
    %922 = vmatpush2.msra.mxu0 0.0
    %923 = vmatprep.mubr.f32.mxu0 0.0
    %924 = vmatmul.mubr.f32.gmra.mxu0 %v204
    %v925 = vpop.f32.mrf.mxu0
    %v926 = vadd.f32 %v784, %v925
    %v927 = vpop.f32.mrf.mxu0
    %928 = vdwg.mxu0
    %v929 = vadd.f32 %v720, %v855
    %v930 = vxor.u32 %v929, 2147483648
    %v931 = vmul.f32 %v930, 1.442695
    %v932 = vpow.pop %v931
    %v933 = vadd.f32 %v932, 1.0
    %v934 = vrcp.pop %v933
    %v935 = vmul.f32 1.0, %v934
    %v936 = vadd.f32 %v721, %v857
    %v937 = vxor.u32 %v936, 2147483648
    %v938 = vmul.f32 %v937, 1.442695
    %v939 = vpow.pop %v938
    %v940 = vadd.f32 %v939, 1.0
    %v941 = vrcp.pop %v940
    %v942 = vmul.f32 1.0, %v941
    %v943 = vmul.f32 %v935, %v926
    %v944 = vadd.f32 %v722, %v943
    %v945 = vtanh.pop %v944
    %v946 = vsub.f32 1.0, %v942
    %v947 = vmul.f32 %v946, %v945
    %v948 = vmul.f32 %v942, %v204
    %v949 = vadd.f32 %v947, %v948
    %s950 = scalar_lea.vmem [#allocation3], 168
    %v951 = vld [vmem:[%s950] sm:$0xff]
    %v952 = vld [vmem:[%s950 + $0x8] sm:$0xff]
    %v953 = vld [vmem:[%s950 + $0x10] sm:$0xff]
    %v954 = vld [vmem:[#allocation12] sm:$0xff]
    %v955 = vld [vmem:[#allocation12 + $0x8] sm:$0xff]
    %v956 = vld [vmem:[#allocation12 + $0x10] sm:$0xff]
    %v957 = vld [vmem:[#allocation12 + $0x18] sm:$0xff]
    %v958 = vld [vmem:[#allocation12 + $0x20] sm:$0xff]
    %v959 = vld [vmem:[#allocation12 + $0x28] sm:$0xff]
    %v960 = vld [vmem:[#allocation12 + $0x30] sm:$0xff]
    %v961 = vld [vmem:[#allocation12 + $0x38] sm:$0xff]
    %v962 = vld [vmem:[#allocation12 + $0x40] sm:$0xff]
    %v963 = vld [vmem:[#allocation12 + $0x48] sm:$0xff]
    %v964 = vld [vmem:[#allocation12 + $0x50] sm:$0xff]
    %v965 = vld [vmem:[#allocation12 + $0x58] sm:$0xff]
    %v966 = vld [vmem:[#allocation12 + $0x60] sm:$0xff]
    %v967 = vld [vmem:[#allocation12 + $0x68] sm:$0xff]
    %v968 = vld [vmem:[#allocation12 + $0x70] sm:$0xff]
    %v969 = vld [vmem:[#allocation12 + $0x78] sm:$0xff]
    %v970 = vld [vmem:[#allocation12 + $0x80] sm:$0xff]
    %v971 = vld [vmem:[#allocation12 + $0x88] sm:$0xff]
    %v972 = vld [vmem:[#allocation12 + $0x90] sm:$0xff]
    %v973 = vld [vmem:[#allocation12 + $0x98] sm:$0xff]
    %v974 = vld [vmem:[#allocation12 + $0xa0] sm:$0xff]
    %v975 = vld [vmem:[#allocation12 + $0xa8] sm:$0xff]
    %v976 = vld [vmem:[#allocation12 + $0xb0] sm:$0xff]
    %v977 = vld [vmem:[#allocation12 + $0xb8] sm:$0xff]
    %v978 = vld [vmem:[#allocation12 + $0xc0] sm:$0xff]
    %v979 = vld [vmem:[#allocation12 + $0xc8] sm:$0xff]
    %v980 = vld [vmem:[#allocation12 + $0xd0] sm:$0xff]
    %v981 = vld [vmem:[#allocation12 + $0xd8] sm:$0xff]
    %v982 = vld [vmem:[#allocation12 + $0xe0] sm:$0xff]
    %v983 = vld [vmem:[#allocation12 + $0xe8] sm:$0xff]
    %v984 = vld [vmem:[#allocation12 + $0xf0] sm:$0xff]
    %v985 = vld [vmem:[#allocation12 + $0xf8] sm:$0xff]
    %v986 = vld [vmem:[#allocation12 + $0x100] sm:$0xff]
    %v987 = vld [vmem:[#allocation12 + $0x108] sm:$0xff]
    %v988 = vld [vmem:[#allocation12 + $0x110] sm:$0xff]
    %v989 = vld [vmem:[#allocation12 + $0x118] sm:$0xff]
    %v990 = vld [vmem:[#allocation12 + $0x120] sm:$0xff]
    %v991 = vld [vmem:[#allocation12 + $0x128] sm:$0xff]
    %v992 = vld [vmem:[#allocation12 + $0x130] sm:$0xff]
    %v993 = vld [vmem:[#allocation12 + $0x138] sm:$0xff]
    %v994 = vld [vmem:[#allocation12 + $0x140] sm:$0xff]
    %v995 = vld [vmem:[#allocation12 + $0x148] sm:$0xff]
    %v996 = vld [vmem:[#allocation12 + $0x150] sm:$0xff]
    %v997 = vld [vmem:[#allocation12 + $0x158] sm:$0xff]
    %v998 = vld [vmem:[#allocation12 + $0x160] sm:$0xff]
    %v999 = vld [vmem:[#allocation12 + $0x168] sm:$0xff]
    %v1000 = vld [vmem:[#allocation12 + $0x170] sm:$0xff]
    %v1001 = vld [vmem:[#allocation12 + $0x178] sm:$0xff]
    %v1002 = vld [vmem:[%s8] sm:$0x7]
    %v1004 = vlaneseq
    %v1005 = vshrl.u32 %v1004, 7
    %v1006 = vsub.s32 0, %v1005
    %v1007 = vrot.slane %v1002, %v1006
    %v1008 = vlaneseq
    %v1009 = vshrl.u32 %v1008, 7
    %v1010 = vsub.s32 1, %v1009
    %v1011 = vrot.slane %v1002, %v1010
    %v1012 = vlaneseq
    %v1013 = vshrl.u32 %v1012, 7
    %v1014 = vsub.s32 2, %v1013
    %v1015 = vrot.slane %v1002, %v1014
    %1019 = vmatprep.subr.mxu0 %v1000
    %1020 = vmatpush1.msra.mxu0 %v999
    %1021 = vmatprep.subr.mxu0 %v997
    %1022 = vmatpush1.msra.mxu0 %v996
    %1023 = vmatprep.subr.mxu0 %v994
    %1024 = vmatpush1.msra.mxu0 %v993
    %1025 = vmatprep.subr.mxu0 %v991
    %1026 = vmatpush1.msra.mxu0 %v990
    %1027 = vmatprep.subr.mxu0 %v988
    %1028 = vmatpush1.msra.mxu0 %v987
    %1029 = vmatprep.subr.mxu0 %v985
    %1030 = vmatpush1.msra.mxu0 %v984
    %1031 = vmatprep.subr.mxu0 %v982
    %1032 = vmatpush1.msra.mxu0 %v981
    %1033 = vmatprep.subr.mxu0 %v979
    %1034 = vmatpush1.msra.mxu0 %v978
    %1035 = vmatprep.subr.mxu0 %v976
    %1036 = vmatpush1.msra.mxu0 %v975
    %1037 = vmatprep.subr.mxu0 %v973
    %1038 = vmatpush1.msra.mxu0 %v972
    %1039 = vmatprep.subr.mxu0 %v970
    %1040 = vmatpush1.msra.mxu0 %v969
    %1041 = vmatprep.subr.mxu0 %v967
    %1042 = vmatpush1.msra.mxu0 %v966
    %1043 = vmatprep.subr.mxu0 %v964
    %1044 = vmatpush1.msra.mxu0 %v963
    %1045 = vmatprep.subr.mxu0 %v961
    %1046 = vmatpush1.msra.mxu0 %v960
    %1047 = vmatprep.subr.mxu0 %v958
    %1048 = vmatpush1.msra.mxu0 %v957
    %1049 = vmatprep.subr.mxu0 %v955
    %1050 = vmatpush1.msra.mxu0 %v954
    %1051 = vmatprep.subr.mxu0 0.0
    %1052 = vmatpush2.msra.mxu0 0.0
    %1053 = vmatprep.subr.mxu0 0.0
    %1054 = vmatpush2.msra.mxu0 0.0
    %1055 = vmatprep.subr.mxu0 0.0
    %1056 = vmatpush2.msra.mxu0 0.0
    %1057 = vmatprep.subr.mxu0 0.0
    %1058 = vmatpush2.msra.mxu0 0.0
    %1059 = vmatprep.subr.mxu0 0.0
    %1060 = vmatpush2.msra.mxu0 0.0
    %1061 = vmatprep.subr.mxu0 0.0
    %1062 = vmatpush2.msra.mxu0 0.0
    %1063 = vmatprep.subr.mxu0 0.0
    %1064 = vmatpush2.msra.mxu0 0.0
    %1065 = vmatprep.subr.mxu0 0.0
    %1066 = vmatpush2.msra.mxu0 0.0
    %1067 = vmatprep.subr.mxu0 0.0
    %1068 = vmatpush2.msra.mxu0 0.0
    %1069 = vmatprep.subr.mxu0 0.0
    %1070 = vmatpush2.msra.mxu0 0.0
    %1071 = vmatprep.subr.mxu0 0.0
    %1072 = vmatpush2.msra.mxu0 0.0
    %1073 = vmatprep.subr.mxu0 0.0
    %1074 = vmatpush2.msra.mxu0 0.0
    %1075 = vmatprep.subr.mxu0 0.0
    %1076 = vmatpush2.msra.mxu0 0.0
    %1077 = vmatprep.subr.mxu0 0.0
    %1078 = vmatpush2.msra.mxu0 0.0
    %1079 = vmatprep.subr.mxu0 0.0
    %1080 = vmatpush2.msra.mxu0 0.0
    %1081 = vmatprep.subr.mxu0 0.0
    %1082 = vmatpush2.msra.mxu0 0.0
    %1083 = vmatprep.mubr.f32.mxu0 0.0
    %1084 = vmatmul.mubr.f32.gmra.mxu0 %v204
    %v1085 = vpop.f32.mrf.mxu0
    %v1086 = vadd.f32 %v1007, %v1085
    %v1087 = vpop.f32.mrf.mxu0
    %v1088 = vadd.f32 %v1011, %v1087
    %1089 = vdwg.mxu0
    %1090 = vmatprep.subr.mxu0 0.0
    %1091 = vmatpush1.msra.mxu0 %v1001
    %1092 = vmatprep.subr.mxu0 0.0
    %1093 = vmatpush1.msra.mxu0 %v998
    %1094 = vmatprep.subr.mxu0 0.0
    %1095 = vmatpush1.msra.mxu0 %v995
    %1096 = vmatprep.subr.mxu0 0.0
    %1097 = vmatpush1.msra.mxu0 %v992
    %1098 = vmatprep.subr.mxu0 0.0
    %1099 = vmatpush1.msra.mxu0 %v989
    %1100 = vmatprep.subr.mxu0 0.0
    %1101 = vmatpush1.msra.mxu0 %v986
    %1102 = vmatprep.subr.mxu0 0.0
    %1103 = vmatpush1.msra.mxu0 %v983
    %1104 = vmatprep.subr.mxu0 0.0
    %1105 = vmatpush1.msra.mxu0 %v980
    %1106 = vmatprep.subr.mxu0 0.0
    %1107 = vmatpush1.msra.mxu0 %v977
    %1108 = vmatprep.subr.mxu0 0.0
    %1109 = vmatpush1.msra.mxu0 %v974
    %1110 = vmatprep.subr.mxu0 0.0
    %1111 = vmatpush1.msra.mxu0 %v971
    %1112 = vmatprep.subr.mxu0 0.0
    %1113 = vmatpush1.msra.mxu0 %v968
    %1114 = vmatprep.subr.mxu0 0.0
    %1115 = vmatpush1.msra.mxu0 %v965
    %1116 = vmatprep.subr.mxu0 0.0
    %1117 = vmatpush1.msra.mxu0 %v962
    %1118 = vmatprep.subr.mxu0 0.0
    %1119 = vmatpush1.msra.mxu0 %v959
    %1120 = vmatprep.subr.mxu0 0.0
    %1121 = vmatpush1.msra.mxu0 %v956
    %1122 = vmatprep.subr.mxu0 0.0
    %1123 = vmatpush2.msra.mxu0 0.0
    %1124 = vmatprep.subr.mxu0 0.0
    %1125 = vmatpush2.msra.mxu0 0.0
    %1126 = vmatprep.subr.mxu0 0.0
    %1127 = vmatpush2.msra.mxu0 0.0
    %1128 = vmatprep.subr.mxu0 0.0
    %1129 = vmatpush2.msra.mxu0 0.0
    %1130 = vmatprep.subr.mxu0 0.0
    %1131 = vmatpush2.msra.mxu0 0.0
    %1132 = vmatprep.subr.mxu0 0.0
    %1133 = vmatpush2.msra.mxu0 0.0
    %1134 = vmatprep.subr.mxu0 0.0
    %1135 = vmatpush2.msra.mxu0 0.0
    %1136 = vmatprep.subr.mxu0 0.0
    %1137 = vmatpush2.msra.mxu0 0.0
    %1138 = vmatprep.subr.mxu0 0.0
    %1139 = vmatpush2.msra.mxu0 0.0
    %1140 = vmatprep.subr.mxu0 0.0
    %1141 = vmatpush2.msra.mxu0 0.0
    %1142 = vmatprep.subr.mxu0 0.0
    %1143 = vmatpush2.msra.mxu0 0.0
    %1144 = vmatprep.subr.mxu0 0.0
    %1145 = vmatpush2.msra.mxu0 0.0
    %1146 = vmatprep.subr.mxu0 0.0
    %1147 = vmatpush2.msra.mxu0 0.0
    %1148 = vmatprep.subr.mxu0 0.0
    %1149 = vmatpush2.msra.mxu0 0.0
    %1150 = vmatprep.subr.mxu0 0.0
    %1151 = vmatpush2.msra.mxu0 0.0
    %1152 = vmatprep.subr.mxu0 0.0
    %1153 = vmatpush2.msra.mxu0 0.0
    %1154 = vmatprep.mubr.f32.mxu0 0.0
    %1155 = vmatmul.mubr.f32.gmra.mxu0 %v204
    %v1156 = vpop.f32.mrf.mxu0
    %v1157 = vadd.f32 %v1015, %v1156
    %v1158 = vpop.f32.mrf.mxu0
    %1159 = vdwg.mxu0
    %v1160 = vadd.f32 %v951, %v1086
    %v1161 = vxor.u32 %v1160, 2147483648
    %v1162 = vmul.f32 %v1161, 1.442695
    %v1163 = vpow.pop %v1162
    %v1164 = vadd.f32 %v1163, 1.0
    %v1165 = vrcp.pop %v1164
    %v1166 = vmul.f32 1.0, %v1165
    %v1167 = vadd.f32 %v952, %v1088
    %v1168 = vxor.u32 %v1167, 2147483648
    %v1169 = vmul.f32 %v1168, 1.442695
    %v1170 = vpow.pop %v1169
    %v1171 = vadd.f32 %v1170, 1.0
    %v1172 = vrcp.pop %v1171
    %v1173 = vmul.f32 1.0, %v1172
    %v1174 = vmul.f32 %v1166, %v1157
    %v1175 = vadd.f32 %v953, %v1174
    %v1176 = vtanh.pop %v1175
    %v1177 = vsub.f32 1.0, %v1173
    %v1178 = vmul.f32 %v1177, %v1176
    %v1179 = vmul.f32 %v1173, %v204
    %v1180 = vadd.f32 %v1178, %v1179
    %1181 = vst [vmem:[#allocation13] sm:$0xff] %v949
    %s1182 = scalar_lea.vmem [#allocation14], 56
    %1183 = vst [vmem:[%s1182] sm:$0xff] %v1180
    %vm1184 = vcmp.lt.f32.partialorder 0.0, %v113
    %v1185 = vsel %vm1184, 1, 0
    %v1186 = vcvt.s32.f32 %v1185
    %1188 = vset.pattern.permute.xlu0 0
    %1189 = vperm.xlu0 %1188, %v1186
    %v1190 = vpop.permute.xlu0 %1189
    %v1192 = vmul.f32 %v949, %v1190
    %v1193 = vadd.f32 %v1192, 0.0
    %vm1194 = vcmp.lt.f32.partialorder 7.0, %v113
    %v1195 = vsel %vm1194, 1, 0
    %v1196 = vcvt.s32.f32 %v1195
    %1198 = vset.pattern.permute.xlu0 0
    %1199 = vperm.xlu0 %1198, %v1196
    %v1200 = vpop.permute.xlu0 %1199
    %v1202 = vmul.f32 %v1180, %v1200
    %v1203 = vadd.f32 %v1202, 0.0
    %s1204 = scalar_lea.vmem [#allocation2], 24
    %v1205 = vld [vmem:[%s1204] sm:$0xff]
    %v1206 = vld [vmem:[%s1204 + $0x8] sm:$0xff]
    %v1207 = vld [vmem:[%s1204 + $0x10] sm:$0xff]
    %v1208 = vld [vmem:[#allocation10] sm:$0xff]
    %v1209 = vld [vmem:[#allocation10 + $0x8] sm:$0xff]
    %v1210 = vld [vmem:[#allocation10 + $0x10] sm:$0xff]
    %v1211 = vld [vmem:[#allocation10 + $0x18] sm:$0xff]
    %v1212 = vld [vmem:[#allocation10 + $0x20] sm:$0xff]
    %v1213 = vld [vmem:[#allocation10 + $0x28] sm:$0xff]
    %v1214 = vld [vmem:[#allocation10 + $0x30] sm:$0xff]
    %v1215 = vld [vmem:[#allocation10 + $0x38] sm:$0xff]
    %v1216 = vld [vmem:[#allocation10 + $0x40] sm:$0xff]
    %v1217 = vld [vmem:[#allocation10 + $0x48] sm:$0xff]
    %v1218 = vld [vmem:[#allocation10 + $0x50] sm:$0xff]
    %v1219 = vld [vmem:[#allocation10 + $0x58] sm:$0xff]
    %v1220 = vld [vmem:[#allocation10 + $0x60] sm:$0xff]
    %v1221 = vld [vmem:[#allocation10 + $0x68] sm:$0xff]
    %v1222 = vld [vmem:[#allocation10 + $0x70] sm:$0xff]
    %v1223 = vld [vmem:[#allocation10 + $0x78] sm:$0xff]
    %v1224 = vld [vmem:[#allocation10 + $0x80] sm:$0xff]
    %v1225 = vld [vmem:[#allocation10 + $0x88] sm:$0xff]
    %v1226 = vld [vmem:[#allocation10 + $0x90] sm:$0xff]
    %v1227 = vld [vmem:[#allocation10 + $0x98] sm:$0xff]
    %v1228 = vld [vmem:[#allocation10 + $0xa0] sm:$0xff]
    %v1229 = vld [vmem:[#allocation10 + $0xa8] sm:$0xff]
    %v1230 = vld [vmem:[#allocation10 + $0xb0] sm:$0xff]
    %v1231 = vld [vmem:[#allocation10 + $0xb8] sm:$0xff]
    %v1232 = vld [vmem:[#allocation10 + $0xc0] sm:$0xff]
    %v1233 = vld [vmem:[#allocation10 + $0xc8] sm:$0xff]
    %v1234 = vld [vmem:[#allocation10 + $0xd0] sm:$0xff]
    %v1235 = vld [vmem:[#allocation10 + $0xd8] sm:$0xff]
    %v1236 = vld [vmem:[#allocation10 + $0xe0] sm:$0xff]
    %v1237 = vld [vmem:[#allocation10 + $0xe8] sm:$0xff]
    %v1238 = vld [vmem:[#allocation10 + $0xf0] sm:$0xff]
    %v1239 = vld [vmem:[#allocation10 + $0xf8] sm:$0xff]
    %v1240 = vld [vmem:[#allocation10 + $0x100] sm:$0xff]
    %v1241 = vld [vmem:[#allocation10 + $0x108] sm:$0xff]
    %v1242 = vld [vmem:[#allocation10 + $0x110] sm:$0xff]
    %v1243 = vld [vmem:[#allocation10 + $0x118] sm:$0xff]
    %v1244 = vld [vmem:[#allocation10 + $0x120] sm:$0xff]
    %v1245 = vld [vmem:[#allocation10 + $0x128] sm:$0xff]
    %v1246 = vld [vmem:[#allocation10 + $0x130] sm:$0xff]
    %v1247 = vld [vmem:[#allocation10 + $0x138] sm:$0xff]
    %v1248 = vld [vmem:[#allocation10 + $0x140] sm:$0xff]
    %v1249 = vld [vmem:[#allocation10 + $0x148] sm:$0xff]
    %v1250 = vld [vmem:[#allocation10 + $0x150] sm:$0xff]
    %v1251 = vld [vmem:[#allocation10 + $0x158] sm:$0xff]
    %v1252 = vld [vmem:[#allocation10 + $0x160] sm:$0xff]
    %v1253 = vld [vmem:[#allocation10 + $0x168] sm:$0xff]
    %v1254 = vld [vmem:[#allocation10 + $0x170] sm:$0xff]
    %v1255 = vld [vmem:[#allocation10 + $0x178] sm:$0xff]
    %v1256 = vld [vmem:[%s6] sm:$0x7]
    %v1258 = vlaneseq
    %v1259 = vshrl.u32 %v1258, 7
    %v1260 = vsub.s32 0, %v1259
    %v1261 = vrot.slane %v1256, %v1260
    %v1262 = vlaneseq
    %v1263 = vshrl.u32 %v1262, 7
    %v1264 = vsub.s32 1, %v1263
    %v1265 = vrot.slane %v1256, %v1264
    %v1266 = vlaneseq
    %v1267 = vshrl.u32 %v1266, 7
    %v1268 = vsub.s32 2, %v1267
    %v1269 = vrot.slane %v1256, %v1268
    %1273 = vmatprep.subr.mxu0 %v1254
    %1274 = vmatpush1.msra.mxu0 %v1253
    %1275 = vmatprep.subr.mxu0 %v1251
    %1276 = vmatpush1.msra.mxu0 %v1250
    %1277 = vmatprep.subr.mxu0 %v1248
    %1278 = vmatpush1.msra.mxu0 %v1247
    %1279 = vmatprep.subr.mxu0 %v1245
    %1280 = vmatpush1.msra.mxu0 %v1244
    %1281 = vmatprep.subr.mxu0 %v1242
    %1282 = vmatpush1.msra.mxu0 %v1241
    %1283 = vmatprep.subr.mxu0 %v1239
    %1284 = vmatpush1.msra.mxu0 %v1238
    %1285 = vmatprep.subr.mxu0 %v1236
    %1286 = vmatpush1.msra.mxu0 %v1235
    %1287 = vmatprep.subr.mxu0 %v1233
    %1288 = vmatpush1.msra.mxu0 %v1232
    %1289 = vmatprep.subr.mxu0 %v1230
    %1290 = vmatpush1.msra.mxu0 %v1229
    %1291 = vmatprep.subr.mxu0 %v1227
    %1292 = vmatpush1.msra.mxu0 %v1226
    %1293 = vmatprep.subr.mxu0 %v1224
    %1294 = vmatpush1.msra.mxu0 %v1223
    %1295 = vmatprep.subr.mxu0 %v1221
    %1296 = vmatpush1.msra.mxu0 %v1220
    %1297 = vmatprep.subr.mxu0 %v1218
    %1298 = vmatpush1.msra.mxu0 %v1217
    %1299 = vmatprep.subr.mxu0 %v1215
    %1300 = vmatpush1.msra.mxu0 %v1214
    %1301 = vmatprep.subr.mxu0 %v1212
    %1302 = vmatpush1.msra.mxu0 %v1211
    %1303 = vmatprep.subr.mxu0 %v1209
    %1304 = vmatpush1.msra.mxu0 %v1208
    %1305 = vmatprep.subr.mxu0 0.0
    %1306 = vmatpush2.msra.mxu0 0.0
    %1307 = vmatprep.subr.mxu0 0.0
    %1308 = vmatpush2.msra.mxu0 0.0
    %1309 = vmatprep.subr.mxu0 0.0
    %1310 = vmatpush2.msra.mxu0 0.0
    %1311 = vmatprep.subr.mxu0 0.0
    %1312 = vmatpush2.msra.mxu0 0.0
    %1313 = vmatprep.subr.mxu0 0.0
    %1314 = vmatpush2.msra.mxu0 0.0
    %1315 = vmatprep.subr.mxu0 0.0
    %1316 = vmatpush2.msra.mxu0 0.0
    %1317 = vmatprep.subr.mxu0 0.0
    %1318 = vmatpush2.msra.mxu0 0.0
    %1319 = vmatprep.subr.mxu0 0.0
    %1320 = vmatpush2.msra.mxu0 0.0
    %1321 = vmatprep.subr.mxu0 0.0
    %1322 = vmatpush2.msra.mxu0 0.0
    %1323 = vmatprep.subr.mxu0 0.0
    %1324 = vmatpush2.msra.mxu0 0.0
    %1325 = vmatprep.subr.mxu0 0.0
    %1326 = vmatpush2.msra.mxu0 0.0
    %1327 = vmatprep.subr.mxu0 0.0
    %1328 = vmatpush2.msra.mxu0 0.0
    %1329 = vmatprep.subr.mxu0 0.0
    %1330 = vmatpush2.msra.mxu0 0.0
    %1331 = vmatprep.subr.mxu0 0.0
    %1332 = vmatpush2.msra.mxu0 0.0
    %1333 = vmatprep.subr.mxu0 0.0
    %1334 = vmatpush2.msra.mxu0 0.0
    %1335 = vmatprep.subr.mxu0 0.0
    %1336 = vmatpush2.msra.mxu0 0.0
    %1337 = vmatprep.mubr.f32.mxu0 0.0
    %1338 = vmatmul.mubr.f32.gmra.mxu0 %v949
    %v1339 = vpop.f32.mrf.mxu0
    %v1340 = vadd.f32 %v1261, %v1339
    %v1341 = vpop.f32.mrf.mxu0
    %v1342 = vadd.f32 %v1265, %v1341
    %1343 = vdwg.mxu0
    %1344 = vmatprep.subr.mxu0 0.0
    %1345 = vmatpush1.msra.mxu0 %v1255
    %1346 = vmatprep.subr.mxu0 0.0
    %1347 = vmatpush1.msra.mxu0 %v1252
    %1348 = vmatprep.subr.mxu0 0.0
    %1349 = vmatpush1.msra.mxu0 %v1249
    %1350 = vmatprep.subr.mxu0 0.0
    %1351 = vmatpush1.msra.mxu0 %v1246
    %1352 = vmatprep.subr.mxu0 0.0
    %1353 = vmatpush1.msra.mxu0 %v1243
    %1354 = vmatprep.subr.mxu0 0.0
    %1355 = vmatpush1.msra.mxu0 %v1240
    %1356 = vmatprep.subr.mxu0 0.0
    %1357 = vmatpush1.msra.mxu0 %v1237
    %1358 = vmatprep.subr.mxu0 0.0
    %1359 = vmatpush1.msra.mxu0 %v1234
    %1360 = vmatprep.subr.mxu0 0.0
    %1361 = vmatpush1.msra.mxu0 %v1231
    %1362 = vmatprep.subr.mxu0 0.0
    %1363 = vmatpush1.msra.mxu0 %v1228
    %1364 = vmatprep.subr.mxu0 0.0
    %1365 = vmatpush1.msra.mxu0 %v1225
    %1366 = vmatprep.subr.mxu0 0.0
    %1367 = vmatpush1.msra.mxu0 %v1222
    %1368 = vmatprep.subr.mxu0 0.0
    %1369 = vmatpush1.msra.mxu0 %v1219
    %1370 = vmatprep.subr.mxu0 0.0
    %1371 = vmatpush1.msra.mxu0 %v1216
    %1372 = vmatprep.subr.mxu0 0.0
    %1373 = vmatpush1.msra.mxu0 %v1213
    %1374 = vmatprep.subr.mxu0 0.0
    %1375 = vmatpush1.msra.mxu0 %v1210
    %1376 = vmatprep.subr.mxu0 0.0
    %1377 = vmatpush2.msra.mxu0 0.0
    %1378 = vmatprep.subr.mxu0 0.0
    %1379 = vmatpush2.msra.mxu0 0.0
    %1380 = vmatprep.subr.mxu0 0.0
    %1381 = vmatpush2.msra.mxu0 0.0
    %1382 = vmatprep.subr.mxu0 0.0
    %1383 = vmatpush2.msra.mxu0 0.0
    %1384 = vmatprep.subr.mxu0 0.0
    %1385 = vmatpush2.msra.mxu0 0.0
    %1386 = vmatprep.subr.mxu0 0.0
    %1387 = vmatpush2.msra.mxu0 0.0
    %1388 = vmatprep.subr.mxu0 0.0
    %1389 = vmatpush2.msra.mxu0 0.0
    %1390 = vmatprep.subr.mxu0 0.0
    %1391 = vmatpush2.msra.mxu0 0.0
    %1392 = vmatprep.subr.mxu0 0.0
    %1393 = vmatpush2.msra.mxu0 0.0
    %1394 = vmatprep.subr.mxu0 0.0
    %1395 = vmatpush2.msra.mxu0 0.0
    %1396 = vmatprep.subr.mxu0 0.0
    %1397 = vmatpush2.msra.mxu0 0.0
    %1398 = vmatprep.subr.mxu0 0.0
    %1399 = vmatpush2.msra.mxu0 0.0
    %1400 = vmatprep.subr.mxu0 0.0
    %1401 = vmatpush2.msra.mxu0 0.0
    %1402 = vmatprep.subr.mxu0 0.0
    %1403 = vmatpush2.msra.mxu0 0.0
    %1404 = vmatprep.subr.mxu0 0.0
    %1405 = vmatpush2.msra.mxu0 0.0
    %1406 = vmatprep.subr.mxu0 0.0
    %1407 = vmatpush2.msra.mxu0 0.0
    %1408 = vmatprep.mubr.f32.mxu0 0.0
    %1409 = vmatmul.mubr.f32.gmra.mxu0 %v949
    %v1410 = vpop.f32.mrf.mxu0
    %v1411 = vadd.f32 %v1269, %v1410
    %v1412 = vpop.f32.mrf.mxu0
    %1413 = vdwg.mxu0
    %v1414 = vadd.f32 %v1205, %v1340
    %v1415 = vxor.u32 %v1414, 2147483648
    %v1416 = vmul.f32 %v1415, 1.442695
    %v1417 = vpow.pop %v1416
    %v1418 = vadd.f32 %v1417, 1.0
    %v1419 = vrcp.pop %v1418
    %v1420 = vmul.f32 1.0, %v1419
    %v1421 = vadd.f32 %v1206, %v1342
    %v1422 = vxor.u32 %v1421, 2147483648
    %v1423 = vmul.f32 %v1422, 1.442695
    %v1424 = vpow.pop %v1423
    %v1425 = vadd.f32 %v1424, 1.0
    %v1426 = vrcp.pop %v1425
    %v1427 = vmul.f32 1.0, %v1426
    %v1428 = vmul.f32 %v1420, %v1411
    %v1429 = vadd.f32 %v1207, %v1428
    %v1430 = vtanh.pop %v1429
    %v1431 = vsub.f32 1.0, %v1427
    %v1432 = vmul.f32 %v1431, %v1430
    %v1433 = vmul.f32 %v1427, %v949
    %v1434 = vadd.f32 %v1432, %v1433
    %s1435 = scalar_lea.vmem [#allocation3], 144
    %v1436 = vld [vmem:[%s1435] sm:$0xff]
    %v1437 = vld [vmem:[%s1435 + $0x8] sm:$0xff]
    %v1438 = vld [vmem:[%s1435 + $0x10] sm:$0xff]
    %v1439 = vld [vmem:[#allocation12] sm:$0xff]
    %v1440 = vld [vmem:[#allocation12 + $0x8] sm:$0xff]
    %v1441 = vld [vmem:[#allocation12 + $0x10] sm:$0xff]
    %v1442 = vld [vmem:[#allocation12 + $0x18] sm:$0xff]
    %v1443 = vld [vmem:[#allocation12 + $0x20] sm:$0xff]
    %v1444 = vld [vmem:[#allocation12 + $0x28] sm:$0xff]
    %v1445 = vld [vmem:[#allocation12 + $0x30] sm:$0xff]
    %v1446 = vld [vmem:[#allocation12 + $0x38] sm:$0xff]
    %v1447 = vld [vmem:[#allocation12 + $0x40] sm:$0xff]
    %v1448 = vld [vmem:[#allocation12 + $0x48] sm:$0xff]
    %v1449 = vld [vmem:[#allocation12 + $0x50] sm:$0xff]
    %v1450 = vld [vmem:[#allocation12 + $0x58] sm:$0xff]
    %v1451 = vld [vmem:[#allocation12 + $0x60] sm:$0xff]
    %v1452 = vld [vmem:[#allocation12 + $0x68] sm:$0xff]
    %v1453 = vld [vmem:[#allocation12 + $0x70] sm:$0xff]
    %v1454 = vld [vmem:[#allocation12 + $0x78] sm:$0xff]
    %v1455 = vld [vmem:[#allocation12 + $0x80] sm:$0xff]
    %v1456 = vld [vmem:[#allocation12 + $0x88] sm:$0xff]
    %v1457 = vld [vmem:[#allocation12 + $0x90] sm:$0xff]
    %v1458 = vld [vmem:[#allocation12 + $0x98] sm:$0xff]
    %v1459 = vld [vmem:[#allocation12 + $0xa0] sm:$0xff]
    %v1460 = vld [vmem:[#allocation12 + $0xa8] sm:$0xff]
    %v1461 = vld [vmem:[#allocation12 + $0xb0] sm:$0xff]
    %v1462 = vld [vmem:[#allocation12 + $0xb8] sm:$0xff]
    %v1463 = vld [vmem:[#allocation12 + $0xc0] sm:$0xff]
    %v1464 = vld [vmem:[#allocation12 + $0xc8] sm:$0xff]
    %v1465 = vld [vmem:[#allocation12 + $0xd0] sm:$0xff]
    %v1466 = vld [vmem:[#allocation12 + $0xd8] sm:$0xff]
    %v1467 = vld [vmem:[#allocation12 + $0xe0] sm:$0xff]
    %v1468 = vld [vmem:[#allocation12 + $0xe8] sm:$0xff]
    %v1469 = vld [vmem:[#allocation12 + $0xf0] sm:$0xff]
    %v1470 = vld [vmem:[#allocation12 + $0xf8] sm:$0xff]
    %v1471 = vld [vmem:[#allocation12 + $0x100] sm:$0xff]
    %v1472 = vld [vmem:[#allocation12 + $0x108] sm:$0xff]
    %v1473 = vld [vmem:[#allocation12 + $0x110] sm:$0xff]
    %v1474 = vld [vmem:[#allocation12 + $0x118] sm:$0xff]
    %v1475 = vld [vmem:[#allocation12 + $0x120] sm:$0xff]
    %v1476 = vld [vmem:[#allocation12 + $0x128] sm:$0xff]
    %v1477 = vld [vmem:[#allocation12 + $0x130] sm:$0xff]
    %v1478 = vld [vmem:[#allocation12 + $0x138] sm:$0xff]
    %v1479 = vld [vmem:[#allocation12 + $0x140] sm:$0xff]
    %v1480 = vld [vmem:[#allocation12 + $0x148] sm:$0xff]
    %v1481 = vld [vmem:[#allocation12 + $0x150] sm:$0xff]
    %v1482 = vld [vmem:[#allocation12 + $0x158] sm:$0xff]
    %v1483 = vld [vmem:[#allocation12 + $0x160] sm:$0xff]
    %v1484 = vld [vmem:[#allocation12 + $0x168] sm:$0xff]
    %v1485 = vld [vmem:[#allocation12 + $0x170] sm:$0xff]
    %v1486 = vld [vmem:[#allocation12 + $0x178] sm:$0xff]
    %v1487 = vld [vmem:[%s8] sm:$0x7]
    %v1489 = vlaneseq
    %v1490 = vshrl.u32 %v1489, 7
    %v1491 = vsub.s32 0, %v1490
    %v1492 = vrot.slane %v1487, %v1491
    %v1493 = vlaneseq
    %v1494 = vshrl.u32 %v1493, 7
    %v1495 = vsub.s32 1, %v1494
    %v1496 = vrot.slane %v1487, %v1495
    %v1497 = vlaneseq
    %v1498 = vshrl.u32 %v1497, 7
    %v1499 = vsub.s32 2, %v1498
    %v1500 = vrot.slane %v1487, %v1499
    %1504 = vmatprep.subr.mxu0 %v1485
    %1505 = vmatpush1.msra.mxu0 %v1484
    %1506 = vmatprep.subr.mxu0 %v1482
    %1507 = vmatpush1.msra.mxu0 %v1481
    %1508 = vmatprep.subr.mxu0 %v1479
    %1509 = vmatpush1.msra.mxu0 %v1478
    %1510 = vmatprep.subr.mxu0 %v1476
    %1511 = vmatpush1.msra.mxu0 %v1475
    %1512 = vmatprep.subr.mxu0 %v1473
    %1513 = vmatpush1.msra.mxu0 %v1472
    %1514 = vmatprep.subr.mxu0 %v1470
    %1515 = vmatpush1.msra.mxu0 %v1469
    %1516 = vmatprep.subr.mxu0 %v1467
    %1517 = vmatpush1.msra.mxu0 %v1466
    %1518 = vmatprep.subr.mxu0 %v1464
    %1519 = vmatpush1.msra.mxu0 %v1463
    %1520 = vmatprep.subr.mxu0 %v1461
    %1521 = vmatpush1.msra.mxu0 %v1460
    %1522 = vmatprep.subr.mxu0 %v1458
    %1523 = vmatpush1.msra.mxu0 %v1457
    %1524 = vmatprep.subr.mxu0 %v1455
    %1525 = vmatpush1.msra.mxu0 %v1454
    %1526 = vmatprep.subr.mxu0 %v1452
    %1527 = vmatpush1.msra.mxu0 %v1451
    %1528 = vmatprep.subr.mxu0 %v1449
    %1529 = vmatpush1.msra.mxu0 %v1448
    %1530 = vmatprep.subr.mxu0 %v1446
    %1531 = vmatpush1.msra.mxu0 %v1445
    %1532 = vmatprep.subr.mxu0 %v1443
    %1533 = vmatpush1.msra.mxu0 %v1442
    %1534 = vmatprep.subr.mxu0 %v1440
    %1535 = vmatpush1.msra.mxu0 %v1439
    %1536 = vmatprep.subr.mxu0 0.0
    %1537 = vmatpush2.msra.mxu0 0.0
    %1538 = vmatprep.subr.mxu0 0.0
    %1539 = vmatpush2.msra.mxu0 0.0
    %1540 = vmatprep.subr.mxu0 0.0
    %1541 = vmatpush2.msra.mxu0 0.0
    %1542 = vmatprep.subr.mxu0 0.0
    %1543 = vmatpush2.msra.mxu0 0.0
    %1544 = vmatprep.subr.mxu0 0.0
    %1545 = vmatpush2.msra.mxu0 0.0
    %1546 = vmatprep.subr.mxu0 0.0
    %1547 = vmatpush2.msra.mxu0 0.0
    %1548 = vmatprep.subr.mxu0 0.0
    %1549 = vmatpush2.msra.mxu0 0.0
    %1550 = vmatprep.subr.mxu0 0.0
    %1551 = vmatpush2.msra.mxu0 0.0
    %1552 = vmatprep.subr.mxu0 0.0
    %1553 = vmatpush2.msra.mxu0 0.0
    %1554 = vmatprep.subr.mxu0 0.0
    %1555 = vmatpush2.msra.mxu0 0.0
    %1556 = vmatprep.subr.mxu0 0.0
    %1557 = vmatpush2.msra.mxu0 0.0
    %1558 = vmatprep.subr.mxu0 0.0
    %1559 = vmatpush2.msra.mxu0 0.0
    %1560 = vmatprep.subr.mxu0 0.0
    %1561 = vmatpush2.msra.mxu0 0.0
    %1562 = vmatprep.subr.mxu0 0.0
    %1563 = vmatpush2.msra.mxu0 0.0
    %1564 = vmatprep.subr.mxu0 0.0
    %1565 = vmatpush2.msra.mxu0 0.0
    %1566 = vmatprep.subr.mxu0 0.0
    %1567 = vmatpush2.msra.mxu0 0.0
    %1568 = vmatprep.mubr.f32.mxu0 0.0
    %1569 = vmatmul.mubr.f32.gmra.mxu0 %v1180
    %v1570 = vpop.f32.mrf.mxu0
    %v1571 = vadd.f32 %v1492, %v1570
    %v1572 = vpop.f32.mrf.mxu0
    %v1573 = vadd.f32 %v1496, %v1572
    %1574 = vdwg.mxu0
    %1575 = vmatprep.subr.mxu0 0.0
    %1576 = vmatpush1.msra.mxu0 %v1486
    %1577 = vmatprep.subr.mxu0 0.0
    %1578 = vmatpush1.msra.mxu0 %v1483
    %1579 = vmatprep.subr.mxu0 0.0
    %1580 = vmatpush1.msra.mxu0 %v1480
    %1581 = vmatprep.subr.mxu0 0.0
    %1582 = vmatpush1.msra.mxu0 %v1477
    %1583 = vmatprep.subr.mxu0 0.0
    %1584 = vmatpush1.msra.mxu0 %v1474
    %1585 = vmatprep.subr.mxu0 0.0
    %1586 = vmatpush1.msra.mxu0 %v1471
    %1587 = vmatprep.subr.mxu0 0.0
    %1588 = vmatpush1.msra.mxu0 %v1468
    %1589 = vmatprep.subr.mxu0 0.0
    %1590 = vmatpush1.msra.mxu0 %v1465
    %1591 = vmatprep.subr.mxu0 0.0
    %1592 = vmatpush1.msra.mxu0 %v1462
    %1593 = vmatprep.subr.mxu0 0.0
    %1594 = vmatpush1.msra.mxu0 %v1459
    %1595 = vmatprep.subr.mxu0 0.0
    %1596 = vmatpush1.msra.mxu0 %v1456
    %1597 = vmatprep.subr.mxu0 0.0
    %1598 = vmatpush1.msra.mxu0 %v1453
    %1599 = vmatprep.subr.mxu0 0.0
    %1600 = vmatpush1.msra.mxu0 %v1450
    %1601 = vmatprep.subr.mxu0 0.0
    %1602 = vmatpush1.msra.mxu0 %v1447
    %1603 = vmatprep.subr.mxu0 0.0
    %1604 = vmatpush1.msra.mxu0 %v1444
    %1605 = vmatprep.subr.mxu0 0.0
    %1606 = vmatpush1.msra.mxu0 %v1441
    %1607 = vmatprep.subr.mxu0 0.0
    %1608 = vmatpush2.msra.mxu0 0.0
    %1609 = vmatprep.subr.mxu0 0.0
    %1610 = vmatpush2.msra.mxu0 0.0
    %1611 = vmatprep.subr.mxu0 0.0
    %1612 = vmatpush2.msra.mxu0 0.0
    %1613 = vmatprep.subr.mxu0 0.0
    %1614 = vmatpush2.msra.mxu0 0.0
    %1615 = vmatprep.subr.mxu0 0.0
    %1616 = vmatpush2.msra.mxu0 0.0
    %1617 = vmatprep.subr.mxu0 0.0
    %1618 = vmatpush2.msra.mxu0 0.0
    %1619 = vmatprep.subr.mxu0 0.0
    %1620 = vmatpush2.msra.mxu0 0.0
    %1621 = vmatprep.subr.mxu0 0.0
    %1622 = vmatpush2.msra.mxu0 0.0
    %1623 = vmatprep.subr.mxu0 0.0
    %1624 = vmatpush2.msra.mxu0 0.0
    %1625 = vmatprep.subr.mxu0 0.0
    %1626 = vmatpush2.msra.mxu0 0.0
    %1627 = vmatprep.subr.mxu0 0.0
    %1628 = vmatpush2.msra.mxu0 0.0
    %1629 = vmatprep.subr.mxu0 0.0
    %1630 = vmatpush2.msra.mxu0 0.0
    %1631 = vmatprep.subr.mxu0 0.0
    %1632 = vmatpush2.msra.mxu0 0.0
    %1633 = vmatprep.subr.mxu0 0.0
    %1634 = vmatpush2.msra.mxu0 0.0
    %1635 = vmatprep.subr.mxu0 0.0
    %1636 = vmatpush2.msra.mxu0 0.0
    %1637 = vmatprep.subr.mxu0 0.0
    %1638 = vmatpush2.msra.mxu0 0.0
    %1639 = vmatprep.mubr.f32.mxu0 0.0
    %1640 = vmatmul.mubr.f32.gmra.mxu0 %v1180
    %v1641 = vpop.f32.mrf.mxu0
    %v1642 = vadd.f32 %v1500, %v1641
    %v1643 = vpop.f32.mrf.mxu0
    %1644 = vdwg.mxu0
    %v1645 = vadd.f32 %v1436, %v1571
    %v1646 = vxor.u32 %v1645, 2147483648
    %v1647 = vmul.f32 %v1646, 1.442695
    %v1648 = vpow.pop %v1647
    %v1649 = vadd.f32 %v1648, 1.0
    %v1650 = vrcp.pop %v1649
    %v1651 = vmul.f32 1.0, %v1650
    %v1652 = vadd.f32 %v1437, %v1573
    %v1653 = vxor.u32 %v1652, 2147483648
    %v1654 = vmul.f32 %v1653, 1.442695
    %v1655 = vpow.pop %v1654
    %v1656 = vadd.f32 %v1655, 1.0
    %v1657 = vrcp.pop %v1656
    %v1658 = vmul.f32 1.0, %v1657
    %v1659 = vmul.f32 %v1651, %v1642
    %v1660 = vadd.f32 %v1438, %v1659
    %v1661 = vtanh.pop %v1660
    %v1662 = vsub.f32 1.0, %v1658
    %v1663 = vmul.f32 %v1662, %v1661
    %v1664 = vmul.f32 %v1658, %v1180
    %v1665 = vadd.f32 %v1663, %v1664
    %s1666 = scalar_lea.vmem [#allocation13], 8
    %1667 = vst [vmem:[%s1666] sm:$0xff] %v1434
    %s1668 = scalar_lea.vmem [#allocation14], 48
    %1669 = vst [vmem:[%s1668] sm:$0xff] %v1665
    %vm1670 = vcmp.lt.f32.partialorder 1.0, %v113
    %v1671 = vsel %vm1670, 1, 0
    %v1672 = vcvt.s32.f32 %v1671
    %1674 = vset.pattern.permute.xlu0 0
    %1675 = vperm.xlu0 %1674, %v1672
    %v1676 = vpop.permute.xlu0 %1675
    %v1678 = vmul.f32 %v1434, %v1676
    %v1679 = vadd.f32 %v1193, %v1678
    %vm1680 = vcmp.lt.f32.partialorder 6.0, %v113
    %v1681 = vsel %vm1680, 1, 0
    %v1682 = vcvt.s32.f32 %v1681
    %1684 = vset.pattern.permute.xlu0 0
    %1685 = vperm.xlu0 %1684, %v1682
    %v1686 = vpop.permute.xlu0 %1685
    %v1688 = vmul.f32 %v1665, %v1686
    %v1689 = vadd.f32 %v1203, %v1688
    %s1690 = scalar_lea.vmem [#allocation2], 48
    %v1691 = vld [vmem:[%s1690] sm:$0xff]
    %v1692 = vld [vmem:[%s1690 + $0x8] sm:$0xff]
    %v1693 = vld [vmem:[%s1690 + $0x10] sm:$0xff]
    %v1694 = vld [vmem:[#allocation10] sm:$0xff]
    %v1695 = vld [vmem:[#allocation10 + $0x8] sm:$0xff]
    %v1696 = vld [vmem:[#allocation10 + $0x10] sm:$0xff]
    %v1697 = vld [vmem:[#allocation10 + $0x18] sm:$0xff]
    %v1698 = vld [vmem:[#allocation10 + $0x20] sm:$0xff]
    %v1699 = vld [vmem:[#allocation10 + $0x28] sm:$0xff]
    %v1700 = vld [vmem:[#allocation10 + $0x30] sm:$0xff]
    %v1701 = vld [vmem:[#allocation10 + $0x38] sm:$0xff]
    %v1702 = vld [vmem:[#allocation10 + $0x40] sm:$0xff]
    %v1703 = vld [vmem:[#allocation10 + $0x48] sm:$0xff]
    %v1704 = vld [vmem:[#allocation10 + $0x50] sm:$0xff]
    %v1705 = vld [vmem:[#allocation10 + $0x58] sm:$0xff]
    %v1706 = vld [vmem:[#allocation10 + $0x60] sm:$0xff]
    %v1707 = vld [vmem:[#allocation10 + $0x68] sm:$0xff]
    %v1708 = vld [vmem:[#allocation10 + $0x70] sm:$0xff]
    %v1709 = vld [vmem:[#allocation10 + $0x78] sm:$0xff]
    %v1710 = vld [vmem:[#allocation10 + $0x80] sm:$0xff]
    %v1711 = vld [vmem:[#allocation10 + $0x88] sm:$0xff]
    %v1712 = vld [vmem:[#allocation10 + $0x90] sm:$0xff]
    %v1713 = vld [vmem:[#allocation10 + $0x98] sm:$0xff]
    %v1714 = vld [vmem:[#allocation10 + $0xa0] sm:$0xff]
    %v1715 = vld [vmem:[#allocation10 + $0xa8] sm:$0xff]
    %v1716 = vld [vmem:[#allocation10 + $0xb0] sm:$0xff]
    %v1717 = vld [vmem:[#allocation10 + $0xb8] sm:$0xff]
    %v1718 = vld [vmem:[#allocation10 + $0xc0] sm:$0xff]
    %v1719 = vld [vmem:[#allocation10 + $0xc8] sm:$0xff]
    %v1720 = vld [vmem:[#allocation10 + $0xd0] sm:$0xff]
    %v1721 = vld [vmem:[#allocation10 + $0xd8] sm:$0xff]
    %v1722 = vld [vmem:[#allocation10 + $0xe0] sm:$0xff]
    %v1723 = vld [vmem:[#allocation10 + $0xe8] sm:$0xff]
    %v1724 = vld [vmem:[#allocation10 + $0xf0] sm:$0xff]
    %v1725 = vld [vmem:[#allocation10 + $0xf8] sm:$0xff]
    %v1726 = vld [vmem:[#allocation10 + $0x100] sm:$0xff]
    %v1727 = vld [vmem:[#allocation10 + $0x108] sm:$0xff]
    %v1728 = vld [vmem:[#allocation10 + $0x110] sm:$0xff]
    %v1729 = vld [vmem:[#allocation10 + $0x118] sm:$0xff]
    %v1730 = vld [vmem:[#allocation10 + $0x120] sm:$0xff]
    %v1731 = vld [vmem:[#allocation10 + $0x128] sm:$0xff]
    %v1732 = vld [vmem:[#allocation10 + $0x130] sm:$0xff]
    %v1733 = vld [vmem:[#allocation10 + $0x138] sm:$0xff]
    %v1734 = vld [vmem:[#allocation10 + $0x140] sm:$0xff]
    %v1735 = vld [vmem:[#allocation10 + $0x148] sm:$0xff]
    %v1736 = vld [vmem:[#allocation10 + $0x150] sm:$0xff]
    %v1737 = vld [vmem:[#allocation10 + $0x158] sm:$0xff]
    %v1738 = vld [vmem:[#allocation10 + $0x160] sm:$0xff]
    %v1739 = vld [vmem:[#allocation10 + $0x168] sm:$0xff]
    %v1740 = vld [vmem:[#allocation10 + $0x170] sm:$0xff]
    %v1741 = vld [vmem:[#allocation10 + $0x178] sm:$0xff]
    %v1742 = vld [vmem:[%s6] sm:$0x7]
    %v1744 = vlaneseq
    %v1745 = vshrl.u32 %v1744, 7
    %v1746 = vsub.s32 0, %v1745
    %v1747 = vrot.slane %v1742, %v1746
    %v1748 = vlaneseq
    %v1749 = vshrl.u32 %v1748, 7
    %v1750 = vsub.s32 1, %v1749
    %v1751 = vrot.slane %v1742, %v1750
    %v1752 = vlaneseq
    %v1753 = vshrl.u32 %v1752, 7
    %v1754 = vsub.s32 2, %v1753
    %v1755 = vrot.slane %v1742, %v1754
    %1759 = vmatprep.subr.mxu0 %v1740
    %1760 = vmatpush1.msra.mxu0 %v1739
    %1761 = vmatprep.subr.mxu0 %v1737
    %1762 = vmatpush1.msra.mxu0 %v1736
    %1763 = vmatprep.subr.mxu0 %v1734
    %1764 = vmatpush1.msra.mxu0 %v1733
    %1765 = vmatprep.subr.mxu0 %v1731
    %1766 = vmatpush1.msra.mxu0 %v1730
    %1767 = vmatprep.subr.mxu0 %v1728
    %1768 = vmatpush1.msra.mxu0 %v1727
    %1769 = vmatprep.subr.mxu0 %v1725
    %1770 = vmatpush1.msra.mxu0 %v1724
    %1771 = vmatprep.subr.mxu0 %v1722
    %1772 = vmatpush1.msra.mxu0 %v1721
    %1773 = vmatprep.subr.mxu0 %v1719
    %1774 = vmatpush1.msra.mxu0 %v1718
    %1775 = vmatprep.subr.mxu0 %v1716
    %1776 = vmatpush1.msra.mxu0 %v1715
    %1777 = vmatprep.subr.mxu0 %v1713
    %1778 = vmatpush1.msra.mxu0 %v1712
    %1779 = vmatprep.subr.mxu0 %v1710
    %1780 = vmatpush1.msra.mxu0 %v1709
    %1781 = vmatprep.subr.mxu0 %v1707
    %1782 = vmatpush1.msra.mxu0 %v1706
    %1783 = vmatprep.subr.mxu0 %v1704
    %1784 = vmatpush1.msra.mxu0 %v1703
    %1785 = vmatprep.subr.mxu0 %v1701
    %1786 = vmatpush1.msra.mxu0 %v1700
    %1787 = vmatprep.subr.mxu0 %v1698
    %1788 = vmatpush1.msra.mxu0 %v1697
    %1789 = vmatprep.subr.mxu0 %v1695
    %1790 = vmatpush1.msra.mxu0 %v1694
    %1791 = vmatprep.subr.mxu0 0.0
    %1792 = vmatpush2.msra.mxu0 0.0
    %1793 = vmatprep.subr.mxu0 0.0
    %1794 = vmatpush2.msra.mxu0 0.0
    %1795 = vmatprep.subr.mxu0 0.0
    %1796 = vmatpush2.msra.mxu0 0.0
    %1797 = vmatprep.subr.mxu0 0.0
    %1798 = vmatpush2.msra.mxu0 0.0
    %1799 = vmatprep.subr.mxu0 0.0
    %1800 = vmatpush2.msra.mxu0 0.0
    %1801 = vmatprep.subr.mxu0 0.0
    %1802 = vmatpush2.msra.mxu0 0.0
    %1803 = vmatprep.subr.mxu0 0.0
    %1804 = vmatpush2.msra.mxu0 0.0
    %1805 = vmatprep.subr.mxu0 0.0
    %1806 = vmatpush2.msra.mxu0 0.0
    %1807 = vmatprep.subr.mxu0 0.0
    %1808 = vmatpush2.msra.mxu0 0.0
    %1809 = vmatprep.subr.mxu0 0.0
    %1810 = vmatpush2.msra.mxu0 0.0
    %1811 = vmatprep.subr.mxu0 0.0
    %1812 = vmatpush2.msra.mxu0 0.0
    %1813 = vmatprep.subr.mxu0 0.0
    %1814 = vmatpush2.msra.mxu0 0.0
    %1815 = vmatprep.subr.mxu0 0.0
    %1816 = vmatpush2.msra.mxu0 0.0
    %1817 = vmatprep.subr.mxu0 0.0
    %1818 = vmatpush2.msra.mxu0 0.0
    %1819 = vmatprep.subr.mxu0 0.0
    %1820 = vmatpush2.msra.mxu0 0.0
    %1821 = vmatprep.subr.mxu0 0.0
    %1822 = vmatpush2.msra.mxu0 0.0
    %1823 = vmatprep.mubr.f32.mxu0 0.0
    %1824 = vmatmul.mubr.f32.gmra.mxu0 %v1434
    %v1825 = vpop.f32.mrf.mxu0
    %v1826 = vadd.f32 %v1747, %v1825
    %v1827 = vpop.f32.mrf.mxu0
    %v1828 = vadd.f32 %v1751, %v1827
    %1829 = vdwg.mxu0
    %1830 = vmatprep.subr.mxu0 0.0
    %1831 = vmatpush1.msra.mxu0 %v1741
    %1832 = vmatprep.subr.mxu0 0.0
    %1833 = vmatpush1.msra.mxu0 %v1738
    %1834 = vmatprep.subr.mxu0 0.0
    %1835 = vmatpush1.msra.mxu0 %v1735
    %1836 = vmatprep.subr.mxu0 0.0
    %1837 = vmatpush1.msra.mxu0 %v1732
    %1838 = vmatprep.subr.mxu0 0.0
    %1839 = vmatpush1.msra.mxu0 %v1729
    %1840 = vmatprep.subr.mxu0 0.0
    %1841 = vmatpush1.msra.mxu0 %v1726
    %1842 = vmatprep.subr.mxu0 0.0
    %1843 = vmatpush1.msra.mxu0 %v1723
    %1844 = vmatprep.subr.mxu0 0.0
    %1845 = vmatpush1.msra.mxu0 %v1720
    %1846 = vmatprep.subr.mxu0 0.0
    %1847 = vmatpush1.msra.mxu0 %v1717
    %1848 = vmatprep.subr.mxu0 0.0
    %1849 = vmatpush1.msra.mxu0 %v1714
    %1850 = vmatprep.subr.mxu0 0.0
    %1851 = vmatpush1.msra.mxu0 %v1711
    %1852 = vmatprep.subr.mxu0 0.0
    %1853 = vmatpush1.msra.mxu0 %v1708
    %1854 = vmatprep.subr.mxu0 0.0
    %1855 = vmatpush1.msra.mxu0 %v1705
    %1856 = vmatprep.subr.mxu0 0.0
    %1857 = vmatpush1.msra.mxu0 %v1702
    %1858 = vmatprep.subr.mxu0 0.0
    %1859 = vmatpush1.msra.mxu0 %v1699
    %1860 = vmatprep.subr.mxu0 0.0
    %1861 = vmatpush1.msra.mxu0 %v1696
    %1862 = vmatprep.subr.mxu0 0.0
    %1863 = vmatpush2.msra.mxu0 0.0
    %1864 = vmatprep.subr.mxu0 0.0
    %1865 = vmatpush2.msra.mxu0 0.0
    %1866 = vmatprep.subr.mxu0 0.0
    %1867 = vmatpush2.msra.mxu0 0.0
    %1868 = vmatprep.subr.mxu0 0.0
    %1869 = vmatpush2.msra.mxu0 0.0
    %1870 = vmatprep.subr.mxu0 0.0
    %1871 = vmatpush2.msra.mxu0 0.0
    %1872 = vmatprep.subr.mxu0 0.0
    %1873 = vmatpush2.msra.mxu0 0.0
    %1874 = vmatprep.subr.mxu0 0.0
    %1875 = vmatpush2.msra.mxu0 0.0
    %1876 = vmatprep.subr.mxu0 0.0
    %1877 = vmatpush2.msra.mxu0 0.0
    %1878 = vmatprep.subr.mxu0 0.0
    %1879 = vmatpush2.msra.mxu0 0.0
    %1880 = vmatprep.subr.mxu0 0.0
    %1881 = vmatpush2.msra.mxu0 0.0
    %1882 = vmatprep.subr.mxu0 0.0
    %1883 = vmatpush2.msra.mxu0 0.0
    %1884 = vmatprep.subr.mxu0 0.0
    %1885 = vmatpush2.msra.mxu0 0.0
    %1886 = vmatprep.subr.mxu0 0.0
    %1887 = vmatpush2.msra.mxu0 0.0
    %1888 = vmatprep.subr.mxu0 0.0
    %1889 = vmatpush2.msra.mxu0 0.0
    %1890 = vmatprep.subr.mxu0 0.0
    %1891 = vmatpush2.msra.mxu0 0.0
    %1892 = vmatprep.subr.mxu0 0.0
    %1893 = vmatpush2.msra.mxu0 0.0
    %1894 = vmatprep.mubr.f32.mxu0 0.0
    %1895 = vmatmul.mubr.f32.gmra.mxu0 %v1434
    %v1896 = vpop.f32.mrf.mxu0
    %v1897 = vadd.f32 %v1755, %v1896
    %v1898 = vpop.f32.mrf.mxu0
    %1899 = vdwg.mxu0
    %v1900 = vadd.f32 %v1691, %v1826
    %v1901 = vxor.u32 %v1900, 2147483648
    %v1902 = vmul.f32 %v1901, 1.442695
    %v1903 = vpow.pop %v1902
    %v1904 = vadd.f32 %v1903, 1.0
    %v1905 = vrcp.pop %v1904
    %v1906 = vmul.f32 1.0, %v1905
    %v1907 = vadd.f32 %v1692, %v1828
    %v1908 = vxor.u32 %v1907, 2147483648
    %v1909 = vmul.f32 %v1908, 1.442695
    %v1910 = vpow.pop %v1909
    %v1911 = vadd.f32 %v1910, 1.0
    %v1912 = vrcp.pop %v1911
    %v1913 = vmul.f32 1.0, %v1912
    %v1914 = vmul.f32 %v1906, %v1897
    %v1915 = vadd.f32 %v1693, %v1914
    %v1916 = vtanh.pop %v1915
    %v1917 = vsub.f32 1.0, %v1913
    %v1918 = vmul.f32 %v1917, %v1916
    %v1919 = vmul.f32 %v1913, %v1434
    %v1920 = vadd.f32 %v1918, %v1919
    %s1921 = scalar_lea.vmem [#allocation3], 120
    %v1922 = vld [vmem:[%s1921] sm:$0xff]
    %v1923 = vld [vmem:[%s1921 + $0x8] sm:$0xff]
    %v1924 = vld [vmem:[%s1921 + $0x10] sm:$0xff]
    %v1925 = vld [vmem:[#allocation12] sm:$0xff]
    %v1926 = vld [vmem:[#allocation12 + $0x8] sm:$0xff]
    %v1927 = vld [vmem:[#allocation12 + $0x10] sm:$0xff]
    %v1928 = vld [vmem:[#allocation12 + $0x18] sm:$0xff]
    %v1929 = vld [vmem:[#allocation12 + $0x20] sm:$0xff]
    %v1930 = vld [vmem:[#allocation12 + $0x28] sm:$0xff]
    %v1931 = vld [vmem:[#allocation12 + $0x30] sm:$0xff]
    %v1932 = vld [vmem:[#allocation12 + $0x38] sm:$0xff]
    %v1933 = vld [vmem:[#allocation12 + $0x40] sm:$0xff]
    %v1934 = vld [vmem:[#allocation12 + $0x48] sm:$0xff]
    %v1935 = vld [vmem:[#allocation12 + $0x50] sm:$0xff]
    %v1936 = vld [vmem:[#allocation12 + $0x58] sm:$0xff]
    %v1937 = vld [vmem:[#allocation12 + $0x60] sm:$0xff]
    %v1938 = vld [vmem:[#allocation12 + $0x68] sm:$0xff]
    %v1939 = vld [vmem:[#allocation12 + $0x70] sm:$0xff]
    %v1940 = vld [vmem:[#allocation12 + $0x78] sm:$0xff]
    %v1941 = vld [vmem:[#allocation12 + $0x80] sm:$0xff]
    %v1942 = vld [vmem:[#allocation12 + $0x88] sm:$0xff]
    %v1943 = vld [vmem:[#allocation12 + $0x90] sm:$0xff]
    %v1944 = vld [vmem:[#allocation12 + $0x98] sm:$0xff]
    %v1945 = vld [vmem:[#allocation12 + $0xa0] sm:$0xff]
    %v1946 = vld [vmem:[#allocation12 + $0xa8] sm:$0xff]
    %v1947 = vld [vmem:[#allocation12 + $0xb0] sm:$0xff]
    %v1948 = vld [vmem:[#allocation12 + $0xb8] sm:$0xff]
    %v1949 = vld [vmem:[#allocation12 + $0xc0] sm:$0xff]
    %v1950 = vld [vmem:[#allocation12 + $0xc8] sm:$0xff]
    %v1951 = vld [vmem:[#allocation12 + $0xd0] sm:$0xff]
    %v1952 = vld [vmem:[#allocation12 + $0xd8] sm:$0xff]
    %v1953 = vld [vmem:[#allocation12 + $0xe0] sm:$0xff]
    %v1954 = vld [vmem:[#allocation12 + $0xe8] sm:$0xff]
    %v1955 = vld [vmem:[#allocation12 + $0xf0] sm:$0xff]
    %v1956 = vld [vmem:[#allocation12 + $0xf8] sm:$0xff]
    %v1957 = vld [vmem:[#allocation12 + $0x100] sm:$0xff]
    %v1958 = vld [vmem:[#allocation12 + $0x108] sm:$0xff]
    %v1959 = vld [vmem:[#allocation12 + $0x110] sm:$0xff]
    %v1960 = vld [vmem:[#allocation12 + $0x118] sm:$0xff]
    %v1961 = vld [vmem:[#allocation12 + $0x120] sm:$0xff]
    %v1962 = vld [vmem:[#allocation12 + $0x128] sm:$0xff]
    %v1963 = vld [vmem:[#allocation12 + $0x130] sm:$0xff]
    %v1964 = vld [vmem:[#allocation12 + $0x138] sm:$0xff]
    %v1965 = vld [vmem:[#allocation12 + $0x140] sm:$0xff]
    %v1966 = vld [vmem:[#allocation12 + $0x148] sm:$0xff]
    %v1967 = vld [vmem:[#allocation12 + $0x150] sm:$0xff]
    %v1968 = vld [vmem:[#allocation12 + $0x158] sm:$0xff]
    %v1969 = vld [vmem:[#allocation12 + $0x160] sm:$0xff]
    %v1970 = vld [vmem:[#allocation12 + $0x168] sm:$0xff]
    %v1971 = vld [vmem:[#allocation12 + $0x170] sm:$0xff]
    %v1972 = vld [vmem:[#allocation12 + $0x178] sm:$0xff]
    %v1973 = vld [vmem:[%s8] sm:$0x7]
    %v1975 = vlaneseq
    %v1976 = vshrl.u32 %v1975, 7
    %v1977 = vsub.s32 0, %v1976
    %v1978 = vrot.slane %v1973, %v1977
    %v1979 = vlaneseq
    %v1980 = vshrl.u32 %v1979, 7
    %v1981 = vsub.s32 1, %v1980
    %v1982 = vrot.slane %v1973, %v1981
    %v1983 = vlaneseq
    %v1984 = vshrl.u32 %v1983, 7
    %v1985 = vsub.s32 2, %v1984
    %v1986 = vrot.slane %v1973, %v1985
    %1990 = vmatprep.subr.mxu0 %v1971
    %1991 = vmatpush1.msra.mxu0 %v1970
    %1992 = vmatprep.subr.mxu0 %v1968
    %1993 = vmatpush1.msra.mxu0 %v1967
    %1994 = vmatprep.subr.mxu0 %v1965
    %1995 = vmatpush1.msra.mxu0 %v1964
    %1996 = vmatprep.subr.mxu0 %v1962
    %1997 = vmatpush1.msra.mxu0 %v1961
    %1998 = vmatprep.subr.mxu0 %v1959
    %1999 = vmatpush1.msra.mxu0 %v1958
    %2000 = vmatprep.subr.mxu0 %v1956
    %2001 = vmatpush1.msra.mxu0 %v1955
    %2002 = vmatprep.subr.mxu0 %v1953
    %2003 = vmatpush1.msra.mxu0 %v1952
    %2004 = vmatprep.subr.mxu0 %v1950
    %2005 = vmatpush1.msra.mxu0 %v1949
    %2006 = vmatprep.subr.mxu0 %v1947
    %2007 = vmatpush1.msra.mxu0 %v1946
    %2008 = vmatprep.subr.mxu0 %v1944
    %2009 = vmatpush1.msra.mxu0 %v1943
    %2010 = vmatprep.subr.mxu0 %v1941
    %2011 = vmatpush1.msra.mxu0 %v1940
    %2012 = vmatprep.subr.mxu0 %v1938
    %2013 = vmatpush1.msra.mxu0 %v1937
    %2014 = vmatprep.subr.mxu0 %v1935
    %2015 = vmatpush1.msra.mxu0 %v1934
    %2016 = vmatprep.subr.mxu0 %v1932
    %2017 = vmatpush1.msra.mxu0 %v1931
    %2018 = vmatprep.subr.mxu0 %v1929
    %2019 = vmatpush1.msra.mxu0 %v1928
    %2020 = vmatprep.subr.mxu0 %v1926
    %2021 = vmatpush1.msra.mxu0 %v1925
    %2022 = vmatprep.subr.mxu0 0.0
    %2023 = vmatpush2.msra.mxu0 0.0
    %2024 = vmatprep.subr.mxu0 0.0
    %2025 = vmatpush2.msra.mxu0 0.0
    %2026 = vmatprep.subr.mxu0 0.0
    %2027 = vmatpush2.msra.mxu0 0.0
    %2028 = vmatprep.subr.mxu0 0.0
    %2029 = vmatpush2.msra.mxu0 0.0
    %2030 = vmatprep.subr.mxu0 0.0
    %2031 = vmatpush2.msra.mxu0 0.0
    %2032 = vmatprep.subr.mxu0 0.0
    %2033 = vmatpush2.msra.mxu0 0.0
    %2034 = vmatprep.subr.mxu0 0.0
    %2035 = vmatpush2.msra.mxu0 0.0
    %2036 = vmatprep.subr.mxu0 0.0
    %2037 = vmatpush2.msra.mxu0 0.0
    %2038 = vmatprep.subr.mxu0 0.0
    %2039 = vmatpush2.msra.mxu0 0.0
    %2040 = vmatprep.subr.mxu0 0.0
    %2041 = vmatpush2.msra.mxu0 0.0
    %2042 = vmatprep.subr.mxu0 0.0
    %2043 = vmatpush2.msra.mxu0 0.0
    %2044 = vmatprep.subr.mxu0 0.0
    %2045 = vmatpush2.msra.mxu0 0.0
    %2046 = vmatprep.subr.mxu0 0.0
    %2047 = vmatpush2.msra.mxu0 0.0
    %2048 = vmatprep.subr.mxu0 0.0
    %2049 = vmatpush2.msra.mxu0 0.0
    %2050 = vmatprep.subr.mxu0 0.0
    %2051 = vmatpush2.msra.mxu0 0.0
    %2052 = vmatprep.subr.mxu0 0.0
    %2053 = vmatpush2.msra.mxu0 0.0
    %2054 = vmatprep.mubr.f32.mxu0 0.0
    %2055 = vmatmul.mubr.f32.gmra.mxu0 %v1665
    %v2056 = vpop.f32.mrf.mxu0
    %v2057 = vadd.f32 %v1978, %v2056
    %v2058 = vpop.f32.mrf.mxu0
    %v2059 = vadd.f32 %v1982, %v2058
    %2060 = vdwg.mxu0
    %2061 = vmatprep.subr.mxu0 0.0
    %2062 = vmatpush1.msra.mxu0 %v1972
    %2063 = vmatprep.subr.mxu0 0.0
    %2064 = vmatpush1.msra.mxu0 %v1969
    %2065 = vmatprep.subr.mxu0 0.0
    %2066 = vmatpush1.msra.mxu0 %v1966
    %2067 = vmatprep.subr.mxu0 0.0
    %2068 = vmatpush1.msra.mxu0 %v1963
    %2069 = vmatprep.subr.mxu0 0.0
    %2070 = vmatpush1.msra.mxu0 %v1960
    %2071 = vmatprep.subr.mxu0 0.0
    %2072 = vmatpush1.msra.mxu0 %v1957
    %2073 = vmatprep.subr.mxu0 0.0
    %2074 = vmatpush1.msra.mxu0 %v1954
    %2075 = vmatprep.subr.mxu0 0.0
    %2076 = vmatpush1.msra.mxu0 %v1951
    %2077 = vmatprep.subr.mxu0 0.0
    %2078 = vmatpush1.msra.mxu0 %v1948
    %2079 = vmatprep.subr.mxu0 0.0
    %2080 = vmatpush1.msra.mxu0 %v1945
    %2081 = vmatprep.subr.mxu0 0.0
    %2082 = vmatpush1.msra.mxu0 %v1942
    %2083 = vmatprep.subr.mxu0 0.0
    %2084 = vmatpush1.msra.mxu0 %v1939
    %2085 = vmatprep.subr.mxu0 0.0
    %2086 = vmatpush1.msra.mxu0 %v1936
    %2087 = vmatprep.subr.mxu0 0.0
    %2088 = vmatpush1.msra.mxu0 %v1933
    %2089 = vmatprep.subr.mxu0 0.0
    %2090 = vmatpush1.msra.mxu0 %v1930
    %2091 = vmatprep.subr.mxu0 0.0
    %2092 = vmatpush1.msra.mxu0 %v1927
    %2093 = vmatprep.subr.mxu0 0.0
    %2094 = vmatpush2.msra.mxu0 0.0
    %2095 = vmatprep.subr.mxu0 0.0
    %2096 = vmatpush2.msra.mxu0 0.0
    %2097 = vmatprep.subr.mxu0 0.0
    %2098 = vmatpush2.msra.mxu0 0.0
    %2099 = vmatprep.subr.mxu0 0.0
    %2100 = vmatpush2.msra.mxu0 0.0
    %2101 = vmatprep.subr.mxu0 0.0
    %2102 = vmatpush2.msra.mxu0 0.0
    %2103 = vmatprep.subr.mxu0 0.0
    %2104 = vmatpush2.msra.mxu0 0.0
    %2105 = vmatprep.subr.mxu0 0.0
    %2106 = vmatpush2.msra.mxu0 0.0
    %2107 = vmatprep.subr.mxu0 0.0
    %2108 = vmatpush2.msra.mxu0 0.0
    %2109 = vmatprep.subr.mxu0 0.0
    %2110 = vmatpush2.msra.mxu0 0.0
    %2111 = vmatprep.subr.mxu0 0.0
    %2112 = vmatpush2.msra.mxu0 0.0
    %2113 = vmatprep.subr.mxu0 0.0
    %2114 = vmatpush2.msra.mxu0 0.0
    %2115 = vmatprep.subr.mxu0 0.0
    %2116 = vmatpush2.msra.mxu0 0.0
    %2117 = vmatprep.subr.mxu0 0.0
    %2118 = vmatpush2.msra.mxu0 0.0
    %2119 = vmatprep.subr.mxu0 0.0
    %2120 = vmatpush2.msra.mxu0 0.0
    %2121 = vmatprep.subr.mxu0 0.0
    %2122 = vmatpush2.msra.mxu0 0.0
    %2123 = vmatprep.subr.mxu0 0.0
    %2124 = vmatpush2.msra.mxu0 0.0
    %2125 = vmatprep.mubr.f32.mxu0 0.0
    %2126 = vmatmul.mubr.f32.gmra.mxu0 %v1665
    %v2127 = vpop.f32.mrf.mxu0
    %v2128 = vadd.f32 %v1986, %v2127
    %v2129 = vpop.f32.mrf.mxu0
    %2130 = vdwg.mxu0
    %v2131 = vadd.f32 %v1922, %v2057
    %v2132 = vxor.u32 %v2131, 2147483648
    %v2133 = vmul.f32 %v2132, 1.442695
    %v2134 = vpow.pop %v2133
    %v2135 = vadd.f32 %v2134, 1.0
    %v2136 = vrcp.pop %v2135
    %v2137 = vmul.f32 1.0, %v2136
    %v2138 = vadd.f32 %v1923, %v2059
    %v2139 = vxor.u32 %v2138, 2147483648
    %v2140 = vmul.f32 %v2139, 1.442695
    %v2141 = vpow.pop %v2140
    %v2142 = vadd.f32 %v2141, 1.0
    %v2143 = vrcp.pop %v2142
    %v2144 = vmul.f32 1.0, %v2143
    %v2145 = vmul.f32 %v2137, %v2128
    %v2146 = vadd.f32 %v1924, %v2145
    %v2147 = vtanh.pop %v2146
    %v2148 = vsub.f32 1.0, %v2144
    %v2149 = vmul.f32 %v2148, %v2147
    %v2150 = vmul.f32 %v2144, %v1665
    %v2151 = vadd.f32 %v2149, %v2150
    %s2152 = scalar_lea.vmem [#allocation13], 16
    %2153 = vst [vmem:[%s2152] sm:$0xff] %v1920
    %s2154 = scalar_lea.vmem [#allocation14], 40
    %2155 = vst [vmem:[%s2154] sm:$0xff] %v2151
    %vm2156 = vcmp.lt.f32.partialorder 2.0, %v113
    %v2157 = vsel %vm2156, 1, 0
    %v2158 = vcvt.s32.f32 %v2157
    %2160 = vset.pattern.permute.xlu0 0
    %2161 = vperm.xlu0 %2160, %v2158
    %v2162 = vpop.permute.xlu0 %2161
    %v2164 = vmul.f32 %v1920, %v2162
    %v2165 = vadd.f32 %v1679, %v2164
    %vm2166 = vcmp.lt.f32.partialorder 5.0, %v113
    %v2167 = vsel %vm2166, 1, 0
    %v2168 = vcvt.s32.f32 %v2167
    %2170 = vset.pattern.permute.xlu0 0
    %2171 = vperm.xlu0 %2170, %v2168
    %v2172 = vpop.permute.xlu0 %2171
    %v2174 = vmul.f32 %v2151, %v2172
    %v2175 = vadd.f32 %v1689, %v2174
    %s2176 = scalar_lea.vmem [#allocation2], 72
    %v2177 = vld [vmem:[%s2176] sm:$0xff]
    %v2178 = vld [vmem:[%s2176 + $0x8] sm:$0xff]
    %v2179 = vld [vmem:[%s2176 + $0x10] sm:$0xff]
    %v2180 = vld [vmem:[#allocation10] sm:$0xff]
    %v2181 = vld [vmem:[#allocation10 + $0x8] sm:$0xff]
    %v2182 = vld [vmem:[#allocation10 + $0x10] sm:$0xff]
    %v2183 = vld [vmem:[#allocation10 + $0x18] sm:$0xff]
    %v2184 = vld [vmem:[#allocation10 + $0x20] sm:$0xff]
    %v2185 = vld [vmem:[#allocation10 + $0x28] sm:$0xff]
    %v2186 = vld [vmem:[#allocation10 + $0x30] sm:$0xff]
    %v2187 = vld [vmem:[#allocation10 + $0x38] sm:$0xff]
    %v2188 = vld [vmem:[#allocation10 + $0x40] sm:$0xff]
    %v2189 = vld [vmem:[#allocation10 + $0x48] sm:$0xff]
    %v2190 = vld [vmem:[#allocation10 + $0x50] sm:$0xff]
    %v2191 = vld [vmem:[#allocation10 + $0x58] sm:$0xff]
    %v2192 = vld [vmem:[#allocation10 + $0x60] sm:$0xff]
    %v2193 = vld [vmem:[#allocation10 + $0x68] sm:$0xff]
    %v2194 = vld [vmem:[#allocation10 + $0x70] sm:$0xff]
    %v2195 = vld [vmem:[#allocation10 + $0x78] sm:$0xff]
    %v2196 = vld [vmem:[#allocation10 + $0x80] sm:$0xff]
    %v2197 = vld [vmem:[#allocation10 + $0x88] sm:$0xff]
    %v2198 = vld [vmem:[#allocation10 + $0x90] sm:$0xff]
    %v2199 = vld [vmem:[#allocation10 + $0x98] sm:$0xff]
    %v2200 = vld [vmem:[#allocation10 + $0xa0] sm:$0xff]
    %v2201 = vld [vmem:[#allocation10 + $0xa8] sm:$0xff]
    %v2202 = vld [vmem:[#allocation10 + $0xb0] sm:$0xff]
    %v2203 = vld [vmem:[#allocation10 + $0xb8] sm:$0xff]
    %v2204 = vld [vmem:[#allocation10 + $0xc0] sm:$0xff]
    %v2205 = vld [vmem:[#allocation10 + $0xc8] sm:$0xff]
    %v2206 = vld [vmem:[#allocation10 + $0xd0] sm:$0xff]
    %v2207 = vld [vmem:[#allocation10 + $0xd8] sm:$0xff]
    %v2208 = vld [vmem:[#allocation10 + $0xe0] sm:$0xff]
    %v2209 = vld [vmem:[#allocation10 + $0xe8] sm:$0xff]
    %v2210 = vld [vmem:[#allocation10 + $0xf0] sm:$0xff]
    %v2211 = vld [vmem:[#allocation10 + $0xf8] sm:$0xff]
    %v2212 = vld [vmem:[#allocation10 + $0x100] sm:$0xff]
    %v2213 = vld [vmem:[#allocation10 + $0x108] sm:$0xff]
    %v2214 = vld [vmem:[#allocation10 + $0x110] sm:$0xff]
    %v2215 = vld [vmem:[#allocation10 + $0x118] sm:$0xff]
    %v2216 = vld [vmem:[#allocation10 + $0x120] sm:$0xff]
    %v2217 = vld [vmem:[#allocation10 + $0x128] sm:$0xff]
    %v2218 = vld [vmem:[#allocation10 + $0x130] sm:$0xff]
    %v2219 = vld [vmem:[#allocation10 + $0x138] sm:$0xff]
    %v2220 = vld [vmem:[#allocation10 + $0x140] sm:$0xff]
    %v2221 = vld [vmem:[#allocation10 + $0x148] sm:$0xff]
    %v2222 = vld [vmem:[#allocation10 + $0x150] sm:$0xff]
    %v2223 = vld [vmem:[#allocation10 + $0x158] sm:$0xff]
    %v2224 = vld [vmem:[#allocation10 + $0x160] sm:$0xff]
    %v2225 = vld [vmem:[#allocation10 + $0x168] sm:$0xff]
    %v2226 = vld [vmem:[#allocation10 + $0x170] sm:$0xff]
    %v2227 = vld [vmem:[#allocation10 + $0x178] sm:$0xff]
    %v2228 = vld [vmem:[%s6] sm:$0x7]
    %v2230 = vlaneseq
    %v2231 = vshrl.u32 %v2230, 7
    %v2232 = vsub.s32 0, %v2231
    %v2233 = vrot.slane %v2228, %v2232
    %v2234 = vlaneseq
    %v2235 = vshrl.u32 %v2234, 7
    %v2236 = vsub.s32 1, %v2235
    %v2237 = vrot.slane %v2228, %v2236
    %v2238 = vlaneseq
    %v2239 = vshrl.u32 %v2238, 7
    %v2240 = vsub.s32 2, %v2239
    %v2241 = vrot.slane %v2228, %v2240
    %2245 = vmatprep.subr.mxu0 %v2226
    %2246 = vmatpush1.msra.mxu0 %v2225
    %2247 = vmatprep.subr.mxu0 %v2223
    %2248 = vmatpush1.msra.mxu0 %v2222
    %2249 = vmatprep.subr.mxu0 %v2220
    %2250 = vmatpush1.msra.mxu0 %v2219
    %2251 = vmatprep.subr.mxu0 %v2217
    %2252 = vmatpush1.msra.mxu0 %v2216
    %2253 = vmatprep.subr.mxu0 %v2214
    %2254 = vmatpush1.msra.mxu0 %v2213
    %2255 = vmatprep.subr.mxu0 %v2211
    %2256 = vmatpush1.msra.mxu0 %v2210
    %2257 = vmatprep.subr.mxu0 %v2208
    %2258 = vmatpush1.msra.mxu0 %v2207
    %2259 = vmatprep.subr.mxu0 %v2205
    %2260 = vmatpush1.msra.mxu0 %v2204
    %2261 = vmatprep.subr.mxu0 %v2202
    %2262 = vmatpush1.msra.mxu0 %v2201
    %2263 = vmatprep.subr.mxu0 %v2199
    %2264 = vmatpush1.msra.mxu0 %v2198
    %2265 = vmatprep.subr.mxu0 %v2196
    %2266 = vmatpush1.msra.mxu0 %v2195
    %2267 = vmatprep.subr.mxu0 %v2193
    %2268 = vmatpush1.msra.mxu0 %v2192
    %2269 = vmatprep.subr.mxu0 %v2190
    %2270 = vmatpush1.msra.mxu0 %v2189
    %2271 = vmatprep.subr.mxu0 %v2187
    %2272 = vmatpush1.msra.mxu0 %v2186
    %2273 = vmatprep.subr.mxu0 %v2184
    %2274 = vmatpush1.msra.mxu0 %v2183
    %2275 = vmatprep.subr.mxu0 %v2181
    %2276 = vmatpush1.msra.mxu0 %v2180
    %2277 = vmatprep.subr.mxu0 0.0
    %2278 = vmatpush2.msra.mxu0 0.0
    %2279 = vmatprep.subr.mxu0 0.0
    %2280 = vmatpush2.msra.mxu0 0.0
    %2281 = vmatprep.subr.mxu0 0.0
    %2282 = vmatpush2.msra.mxu0 0.0
    %2283 = vmatprep.subr.mxu0 0.0
    %2284 = vmatpush2.msra.mxu0 0.0
    %2285 = vmatprep.subr.mxu0 0.0
    %2286 = vmatpush2.msra.mxu0 0.0
    %2287 = vmatprep.subr.mxu0 0.0
    %2288 = vmatpush2.msra.mxu0 0.0
    %2289 = vmatprep.subr.mxu0 0.0
    %2290 = vmatpush2.msra.mxu0 0.0
    %2291 = vmatprep.subr.mxu0 0.0
    %2292 = vmatpush2.msra.mxu0 0.0
    %2293 = vmatprep.subr.mxu0 0.0
    %2294 = vmatpush2.msra.mxu0 0.0
    %2295 = vmatprep.subr.mxu0 0.0
    %2296 = vmatpush2.msra.mxu0 0.0
    %2297 = vmatprep.subr.mxu0 0.0
    %2298 = vmatpush2.msra.mxu0 0.0
    %2299 = vmatprep.subr.mxu0 0.0
    %2300 = vmatpush2.msra.mxu0 0.0
    %2301 = vmatprep.subr.mxu0 0.0
    %2302 = vmatpush2.msra.mxu0 0.0
    %2303 = vmatprep.subr.mxu0 0.0
    %2304 = vmatpush2.msra.mxu0 0.0
    %2305 = vmatprep.subr.mxu0 0.0
    %2306 = vmatpush2.msra.mxu0 0.0
    %2307 = vmatprep.subr.mxu0 0.0
    %2308 = vmatpush2.msra.mxu0 0.0
    %2309 = vmatprep.mubr.f32.mxu0 0.0
    %2310 = vmatmul.mubr.f32.gmra.mxu0 %v1920
    %v2311 = vpop.f32.mrf.mxu0
    %v2312 = vadd.f32 %v2233, %v2311
    %v2313 = vpop.f32.mrf.mxu0
    %v2314 = vadd.f32 %v2237, %v2313
    %2315 = vdwg.mxu0
    %2316 = vmatprep.subr.mxu0 0.0
    %2317 = vmatpush1.msra.mxu0 %v2227
    %2318 = vmatprep.subr.mxu0 0.0
    %2319 = vmatpush1.msra.mxu0 %v2224
    %2320 = vmatprep.subr.mxu0 0.0
    %2321 = vmatpush1.msra.mxu0 %v2221
    %2322 = vmatprep.subr.mxu0 0.0
    %2323 = vmatpush1.msra.mxu0 %v2218
    %2324 = vmatprep.subr.mxu0 0.0
    %2325 = vmatpush1.msra.mxu0 %v2215
    %2326 = vmatprep.subr.mxu0 0.0
    %2327 = vmatpush1.msra.mxu0 %v2212
    %2328 = vmatprep.subr.mxu0 0.0
    %2329 = vmatpush1.msra.mxu0 %v2209
    %2330 = vmatprep.subr.mxu0 0.0
    %2331 = vmatpush1.msra.mxu0 %v2206
    %2332 = vmatprep.subr.mxu0 0.0
    %2333 = vmatpush1.msra.mxu0 %v2203
    %2334 = vmatprep.subr.mxu0 0.0
    %2335 = vmatpush1.msra.mxu0 %v2200
    %2336 = vmatprep.subr.mxu0 0.0
    %2337 = vmatpush1.msra.mxu0 %v2197
    %2338 = vmatprep.subr.mxu0 0.0
    %2339 = vmatpush1.msra.mxu0 %v2194
    %2340 = vmatprep.subr.mxu0 0.0
    %2341 = vmatpush1.msra.mxu0 %v2191
    %2342 = vmatprep.subr.mxu0 0.0
    %2343 = vmatpush1.msra.mxu0 %v2188
    %2344 = vmatprep.subr.mxu0 0.0
    %2345 = vmatpush1.msra.mxu0 %v2185
    %2346 = vmatprep.subr.mxu0 0.0
    %2347 = vmatpush1.msra.mxu0 %v2182
    %2348 = vmatprep.subr.mxu0 0.0
    %2349 = vmatpush2.msra.mxu0 0.0
    %2350 = vmatprep.subr.mxu0 0.0
    %2351 = vmatpush2.msra.mxu0 0.0
    %2352 = vmatprep.subr.mxu0 0.0
    %2353 = vmatpush2.msra.mxu0 0.0
    %2354 = vmatprep.subr.mxu0 0.0
    %2355 = vmatpush2.msra.mxu0 0.0
    %2356 = vmatprep.subr.mxu0 0.0
    %2357 = vmatpush2.msra.mxu0 0.0
    %2358 = vmatprep.subr.mxu0 0.0
    %2359 = vmatpush2.msra.mxu0 0.0
    %2360 = vmatprep.subr.mxu0 0.0
    %2361 = vmatpush2.msra.mxu0 0.0
    %2362 = vmatprep.subr.mxu0 0.0
    %2363 = vmatpush2.msra.mxu0 0.0
    %2364 = vmatprep.subr.mxu0 0.0
    %2365 = vmatpush2.msra.mxu0 0.0
    %2366 = vmatprep.subr.mxu0 0.0
    %2367 = vmatpush2.msra.mxu0 0.0
    %2368 = vmatprep.subr.mxu0 0.0
    %2369 = vmatpush2.msra.mxu0 0.0
    %2370 = vmatprep.subr.mxu0 0.0
    %2371 = vmatpush2.msra.mxu0 0.0
    %2372 = vmatprep.subr.mxu0 0.0
    %2373 = vmatpush2.msra.mxu0 0.0
    %2374 = vmatprep.subr.mxu0 0.0
    %2375 = vmatpush2.msra.mxu0 0.0
    %2376 = vmatprep.subr.mxu0 0.0
    %2377 = vmatpush2.msra.mxu0 0.0
    %2378 = vmatprep.subr.mxu0 0.0
    %2379 = vmatpush2.msra.mxu0 0.0
    %2380 = vmatprep.mubr.f32.mxu0 0.0
    %2381 = vmatmul.mubr.f32.gmra.mxu0 %v1920
    %v2382 = vpop.f32.mrf.mxu0
    %v2383 = vadd.f32 %v2241, %v2382
    %v2384 = vpop.f32.mrf.mxu0
    %2385 = vdwg.mxu0
    %v2386 = vadd.f32 %v2177, %v2312
    %v2387 = vxor.u32 %v2386, 2147483648
    %v2388 = vmul.f32 %v2387, 1.442695
    %v2389 = vpow.pop %v2388
    %v2390 = vadd.f32 %v2389, 1.0
    %v2391 = vrcp.pop %v2390
    %v2392 = vmul.f32 1.0, %v2391
    %v2393 = vadd.f32 %v2178, %v2314
    %v2394 = vxor.u32 %v2393, 2147483648
    %v2395 = vmul.f32 %v2394, 1.442695
    %v2396 = vpow.pop %v2395
    %v2397 = vadd.f32 %v2396, 1.0
    %v2398 = vrcp.pop %v2397
    %v2399 = vmul.f32 1.0, %v2398
    %v2400 = vmul.f32 %v2392, %v2383
    %v2401 = vadd.f32 %v2179, %v2400
    %v2402 = vtanh.pop %v2401
    %v2403 = vsub.f32 1.0, %v2399
    %v2404 = vmul.f32 %v2403, %v2402
    %v2405 = vmul.f32 %v2399, %v1920
    %v2406 = vadd.f32 %v2404, %v2405
    %s2407 = scalar_lea.vmem [#allocation3], 96
    %v2408 = vld [vmem:[%s2407] sm:$0xff]
    %v2409 = vld [vmem:[%s2407 + $0x8] sm:$0xff]
    %v2410 = vld [vmem:[%s2407 + $0x10] sm:$0xff]
    %v2411 = vld [vmem:[#allocation12] sm:$0xff]
    %v2412 = vld [vmem:[#allocation12 + $0x8] sm:$0xff]
    %v2413 = vld [vmem:[#allocation12 + $0x10] sm:$0xff]
    %v2414 = vld [vmem:[#allocation12 + $0x18] sm:$0xff]
    %v2415 = vld [vmem:[#allocation12 + $0x20] sm:$0xff]
    %v2416 = vld [vmem:[#allocation12 + $0x28] sm:$0xff]
    %v2417 = vld [vmem:[#allocation12 + $0x30] sm:$0xff]
    %v2418 = vld [vmem:[#allocation12 + $0x38] sm:$0xff]
    %v2419 = vld [vmem:[#allocation12 + $0x40] sm:$0xff]
    %v2420 = vld [vmem:[#allocation12 + $0x48] sm:$0xff]
    %v2421 = vld [vmem:[#allocation12 + $0x50] sm:$0xff]
    %v2422 = vld [vmem:[#allocation12 + $0x58] sm:$0xff]
    %v2423 = vld [vmem:[#allocation12 + $0x60] sm:$0xff]
    %v2424 = vld [vmem:[#allocation12 + $0x68] sm:$0xff]
    %v2425 = vld [vmem:[#allocation12 + $0x70] sm:$0xff]
    %v2426 = vld [vmem:[#allocation12 + $0x78] sm:$0xff]
    %v2427 = vld [vmem:[#allocation12 + $0x80] sm:$0xff]
    %v2428 = vld [vmem:[#allocation12 + $0x88] sm:$0xff]
    %v2429 = vld [vmem:[#allocation12 + $0x90] sm:$0xff]
    %v2430 = vld [vmem:[#allocation12 + $0x98] sm:$0xff]
    %v2431 = vld [vmem:[#allocation12 + $0xa0] sm:$0xff]
    %v2432 = vld [vmem:[#allocation12 + $0xa8] sm:$0xff]
    %v2433 = vld [vmem:[#allocation12 + $0xb0] sm:$0xff]
    %v2434 = vld [vmem:[#allocation12 + $0xb8] sm:$0xff]
    %v2435 = vld [vmem:[#allocation12 + $0xc0] sm:$0xff]
    %v2436 = vld [vmem:[#allocation12 + $0xc8] sm:$0xff]
    %v2437 = vld [vmem:[#allocation12 + $0xd0] sm:$0xff]
    %v2438 = vld [vmem:[#allocation12 + $0xd8] sm:$0xff]
    %v2439 = vld [vmem:[#allocation12 + $0xe0] sm:$0xff]
    %v2440 = vld [vmem:[#allocation12 + $0xe8] sm:$0xff]
    %v2441 = vld [vmem:[#allocation12 + $0xf0] sm:$0xff]
    %v2442 = vld [vmem:[#allocation12 + $0xf8] sm:$0xff]
    %v2443 = vld [vmem:[#allocation12 + $0x100] sm:$0xff]
    %v2444 = vld [vmem:[#allocation12 + $0x108] sm:$0xff]
    %v2445 = vld [vmem:[#allocation12 + $0x110] sm:$0xff]
    %v2446 = vld [vmem:[#allocation12 + $0x118] sm:$0xff]
    %v2447 = vld [vmem:[#allocation12 + $0x120] sm:$0xff]
    %v2448 = vld [vmem:[#allocation12 + $0x128] sm:$0xff]
    %v2449 = vld [vmem:[#allocation12 + $0x130] sm:$0xff]
    %v2450 = vld [vmem:[#allocation12 + $0x138] sm:$0xff]
    %v2451 = vld [vmem:[#allocation12 + $0x140] sm:$0xff]
    %v2452 = vld [vmem:[#allocation12 + $0x148] sm:$0xff]
    %v2453 = vld [vmem:[#allocation12 + $0x150] sm:$0xff]
    %v2454 = vld [vmem:[#allocation12 + $0x158] sm:$0xff]
    %v2455 = vld [vmem:[#allocation12 + $0x160] sm:$0xff]
    %v2456 = vld [vmem:[#allocation12 + $0x168] sm:$0xff]
    %v2457 = vld [vmem:[#allocation12 + $0x170] sm:$0xff]
    %v2458 = vld [vmem:[#allocation12 + $0x178] sm:$0xff]
    %v2459 = vld [vmem:[%s8] sm:$0x7]
    %v2461 = vlaneseq
    %v2462 = vshrl.u32 %v2461, 7
    %v2463 = vsub.s32 0, %v2462
    %v2464 = vrot.slane %v2459, %v2463
    %v2465 = vlaneseq
    %v2466 = vshrl.u32 %v2465, 7
    %v2467 = vsub.s32 1, %v2466
    %v2468 = vrot.slane %v2459, %v2467
    %v2469 = vlaneseq
    %v2470 = vshrl.u32 %v2469, 7
    %v2471 = vsub.s32 2, %v2470
    %v2472 = vrot.slane %v2459, %v2471
    %2476 = vmatprep.subr.mxu0 %v2457
    %2477 = vmatpush1.msra.mxu0 %v2456
    %2478 = vmatprep.subr.mxu0 %v2454
    %2479 = vmatpush1.msra.mxu0 %v2453
    %2480 = vmatprep.subr.mxu0 %v2451
    %2481 = vmatpush1.msra.mxu0 %v2450
    %2482 = vmatprep.subr.mxu0 %v2448
    %2483 = vmatpush1.msra.mxu0 %v2447
    %2484 = vmatprep.subr.mxu0 %v2445
    %2485 = vmatpush1.msra.mxu0 %v2444
    %2486 = vmatprep.subr.mxu0 %v2442
    %2487 = vmatpush1.msra.mxu0 %v2441
    %2488 = vmatprep.subr.mxu0 %v2439
    %2489 = vmatpush1.msra.mxu0 %v2438
    %2490 = vmatprep.subr.mxu0 %v2436
    %2491 = vmatpush1.msra.mxu0 %v2435
    %2492 = vmatprep.subr.mxu0 %v2433
    %2493 = vmatpush1.msra.mxu0 %v2432
    %2494 = vmatprep.subr.mxu0 %v2430
    %2495 = vmatpush1.msra.mxu0 %v2429
    %2496 = vmatprep.subr.mxu0 %v2427
    %2497 = vmatpush1.msra.mxu0 %v2426
    %2498 = vmatprep.subr.mxu0 %v2424
    %2499 = vmatpush1.msra.mxu0 %v2423
    %2500 = vmatprep.subr.mxu0 %v2421
    %2501 = vmatpush1.msra.mxu0 %v2420
    %2502 = vmatprep.subr.mxu0 %v2418
    %2503 = vmatpush1.msra.mxu0 %v2417
    %2504 = vmatprep.subr.mxu0 %v2415
    %2505 = vmatpush1.msra.mxu0 %v2414
    %2506 = vmatprep.subr.mxu0 %v2412
    %2507 = vmatpush1.msra.mxu0 %v2411
    %2508 = vmatprep.subr.mxu0 0.0
    %2509 = vmatpush2.msra.mxu0 0.0
    %2510 = vmatprep.subr.mxu0 0.0
    %2511 = vmatpush2.msra.mxu0 0.0
    %2512 = vmatprep.subr.mxu0 0.0
    %2513 = vmatpush2.msra.mxu0 0.0
    %2514 = vmatprep.subr.mxu0 0.0
    %2515 = vmatpush2.msra.mxu0 0.0
    %2516 = vmatprep.subr.mxu0 0.0
    %2517 = vmatpush2.msra.mxu0 0.0
    %2518 = vmatprep.subr.mxu0 0.0
    %2519 = vmatpush2.msra.mxu0 0.0
    %2520 = vmatprep.subr.mxu0 0.0
    %2521 = vmatpush2.msra.mxu0 0.0
    %2522 = vmatprep.subr.mxu0 0.0
    %2523 = vmatpush2.msra.mxu0 0.0
    %2524 = vmatprep.subr.mxu0 0.0
    %2525 = vmatpush2.msra.mxu0 0.0
    %2526 = vmatprep.subr.mxu0 0.0
    %2527 = vmatpush2.msra.mxu0 0.0
    %2528 = vmatprep.subr.mxu0 0.0
    %2529 = vmatpush2.msra.mxu0 0.0
    %2530 = vmatprep.subr.mxu0 0.0
    %2531 = vmatpush2.msra.mxu0 0.0
    %2532 = vmatprep.subr.mxu0 0.0
    %2533 = vmatpush2.msra.mxu0 0.0
    %2534 = vmatprep.subr.mxu0 0.0
    %2535 = vmatpush2.msra.mxu0 0.0
    %2536 = vmatprep.subr.mxu0 0.0
    %2537 = vmatpush2.msra.mxu0 0.0
    %2538 = vmatprep.subr.mxu0 0.0
    %2539 = vmatpush2.msra.mxu0 0.0
    %2540 = vmatprep.mubr.f32.mxu0 0.0
    %2541 = vmatmul.mubr.f32.gmra.mxu0 %v2151
    %v2542 = vpop.f32.mrf.mxu0
    %v2543 = vadd.f32 %v2464, %v2542
    %v2544 = vpop.f32.mrf.mxu0
    %v2545 = vadd.f32 %v2468, %v2544
    %2546 = vdwg.mxu0
    %2547 = vmatprep.subr.mxu0 0.0
    %2548 = vmatpush1.msra.mxu0 %v2458
    %2549 = vmatprep.subr.mxu0 0.0
    %2550 = vmatpush1.msra.mxu0 %v2455
    %2551 = vmatprep.subr.mxu0 0.0
    %2552 = vmatpush1.msra.mxu0 %v2452
    %2553 = vmatprep.subr.mxu0 0.0
    %2554 = vmatpush1.msra.mxu0 %v2449
    %2555 = vmatprep.subr.mxu0 0.0
    %2556 = vmatpush1.msra.mxu0 %v2446
    %2557 = vmatprep.subr.mxu0 0.0
    %2558 = vmatpush1.msra.mxu0 %v2443
    %2559 = vmatprep.subr.mxu0 0.0
    %2560 = vmatpush1.msra.mxu0 %v2440
    %2561 = vmatprep.subr.mxu0 0.0
    %2562 = vmatpush1.msra.mxu0 %v2437
    %2563 = vmatprep.subr.mxu0 0.0
    %2564 = vmatpush1.msra.mxu0 %v2434
    %2565 = vmatprep.subr.mxu0 0.0
    %2566 = vmatpush1.msra.mxu0 %v2431
    %2567 = vmatprep.subr.mxu0 0.0
    %2568 = vmatpush1.msra.mxu0 %v2428
    %2569 = vmatprep.subr.mxu0 0.0
    %2570 = vmatpush1.msra.mxu0 %v2425
    %2571 = vmatprep.subr.mxu0 0.0
    %2572 = vmatpush1.msra.mxu0 %v2422
    %2573 = vmatprep.subr.mxu0 0.0
    %2574 = vmatpush1.msra.mxu0 %v2419
    %2575 = vmatprep.subr.mxu0 0.0
    %2576 = vmatpush1.msra.mxu0 %v2416
    %2577 = vmatprep.subr.mxu0 0.0
    %2578 = vmatpush1.msra.mxu0 %v2413
    %2579 = vmatprep.subr.mxu0 0.0
    %2580 = vmatpush2.msra.mxu0 0.0
    %2581 = vmatprep.subr.mxu0 0.0
    %2582 = vmatpush2.msra.mxu0 0.0
    %2583 = vmatprep.subr.mxu0 0.0
    %2584 = vmatpush2.msra.mxu0 0.0
    %2585 = vmatprep.subr.mxu0 0.0
    %2586 = vmatpush2.msra.mxu0 0.0
    %2587 = vmatprep.subr.mxu0 0.0
    %2588 = vmatpush2.msra.mxu0 0.0
    %2589 = vmatprep.subr.mxu0 0.0
    %2590 = vmatpush2.msra.mxu0 0.0
    %2591 = vmatprep.subr.mxu0 0.0
    %2592 = vmatpush2.msra.mxu0 0.0
    %2593 = vmatprep.subr.mxu0 0.0
    %2594 = vmatpush2.msra.mxu0 0.0
    %2595 = vmatprep.subr.mxu0 0.0
    %2596 = vmatpush2.msra.mxu0 0.0
    %2597 = vmatprep.subr.mxu0 0.0
    %2598 = vmatpush2.msra.mxu0 0.0
    %2599 = vmatprep.subr.mxu0 0.0
    %2600 = vmatpush2.msra.mxu0 0.0
    %2601 = vmatprep.subr.mxu0 0.0
    %2602 = vmatpush2.msra.mxu0 0.0
    %2603 = vmatprep.subr.mxu0 0.0
    %2604 = vmatpush2.msra.mxu0 0.0
    %2605 = vmatprep.subr.mxu0 0.0
    %2606 = vmatpush2.msra.mxu0 0.0
    %2607 = vmatprep.subr.mxu0 0.0
    %2608 = vmatpush2.msra.mxu0 0.0
    %2609 = vmatprep.subr.mxu0 0.0
    %2610 = vmatpush2.msra.mxu0 0.0
    %2611 = vmatprep.mubr.f32.mxu0 0.0
    %2612 = vmatmul.mubr.f32.gmra.mxu0 %v2151
    %v2613 = vpop.f32.mrf.mxu0
    %v2614 = vadd.f32 %v2472, %v2613
    %v2615 = vpop.f32.mrf.mxu0
    %2616 = vdwg.mxu0
    %v2617 = vadd.f32 %v2408, %v2543
    %v2618 = vxor.u32 %v2617, 2147483648
    %v2619 = vmul.f32 %v2618, 1.442695
    %v2620 = vpow.pop %v2619
    %v2621 = vadd.f32 %v2620, 1.0
    %v2622 = vrcp.pop %v2621
    %v2623 = vmul.f32 1.0, %v2622
    %v2624 = vadd.f32 %v2409, %v2545
    %v2625 = vxor.u32 %v2624, 2147483648
    %v2626 = vmul.f32 %v2625, 1.442695
    %v2627 = vpow.pop %v2626
    %v2628 = vadd.f32 %v2627, 1.0
    %v2629 = vrcp.pop %v2628
    %v2630 = vmul.f32 1.0, %v2629
    %v2631 = vmul.f32 %v2623, %v2614
    %v2632 = vadd.f32 %v2410, %v2631
    %v2633 = vtanh.pop %v2632
    %v2634 = vsub.f32 1.0, %v2630
    %v2635 = vmul.f32 %v2634, %v2633
    %v2636 = vmul.f32 %v2630, %v2151
    %v2637 = vadd.f32 %v2635, %v2636
    %s2638 = scalar_lea.vmem [#allocation13], 24
    %2639 = vst [vmem:[%s2638] sm:$0xff] %v2406
    %s2640 = scalar_lea.vmem [#allocation14], 32
    %2641 = vst [vmem:[%s2640] sm:$0xff] %v2637
    %vm2642 = vcmp.lt.f32.partialorder 3.0, %v113
    %v2643 = vsel %vm2642, 1, 0
    %v2644 = vcvt.s32.f32 %v2643
    %2646 = vset.pattern.permute.xlu0 0
    %2647 = vperm.xlu0 %2646, %v2644
    %v2648 = vpop.permute.xlu0 %2647
    %v2650 = vmul.f32 %v2406, %v2648
    %v2651 = vadd.f32 %v2165, %v2650
    %vm2652 = vcmp.lt.f32.partialorder 4.0, %v113
    %v2653 = vsel %vm2652, 1, 0
    %v2654 = vcvt.s32.f32 %v2653
    %2656 = vset.pattern.permute.xlu0 0
    %2657 = vperm.xlu0 %2656, %v2654
    %v2658 = vpop.permute.xlu0 %2657
    %v2660 = vmul.f32 %v2637, %v2658
    %v2661 = vadd.f32 %v2175, %v2660
    %s2662 = scalar_lea.vmem [#allocation2], 96
    %v2663 = vld [vmem:[%s2662] sm:$0xff]
    %v2664 = vld [vmem:[%s2662 + $0x8] sm:$0xff]
    %v2665 = vld [vmem:[%s2662 + $0x10] sm:$0xff]
    %v2666 = vld [vmem:[#allocation10] sm:$0xff]
    %v2667 = vld [vmem:[#allocation10 + $0x8] sm:$0xff]
    %v2668 = vld [vmem:[#allocation10 + $0x10] sm:$0xff]
    %v2669 = vld [vmem:[#allocation10 + $0x18] sm:$0xff]
    %v2670 = vld [vmem:[#allocation10 + $0x20] sm:$0xff]
    %v2671 = vld [vmem:[#allocation10 + $0x28] sm:$0xff]
    %v2672 = vld [vmem:[#allocation10 + $0x30] sm:$0xff]
    %v2673 = vld [vmem:[#allocation10 + $0x38] sm:$0xff]
    %v2674 = vld [vmem:[#allocation10 + $0x40] sm:$0xff]
    %v2675 = vld [vmem:[#allocation10 + $0x48] sm:$0xff]
    %v2676 = vld [vmem:[#allocation10 + $0x50] sm:$0xff]
    %v2677 = vld [vmem:[#allocation10 + $0x58] sm:$0xff]
    %v2678 = vld [vmem:[#allocation10 + $0x60] sm:$0xff]
    %v2679 = vld [vmem:[#allocation10 + $0x68] sm:$0xff]
    %v2680 = vld [vmem:[#allocation10 + $0x70] sm:$0xff]
    %v2681 = vld [vmem:[#allocation10 + $0x78] sm:$0xff]
    %v2682 = vld [vmem:[#allocation10 + $0x80] sm:$0xff]
    %v2683 = vld [vmem:[#allocation10 + $0x88] sm:$0xff]
    %v2684 = vld [vmem:[#allocation10 + $0x90] sm:$0xff]
    %v2685 = vld [vmem:[#allocation10 + $0x98] sm:$0xff]
    %v2686 = vld [vmem:[#allocation10 + $0xa0] sm:$0xff]
    %v2687 = vld [vmem:[#allocation10 + $0xa8] sm:$0xff]
    %v2688 = vld [vmem:[#allocation10 + $0xb0] sm:$0xff]
    %v2689 = vld [vmem:[#allocation10 + $0xb8] sm:$0xff]
    %v2690 = vld [vmem:[#allocation10 + $0xc0] sm:$0xff]
    %v2691 = vld [vmem:[#allocation10 + $0xc8] sm:$0xff]
    %v2692 = vld [vmem:[#allocation10 + $0xd0] sm:$0xff]
    %v2693 = vld [vmem:[#allocation10 + $0xd8] sm:$0xff]
    %v2694 = vld [vmem:[#allocation10 + $0xe0] sm:$0xff]
    %v2695 = vld [vmem:[#allocation10 + $0xe8] sm:$0xff]
    %v2696 = vld [vmem:[#allocation10 + $0xf0] sm:$0xff]
    %v2697 = vld [vmem:[#allocation10 + $0xf8] sm:$0xff]
    %v2698 = vld [vmem:[#allocation10 + $0x100] sm:$0xff]
    %v2699 = vld [vmem:[#allocation10 + $0x108] sm:$0xff]
    %v2700 = vld [vmem:[#allocation10 + $0x110] sm:$0xff]
    %v2701 = vld [vmem:[#allocation10 + $0x118] sm:$0xff]
    %v2702 = vld [vmem:[#allocation10 + $0x120] sm:$0xff]
    %v2703 = vld [vmem:[#allocation10 + $0x128] sm:$0xff]
    %v2704 = vld [vmem:[#allocation10 + $0x130] sm:$0xff]
    %v2705 = vld [vmem:[#allocation10 + $0x138] sm:$0xff]
    %v2706 = vld [vmem:[#allocation10 + $0x140] sm:$0xff]
    %v2707 = vld [vmem:[#allocation10 + $0x148] sm:$0xff]
    %v2708 = vld [vmem:[#allocation10 + $0x150] sm:$0xff]
    %v2709 = vld [vmem:[#allocation10 + $0x158] sm:$0xff]
    %v2710 = vld [vmem:[#allocation10 + $0x160] sm:$0xff]
    %v2711 = vld [vmem:[#allocation10 + $0x168] sm:$0xff]
    %v2712 = vld [vmem:[#allocation10 + $0x170] sm:$0xff]
    %v2713 = vld [vmem:[#allocation10 + $0x178] sm:$0xff]
    %v2714 = vld [vmem:[%s6] sm:$0x7]
    %v2716 = vlaneseq
    %v2717 = vshrl.u32 %v2716, 7
    %v2718 = vsub.s32 0, %v2717
    %v2719 = vrot.slane %v2714, %v2718
    %v2720 = vlaneseq
    %v2721 = vshrl.u32 %v2720, 7
    %v2722 = vsub.s32 1, %v2721
    %v2723 = vrot.slane %v2714, %v2722
    %v2724 = vlaneseq
    %v2725 = vshrl.u32 %v2724, 7
    %v2726 = vsub.s32 2, %v2725
    %v2727 = vrot.slane %v2714, %v2726
    %2731 = vmatprep.subr.mxu0 %v2712
    %2732 = vmatpush1.msra.mxu0 %v2711
    %2733 = vmatprep.subr.mxu0 %v2709
    %2734 = vmatpush1.msra.mxu0 %v2708
    %2735 = vmatprep.subr.mxu0 %v2706
    %2736 = vmatpush1.msra.mxu0 %v2705
    %2737 = vmatprep.subr.mxu0 %v2703
    %2738 = vmatpush1.msra.mxu0 %v2702
    %2739 = vmatprep.subr.mxu0 %v2700
    %2740 = vmatpush1.msra.mxu0 %v2699
    %2741 = vmatprep.subr.mxu0 %v2697
    %2742 = vmatpush1.msra.mxu0 %v2696
    %2743 = vmatprep.subr.mxu0 %v2694
    %2744 = vmatpush1.msra.mxu0 %v2693
    %2745 = vmatprep.subr.mxu0 %v2691
    %2746 = vmatpush1.msra.mxu0 %v2690
    %2747 = vmatprep.subr.mxu0 %v2688
    %2748 = vmatpush1.msra.mxu0 %v2687
    %2749 = vmatprep.subr.mxu0 %v2685
    %2750 = vmatpush1.msra.mxu0 %v2684
    %2751 = vmatprep.subr.mxu0 %v2682
    %2752 = vmatpush1.msra.mxu0 %v2681
    %2753 = vmatprep.subr.mxu0 %v2679
    %2754 = vmatpush1.msra.mxu0 %v2678
    %2755 = vmatprep.subr.mxu0 %v2676
    %2756 = vmatpush1.msra.mxu0 %v2675
    %2757 = vmatprep.subr.mxu0 %v2673
    %2758 = vmatpush1.msra.mxu0 %v2672
    %2759 = vmatprep.subr.mxu0 %v2670
    %2760 = vmatpush1.msra.mxu0 %v2669
    %2761 = vmatprep.subr.mxu0 %v2667
    %2762 = vmatpush1.msra.mxu0 %v2666
    %2763 = vmatprep.subr.mxu0 0.0
    %2764 = vmatpush2.msra.mxu0 0.0
    %2765 = vmatprep.subr.mxu0 0.0
    %2766 = vmatpush2.msra.mxu0 0.0
    %2767 = vmatprep.subr.mxu0 0.0
    %2768 = vmatpush2.msra.mxu0 0.0
    %2769 = vmatprep.subr.mxu0 0.0
    %2770 = vmatpush2.msra.mxu0 0.0
    %2771 = vmatprep.subr.mxu0 0.0
    %2772 = vmatpush2.msra.mxu0 0.0
    %2773 = vmatprep.subr.mxu0 0.0
    %2774 = vmatpush2.msra.mxu0 0.0
    %2775 = vmatprep.subr.mxu0 0.0
    %2776 = vmatpush2.msra.mxu0 0.0
    %2777 = vmatprep.subr.mxu0 0.0
    %2778 = vmatpush2.msra.mxu0 0.0
    %2779 = vmatprep.subr.mxu0 0.0
    %2780 = vmatpush2.msra.mxu0 0.0
    %2781 = vmatprep.subr.mxu0 0.0
    %2782 = vmatpush2.msra.mxu0 0.0
    %2783 = vmatprep.subr.mxu0 0.0
    %2784 = vmatpush2.msra.mxu0 0.0
    %2785 = vmatprep.subr.mxu0 0.0
    %2786 = vmatpush2.msra.mxu0 0.0
    %2787 = vmatprep.subr.mxu0 0.0
    %2788 = vmatpush2.msra.mxu0 0.0
    %2789 = vmatprep.subr.mxu0 0.0
    %2790 = vmatpush2.msra.mxu0 0.0
    %2791 = vmatprep.subr.mxu0 0.0
    %2792 = vmatpush2.msra.mxu0 0.0
    %2793 = vmatprep.subr.mxu0 0.0
    %2794 = vmatpush2.msra.mxu0 0.0
    %2795 = vmatprep.mubr.f32.mxu0 0.0
    %2796 = vmatmul.mubr.f32.gmra.mxu0 %v2406
    %v2797 = vpop.f32.mrf.mxu0
    %v2798 = vadd.f32 %v2719, %v2797
    %v2799 = vpop.f32.mrf.mxu0
    %v2800 = vadd.f32 %v2723, %v2799
    %2801 = vdwg.mxu0
    %2802 = vmatprep.subr.mxu0 0.0
    %2803 = vmatpush1.msra.mxu0 %v2713
    %2804 = vmatprep.subr.mxu0 0.0
    %2805 = vmatpush1.msra.mxu0 %v2710
    %2806 = vmatprep.subr.mxu0 0.0
    %2807 = vmatpush1.msra.mxu0 %v2707
    %2808 = vmatprep.subr.mxu0 0.0
    %2809 = vmatpush1.msra.mxu0 %v2704
    %2810 = vmatprep.subr.mxu0 0.0
    %2811 = vmatpush1.msra.mxu0 %v2701
    %2812 = vmatprep.subr.mxu0 0.0
    %2813 = vmatpush1.msra.mxu0 %v2698
    %2814 = vmatprep.subr.mxu0 0.0
    %2815 = vmatpush1.msra.mxu0 %v2695
    %2816 = vmatprep.subr.mxu0 0.0
    %2817 = vmatpush1.msra.mxu0 %v2692
    %2818 = vmatprep.subr.mxu0 0.0
    %2819 = vmatpush1.msra.mxu0 %v2689
    %2820 = vmatprep.subr.mxu0 0.0
    %2821 = vmatpush1.msra.mxu0 %v2686
    %2822 = vmatprep.subr.mxu0 0.0
    %2823 = vmatpush1.msra.mxu0 %v2683
    %2824 = vmatprep.subr.mxu0 0.0
    %2825 = vmatpush1.msra.mxu0 %v2680
    %2826 = vmatprep.subr.mxu0 0.0
    %2827 = vmatpush1.msra.mxu0 %v2677
    %2828 = vmatprep.subr.mxu0 0.0
    %2829 = vmatpush1.msra.mxu0 %v2674
    %2830 = vmatprep.subr.mxu0 0.0
    %2831 = vmatpush1.msra.mxu0 %v2671
    %2832 = vmatprep.subr.mxu0 0.0
    %2833 = vmatpush1.msra.mxu0 %v2668
    %2834 = vmatprep.subr.mxu0 0.0
    %2835 = vmatpush2.msra.mxu0 0.0
    %2836 = vmatprep.subr.mxu0 0.0
    %2837 = vmatpush2.msra.mxu0 0.0
    %2838 = vmatprep.subr.mxu0 0.0
    %2839 = vmatpush2.msra.mxu0 0.0
    %2840 = vmatprep.subr.mxu0 0.0
    %2841 = vmatpush2.msra.mxu0 0.0
    %2842 = vmatprep.subr.mxu0 0.0
    %2843 = vmatpush2.msra.mxu0 0.0
    %2844 = vmatprep.subr.mxu0 0.0
    %2845 = vmatpush2.msra.mxu0 0.0
    %2846 = vmatprep.subr.mxu0 0.0
    %2847 = vmatpush2.msra.mxu0 0.0
    %2848 = vmatprep.subr.mxu0 0.0
    %2849 = vmatpush2.msra.mxu0 0.0
    %2850 = vmatprep.subr.mxu0 0.0
    %2851 = vmatpush2.msra.mxu0 0.0
    %2852 = vmatprep.subr.mxu0 0.0
    %2853 = vmatpush2.msra.mxu0 0.0
    %2854 = vmatprep.subr.mxu0 0.0
    %2855 = vmatpush2.msra.mxu0 0.0
    %2856 = vmatprep.subr.mxu0 0.0
    %2857 = vmatpush2.msra.mxu0 0.0
    %2858 = vmatprep.subr.mxu0 0.0
    %2859 = vmatpush2.msra.mxu0 0.0
    %2860 = vmatprep.subr.mxu0 0.0
    %2861 = vmatpush2.msra.mxu0 0.0
    %2862 = vmatprep.subr.mxu0 0.0
    %2863 = vmatpush2.msra.mxu0 0.0
    %2864 = vmatprep.subr.mxu0 0.0
    %2865 = vmatpush2.msra.mxu0 0.0
    %2866 = vmatprep.mubr.f32.mxu0 0.0
    %2867 = vmatmul.mubr.f32.gmra.mxu0 %v2406
    %v2868 = vpop.f32.mrf.mxu0
    %v2869 = vadd.f32 %v2727, %v2868
    %v2870 = vpop.f32.mrf.mxu0
    %2871 = vdwg.mxu0
    %v2872 = vadd.f32 %v2663, %v2798
    %v2873 = vxor.u32 %v2872, 2147483648
    %v2874 = vmul.f32 %v2873, 1.442695
    %v2875 = vpow.pop %v2874
    %v2876 = vadd.f32 %v2875, 1.0
    %v2877 = vrcp.pop %v2876
    %v2878 = vmul.f32 1.0, %v2877
    %v2879 = vadd.f32 %v2664, %v2800
    %v2880 = vxor.u32 %v2879, 2147483648
    %v2881 = vmul.f32 %v2880, 1.442695
    %v2882 = vpow.pop %v2881
    %v2883 = vadd.f32 %v2882, 1.0
    %v2884 = vrcp.pop %v2883
    %v2885 = vmul.f32 1.0, %v2884
    %v2886 = vmul.f32 %v2878, %v2869
    %v2887 = vadd.f32 %v2665, %v2886
    %v2888 = vtanh.pop %v2887
    %v2889 = vsub.f32 1.0, %v2885
    %v2890 = vmul.f32 %v2889, %v2888
    %v2891 = vmul.f32 %v2885, %v2406
    %v2892 = vadd.f32 %v2890, %v2891
    %s2893 = scalar_lea.vmem [#allocation3], 72
    %v2894 = vld [vmem:[%s2893] sm:$0xff]
    %v2895 = vld [vmem:[%s2893 + $0x8] sm:$0xff]
    %v2896 = vld [vmem:[%s2893 + $0x10] sm:$0xff]
    %v2897 = vld [vmem:[#allocation12] sm:$0xff]
    %v2898 = vld [vmem:[#allocation12 + $0x8] sm:$0xff]
    %v2899 = vld [vmem:[#allocation12 + $0x10] sm:$0xff]
    %v2900 = vld [vmem:[#allocation12 + $0x18] sm:$0xff]
    %v2901 = vld [vmem:[#allocation12 + $0x20] sm:$0xff]
    %v2902 = vld [vmem:[#allocation12 + $0x28] sm:$0xff]
    %v2903 = vld [vmem:[#allocation12 + $0x30] sm:$0xff]
    %v2904 = vld [vmem:[#allocation12 + $0x38] sm:$0xff]
    %v2905 = vld [vmem:[#allocation12 + $0x40] sm:$0xff]
    %v2906 = vld [vmem:[#allocation12 + $0x48] sm:$0xff]
    %v2907 = vld [vmem:[#allocation12 + $0x50] sm:$0xff]
    %v2908 = vld [vmem:[#allocation12 + $0x58] sm:$0xff]
    %v2909 = vld [vmem:[#allocation12 + $0x60] sm:$0xff]
    %v2910 = vld [vmem:[#allocation12 + $0x68] sm:$0xff]
    %v2911 = vld [vmem:[#allocation12 + $0x70] sm:$0xff]
    %v2912 = vld [vmem:[#allocation12 + $0x78] sm:$0xff]
    %v2913 = vld [vmem:[#allocation12 + $0x80] sm:$0xff]
    %v2914 = vld [vmem:[#allocation12 + $0x88] sm:$0xff]
    %v2915 = vld [vmem:[#allocation12 + $0x90] sm:$0xff]
    %v2916 = vld [vmem:[#allocation12 + $0x98] sm:$0xff]
    %v2917 = vld [vmem:[#allocation12 + $0xa0] sm:$0xff]
    %v2918 = vld [vmem:[#allocation12 + $0xa8] sm:$0xff]
    %v2919 = vld [vmem:[#allocation12 + $0xb0] sm:$0xff]
    %v2920 = vld [vmem:[#allocation12 + $0xb8] sm:$0xff]
    %v2921 = vld [vmem:[#allocation12 + $0xc0] sm:$0xff]
    %v2922 = vld [vmem:[#allocation12 + $0xc8] sm:$0xff]
    %v2923 = vld [vmem:[#allocation12 + $0xd0] sm:$0xff]
    %v2924 = vld [vmem:[#allocation12 + $0xd8] sm:$0xff]
    %v2925 = vld [vmem:[#allocation12 + $0xe0] sm:$0xff]
    %v2926 = vld [vmem:[#allocation12 + $0xe8] sm:$0xff]
    %v2927 = vld [vmem:[#allocation12 + $0xf0] sm:$0xff]
    %v2928 = vld [vmem:[#allocation12 + $0xf8] sm:$0xff]
    %v2929 = vld [vmem:[#allocation12 + $0x100] sm:$0xff]
    %v2930 = vld [vmem:[#allocation12 + $0x108] sm:$0xff]
    %v2931 = vld [vmem:[#allocation12 + $0x110] sm:$0xff]
    %v2932 = vld [vmem:[#allocation12 + $0x118] sm:$0xff]
    %v2933 = vld [vmem:[#allocation12 + $0x120] sm:$0xff]
    %v2934 = vld [vmem:[#allocation12 + $0x128] sm:$0xff]
    %v2935 = vld [vmem:[#allocation12 + $0x130] sm:$0xff]
    %v2936 = vld [vmem:[#allocation12 + $0x138] sm:$0xff]
    %v2937 = vld [vmem:[#allocation12 + $0x140] sm:$0xff]
    %v2938 = vld [vmem:[#allocation12 + $0x148] sm:$0xff]
    %v2939 = vld [vmem:[#allocation12 + $0x150] sm:$0xff]
    %v2940 = vld [vmem:[#allocation12 + $0x158] sm:$0xff]
    %v2941 = vld [vmem:[#allocation12 + $0x160] sm:$0xff]
    %v2942 = vld [vmem:[#allocation12 + $0x168] sm:$0xff]
    %v2943 = vld [vmem:[#allocation12 + $0x170] sm:$0xff]
    %v2944 = vld [vmem:[#allocation12 + $0x178] sm:$0xff]
    %v2945 = vld [vmem:[%s8] sm:$0x7]
    %v2947 = vlaneseq
    %v2948 = vshrl.u32 %v2947, 7
    %v2949 = vsub.s32 0, %v2948
    %v2950 = vrot.slane %v2945, %v2949
    %v2951 = vlaneseq
    %v2952 = vshrl.u32 %v2951, 7
    %v2953 = vsub.s32 1, %v2952
    %v2954 = vrot.slane %v2945, %v2953
    %v2955 = vlaneseq
    %v2956 = vshrl.u32 %v2955, 7
    %v2957 = vsub.s32 2, %v2956
    %v2958 = vrot.slane %v2945, %v2957
    %2962 = vmatprep.subr.mxu0 %v2943
    %2963 = vmatpush1.msra.mxu0 %v2942
    %2964 = vmatprep.subr.mxu0 %v2940
    %2965 = vmatpush1.msra.mxu0 %v2939
    %2966 = vmatprep.subr.mxu0 %v2937
    %2967 = vmatpush1.msra.mxu0 %v2936
    %2968 = vmatprep.subr.mxu0 %v2934
    %2969 = vmatpush1.msra.mxu0 %v2933
    %2970 = vmatprep.subr.mxu0 %v2931
    %2971 = vmatpush1.msra.mxu0 %v2930
    %2972 = vmatprep.subr.mxu0 %v2928
    %2973 = vmatpush1.msra.mxu0 %v2927
    %2974 = vmatprep.subr.mxu0 %v2925
    %2975 = vmatpush1.msra.mxu0 %v2924
    %2976 = vmatprep.subr.mxu0 %v2922
    %2977 = vmatpush1.msra.mxu0 %v2921
    %2978 = vmatprep.subr.mxu0 %v2919
    %2979 = vmatpush1.msra.mxu0 %v2918
    %2980 = vmatprep.subr.mxu0 %v2916
    %2981 = vmatpush1.msra.mxu0 %v2915
    %2982 = vmatprep.subr.mxu0 %v2913
    %2983 = vmatpush1.msra.mxu0 %v2912
    %2984 = vmatprep.subr.mxu0 %v2910
    %2985 = vmatpush1.msra.mxu0 %v2909
    %2986 = vmatprep.subr.mxu0 %v2907
    %2987 = vmatpush1.msra.mxu0 %v2906
    %2988 = vmatprep.subr.mxu0 %v2904
    %2989 = vmatpush1.msra.mxu0 %v2903
    %2990 = vmatprep.subr.mxu0 %v2901
    %2991 = vmatpush1.msra.mxu0 %v2900
    %2992 = vmatprep.subr.mxu0 %v2898
    %2993 = vmatpush1.msra.mxu0 %v2897
    %2994 = vmatprep.subr.mxu0 0.0
    %2995 = vmatpush2.msra.mxu0 0.0
    %2996 = vmatprep.subr.mxu0 0.0
    %2997 = vmatpush2.msra.mxu0 0.0
    %2998 = vmatprep.subr.mxu0 0.0
    %2999 = vmatpush2.msra.mxu0 0.0
    %3000 = vmatprep.subr.mxu0 0.0
    %3001 = vmatpush2.msra.mxu0 0.0
    %3002 = vmatprep.subr.mxu0 0.0
    %3003 = vmatpush2.msra.mxu0 0.0
    %3004 = vmatprep.subr.mxu0 0.0
    %3005 = vmatpush2.msra.mxu0 0.0
    %3006 = vmatprep.subr.mxu0 0.0
    %3007 = vmatpush2.msra.mxu0 0.0
    %3008 = vmatprep.subr.mxu0 0.0
    %3009 = vmatpush2.msra.mxu0 0.0
    %3010 = vmatprep.subr.mxu0 0.0
    %3011 = vmatpush2.msra.mxu0 0.0
    %3012 = vmatprep.subr.mxu0 0.0
    %3013 = vmatpush2.msra.mxu0 0.0
    %3014 = vmatprep.subr.mxu0 0.0
    %3015 = vmatpush2.msra.mxu0 0.0
    %3016 = vmatprep.subr.mxu0 0.0
    %3017 = vmatpush2.msra.mxu0 0.0
    %3018 = vmatprep.subr.mxu0 0.0
    %3019 = vmatpush2.msra.mxu0 0.0
    %3020 = vmatprep.subr.mxu0 0.0
    %3021 = vmatpush2.msra.mxu0 0.0
    %3022 = vmatprep.subr.mxu0 0.0
    %3023 = vmatpush2.msra.mxu0 0.0
    %3024 = vmatprep.subr.mxu0 0.0
    %3025 = vmatpush2.msra.mxu0 0.0
    %3026 = vmatprep.mubr.f32.mxu0 0.0
    %3027 = vmatmul.mubr.f32.gmra.mxu0 %v2637
    %v3028 = vpop.f32.mrf.mxu0
    %v3029 = vadd.f32 %v2950, %v3028
    %v3030 = vpop.f32.mrf.mxu0
    %v3031 = vadd.f32 %v2954, %v3030
    %3032 = vdwg.mxu0
    %3033 = vmatprep.subr.mxu0 0.0
    %3034 = vmatpush1.msra.mxu0 %v2944
    %3035 = vmatprep.subr.mxu0 0.0
    %3036 = vmatpush1.msra.mxu0 %v2941
    %3037 = vmatprep.subr.mxu0 0.0
    %3038 = vmatpush1.msra.mxu0 %v2938
    %3039 = vmatprep.subr.mxu0 0.0
    %3040 = vmatpush1.msra.mxu0 %v2935
    %3041 = vmatprep.subr.mxu0 0.0
    %3042 = vmatpush1.msra.mxu0 %v2932
    %3043 = vmatprep.subr.mxu0 0.0
    %3044 = vmatpush1.msra.mxu0 %v2929
    %3045 = vmatprep.subr.mxu0 0.0
    %3046 = vmatpush1.msra.mxu0 %v2926
    %3047 = vmatprep.subr.mxu0 0.0
    %3048 = vmatpush1.msra.mxu0 %v2923
    %3049 = vmatprep.subr.mxu0 0.0
    %3050 = vmatpush1.msra.mxu0 %v2920
    %3051 = vmatprep.subr.mxu0 0.0
    %3052 = vmatpush1.msra.mxu0 %v2917
    %3053 = vmatprep.subr.mxu0 0.0
    %3054 = vmatpush1.msra.mxu0 %v2914
    %3055 = vmatprep.subr.mxu0 0.0
    %3056 = vmatpush1.msra.mxu0 %v2911
    %3057 = vmatprep.subr.mxu0 0.0
    %3058 = vmatpush1.msra.mxu0 %v2908
    %3059 = vmatprep.subr.mxu0 0.0
    %3060 = vmatpush1.msra.mxu0 %v2905
    %3061 = vmatprep.subr.mxu0 0.0
    %3062 = vmatpush1.msra.mxu0 %v2902
    %3063 = vmatprep.subr.mxu0 0.0
    %3064 = vmatpush1.msra.mxu0 %v2899
    %3065 = vmatprep.subr.mxu0 0.0
    %3066 = vmatpush2.msra.mxu0 0.0
    %3067 = vmatprep.subr.mxu0 0.0
    %3068 = vmatpush2.msra.mxu0 0.0
    %3069 = vmatprep.subr.mxu0 0.0
    %3070 = vmatpush2.msra.mxu0 0.0
    %3071 = vmatprep.subr.mxu0 0.0
    %3072 = vmatpush2.msra.mxu0 0.0
    %3073 = vmatprep.subr.mxu0 0.0
    %3074 = vmatpush2.msra.mxu0 0.0
    %3075 = vmatprep.subr.mxu0 0.0
    %3076 = vmatpush2.msra.mxu0 0.0
    %3077 = vmatprep.subr.mxu0 0.0
    %3078 = vmatpush2.msra.mxu0 0.0
    %3079 = vmatprep.subr.mxu0 0.0
    %3080 = vmatpush2.msra.mxu0 0.0
    %3081 = vmatprep.subr.mxu0 0.0
    %3082 = vmatpush2.msra.mxu0 0.0
    %3083 = vmatprep.subr.mxu0 0.0
    %3084 = vmatpush2.msra.mxu0 0.0
    %3085 = vmatprep.subr.mxu0 0.0
    %3086 = vmatpush2.msra.mxu0 0.0
    %3087 = vmatprep.subr.mxu0 0.0
    %3088 = vmatpush2.msra.mxu0 0.0
    %3089 = vmatprep.subr.mxu0 0.0
    %3090 = vmatpush2.msra.mxu0 0.0
    %3091 = vmatprep.subr.mxu0 0.0
    %3092 = vmatpush2.msra.mxu0 0.0
    %3093 = vmatprep.subr.mxu0 0.0
    %3094 = vmatpush2.msra.mxu0 0.0
    %3095 = vmatprep.subr.mxu0 0.0
    %3096 = vmatpush2.msra.mxu0 0.0
    %3097 = vmatprep.mubr.f32.mxu0 0.0
    %3098 = vmatmul.mubr.f32.gmra.mxu0 %v2637
    %v3099 = vpop.f32.mrf.mxu0
    %v3100 = vadd.f32 %v2958, %v3099
    %v3101 = vpop.f32.mrf.mxu0
    %3102 = vdwg.mxu0
    %v3103 = vadd.f32 %v2894, %v3029
    %v3104 = vxor.u32 %v3103, 2147483648
    %v3105 = vmul.f32 %v3104, 1.442695
    %v3106 = vpow.pop %v3105
    %v3107 = vadd.f32 %v3106, 1.0
    %v3108 = vrcp.pop %v3107
    %v3109 = vmul.f32 1.0, %v3108
    %v3110 = vadd.f32 %v2895, %v3031
    %v3111 = vxor.u32 %v3110, 2147483648
    %v3112 = vmul.f32 %v3111, 1.442695
    %v3113 = vpow.pop %v3112
    %v3114 = vadd.f32 %v3113, 1.0
    %v3115 = vrcp.pop %v3114
    %v3116 = vmul.f32 1.0, %v3115
    %v3117 = vmul.f32 %v3109, %v3100
    %v3118 = vadd.f32 %v2896, %v3117
    %v3119 = vtanh.pop %v3118
    %v3120 = vsub.f32 1.0, %v3116
    %v3121 = vmul.f32 %v3120, %v3119
    %v3122 = vmul.f32 %v3116, %v2637
    %v3123 = vadd.f32 %v3121, %v3122
    %s3124 = scalar_lea.vmem [#allocation13], 32
    %3125 = vst [vmem:[%s3124] sm:$0xff] %v2892
    %s3126 = scalar_lea.vmem [#allocation14], 24
    %3127 = vst [vmem:[%s3126] sm:$0xff] %v3123
    %v3128 = vmul.f32 %v2892, %v2658
    %v3129 = vadd.f32 %v2651, %v3128
    %v3130 = vmul.f32 %v3123, %v2648
    %v3131 = vadd.f32 %v2661, %v3130
    %s3132 = scalar_lea.vmem [#allocation2], 120
    %v3133 = vld [vmem:[%s3132] sm:$0xff]
    %v3134 = vld [vmem:[%s3132 + $0x8] sm:$0xff]
    %v3135 = vld [vmem:[%s3132 + $0x10] sm:$0xff]
    %v3136 = vld [vmem:[#allocation10] sm:$0xff]
    %v3137 = vld [vmem:[#allocation10 + $0x8] sm:$0xff]
    %v3138 = vld [vmem:[#allocation10 + $0x10] sm:$0xff]
    %v3139 = vld [vmem:[#allocation10 + $0x18] sm:$0xff]
    %v3140 = vld [vmem:[#allocation10 + $0x20] sm:$0xff]
    %v3141 = vld [vmem:[#allocation10 + $0x28] sm:$0xff]
    %v3142 = vld [vmem:[#allocation10 + $0x30] sm:$0xff]
    %v3143 = vld [vmem:[#allocation10 + $0x38] sm:$0xff]
    %v3144 = vld [vmem:[#allocation10 + $0x40] sm:$0xff]
    %v3145 = vld [vmem:[#allocation10 + $0x48] sm:$0xff]
    %v3146 = vld [vmem:[#allocation10 + $0x50] sm:$0xff]
    %v3147 = vld [vmem:[#allocation10 + $0x58] sm:$0xff]
    %v3148 = vld [vmem:[#allocation10 + $0x60] sm:$0xff]
    %v3149 = vld [vmem:[#allocation10 + $0x68] sm:$0xff]
    %v3150 = vld [vmem:[#allocation10 + $0x70] sm:$0xff]
    %v3151 = vld [vmem:[#allocation10 + $0x78] sm:$0xff]
    %v3152 = vld [vmem:[#allocation10 + $0x80] sm:$0xff]
    %v3153 = vld [vmem:[#allocation10 + $0x88] sm:$0xff]
    %v3154 = vld [vmem:[#allocation10 + $0x90] sm:$0xff]
    %v3155 = vld [vmem:[#allocation10 + $0x98] sm:$0xff]
    %v3156 = vld [vmem:[#allocation10 + $0xa0] sm:$0xff]
    %v3157 = vld [vmem:[#allocation10 + $0xa8] sm:$0xff]
    %v3158 = vld [vmem:[#allocation10 + $0xb0] sm:$0xff]
    %v3159 = vld [vmem:[#allocation10 + $0xb8] sm:$0xff]
    %v3160 = vld [vmem:[#allocation10 + $0xc0] sm:$0xff]
    %v3161 = vld [vmem:[#allocation10 + $0xc8] sm:$0xff]
    %v3162 = vld [vmem:[#allocation10 + $0xd0] sm:$0xff]
    %v3163 = vld [vmem:[#allocation10 + $0xd8] sm:$0xff]
    %v3164 = vld [vmem:[#allocation10 + $0xe0] sm:$0xff]
    %v3165 = vld [vmem:[#allocation10 + $0xe8] sm:$0xff]
    %v3166 = vld [vmem:[#allocation10 + $0xf0] sm:$0xff]
    %v3167 = vld [vmem:[#allocation10 + $0xf8] sm:$0xff]
    %v3168 = vld [vmem:[#allocation10 + $0x100] sm:$0xff]
    %v3169 = vld [vmem:[#allocation10 + $0x108] sm:$0xff]
    %v3170 = vld [vmem:[#allocation10 + $0x110] sm:$0xff]
    %v3171 = vld [vmem:[#allocation10 + $0x118] sm:$0xff]
    %v3172 = vld [vmem:[#allocation10 + $0x120] sm:$0xff]
    %v3173 = vld [vmem:[#allocation10 + $0x128] sm:$0xff]
    %v3174 = vld [vmem:[#allocation10 + $0x130] sm:$0xff]
    %v3175 = vld [vmem:[#allocation10 + $0x138] sm:$0xff]
    %v3176 = vld [vmem:[#allocation10 + $0x140] sm:$0xff]
    %v3177 = vld [vmem:[#allocation10 + $0x148] sm:$0xff]
    %v3178 = vld [vmem:[#allocation10 + $0x150] sm:$0xff]
    %v3179 = vld [vmem:[#allocation10 + $0x158] sm:$0xff]
    %v3180 = vld [vmem:[#allocation10 + $0x160] sm:$0xff]
    %v3181 = vld [vmem:[#allocation10 + $0x168] sm:$0xff]
    %v3182 = vld [vmem:[#allocation10 + $0x170] sm:$0xff]
    %v3183 = vld [vmem:[#allocation10 + $0x178] sm:$0xff]
    %v3184 = vld [vmem:[%s6] sm:$0x7]
    %v3186 = vlaneseq
    %v3187 = vshrl.u32 %v3186, 7
    %v3188 = vsub.s32 0, %v3187
    %v3189 = vrot.slane %v3184, %v3188
    %v3190 = vlaneseq
    %v3191 = vshrl.u32 %v3190, 7
    %v3192 = vsub.s32 1, %v3191
    %v3193 = vrot.slane %v3184, %v3192
    %v3194 = vlaneseq
    %v3195 = vshrl.u32 %v3194, 7
    %v3196 = vsub.s32 2, %v3195
    %v3197 = vrot.slane %v3184, %v3196
    %3201 = vmatprep.subr.mxu0 %v3182
    %3202 = vmatpush1.msra.mxu0 %v3181
    %3203 = vmatprep.subr.mxu0 %v3179
    %3204 = vmatpush1.msra.mxu0 %v3178
    %3205 = vmatprep.subr.mxu0 %v3176
    %3206 = vmatpush1.msra.mxu0 %v3175
    %3207 = vmatprep.subr.mxu0 %v3173
    %3208 = vmatpush1.msra.mxu0 %v3172
    %3209 = vmatprep.subr.mxu0 %v3170
    %3210 = vmatpush1.msra.mxu0 %v3169
    %3211 = vmatprep.subr.mxu0 %v3167
    %3212 = vmatpush1.msra.mxu0 %v3166
    %3213 = vmatprep.subr.mxu0 %v3164
    %3214 = vmatpush1.msra.mxu0 %v3163
    %3215 = vmatprep.subr.mxu0 %v3161
    %3216 = vmatpush1.msra.mxu0 %v3160
    %3217 = vmatprep.subr.mxu0 %v3158
    %3218 = vmatpush1.msra.mxu0 %v3157
    %3219 = vmatprep.subr.mxu0 %v3155
    %3220 = vmatpush1.msra.mxu0 %v3154
    %3221 = vmatprep.subr.mxu0 %v3152
    %3222 = vmatpush1.msra.mxu0 %v3151
    %3223 = vmatprep.subr.mxu0 %v3149
    %3224 = vmatpush1.msra.mxu0 %v3148
    %3225 = vmatprep.subr.mxu0 %v3146
    %3226 = vmatpush1.msra.mxu0 %v3145
    %3227 = vmatprep.subr.mxu0 %v3143
    %3228 = vmatpush1.msra.mxu0 %v3142
    %3229 = vmatprep.subr.mxu0 %v3140
    %3230 = vmatpush1.msra.mxu0 %v3139
    %3231 = vmatprep.subr.mxu0 %v3137
    %3232 = vmatpush1.msra.mxu0 %v3136
    %3233 = vmatprep.subr.mxu0 0.0
    %3234 = vmatpush2.msra.mxu0 0.0
    %3235 = vmatprep.subr.mxu0 0.0
    %3236 = vmatpush2.msra.mxu0 0.0
    %3237 = vmatprep.subr.mxu0 0.0
    %3238 = vmatpush2.msra.mxu0 0.0
    %3239 = vmatprep.subr.mxu0 0.0
    %3240 = vmatpush2.msra.mxu0 0.0
    %3241 = vmatprep.subr.mxu0 0.0
    %3242 = vmatpush2.msra.mxu0 0.0
    %3243 = vmatprep.subr.mxu0 0.0
    %3244 = vmatpush2.msra.mxu0 0.0
    %3245 = vmatprep.subr.mxu0 0.0
    %3246 = vmatpush2.msra.mxu0 0.0
    %3247 = vmatprep.subr.mxu0 0.0
    %3248 = vmatpush2.msra.mxu0 0.0
    %3249 = vmatprep.subr.mxu0 0.0
    %3250 = vmatpush2.msra.mxu0 0.0
    %3251 = vmatprep.subr.mxu0 0.0
    %3252 = vmatpush2.msra.mxu0 0.0
    %3253 = vmatprep.subr.mxu0 0.0
    %3254 = vmatpush2.msra.mxu0 0.0
    %3255 = vmatprep.subr.mxu0 0.0
    %3256 = vmatpush2.msra.mxu0 0.0
    %3257 = vmatprep.subr.mxu0 0.0
    %3258 = vmatpush2.msra.mxu0 0.0
    %3259 = vmatprep.subr.mxu0 0.0
    %3260 = vmatpush2.msra.mxu0 0.0
    %3261 = vmatprep.subr.mxu0 0.0
    %3262 = vmatpush2.msra.mxu0 0.0
    %3263 = vmatprep.subr.mxu0 0.0
    %3264 = vmatpush2.msra.mxu0 0.0
    %3265 = vmatprep.mubr.f32.mxu0 0.0
    %3266 = vmatmul.mubr.f32.gmra.mxu0 %v2892
    %v3267 = vpop.f32.mrf.mxu0
    %v3268 = vadd.f32 %v3189, %v3267
    %v3269 = vpop.f32.mrf.mxu0
    %v3270 = vadd.f32 %v3193, %v3269
    %3271 = vdwg.mxu0
    %3272 = vmatprep.subr.mxu0 0.0
    %3273 = vmatpush1.msra.mxu0 %v3183
    %3274 = vmatprep.subr.mxu0 0.0
    %3275 = vmatpush1.msra.mxu0 %v3180
    %3276 = vmatprep.subr.mxu0 0.0
    %3277 = vmatpush1.msra.mxu0 %v3177
    %3278 = vmatprep.subr.mxu0 0.0
    %3279 = vmatpush1.msra.mxu0 %v3174
    %3280 = vmatprep.subr.mxu0 0.0
    %3281 = vmatpush1.msra.mxu0 %v3171
    %3282 = vmatprep.subr.mxu0 0.0
    %3283 = vmatpush1.msra.mxu0 %v3168
    %3284 = vmatprep.subr.mxu0 0.0
    %3285 = vmatpush1.msra.mxu0 %v3165
    %3286 = vmatprep.subr.mxu0 0.0
    %3287 = vmatpush1.msra.mxu0 %v3162
    %3288 = vmatprep.subr.mxu0 0.0
    %3289 = vmatpush1.msra.mxu0 %v3159
    %3290 = vmatprep.subr.mxu0 0.0
    %3291 = vmatpush1.msra.mxu0 %v3156
    %3292 = vmatprep.subr.mxu0 0.0
    %3293 = vmatpush1.msra.mxu0 %v3153
    %3294 = vmatprep.subr.mxu0 0.0
    %3295 = vmatpush1.msra.mxu0 %v3150
    %3296 = vmatprep.subr.mxu0 0.0
    %3297 = vmatpush1.msra.mxu0 %v3147
    %3298 = vmatprep.subr.mxu0 0.0
    %3299 = vmatpush1.msra.mxu0 %v3144
    %3300 = vmatprep.subr.mxu0 0.0
    %3301 = vmatpush1.msra.mxu0 %v3141
    %3302 = vmatprep.subr.mxu0 0.0
    %3303 = vmatpush1.msra.mxu0 %v3138
    %3304 = vmatprep.subr.mxu0 0.0
    %3305 = vmatpush2.msra.mxu0 0.0
    %3306 = vmatprep.subr.mxu0 0.0
    %3307 = vmatpush2.msra.mxu0 0.0
    %3308 = vmatprep.subr.mxu0 0.0
    %3309 = vmatpush2.msra.mxu0 0.0
    %3310 = vmatprep.subr.mxu0 0.0
    %3311 = vmatpush2.msra.mxu0 0.0
    %3312 = vmatprep.subr.mxu0 0.0
    %3313 = vmatpush2.msra.mxu0 0.0
    %3314 = vmatprep.subr.mxu0 0.0
    %3315 = vmatpush2.msra.mxu0 0.0
    %3316 = vmatprep.subr.mxu0 0.0
    %3317 = vmatpush2.msra.mxu0 0.0
    %3318 = vmatprep.subr.mxu0 0.0
    %3319 = vmatpush2.msra.mxu0 0.0
    %3320 = vmatprep.subr.mxu0 0.0
    %3321 = vmatpush2.msra.mxu0 0.0
    %3322 = vmatprep.subr.mxu0 0.0
    %3323 = vmatpush2.msra.mxu0 0.0
    %3324 = vmatprep.subr.mxu0 0.0
    %3325 = vmatpush2.msra.mxu0 0.0
    %3326 = vmatprep.subr.mxu0 0.0
    %3327 = vmatpush2.msra.mxu0 0.0
    %3328 = vmatprep.subr.mxu0 0.0
    %3329 = vmatpush2.msra.mxu0 0.0
    %3330 = vmatprep.subr.mxu0 0.0
    %3331 = vmatpush2.msra.mxu0 0.0
    %3332 = vmatprep.subr.mxu0 0.0
    %3333 = vmatpush2.msra.mxu0 0.0
    %3334 = vmatprep.subr.mxu0 0.0
    %3335 = vmatpush2.msra.mxu0 0.0
    %3336 = vmatprep.mubr.f32.mxu0 0.0
    %3337 = vmatmul.mubr.f32.gmra.mxu0 %v2892
    %v3338 = vpop.f32.mrf.mxu0
    %v3339 = vadd.f32 %v3197, %v3338
    %v3340 = vpop.f32.mrf.mxu0
    %3341 = vdwg.mxu0
    %v3342 = vadd.f32 %v3133, %v3268
    %v3343 = vxor.u32 %v3342, 2147483648
    %v3344 = vmul.f32 %v3343, 1.442695
    %v3345 = vpow.pop %v3344
    %v3346 = vadd.f32 %v3345, 1.0
    %v3347 = vrcp.pop %v3346
    %v3348 = vmul.f32 1.0, %v3347
    %v3349 = vadd.f32 %v3134, %v3270
    %v3350 = vxor.u32 %v3349, 2147483648
    %v3351 = vmul.f32 %v3350, 1.442695
    %v3352 = vpow.pop %v3351
    %v3353 = vadd.f32 %v3352, 1.0
    %v3354 = vrcp.pop %v3353
    %v3355 = vmul.f32 1.0, %v3354
    %v3356 = vmul.f32 %v3348, %v3339
    %v3357 = vadd.f32 %v3135, %v3356
    %v3358 = vtanh.pop %v3357
    %v3359 = vsub.f32 1.0, %v3355
    %v3360 = vmul.f32 %v3359, %v3358
    %v3361 = vmul.f32 %v3355, %v2892
    %v3362 = vadd.f32 %v3360, %v3361
    %s3363 = scalar_lea.vmem [#allocation3], 48
    %v3364 = vld [vmem:[%s3363] sm:$0xff]
    %v3365 = vld [vmem:[%s3363 + $0x8] sm:$0xff]
    %v3366 = vld [vmem:[%s3363 + $0x10] sm:$0xff]
    %v3367 = vld [vmem:[#allocation12] sm:$0xff]
    %v3368 = vld [vmem:[#allocation12 + $0x8] sm:$0xff]
    %v3369 = vld [vmem:[#allocation12 + $0x10] sm:$0xff]
    %v3370 = vld [vmem:[#allocation12 + $0x18] sm:$0xff]
    %v3371 = vld [vmem:[#allocation12 + $0x20] sm:$0xff]
    %v3372 = vld [vmem:[#allocation12 + $0x28] sm:$0xff]
    %v3373 = vld [vmem:[#allocation12 + $0x30] sm:$0xff]
    %v3374 = vld [vmem:[#allocation12 + $0x38] sm:$0xff]
    %v3375 = vld [vmem:[#allocation12 + $0x40] sm:$0xff]
    %v3376 = vld [vmem:[#allocation12 + $0x48] sm:$0xff]
    %v3377 = vld [vmem:[#allocation12 + $0x50] sm:$0xff]
    %v3378 = vld [vmem:[#allocation12 + $0x58] sm:$0xff]
    %v3379 = vld [vmem:[#allocation12 + $0x60] sm:$0xff]
    %v3380 = vld [vmem:[#allocation12 + $0x68] sm:$0xff]
    %v3381 = vld [vmem:[#allocation12 + $0x70] sm:$0xff]
    %v3382 = vld [vmem:[#allocation12 + $0x78] sm:$0xff]
    %v3383 = vld [vmem:[#allocation12 + $0x80] sm:$0xff]
    %v3384 = vld [vmem:[#allocation12 + $0x88] sm:$0xff]
    %v3385 = vld [vmem:[#allocation12 + $0x90] sm:$0xff]
    %v3386 = vld [vmem:[#allocation12 + $0x98] sm:$0xff]
    %v3387 = vld [vmem:[#allocation12 + $0xa0] sm:$0xff]
    %v3388 = vld [vmem:[#allocation12 + $0xa8] sm:$0xff]
    %v3389 = vld [vmem:[#allocation12 + $0xb0] sm:$0xff]
    %v3390 = vld [vmem:[#allocation12 + $0xb8] sm:$0xff]
    %v3391 = vld [vmem:[#allocation12 + $0xc0] sm:$0xff]
    %v3392 = vld [vmem:[#allocation12 + $0xc8] sm:$0xff]
    %v3393 = vld [vmem:[#allocation12 + $0xd0] sm:$0xff]
    %v3394 = vld [vmem:[#allocation12 + $0xd8] sm:$0xff]
    %v3395 = vld [vmem:[#allocation12 + $0xe0] sm:$0xff]
    %v3396 = vld [vmem:[#allocation12 + $0xe8] sm:$0xff]
    %v3397 = vld [vmem:[#allocation12 + $0xf0] sm:$0xff]
    %v3398 = vld [vmem:[#allocation12 + $0xf8] sm:$0xff]
    %v3399 = vld [vmem:[#allocation12 + $0x100] sm:$0xff]
    %v3400 = vld [vmem:[#allocation12 + $0x108] sm:$0xff]
    %v3401 = vld [vmem:[#allocation12 + $0x110] sm:$0xff]
    %v3402 = vld [vmem:[#allocation12 + $0x118] sm:$0xff]
    %v3403 = vld [vmem:[#allocation12 + $0x120] sm:$0xff]
    %v3404 = vld [vmem:[#allocation12 + $0x128] sm:$0xff]
    %v3405 = vld [vmem:[#allocation12 + $0x130] sm:$0xff]
    %v3406 = vld [vmem:[#allocation12 + $0x138] sm:$0xff]
    %v3407 = vld [vmem:[#allocation12 + $0x140] sm:$0xff]
    %v3408 = vld [vmem:[#allocation12 + $0x148] sm:$0xff]
    %v3409 = vld [vmem:[#allocation12 + $0x150] sm:$0xff]
    %v3410 = vld [vmem:[#allocation12 + $0x158] sm:$0xff]
    %v3411 = vld [vmem:[#allocation12 + $0x160] sm:$0xff]
    %v3412 = vld [vmem:[#allocation12 + $0x168] sm:$0xff]
    %v3413 = vld [vmem:[#allocation12 + $0x170] sm:$0xff]
    %v3414 = vld [vmem:[#allocation12 + $0x178] sm:$0xff]
    %v3415 = vld [vmem:[%s8] sm:$0x7]
    %v3417 = vlaneseq
    %v3418 = vshrl.u32 %v3417, 7
    %v3419 = vsub.s32 0, %v3418
    %v3420 = vrot.slane %v3415, %v3419
    %v3421 = vlaneseq
    %v3422 = vshrl.u32 %v3421, 7
    %v3423 = vsub.s32 1, %v3422
    %v3424 = vrot.slane %v3415, %v3423
    %v3425 = vlaneseq
    %v3426 = vshrl.u32 %v3425, 7
    %v3427 = vsub.s32 2, %v3426
    %v3428 = vrot.slane %v3415, %v3427
    %3432 = vmatprep.subr.mxu0 %v3413
    %3433 = vmatpush1.msra.mxu0 %v3412
    %3434 = vmatprep.subr.mxu0 %v3410
    %3435 = vmatpush1.msra.mxu0 %v3409
    %3436 = vmatprep.subr.mxu0 %v3407
    %3437 = vmatpush1.msra.mxu0 %v3406
    %3438 = vmatprep.subr.mxu0 %v3404
    %3439 = vmatpush1.msra.mxu0 %v3403
    %3440 = vmatprep.subr.mxu0 %v3401
    %3441 = vmatpush1.msra.mxu0 %v3400
    %3442 = vmatprep.subr.mxu0 %v3398
    %3443 = vmatpush1.msra.mxu0 %v3397
    %3444 = vmatprep.subr.mxu0 %v3395
    %3445 = vmatpush1.msra.mxu0 %v3394
    %3446 = vmatprep.subr.mxu0 %v3392
    %3447 = vmatpush1.msra.mxu0 %v3391
    %3448 = vmatprep.subr.mxu0 %v3389
    %3449 = vmatpush1.msra.mxu0 %v3388
    %3450 = vmatprep.subr.mxu0 %v3386
    %3451 = vmatpush1.msra.mxu0 %v3385
    %3452 = vmatprep.subr.mxu0 %v3383
    %3453 = vmatpush1.msra.mxu0 %v3382
    %3454 = vmatprep.subr.mxu0 %v3380
    %3455 = vmatpush1.msra.mxu0 %v3379
    %3456 = vmatprep.subr.mxu0 %v3377
    %3457 = vmatpush1.msra.mxu0 %v3376
    %3458 = vmatprep.subr.mxu0 %v3374
    %3459 = vmatpush1.msra.mxu0 %v3373
    %3460 = vmatprep.subr.mxu0 %v3371
    %3461 = vmatpush1.msra.mxu0 %v3370
    %3462 = vmatprep.subr.mxu0 %v3368
    %3463 = vmatpush1.msra.mxu0 %v3367
    %3464 = vmatprep.subr.mxu0 0.0
    %3465 = vmatpush2.msra.mxu0 0.0
    %3466 = vmatprep.subr.mxu0 0.0
    %3467 = vmatpush2.msra.mxu0 0.0
    %3468 = vmatprep.subr.mxu0 0.0
    %3469 = vmatpush2.msra.mxu0 0.0
    %3470 = vmatprep.subr.mxu0 0.0
    %3471 = vmatpush2.msra.mxu0 0.0
    %3472 = vmatprep.subr.mxu0 0.0
    %3473 = vmatpush2.msra.mxu0 0.0
    %3474 = vmatprep.subr.mxu0 0.0
    %3475 = vmatpush2.msra.mxu0 0.0
    %3476 = vmatprep.subr.mxu0 0.0
    %3477 = vmatpush2.msra.mxu0 0.0
    %3478 = vmatprep.subr.mxu0 0.0
    %3479 = vmatpush2.msra.mxu0 0.0
    %3480 = vmatprep.subr.mxu0 0.0
    %3481 = vmatpush2.msra.mxu0 0.0
    %3482 = vmatprep.subr.mxu0 0.0
    %3483 = vmatpush2.msra.mxu0 0.0
    %3484 = vmatprep.subr.mxu0 0.0
    %3485 = vmatpush2.msra.mxu0 0.0
    %3486 = vmatprep.subr.mxu0 0.0
    %3487 = vmatpush2.msra.mxu0 0.0
    %3488 = vmatprep.subr.mxu0 0.0
    %3489 = vmatpush2.msra.mxu0 0.0
    %3490 = vmatprep.subr.mxu0 0.0
    %3491 = vmatpush2.msra.mxu0 0.0
    %3492 = vmatprep.subr.mxu0 0.0
    %3493 = vmatpush2.msra.mxu0 0.0
    %3494 = vmatprep.subr.mxu0 0.0
    %3495 = vmatpush2.msra.mxu0 0.0
    %3496 = vmatprep.mubr.f32.mxu0 0.0
    %3497 = vmatmul.mubr.f32.gmra.mxu0 %v3123
    %v3498 = vpop.f32.mrf.mxu0
    %v3499 = vadd.f32 %v3420, %v3498
    %v3500 = vpop.f32.mrf.mxu0
    %v3501 = vadd.f32 %v3424, %v3500
    %3502 = vdwg.mxu0
    %3503 = vmatprep.subr.mxu0 0.0
    %3504 = vmatpush1.msra.mxu0 %v3414
    %3505 = vmatprep.subr.mxu0 0.0
    %3506 = vmatpush1.msra.mxu0 %v3411
    %3507 = vmatprep.subr.mxu0 0.0
    %3508 = vmatpush1.msra.mxu0 %v3408
    %3509 = vmatprep.subr.mxu0 0.0
    %3510 = vmatpush1.msra.mxu0 %v3405
    %3511 = vmatprep.subr.mxu0 0.0
    %3512 = vmatpush1.msra.mxu0 %v3402
    %3513 = vmatprep.subr.mxu0 0.0
    %3514 = vmatpush1.msra.mxu0 %v3399
    %3515 = vmatprep.subr.mxu0 0.0
    %3516 = vmatpush1.msra.mxu0 %v3396
    %3517 = vmatprep.subr.mxu0 0.0
    %3518 = vmatpush1.msra.mxu0 %v3393
    %3519 = vmatprep.subr.mxu0 0.0
    %3520 = vmatpush1.msra.mxu0 %v3390
    %3521 = vmatprep.subr.mxu0 0.0
    %3522 = vmatpush1.msra.mxu0 %v3387
    %3523 = vmatprep.subr.mxu0 0.0
    %3524 = vmatpush1.msra.mxu0 %v3384
    %3525 = vmatprep.subr.mxu0 0.0
    %3526 = vmatpush1.msra.mxu0 %v3381
    %3527 = vmatprep.subr.mxu0 0.0
    %3528 = vmatpush1.msra.mxu0 %v3378
    %3529 = vmatprep.subr.mxu0 0.0
    %3530 = vmatpush1.msra.mxu0 %v3375
    %3531 = vmatprep.subr.mxu0 0.0
    %3532 = vmatpush1.msra.mxu0 %v3372
    %3533 = vmatprep.subr.mxu0 0.0
    %3534 = vmatpush1.msra.mxu0 %v3369
    %3535 = vmatprep.subr.mxu0 0.0
    %3536 = vmatpush2.msra.mxu0 0.0
    %3537 = vmatprep.subr.mxu0 0.0
    %3538 = vmatpush2.msra.mxu0 0.0
    %3539 = vmatprep.subr.mxu0 0.0
    %3540 = vmatpush2.msra.mxu0 0.0
    %3541 = vmatprep.subr.mxu0 0.0
    %3542 = vmatpush2.msra.mxu0 0.0
    %3543 = vmatprep.subr.mxu0 0.0
    %3544 = vmatpush2.msra.mxu0 0.0
    %3545 = vmatprep.subr.mxu0 0.0
    %3546 = vmatpush2.msra.mxu0 0.0
    %3547 = vmatprep.subr.mxu0 0.0
    %3548 = vmatpush2.msra.mxu0 0.0
    %3549 = vmatprep.subr.mxu0 0.0
    %3550 = vmatpush2.msra.mxu0 0.0
    %3551 = vmatprep.subr.mxu0 0.0
    %3552 = vmatpush2.msra.mxu0 0.0
    %3553 = vmatprep.subr.mxu0 0.0
    %3554 = vmatpush2.msra.mxu0 0.0
    %3555 = vmatprep.subr.mxu0 0.0
    %3556 = vmatpush2.msra.mxu0 0.0
    %3557 = vmatprep.subr.mxu0 0.0
    %3558 = vmatpush2.msra.mxu0 0.0
    %3559 = vmatprep.subr.mxu0 0.0
    %3560 = vmatpush2.msra.mxu0 0.0
    %3561 = vmatprep.subr.mxu0 0.0
    %3562 = vmatpush2.msra.mxu0 0.0
    %3563 = vmatprep.subr.mxu0 0.0
    %3564 = vmatpush2.msra.mxu0 0.0
    %3565 = vmatprep.subr.mxu0 0.0
    %3566 = vmatpush2.msra.mxu0 0.0
    %3567 = vmatprep.mubr.f32.mxu0 0.0
    %3568 = vmatmul.mubr.f32.gmra.mxu0 %v3123
    %v3569 = vpop.f32.mrf.mxu0
    %v3570 = vadd.f32 %v3428, %v3569
    %v3571 = vpop.f32.mrf.mxu0
    %3572 = vdwg.mxu0
    %v3573 = vadd.f32 %v3364, %v3499
    %v3574 = vxor.u32 %v3573, 2147483648
    %v3575 = vmul.f32 %v3574, 1.442695
    %v3576 = vpow.pop %v3575
    %v3577 = vadd.f32 %v3576, 1.0
    %v3578 = vrcp.pop %v3577
    %v3579 = vmul.f32 1.0, %v3578
    %v3580 = vadd.f32 %v3365, %v3501
    %v3581 = vxor.u32 %v3580, 2147483648
    %v3582 = vmul.f32 %v3581, 1.442695
    %v3583 = vpow.pop %v3582
    %v3584 = vadd.f32 %v3583, 1.0
    %v3585 = vrcp.pop %v3584
    %v3586 = vmul.f32 1.0, %v3585
    %v3587 = vmul.f32 %v3579, %v3570
    %v3588 = vadd.f32 %v3366, %v3587
    %v3589 = vtanh.pop %v3588
    %v3590 = vsub.f32 1.0, %v3586
    %v3591 = vmul.f32 %v3590, %v3589
    %v3592 = vmul.f32 %v3586, %v3123
    %v3593 = vadd.f32 %v3591, %v3592
    %s3594 = scalar_lea.vmem [#allocation13], 40
    %3595 = vst [vmem:[%s3594] sm:$0xff] %v3362
    %s3596 = scalar_lea.vmem [#allocation14], 16
    %3597 = vst [vmem:[%s3596] sm:$0xff] %v3593
    %v3598 = vmul.f32 %v3362, %v2172
    %v3599 = vadd.f32 %v3129, %v3598
    %v3600 = vmul.f32 %v3593, %v2162
    %v3601 = vadd.f32 %v3131, %v3600
    %s3602 = scalar_lea.vmem [#allocation2], 144
    %v3603 = vld [vmem:[%s3602] sm:$0xff]
    %v3604 = vld [vmem:[%s3602 + $0x8] sm:$0xff]
    %v3605 = vld [vmem:[%s3602 + $0x10] sm:$0xff]
    %v3606 = vld [vmem:[#allocation10] sm:$0xff]
    %v3607 = vld [vmem:[#allocation10 + $0x8] sm:$0xff]
    %v3608 = vld [vmem:[#allocation10 + $0x10] sm:$0xff]
    %v3609 = vld [vmem:[#allocation10 + $0x18] sm:$0xff]
    %v3610 = vld [vmem:[#allocation10 + $0x20] sm:$0xff]
    %v3611 = vld [vmem:[#allocation10 + $0x28] sm:$0xff]
    %v3612 = vld [vmem:[#allocation10 + $0x30] sm:$0xff]
    %v3613 = vld [vmem:[#allocation10 + $0x38] sm:$0xff]
    %v3614 = vld [vmem:[#allocation10 + $0x40] sm:$0xff]
    %v3615 = vld [vmem:[#allocation10 + $0x48] sm:$0xff]
    %v3616 = vld [vmem:[#allocation10 + $0x50] sm:$0xff]
    %v3617 = vld [vmem:[#allocation10 + $0x58] sm:$0xff]
    %v3618 = vld [vmem:[#allocation10 + $0x60] sm:$0xff]
    %v3619 = vld [vmem:[#allocation10 + $0x68] sm:$0xff]
    %v3620 = vld [vmem:[#allocation10 + $0x70] sm:$0xff]
    %v3621 = vld [vmem:[#allocation10 + $0x78] sm:$0xff]
    %v3622 = vld [vmem:[#allocation10 + $0x80] sm:$0xff]
    %v3623 = vld [vmem:[#allocation10 + $0x88] sm:$0xff]
    %v3624 = vld [vmem:[#allocation10 + $0x90] sm:$0xff]
    %v3625 = vld [vmem:[#allocation10 + $0x98] sm:$0xff]
    %v3626 = vld [vmem:[#allocation10 + $0xa0] sm:$0xff]
    %v3627 = vld [vmem:[#allocation10 + $0xa8] sm:$0xff]
    %v3628 = vld [vmem:[#allocation10 + $0xb0] sm:$0xff]
    %v3629 = vld [vmem:[#allocation10 + $0xb8] sm:$0xff]
    %v3630 = vld [vmem:[#allocation10 + $0xc0] sm:$0xff]
    %v3631 = vld [vmem:[#allocation10 + $0xc8] sm:$0xff]
    %v3632 = vld [vmem:[#allocation10 + $0xd0] sm:$0xff]
    %v3633 = vld [vmem:[#allocation10 + $0xd8] sm:$0xff]
    %v3634 = vld [vmem:[#allocation10 + $0xe0] sm:$0xff]
    %v3635 = vld [vmem:[#allocation10 + $0xe8] sm:$0xff]
    %v3636 = vld [vmem:[#allocation10 + $0xf0] sm:$0xff]
    %v3637 = vld [vmem:[#allocation10 + $0xf8] sm:$0xff]
    %v3638 = vld [vmem:[#allocation10 + $0x100] sm:$0xff]
    %v3639 = vld [vmem:[#allocation10 + $0x108] sm:$0xff]
    %v3640 = vld [vmem:[#allocation10 + $0x110] sm:$0xff]
    %v3641 = vld [vmem:[#allocation10 + $0x118] sm:$0xff]
    %v3642 = vld [vmem:[#allocation10 + $0x120] sm:$0xff]
    %v3643 = vld [vmem:[#allocation10 + $0x128] sm:$0xff]
    %v3644 = vld [vmem:[#allocation10 + $0x130] sm:$0xff]
    %v3645 = vld [vmem:[#allocation10 + $0x138] sm:$0xff]
    %v3646 = vld [vmem:[#allocation10 + $0x140] sm:$0xff]
    %v3647 = vld [vmem:[#allocation10 + $0x148] sm:$0xff]
    %v3648 = vld [vmem:[#allocation10 + $0x150] sm:$0xff]
    %v3649 = vld [vmem:[#allocation10 + $0x158] sm:$0xff]
    %v3650 = vld [vmem:[#allocation10 + $0x160] sm:$0xff]
    %v3651 = vld [vmem:[#allocation10 + $0x168] sm:$0xff]
    %v3652 = vld [vmem:[#allocation10 + $0x170] sm:$0xff]
    %v3653 = vld [vmem:[#allocation10 + $0x178] sm:$0xff]
    %v3654 = vld [vmem:[%s6] sm:$0x7]
    %v3656 = vlaneseq
    %v3657 = vshrl.u32 %v3656, 7
    %v3658 = vsub.s32 0, %v3657
    %v3659 = vrot.slane %v3654, %v3658
    %v3660 = vlaneseq
    %v3661 = vshrl.u32 %v3660, 7
    %v3662 = vsub.s32 1, %v3661
    %v3663 = vrot.slane %v3654, %v3662
    %v3664 = vlaneseq
    %v3665 = vshrl.u32 %v3664, 7
    %v3666 = vsub.s32 2, %v3665
    %v3667 = vrot.slane %v3654, %v3666
    %3671 = vmatprep.subr.mxu0 %v3652
    %3672 = vmatpush1.msra.mxu0 %v3651
    %3673 = vmatprep.subr.mxu0 %v3649
    %3674 = vmatpush1.msra.mxu0 %v3648
    %3675 = vmatprep.subr.mxu0 %v3646
    %3676 = vmatpush1.msra.mxu0 %v3645
    %3677 = vmatprep.subr.mxu0 %v3643
    %3678 = vmatpush1.msra.mxu0 %v3642
    %3679 = vmatprep.subr.mxu0 %v3640
    %3680 = vmatpush1.msra.mxu0 %v3639
    %3681 = vmatprep.subr.mxu0 %v3637
    %3682 = vmatpush1.msra.mxu0 %v3636
    %3683 = vmatprep.subr.mxu0 %v3634
    %3684 = vmatpush1.msra.mxu0 %v3633
    %3685 = vmatprep.subr.mxu0 %v3631
    %3686 = vmatpush1.msra.mxu0 %v3630
    %3687 = vmatprep.subr.mxu0 %v3628
    %3688 = vmatpush1.msra.mxu0 %v3627
    %3689 = vmatprep.subr.mxu0 %v3625
    %3690 = vmatpush1.msra.mxu0 %v3624
    %3691 = vmatprep.subr.mxu0 %v3622
    %3692 = vmatpush1.msra.mxu0 %v3621
    %3693 = vmatprep.subr.mxu0 %v3619
    %3694 = vmatpush1.msra.mxu0 %v3618
    %3695 = vmatprep.subr.mxu0 %v3616
    %3696 = vmatpush1.msra.mxu0 %v3615
    %3697 = vmatprep.subr.mxu0 %v3613
    %3698 = vmatpush1.msra.mxu0 %v3612
    %3699 = vmatprep.subr.mxu0 %v3610
    %3700 = vmatpush1.msra.mxu0 %v3609
    %3701 = vmatprep.subr.mxu0 %v3607
    %3702 = vmatpush1.msra.mxu0 %v3606
    %3703 = vmatprep.subr.mxu0 0.0
    %3704 = vmatpush2.msra.mxu0 0.0
    %3705 = vmatprep.subr.mxu0 0.0
    %3706 = vmatpush2.msra.mxu0 0.0
    %3707 = vmatprep.subr.mxu0 0.0
    %3708 = vmatpush2.msra.mxu0 0.0
    %3709 = vmatprep.subr.mxu0 0.0
    %3710 = vmatpush2.msra.mxu0 0.0
    %3711 = vmatprep.subr.mxu0 0.0
    %3712 = vmatpush2.msra.mxu0 0.0
    %3713 = vmatprep.subr.mxu0 0.0
    %3714 = vmatpush2.msra.mxu0 0.0
    %3715 = vmatprep.subr.mxu0 0.0
    %3716 = vmatpush2.msra.mxu0 0.0
    %3717 = vmatprep.subr.mxu0 0.0
    %3718 = vmatpush2.msra.mxu0 0.0
    %3719 = vmatprep.subr.mxu0 0.0
    %3720 = vmatpush2.msra.mxu0 0.0
    %3721 = vmatprep.subr.mxu0 0.0
    %3722 = vmatpush2.msra.mxu0 0.0
    %3723 = vmatprep.subr.mxu0 0.0
    %3724 = vmatpush2.msra.mxu0 0.0
    %3725 = vmatprep.subr.mxu0 0.0
    %3726 = vmatpush2.msra.mxu0 0.0
    %3727 = vmatprep.subr.mxu0 0.0
    %3728 = vmatpush2.msra.mxu0 0.0
    %3729 = vmatprep.subr.mxu0 0.0
    %3730 = vmatpush2.msra.mxu0 0.0
    %3731 = vmatprep.subr.mxu0 0.0
    %3732 = vmatpush2.msra.mxu0 0.0
    %3733 = vmatprep.subr.mxu0 0.0
    %3734 = vmatpush2.msra.mxu0 0.0
    %3735 = vmatprep.mubr.f32.mxu0 0.0
    %3736 = vmatmul.mubr.f32.gmra.mxu0 %v3362
    %v3737 = vpop.f32.mrf.mxu0
    %v3738 = vadd.f32 %v3659, %v3737
    %v3739 = vpop.f32.mrf.mxu0
    %v3740 = vadd.f32 %v3663, %v3739
    %3741 = vdwg.mxu0
    %3742 = vmatprep.subr.mxu0 0.0
    %3743 = vmatpush1.msra.mxu0 %v3653
    %3744 = vmatprep.subr.mxu0 0.0
    %3745 = vmatpush1.msra.mxu0 %v3650
    %3746 = vmatprep.subr.mxu0 0.0
    %3747 = vmatpush1.msra.mxu0 %v3647
    %3748 = vmatprep.subr.mxu0 0.0
    %3749 = vmatpush1.msra.mxu0 %v3644
    %3750 = vmatprep.subr.mxu0 0.0
    %3751 = vmatpush1.msra.mxu0 %v3641
    %3752 = vmatprep.subr.mxu0 0.0
    %3753 = vmatpush1.msra.mxu0 %v3638
    %3754 = vmatprep.subr.mxu0 0.0
    %3755 = vmatpush1.msra.mxu0 %v3635
    %3756 = vmatprep.subr.mxu0 0.0
    %3757 = vmatpush1.msra.mxu0 %v3632
    %3758 = vmatprep.subr.mxu0 0.0
    %3759 = vmatpush1.msra.mxu0 %v3629
    %3760 = vmatprep.subr.mxu0 0.0
    %3761 = vmatpush1.msra.mxu0 %v3626
    %3762 = vmatprep.subr.mxu0 0.0
    %3763 = vmatpush1.msra.mxu0 %v3623
    %3764 = vmatprep.subr.mxu0 0.0
    %3765 = vmatpush1.msra.mxu0 %v3620
    %3766 = vmatprep.subr.mxu0 0.0
    %3767 = vmatpush1.msra.mxu0 %v3617
    %3768 = vmatprep.subr.mxu0 0.0
    %3769 = vmatpush1.msra.mxu0 %v3614
    %3770 = vmatprep.subr.mxu0 0.0
    %3771 = vmatpush1.msra.mxu0 %v3611
    %3772 = vmatprep.subr.mxu0 0.0
    %3773 = vmatpush1.msra.mxu0 %v3608
    %3774 = vmatprep.subr.mxu0 0.0
    %3775 = vmatpush2.msra.mxu0 0.0
    %3776 = vmatprep.subr.mxu0 0.0
    %3777 = vmatpush2.msra.mxu0 0.0
    %3778 = vmatprep.subr.mxu0 0.0
    %3779 = vmatpush2.msra.mxu0 0.0
    %3780 = vmatprep.subr.mxu0 0.0
    %3781 = vmatpush2.msra.mxu0 0.0
    %3782 = vmatprep.subr.mxu0 0.0
    %3783 = vmatpush2.msra.mxu0 0.0
    %3784 = vmatprep.subr.mxu0 0.0
    %3785 = vmatpush2.msra.mxu0 0.0
    %3786 = vmatprep.subr.mxu0 0.0
    %3787 = vmatpush2.msra.mxu0 0.0
    %3788 = vmatprep.subr.mxu0 0.0
    %3789 = vmatpush2.msra.mxu0 0.0
    %3790 = vmatprep.subr.mxu0 0.0
    %3791 = vmatpush2.msra.mxu0 0.0
    %3792 = vmatprep.subr.mxu0 0.0
    %3793 = vmatpush2.msra.mxu0 0.0
    %3794 = vmatprep.subr.mxu0 0.0
    %3795 = vmatpush2.msra.mxu0 0.0
    %3796 = vmatprep.subr.mxu0 0.0
    %3797 = vmatpush2.msra.mxu0 0.0
    %3798 = vmatprep.subr.mxu0 0.0
    %3799 = vmatpush2.msra.mxu0 0.0
    %3800 = vmatprep.subr.mxu0 0.0
    %3801 = vmatpush2.msra.mxu0 0.0
    %3802 = vmatprep.subr.mxu0 0.0
    %3803 = vmatpush2.msra.mxu0 0.0
    %3804 = vmatprep.subr.mxu0 0.0
    %3805 = vmatpush2.msra.mxu0 0.0
    %3806 = vmatprep.mubr.f32.mxu0 0.0
    %3807 = vmatmul.mubr.f32.gmra.mxu0 %v3362
    %v3808 = vpop.f32.mrf.mxu0
    %v3809 = vadd.f32 %v3667, %v3808
    %v3810 = vpop.f32.mrf.mxu0
    %3811 = vdwg.mxu0
    %v3812 = vadd.f32 %v3603, %v3738
    %v3813 = vxor.u32 %v3812, 2147483648
    %v3814 = vmul.f32 %v3813, 1.442695
    %v3815 = vpow.pop %v3814
    %v3816 = vadd.f32 %v3815, 1.0
    %v3817 = vrcp.pop %v3816
    %v3818 = vmul.f32 1.0, %v3817
    %v3819 = vadd.f32 %v3604, %v3740
    %v3820 = vxor.u32 %v3819, 2147483648
    %v3821 = vmul.f32 %v3820, 1.442695
    %v3822 = vpow.pop %v3821
    %v3823 = vadd.f32 %v3822, 1.0
    %v3824 = vrcp.pop %v3823
    %v3825 = vmul.f32 1.0, %v3824
    %v3826 = vmul.f32 %v3818, %v3809
    %v3827 = vadd.f32 %v3605, %v3826
    %v3828 = vtanh.pop %v3827
    %v3829 = vsub.f32 1.0, %v3825
    %v3830 = vmul.f32 %v3829, %v3828
    %v3831 = vmul.f32 %v3825, %v3362
    %v3832 = vadd.f32 %v3830, %v3831
    %s3833 = scalar_lea.vmem [#allocation3], 24
    %v3834 = vld [vmem:[%s3833] sm:$0xff]
    %v3835 = vld [vmem:[%s3833 + $0x8] sm:$0xff]
    %v3836 = vld [vmem:[%s3833 + $0x10] sm:$0xff]
    %v3837 = vld [vmem:[#allocation12] sm:$0xff]
    %v3838 = vld [vmem:[#allocation12 + $0x8] sm:$0xff]
    %v3839 = vld [vmem:[#allocation12 + $0x10] sm:$0xff]
    %v3840 = vld [vmem:[#allocation12 + $0x18] sm:$0xff]
    %v3841 = vld [vmem:[#allocation12 + $0x20] sm:$0xff]
    %v3842 = vld [vmem:[#allocation12 + $0x28] sm:$0xff]
    %v3843 = vld [vmem:[#allocation12 + $0x30] sm:$0xff]
    %v3844 = vld [vmem:[#allocation12 + $0x38] sm:$0xff]
    %v3845 = vld [vmem:[#allocation12 + $0x40] sm:$0xff]
    %v3846 = vld [vmem:[#allocation12 + $0x48] sm:$0xff]
    %v3847 = vld [vmem:[#allocation12 + $0x50] sm:$0xff]
    %v3848 = vld [vmem:[#allocation12 + $0x58] sm:$0xff]
    %v3849 = vld [vmem:[#allocation12 + $0x60] sm:$0xff]
    %v3850 = vld [vmem:[#allocation12 + $0x68] sm:$0xff]
    %v3851 = vld [vmem:[#allocation12 + $0x70] sm:$0xff]
    %v3852 = vld [vmem:[#allocation12 + $0x78] sm:$0xff]
    %v3853 = vld [vmem:[#allocation12 + $0x80] sm:$0xff]
    %v3854 = vld [vmem:[#allocation12 + $0x88] sm:$0xff]
    %v3855 = vld [vmem:[#allocation12 + $0x90] sm:$0xff]
    %v3856 = vld [vmem:[#allocation12 + $0x98] sm:$0xff]
    %v3857 = vld [vmem:[#allocation12 + $0xa0] sm:$0xff]
    %v3858 = vld [vmem:[#allocation12 + $0xa8] sm:$0xff]
    %v3859 = vld [vmem:[#allocation12 + $0xb0] sm:$0xff]
    %v3860 = vld [vmem:[#allocation12 + $0xb8] sm:$0xff]
    %v3861 = vld [vmem:[#allocation12 + $0xc0] sm:$0xff]
    %v3862 = vld [vmem:[#allocation12 + $0xc8] sm:$0xff]
    %v3863 = vld [vmem:[#allocation12 + $0xd0] sm:$0xff]
    %v3864 = vld [vmem:[#allocation12 + $0xd8] sm:$0xff]
    %v3865 = vld [vmem:[#allocation12 + $0xe0] sm:$0xff]
    %v3866 = vld [vmem:[#allocation12 + $0xe8] sm:$0xff]
    %v3867 = vld [vmem:[#allocation12 + $0xf0] sm:$0xff]
    %v3868 = vld [vmem:[#allocation12 + $0xf8] sm:$0xff]
    %v3869 = vld [vmem:[#allocation12 + $0x100] sm:$0xff]
    %v3870 = vld [vmem:[#allocation12 + $0x108] sm:$0xff]
    %v3871 = vld [vmem:[#allocation12 + $0x110] sm:$0xff]
    %v3872 = vld [vmem:[#allocation12 + $0x118] sm:$0xff]
    %v3873 = vld [vmem:[#allocation12 + $0x120] sm:$0xff]
    %v3874 = vld [vmem:[#allocation12 + $0x128] sm:$0xff]
    %v3875 = vld [vmem:[#allocation12 + $0x130] sm:$0xff]
    %v3876 = vld [vmem:[#allocation12 + $0x138] sm:$0xff]
    %v3877 = vld [vmem:[#allocation12 + $0x140] sm:$0xff]
    %v3878 = vld [vmem:[#allocation12 + $0x148] sm:$0xff]
    %v3879 = vld [vmem:[#allocation12 + $0x150] sm:$0xff]
    %v3880 = vld [vmem:[#allocation12 + $0x158] sm:$0xff]
    %v3881 = vld [vmem:[#allocation12 + $0x160] sm:$0xff]
    %v3882 = vld [vmem:[#allocation12 + $0x168] sm:$0xff]
    %v3883 = vld [vmem:[#allocation12 + $0x170] sm:$0xff]
    %v3884 = vld [vmem:[#allocation12 + $0x178] sm:$0xff]
    %v3885 = vld [vmem:[%s8] sm:$0x7]
    %v3887 = vlaneseq
    %v3888 = vshrl.u32 %v3887, 7
    %v3889 = vsub.s32 0, %v3888
    %v3890 = vrot.slane %v3885, %v3889
    %v3891 = vlaneseq
    %v3892 = vshrl.u32 %v3891, 7
    %v3893 = vsub.s32 1, %v3892
    %v3894 = vrot.slane %v3885, %v3893
    %v3895 = vlaneseq
    %v3896 = vshrl.u32 %v3895, 7
    %v3897 = vsub.s32 2, %v3896
    %v3898 = vrot.slane %v3885, %v3897
    %3902 = vmatprep.subr.mxu0 %v3883
    %3903 = vmatpush1.msra.mxu0 %v3882
    %3904 = vmatprep.subr.mxu0 %v3880
    %3905 = vmatpush1.msra.mxu0 %v3879
    %3906 = vmatprep.subr.mxu0 %v3877
    %3907 = vmatpush1.msra.mxu0 %v3876
    %3908 = vmatprep.subr.mxu0 %v3874
    %3909 = vmatpush1.msra.mxu0 %v3873
    %3910 = vmatprep.subr.mxu0 %v3871
    %3911 = vmatpush1.msra.mxu0 %v3870
    %3912 = vmatprep.subr.mxu0 %v3868
    %3913 = vmatpush1.msra.mxu0 %v3867
    %3914 = vmatprep.subr.mxu0 %v3865
    %3915 = vmatpush1.msra.mxu0 %v3864
    %3916 = vmatprep.subr.mxu0 %v3862
    %3917 = vmatpush1.msra.mxu0 %v3861
    %3918 = vmatprep.subr.mxu0 %v3859
    %3919 = vmatpush1.msra.mxu0 %v3858
    %3920 = vmatprep.subr.mxu0 %v3856
    %3921 = vmatpush1.msra.mxu0 %v3855
    %3922 = vmatprep.subr.mxu0 %v3853
    %3923 = vmatpush1.msra.mxu0 %v3852
    %3924 = vmatprep.subr.mxu0 %v3850
    %3925 = vmatpush1.msra.mxu0 %v3849
    %3926 = vmatprep.subr.mxu0 %v3847
    %3927 = vmatpush1.msra.mxu0 %v3846
    %3928 = vmatprep.subr.mxu0 %v3844
    %3929 = vmatpush1.msra.mxu0 %v3843
    %3930 = vmatprep.subr.mxu0 %v3841
    %3931 = vmatpush1.msra.mxu0 %v3840
    %3932 = vmatprep.subr.mxu0 %v3838
    %3933 = vmatpush1.msra.mxu0 %v3837
    %3934 = vmatprep.subr.mxu0 0.0
    %3935 = vmatpush2.msra.mxu0 0.0
    %3936 = vmatprep.subr.mxu0 0.0
    %3937 = vmatpush2.msra.mxu0 0.0
    %3938 = vmatprep.subr.mxu0 0.0
    %3939 = vmatpush2.msra.mxu0 0.0
    %3940 = vmatprep.subr.mxu0 0.0
    %3941 = vmatpush2.msra.mxu0 0.0
    %3942 = vmatprep.subr.mxu0 0.0
    %3943 = vmatpush2.msra.mxu0 0.0
    %3944 = vmatprep.subr.mxu0 0.0
    %3945 = vmatpush2.msra.mxu0 0.0
    %3946 = vmatprep.subr.mxu0 0.0
    %3947 = vmatpush2.msra.mxu0 0.0
    %3948 = vmatprep.subr.mxu0 0.0
    %3949 = vmatpush2.msra.mxu0 0.0
    %3950 = vmatprep.subr.mxu0 0.0
    %3951 = vmatpush2.msra.mxu0 0.0
    %3952 = vmatprep.subr.mxu0 0.0
    %3953 = vmatpush2.msra.mxu0 0.0
    %3954 = vmatprep.subr.mxu0 0.0
    %3955 = vmatpush2.msra.mxu0 0.0
    %3956 = vmatprep.subr.mxu0 0.0
    %3957 = vmatpush2.msra.mxu0 0.0
    %3958 = vmatprep.subr.mxu0 0.0
    %3959 = vmatpush2.msra.mxu0 0.0
    %3960 = vmatprep.subr.mxu0 0.0
    %3961 = vmatpush2.msra.mxu0 0.0
    %3962 = vmatprep.subr.mxu0 0.0
    %3963 = vmatpush2.msra.mxu0 0.0
    %3964 = vmatprep.subr.mxu0 0.0
    %3965 = vmatpush2.msra.mxu0 0.0
    %3966 = vmatprep.mubr.f32.mxu0 0.0
    %3967 = vmatmul.mubr.f32.gmra.mxu0 %v3593
    %v3968 = vpop.f32.mrf.mxu0
    %v3969 = vadd.f32 %v3890, %v3968
    %v3970 = vpop.f32.mrf.mxu0
    %v3971 = vadd.f32 %v3894, %v3970
    %3972 = vdwg.mxu0
    %3973 = vmatprep.subr.mxu0 0.0
    %3974 = vmatpush1.msra.mxu0 %v3884
    %3975 = vmatprep.subr.mxu0 0.0
    %3976 = vmatpush1.msra.mxu0 %v3881
    %3977 = vmatprep.subr.mxu0 0.0
    %3978 = vmatpush1.msra.mxu0 %v3878
    %3979 = vmatprep.subr.mxu0 0.0
    %3980 = vmatpush1.msra.mxu0 %v3875
    %3981 = vmatprep.subr.mxu0 0.0
    %3982 = vmatpush1.msra.mxu0 %v3872
    %3983 = vmatprep.subr.mxu0 0.0
    %3984 = vmatpush1.msra.mxu0 %v3869
    %3985 = vmatprep.subr.mxu0 0.0
    %3986 = vmatpush1.msra.mxu0 %v3866
    %3987 = vmatprep.subr.mxu0 0.0
    %3988 = vmatpush1.msra.mxu0 %v3863
    %3989 = vmatprep.subr.mxu0 0.0
    %3990 = vmatpush1.msra.mxu0 %v3860
    %3991 = vmatprep.subr.mxu0 0.0
    %3992 = vmatpush1.msra.mxu0 %v3857
    %3993 = vmatprep.subr.mxu0 0.0
    %3994 = vmatpush1.msra.mxu0 %v3854
    %3995 = vmatprep.subr.mxu0 0.0
    %3996 = vmatpush1.msra.mxu0 %v3851
    %3997 = vmatprep.subr.mxu0 0.0
    %3998 = vmatpush1.msra.mxu0 %v3848
    %3999 = vmatprep.subr.mxu0 0.0
    %4000 = vmatpush1.msra.mxu0 %v3845
    %4001 = vmatprep.subr.mxu0 0.0
    %4002 = vmatpush1.msra.mxu0 %v3842
    %4003 = vmatprep.subr.mxu0 0.0
    %4004 = vmatpush1.msra.mxu0 %v3839
    %4005 = vmatprep.subr.mxu0 0.0
    %4006 = vmatpush2.msra.mxu0 0.0
    %4007 = vmatprep.subr.mxu0 0.0
    %4008 = vmatpush2.msra.mxu0 0.0
    %4009 = vmatprep.subr.mxu0 0.0
    %4010 = vmatpush2.msra.mxu0 0.0
    %4011 = vmatprep.subr.mxu0 0.0
    %4012 = vmatpush2.msra.mxu0 0.0
    %4013 = vmatprep.subr.mxu0 0.0
    %4014 = vmatpush2.msra.mxu0 0.0
    %4015 = vmatprep.subr.mxu0 0.0
    %4016 = vmatpush2.msra.mxu0 0.0
    %4017 = vmatprep.subr.mxu0 0.0
    %4018 = vmatpush2.msra.mxu0 0.0
    %4019 = vmatprep.subr.mxu0 0.0
    %4020 = vmatpush2.msra.mxu0 0.0
    %4021 = vmatprep.subr.mxu0 0.0
    %4022 = vmatpush2.msra.mxu0 0.0
    %4023 = vmatprep.subr.mxu0 0.0
    %4024 = vmatpush2.msra.mxu0 0.0
    %4025 = vmatprep.subr.mxu0 0.0
    %4026 = vmatpush2.msra.mxu0 0.0
    %4027 = vmatprep.subr.mxu0 0.0
    %4028 = vmatpush2.msra.mxu0 0.0
    %4029 = vmatprep.subr.mxu0 0.0
    %4030 = vmatpush2.msra.mxu0 0.0
    %4031 = vmatprep.subr.mxu0 0.0
    %4032 = vmatpush2.msra.mxu0 0.0
    %4033 = vmatprep.subr.mxu0 0.0
    %4034 = vmatpush2.msra.mxu0 0.0
    %4035 = vmatprep.subr.mxu0 0.0
    %4036 = vmatpush2.msra.mxu0 0.0
    %4037 = vmatprep.mubr.f32.mxu0 0.0
    %4038 = vmatmul.mubr.f32.gmra.mxu0 %v3593
    %v4039 = vpop.f32.mrf.mxu0
    %v4040 = vadd.f32 %v3898, %v4039
    %v4041 = vpop.f32.mrf.mxu0
    %4042 = vdwg.mxu0
    %v4043 = vadd.f32 %v3834, %v3969
    %v4044 = vxor.u32 %v4043, 2147483648
    %v4045 = vmul.f32 %v4044, 1.442695
    %v4046 = vpow.pop %v4045
    %v4047 = vadd.f32 %v4046, 1.0
    %v4048 = vrcp.pop %v4047
    %v4049 = vmul.f32 1.0, %v4048
    %v4050 = vadd.f32 %v3835, %v3971
    %v4051 = vxor.u32 %v4050, 2147483648
    %v4052 = vmul.f32 %v4051, 1.442695
    %v4053 = vpow.pop %v4052
    %v4054 = vadd.f32 %v4053, 1.0
    %v4055 = vrcp.pop %v4054
    %v4056 = vmul.f32 1.0, %v4055
    %v4057 = vmul.f32 %v4049, %v4040
    %v4058 = vadd.f32 %v3836, %v4057
    %v4059 = vtanh.pop %v4058
    %v4060 = vsub.f32 1.0, %v4056
    %v4061 = vmul.f32 %v4060, %v4059
    %v4062 = vmul.f32 %v4056, %v3593
    %v4063 = vadd.f32 %v4061, %v4062
    %s4064 = scalar_lea.vmem [#allocation13], 48
    %4065 = vst [vmem:[%s4064] sm:$0xff] %v3832
    %s4066 = scalar_lea.vmem [#allocation14], 8
    %4067 = vst [vmem:[%s4066] sm:$0xff] %v4063
    %v4068 = vmul.f32 %v3832, %v1686
    %v4069 = vadd.f32 %v3599, %v4068
    %v4070 = vmul.f32 %v4063, %v1676
    %v4071 = vadd.f32 %v3601, %v4070
    %s4072 = scalar_lea.vmem [#allocation2], 168
    %v4073 = vld [vmem:[%s4072] sm:$0xff]
    %v4074 = vld [vmem:[%s4072 + $0x8] sm:$0xff]
    %v4075 = vld [vmem:[%s4072 + $0x10] sm:$0xff]
    %v4076 = vld [vmem:[#allocation10] sm:$0xff]
    %v4077 = vld [vmem:[#allocation10 + $0x8] sm:$0xff]
    %v4078 = vld [vmem:[#allocation10 + $0x10] sm:$0xff]
    %v4079 = vld [vmem:[#allocation10 + $0x18] sm:$0xff]
    %v4080 = vld [vmem:[#allocation10 + $0x20] sm:$0xff]
    %v4081 = vld [vmem:[#allocation10 + $0x28] sm:$0xff]
    %v4082 = vld [vmem:[#allocation10 + $0x30] sm:$0xff]
    %v4083 = vld [vmem:[#allocation10 + $0x38] sm:$0xff]
    %v4084 = vld [vmem:[#allocation10 + $0x40] sm:$0xff]
    %v4085 = vld [vmem:[#allocation10 + $0x48] sm:$0xff]
    %v4086 = vld [vmem:[#allocation10 + $0x50] sm:$0xff]
    %v4087 = vld [vmem:[#allocation10 + $0x58] sm:$0xff]
    %v4088 = vld [vmem:[#allocation10 + $0x60] sm:$0xff]
    %v4089 = vld [vmem:[#allocation10 + $0x68] sm:$0xff]
    %v4090 = vld [vmem:[#allocation10 + $0x70] sm:$0xff]
    %v4091 = vld [vmem:[#allocation10 + $0x78] sm:$0xff]
    %v4092 = vld [vmem:[#allocation10 + $0x80] sm:$0xff]
    %v4093 = vld [vmem:[#allocation10 + $0x88] sm:$0xff]
    %v4094 = vld [vmem:[#allocation10 + $0x90] sm:$0xff]
    %v4095 = vld [vmem:[#allocation10 + $0x98] sm:$0xff]
    %v4096 = vld [vmem:[#allocation10 + $0xa0] sm:$0xff]
    %v4097 = vld [vmem:[#allocation10 + $0xa8] sm:$0xff]
    %v4098 = vld [vmem:[#allocation10 + $0xb0] sm:$0xff]
    %v4099 = vld [vmem:[#allocation10 + $0xb8] sm:$0xff]
    %v4100 = vld [vmem:[#allocation10 + $0xc0] sm:$0xff]
    %v4101 = vld [vmem:[#allocation10 + $0xc8] sm:$0xff]
    %v4102 = vld [vmem:[#allocation10 + $0xd0] sm:$0xff]
    %v4103 = vld [vmem:[#allocation10 + $0xd8] sm:$0xff]
    %v4104 = vld [vmem:[#allocation10 + $0xe0] sm:$0xff]
    %v4105 = vld [vmem:[#allocation10 + $0xe8] sm:$0xff]
    %v4106 = vld [vmem:[#allocation10 + $0xf0] sm:$0xff]
    %v4107 = vld [vmem:[#allocation10 + $0xf8] sm:$0xff]
    %v4108 = vld [vmem:[#allocation10 + $0x100] sm:$0xff]
    %v4109 = vld [vmem:[#allocation10 + $0x108] sm:$0xff]
    %v4110 = vld [vmem:[#allocation10 + $0x110] sm:$0xff]
    %v4111 = vld [vmem:[#allocation10 + $0x118] sm:$0xff]
    %v4112 = vld [vmem:[#allocation10 + $0x120] sm:$0xff]
    %v4113 = vld [vmem:[#allocation10 + $0x128] sm:$0xff]
    %v4114 = vld [vmem:[#allocation10 + $0x130] sm:$0xff]
    %v4115 = vld [vmem:[#allocation10 + $0x138] sm:$0xff]
    %v4116 = vld [vmem:[#allocation10 + $0x140] sm:$0xff]
    %v4117 = vld [vmem:[#allocation10 + $0x148] sm:$0xff]
    %v4118 = vld [vmem:[#allocation10 + $0x150] sm:$0xff]
    %v4119 = vld [vmem:[#allocation10 + $0x158] sm:$0xff]
    %v4120 = vld [vmem:[#allocation10 + $0x160] sm:$0xff]
    %v4121 = vld [vmem:[#allocation10 + $0x168] sm:$0xff]
    %v4122 = vld [vmem:[#allocation10 + $0x170] sm:$0xff]
    %v4123 = vld [vmem:[#allocation10 + $0x178] sm:$0xff]
    %v4124 = vld [vmem:[%s6] sm:$0x7]
    %v4126 = vlaneseq
    %v4127 = vshrl.u32 %v4126, 7
    %v4128 = vsub.s32 0, %v4127
    %v4129 = vrot.slane %v4124, %v4128
    %v4130 = vlaneseq
    %v4131 = vshrl.u32 %v4130, 7
    %v4132 = vsub.s32 1, %v4131
    %v4133 = vrot.slane %v4124, %v4132
    %v4134 = vlaneseq
    %v4135 = vshrl.u32 %v4134, 7
    %v4136 = vsub.s32 2, %v4135
    %v4137 = vrot.slane %v4124, %v4136
    %4141 = vmatprep.subr.mxu0 %v4122
    %4142 = vmatpush1.msra.mxu0 %v4121
    %4143 = vmatprep.subr.mxu0 %v4119
    %4144 = vmatpush1.msra.mxu0 %v4118
    %4145 = vmatprep.subr.mxu0 %v4116
    %4146 = vmatpush1.msra.mxu0 %v4115
    %4147 = vmatprep.subr.mxu0 %v4113
    %4148 = vmatpush1.msra.mxu0 %v4112
    %4149 = vmatprep.subr.mxu0 %v4110
    %4150 = vmatpush1.msra.mxu0 %v4109
    %4151 = vmatprep.subr.mxu0 %v4107
    %4152 = vmatpush1.msra.mxu0 %v4106
    %4153 = vmatprep.subr.mxu0 %v4104
    %4154 = vmatpush1.msra.mxu0 %v4103
    %4155 = vmatprep.subr.mxu0 %v4101
    %4156 = vmatpush1.msra.mxu0 %v4100
    %4157 = vmatprep.subr.mxu0 %v4098
    %4158 = vmatpush1.msra.mxu0 %v4097
    %4159 = vmatprep.subr.mxu0 %v4095
    %4160 = vmatpush1.msra.mxu0 %v4094
    %4161 = vmatprep.subr.mxu0 %v4092
    %4162 = vmatpush1.msra.mxu0 %v4091
    %4163 = vmatprep.subr.mxu0 %v4089
    %4164 = vmatpush1.msra.mxu0 %v4088
    %4165 = vmatprep.subr.mxu0 %v4086
    %4166 = vmatpush1.msra.mxu0 %v4085
    %4167 = vmatprep.subr.mxu0 %v4083
    %4168 = vmatpush1.msra.mxu0 %v4082
    %4169 = vmatprep.subr.mxu0 %v4080
    %4170 = vmatpush1.msra.mxu0 %v4079
    %4171 = vmatprep.subr.mxu0 %v4077
    %4172 = vmatpush1.msra.mxu0 %v4076
    %4173 = vmatprep.subr.mxu0 0.0
    %4174 = vmatpush2.msra.mxu0 0.0
    %4175 = vmatprep.subr.mxu0 0.0
    %4176 = vmatpush2.msra.mxu0 0.0
    %4177 = vmatprep.subr.mxu0 0.0
    %4178 = vmatpush2.msra.mxu0 0.0
    %4179 = vmatprep.subr.mxu0 0.0
    %4180 = vmatpush2.msra.mxu0 0.0
    %4181 = vmatprep.subr.mxu0 0.0
    %4182 = vmatpush2.msra.mxu0 0.0
    %4183 = vmatprep.subr.mxu0 0.0
    %4184 = vmatpush2.msra.mxu0 0.0
    %4185 = vmatprep.subr.mxu0 0.0
    %4186 = vmatpush2.msra.mxu0 0.0
    %4187 = vmatprep.subr.mxu0 0.0
    %4188 = vmatpush2.msra.mxu0 0.0
    %4189 = vmatprep.subr.mxu0 0.0
    %4190 = vmatpush2.msra.mxu0 0.0
    %4191 = vmatprep.subr.mxu0 0.0
    %4192 = vmatpush2.msra.mxu0 0.0
    %4193 = vmatprep.subr.mxu0 0.0
    %4194 = vmatpush2.msra.mxu0 0.0
    %4195 = vmatprep.subr.mxu0 0.0
    %4196 = vmatpush2.msra.mxu0 0.0
    %4197 = vmatprep.subr.mxu0 0.0
    %4198 = vmatpush2.msra.mxu0 0.0
    %4199 = vmatprep.subr.mxu0 0.0
    %4200 = vmatpush2.msra.mxu0 0.0
    %4201 = vmatprep.subr.mxu0 0.0
    %4202 = vmatpush2.msra.mxu0 0.0
    %4203 = vmatprep.subr.mxu0 0.0
    %4204 = vmatpush2.msra.mxu0 0.0
    %4205 = vmatprep.mubr.f32.mxu0 0.0
    %4206 = vmatmul.mubr.f32.gmra.mxu0 %v3832
    %v4207 = vpop.f32.mrf.mxu0
    %v4208 = vadd.f32 %v4129, %v4207
    %v4209 = vpop.f32.mrf.mxu0
    %v4210 = vadd.f32 %v4133, %v4209
    %4211 = vdwg.mxu0
    %4212 = vmatprep.subr.mxu0 0.0
    %4213 = vmatpush1.msra.mxu0 %v4123
    %4214 = vmatprep.subr.mxu0 0.0
    %4215 = vmatpush1.msra.mxu0 %v4120
    %4216 = vmatprep.subr.mxu0 0.0
    %4217 = vmatpush1.msra.mxu0 %v4117
    %4218 = vmatprep.subr.mxu0 0.0
    %4219 = vmatpush1.msra.mxu0 %v4114
    %4220 = vmatprep.subr.mxu0 0.0
    %4221 = vmatpush1.msra.mxu0 %v4111
    %4222 = vmatprep.subr.mxu0 0.0
    %4223 = vmatpush1.msra.mxu0 %v4108
    %4224 = vmatprep.subr.mxu0 0.0
    %4225 = vmatpush1.msra.mxu0 %v4105
    %4226 = vmatprep.subr.mxu0 0.0
    %4227 = vmatpush1.msra.mxu0 %v4102
    %4228 = vmatprep.subr.mxu0 0.0
    %4229 = vmatpush1.msra.mxu0 %v4099
    %4230 = vmatprep.subr.mxu0 0.0
    %4231 = vmatpush1.msra.mxu0 %v4096
    %4232 = vmatprep.subr.mxu0 0.0
    %4233 = vmatpush1.msra.mxu0 %v4093
    %4234 = vmatprep.subr.mxu0 0.0
    %4235 = vmatpush1.msra.mxu0 %v4090
    %4236 = vmatprep.subr.mxu0 0.0
    %4237 = vmatpush1.msra.mxu0 %v4087
    %4238 = vmatprep.subr.mxu0 0.0
    %4239 = vmatpush1.msra.mxu0 %v4084
    %4240 = vmatprep.subr.mxu0 0.0
    %4241 = vmatpush1.msra.mxu0 %v4081
    %4242 = vmatprep.subr.mxu0 0.0
    %4243 = vmatpush1.msra.mxu0 %v4078
    %4244 = vmatprep.subr.mxu0 0.0
    %4245 = vmatpush2.msra.mxu0 0.0
    %4246 = vmatprep.subr.mxu0 0.0
    %4247 = vmatpush2.msra.mxu0 0.0
    %4248 = vmatprep.subr.mxu0 0.0
    %4249 = vmatpush2.msra.mxu0 0.0
    %4250 = vmatprep.subr.mxu0 0.0
    %4251 = vmatpush2.msra.mxu0 0.0
    %4252 = vmatprep.subr.mxu0 0.0
    %4253 = vmatpush2.msra.mxu0 0.0
    %4254 = vmatprep.subr.mxu0 0.0
    %4255 = vmatpush2.msra.mxu0 0.0
    %4256 = vmatprep.subr.mxu0 0.0
    %4257 = vmatpush2.msra.mxu0 0.0
    %4258 = vmatprep.subr.mxu0 0.0
    %4259 = vmatpush2.msra.mxu0 0.0
    %4260 = vmatprep.subr.mxu0 0.0
    %4261 = vmatpush2.msra.mxu0 0.0
    %4262 = vmatprep.subr.mxu0 0.0
    %4263 = vmatpush2.msra.mxu0 0.0
    %4264 = vmatprep.subr.mxu0 0.0
    %4265 = vmatpush2.msra.mxu0 0.0
    %4266 = vmatprep.subr.mxu0 0.0
    %4267 = vmatpush2.msra.mxu0 0.0
    %4268 = vmatprep.subr.mxu0 0.0
    %4269 = vmatpush2.msra.mxu0 0.0
    %4270 = vmatprep.subr.mxu0 0.0
    %4271 = vmatpush2.msra.mxu0 0.0
    %4272 = vmatprep.subr.mxu0 0.0
    %4273 = vmatpush2.msra.mxu0 0.0
    %4274 = vmatprep.subr.mxu0 0.0
    %4275 = vmatpush2.msra.mxu0 0.0
    %4276 = vmatprep.mubr.f32.mxu0 0.0
    %4277 = vmatmul.mubr.f32.gmra.mxu0 %v3832
    %v4278 = vpop.f32.mrf.mxu0
    %v4279 = vadd.f32 %v4137, %v4278
    %v4280 = vpop.f32.mrf.mxu0
    %4281 = vdwg.mxu0
    %v4282 = vadd.f32 %v4073, %v4208
    %v4283 = vxor.u32 %v4282, 2147483648
    %v4284 = vmul.f32 %v4283, 1.442695
    %v4285 = vpow.pop %v4284
    %v4286 = vadd.f32 %v4285, 1.0
    %v4287 = vrcp.pop %v4286
    %v4288 = vmul.f32 1.0, %v4287
    %v4289 = vadd.f32 %v4074, %v4210
    %v4290 = vxor.u32 %v4289, 2147483648
    %v4291 = vmul.f32 %v4290, 1.442695
    %v4292 = vpow.pop %v4291
    %v4293 = vadd.f32 %v4292, 1.0
    %v4294 = vrcp.pop %v4293
    %v4295 = vmul.f32 1.0, %v4294
    %v4296 = vmul.f32 %v4288, %v4279
    %v4297 = vadd.f32 %v4075, %v4296
    %v4298 = vtanh.pop %v4297
    %v4299 = vsub.f32 1.0, %v4295
    %v4300 = vmul.f32 %v4299, %v4298
    %v4301 = vmul.f32 %v4295, %v3832
    %v4302 = vadd.f32 %v4300, %v4301
    %v4303 = vld [vmem:[#allocation3] sm:$0xff]
    %v4304 = vld [vmem:[#allocation3 + $0x8] sm:$0xff]
    %v4305 = vld [vmem:[#allocation3 + $0x10] sm:$0xff]
    %v4306 = vld [vmem:[#allocation12] sm:$0xff]
    %v4307 = vld [vmem:[#allocation12 + $0x8] sm:$0xff]
    %v4308 = vld [vmem:[#allocation12 + $0x10] sm:$0xff]
    %v4309 = vld [vmem:[#allocation12 + $0x18] sm:$0xff]
    %v4310 = vld [vmem:[#allocation12 + $0x20] sm:$0xff]
    %v4311 = vld [vmem:[#allocation12 + $0x28] sm:$0xff]
    %v4312 = vld [vmem:[#allocation12 + $0x30] sm:$0xff]
    %v4313 = vld [vmem:[#allocation12 + $0x38] sm:$0xff]
    %v4314 = vld [vmem:[#allocation12 + $0x40] sm:$0xff]
    %v4315 = vld [vmem:[#allocation12 + $0x48] sm:$0xff]
    %v4316 = vld [vmem:[#allocation12 + $0x50] sm:$0xff]
    %v4317 = vld [vmem:[#allocation12 + $0x58] sm:$0xff]
    %v4318 = vld [vmem:[#allocation12 + $0x60] sm:$0xff]
    %v4319 = vld [vmem:[#allocation12 + $0x68] sm:$0xff]
    %v4320 = vld [vmem:[#allocation12 + $0x70] sm:$0xff]
    %v4321 = vld [vmem:[#allocation12 + $0x78] sm:$0xff]
    %v4322 = vld [vmem:[#allocation12 + $0x80] sm:$0xff]
    %v4323 = vld [vmem:[#allocation12 + $0x88] sm:$0xff]
    %v4324 = vld [vmem:[#allocation12 + $0x90] sm:$0xff]
    %v4325 = vld [vmem:[#allocation12 + $0x98] sm:$0xff]
    %v4326 = vld [vmem:[#allocation12 + $0xa0] sm:$0xff]
    %v4327 = vld [vmem:[#allocation12 + $0xa8] sm:$0xff]
    %v4328 = vld [vmem:[#allocation12 + $0xb0] sm:$0xff]
    %v4329 = vld [vmem:[#allocation12 + $0xb8] sm:$0xff]
    %v4330 = vld [vmem:[#allocation12 + $0xc0] sm:$0xff]
    %v4331 = vld [vmem:[#allocation12 + $0xc8] sm:$0xff]
    %v4332 = vld [vmem:[#allocation12 + $0xd0] sm:$0xff]
    %v4333 = vld [vmem:[#allocation12 + $0xd8] sm:$0xff]
    %v4334 = vld [vmem:[#allocation12 + $0xe0] sm:$0xff]
    %v4335 = vld [vmem:[#allocation12 + $0xe8] sm:$0xff]
    %v4336 = vld [vmem:[#allocation12 + $0xf0] sm:$0xff]
    %v4337 = vld [vmem:[#allocation12 + $0xf8] sm:$0xff]
    %v4338 = vld [vmem:[#allocation12 + $0x100] sm:$0xff]
    %v4339 = vld [vmem:[#allocation12 + $0x108] sm:$0xff]
    %v4340 = vld [vmem:[#allocation12 + $0x110] sm:$0xff]
    %v4341 = vld [vmem:[#allocation12 + $0x118] sm:$0xff]
    %v4342 = vld [vmem:[#allocation12 + $0x120] sm:$0xff]
    %v4343 = vld [vmem:[#allocation12 + $0x128] sm:$0xff]
    %v4344 = vld [vmem:[#allocation12 + $0x130] sm:$0xff]
    %v4345 = vld [vmem:[#allocation12 + $0x138] sm:$0xff]
    %v4346 = vld [vmem:[#allocation12 + $0x140] sm:$0xff]
    %v4347 = vld [vmem:[#allocation12 + $0x148] sm:$0xff]
    %v4348 = vld [vmem:[#allocation12 + $0x150] sm:$0xff]
    %v4349 = vld [vmem:[#allocation12 + $0x158] sm:$0xff]
    %v4350 = vld [vmem:[#allocation12 + $0x160] sm:$0xff]
    %v4351 = vld [vmem:[#allocation12 + $0x168] sm:$0xff]
    %v4352 = vld [vmem:[#allocation12 + $0x170] sm:$0xff]
    %v4353 = vld [vmem:[#allocation12 + $0x178] sm:$0xff]
    %v4354 = vld [vmem:[%s8] sm:$0x7]
    %v4356 = vlaneseq
    %v4357 = vshrl.u32 %v4356, 7
    %v4358 = vsub.s32 0, %v4357
    %v4359 = vrot.slane %v4354, %v4358
    %v4360 = vlaneseq
    %v4361 = vshrl.u32 %v4360, 7
    %v4362 = vsub.s32 1, %v4361
    %v4363 = vrot.slane %v4354, %v4362
    %v4364 = vlaneseq
    %v4365 = vshrl.u32 %v4364, 7
    %v4366 = vsub.s32 2, %v4365
    %v4367 = vrot.slane %v4354, %v4366
    %4371 = vmatprep.subr.mxu0 %v4352
    %4372 = vmatpush1.msra.mxu0 %v4351
    %4373 = vmatprep.subr.mxu0 %v4349
    %4374 = vmatpush1.msra.mxu0 %v4348
    %4375 = vmatprep.subr.mxu0 %v4346
    %4376 = vmatpush1.msra.mxu0 %v4345
    %4377 = vmatprep.subr.mxu0 %v4343
    %4378 = vmatpush1.msra.mxu0 %v4342
    %4379 = vmatprep.subr.mxu0 %v4340
    %4380 = vmatpush1.msra.mxu0 %v4339
    %4381 = vmatprep.subr.mxu0 %v4337
    %4382 = vmatpush1.msra.mxu0 %v4336
    %4383 = vmatprep.subr.mxu0 %v4334
    %4384 = vmatpush1.msra.mxu0 %v4333
    %4385 = vmatprep.subr.mxu0 %v4331
    %4386 = vmatpush1.msra.mxu0 %v4330
    %4387 = vmatprep.subr.mxu0 %v4328
    %4388 = vmatpush1.msra.mxu0 %v4327
    %4389 = vmatprep.subr.mxu0 %v4325
    %4390 = vmatpush1.msra.mxu0 %v4324
    %4391 = vmatprep.subr.mxu0 %v4322
    %4392 = vmatpush1.msra.mxu0 %v4321
    %4393 = vmatprep.subr.mxu0 %v4319
    %4394 = vmatpush1.msra.mxu0 %v4318
    %4395 = vmatprep.subr.mxu0 %v4316
    %4396 = vmatpush1.msra.mxu0 %v4315
    %4397 = vmatprep.subr.mxu0 %v4313
    %4398 = vmatpush1.msra.mxu0 %v4312
    %4399 = vmatprep.subr.mxu0 %v4310
    %4400 = vmatpush1.msra.mxu0 %v4309
    %4401 = vmatprep.subr.mxu0 %v4307
    %4402 = vmatpush1.msra.mxu0 %v4306
    %4403 = vmatprep.subr.mxu0 0.0
    %4404 = vmatpush2.msra.mxu0 0.0
    %4405 = vmatprep.subr.mxu0 0.0
    %4406 = vmatpush2.msra.mxu0 0.0
    %4407 = vmatprep.subr.mxu0 0.0
    %4408 = vmatpush2.msra.mxu0 0.0
    %4409 = vmatprep.subr.mxu0 0.0
    %4410 = vmatpush2.msra.mxu0 0.0
    %4411 = vmatprep.subr.mxu0 0.0
    %4412 = vmatpush2.msra.mxu0 0.0
    %4413 = vmatprep.subr.mxu0 0.0
    %4414 = vmatpush2.msra.mxu0 0.0
    %4415 = vmatprep.subr.mxu0 0.0
    %4416 = vmatpush2.msra.mxu0 0.0
    %4417 = vmatprep.subr.mxu0 0.0
    %4418 = vmatpush2.msra.mxu0 0.0
    %4419 = vmatprep.subr.mxu0 0.0
    %4420 = vmatpush2.msra.mxu0 0.0
    %4421 = vmatprep.subr.mxu0 0.0
    %4422 = vmatpush2.msra.mxu0 0.0
    %4423 = vmatprep.subr.mxu0 0.0
    %4424 = vmatpush2.msra.mxu0 0.0
    %4425 = vmatprep.subr.mxu0 0.0
    %4426 = vmatpush2.msra.mxu0 0.0
    %4427 = vmatprep.subr.mxu0 0.0
    %4428 = vmatpush2.msra.mxu0 0.0
    %4429 = vmatprep.subr.mxu0 0.0
    %4430 = vmatpush2.msra.mxu0 0.0
    %4431 = vmatprep.subr.mxu0 0.0
    %4432 = vmatpush2.msra.mxu0 0.0
    %4433 = vmatprep.subr.mxu0 0.0
    %4434 = vmatpush2.msra.mxu0 0.0
    %4435 = vmatprep.mubr.f32.mxu0 0.0
    %4436 = vmatmul.mubr.f32.gmra.mxu0 %v4063
    %v4437 = vpop.f32.mrf.mxu0
    %v4438 = vadd.f32 %v4359, %v4437
    %v4439 = vpop.f32.mrf.mxu0
    %v4440 = vadd.f32 %v4363, %v4439
    %4441 = vdwg.mxu0
    %4442 = vmatprep.subr.mxu0 0.0
    %4443 = vmatpush1.msra.mxu0 %v4353
    %4444 = vmatprep.subr.mxu0 0.0
    %4445 = vmatpush1.msra.mxu0 %v4350
    %4446 = vmatprep.subr.mxu0 0.0
    %4447 = vmatpush1.msra.mxu0 %v4347
    %4448 = vmatprep.subr.mxu0 0.0
    %4449 = vmatpush1.msra.mxu0 %v4344
    %4450 = vmatprep.subr.mxu0 0.0
    %4451 = vmatpush1.msra.mxu0 %v4341
    %4452 = vmatprep.subr.mxu0 0.0
    %4453 = vmatpush1.msra.mxu0 %v4338
    %4454 = vmatprep.subr.mxu0 0.0
    %4455 = vmatpush1.msra.mxu0 %v4335
    %4456 = vmatprep.subr.mxu0 0.0
    %4457 = vmatpush1.msra.mxu0 %v4332
    %4458 = vmatprep.subr.mxu0 0.0
    %4459 = vmatpush1.msra.mxu0 %v4329
    %4460 = vmatprep.subr.mxu0 0.0
    %4461 = vmatpush1.msra.mxu0 %v4326
    %4462 = vmatprep.subr.mxu0 0.0
    %4463 = vmatpush1.msra.mxu0 %v4323
    %4464 = vmatprep.subr.mxu0 0.0
    %4465 = vmatpush1.msra.mxu0 %v4320
    %4466 = vmatprep.subr.mxu0 0.0
    %4467 = vmatpush1.msra.mxu0 %v4317
    %4468 = vmatprep.subr.mxu0 0.0
    %4469 = vmatpush1.msra.mxu0 %v4314
    %4470 = vmatprep.subr.mxu0 0.0
    %4471 = vmatpush1.msra.mxu0 %v4311
    %4472 = vmatprep.subr.mxu0 0.0
    %4473 = vmatpush1.msra.mxu0 %v4308
    %4474 = vmatprep.subr.mxu0 0.0
    %4475 = vmatpush2.msra.mxu0 0.0
    %4476 = vmatprep.subr.mxu0 0.0
    %4477 = vmatpush2.msra.mxu0 0.0
    %4478 = vmatprep.subr.mxu0 0.0
    %4479 = vmatpush2.msra.mxu0 0.0
    %4480 = vmatprep.subr.mxu0 0.0
    %4481 = vmatpush2.msra.mxu0 0.0
    %4482 = vmatprep.subr.mxu0 0.0
    %4483 = vmatpush2.msra.mxu0 0.0
    %4484 = vmatprep.subr.mxu0 0.0
    %4485 = vmatpush2.msra.mxu0 0.0
    %4486 = vmatprep.subr.mxu0 0.0
    %4487 = vmatpush2.msra.mxu0 0.0
    %4488 = vmatprep.subr.mxu0 0.0
    %4489 = vmatpush2.msra.mxu0 0.0
    %4490 = vmatprep.subr.mxu0 0.0
    %4491 = vmatpush2.msra.mxu0 0.0
    %4492 = vmatprep.subr.mxu0 0.0
    %4493 = vmatpush2.msra.mxu0 0.0
    %4494 = vmatprep.subr.mxu0 0.0
    %4495 = vmatpush2.msra.mxu0 0.0
    %4496 = vmatprep.subr.mxu0 0.0
    %4497 = vmatpush2.msra.mxu0 0.0
    %4498 = vmatprep.subr.mxu0 0.0
    %4499 = vmatpush2.msra.mxu0 0.0
    %4500 = vmatprep.subr.mxu0 0.0
    %4501 = vmatpush2.msra.mxu0 0.0
    %4502 = vmatprep.subr.mxu0 0.0
    %4503 = vmatpush2.msra.mxu0 0.0
    %4504 = vmatprep.subr.mxu0 0.0
    %4505 = vmatpush2.msra.mxu0 0.0
    %4506 = vmatprep.mubr.f32.mxu0 0.0
    %4507 = vmatmul.mubr.f32.gmra.mxu0 %v4063
    %v4508 = vpop.f32.mrf.mxu0
    %v4509 = vadd.f32 %v4367, %v4508
    %v4510 = vpop.f32.mrf.mxu0
    %4511 = vdwg.mxu0
    %v4512 = vadd.f32 %v4303, %v4438
    %v4513 = vxor.u32 %v4512, 2147483648
    %v4514 = vmul.f32 %v4513, 1.442695
    %v4515 = vpow.pop %v4514
    %v4516 = vadd.f32 %v4515, 1.0
    %v4517 = vrcp.pop %v4516
    %v4518 = vmul.f32 1.0, %v4517
    %v4519 = vadd.f32 %v4304, %v4440
    %v4520 = vxor.u32 %v4519, 2147483648
    %v4521 = vmul.f32 %v4520, 1.442695
    %v4522 = vpow.pop %v4521
    %v4523 = vadd.f32 %v4522, 1.0
    %v4524 = vrcp.pop %v4523
    %v4525 = vmul.f32 1.0, %v4524
    %v4526 = vmul.f32 %v4518, %v4509
    %v4527 = vadd.f32 %v4305, %v4526
    %v4528 = vtanh.pop %v4527
    %v4529 = vsub.f32 1.0, %v4525
    %v4530 = vmul.f32 %v4529, %v4528
    %v4531 = vmul.f32 %v4525, %v4063
    %v4532 = vadd.f32 %v4530, %v4531
    %s4533 = scalar_lea.vmem [#allocation13], 56
    %4534 = vst [vmem:[%s4533] sm:$0xff] %v4302
    %4535 = vst [vmem:[#allocation14] sm:$0xff] %v4532
    %v4536 = vmul.f32 %v4302, %v1200
    %v4537 = vadd.f32 %v4069, %v4536
    %v4538 = vmul.f32 %v4532, %v1190
    %v4539 = vadd.f32 %v4071, %v4538
    %v4540 = vmax.f32 %v113, 1.0
    %v4541 = vrcp.pop %v4540
    %4543 = vset.pattern.permute.xlu0 0
    %4544 = vperm.xlu0 %4543, %v4541
    %v4545 = vpop.permute.xlu0 %4544
    %v4547 = vmul.f32 %v4537, %v4545
    %4548 = vst [vmem:[#allocation16] sm:$0xff] %v4547
    %v4549 = vmul.f32 %v4539, %v4545
    %4550 = vst [vmem:[#allocation17] sm:$0xff] %v4549
    // Predicated region
    $region58: #{tpu_custom_call.1} parent=1 // pred_check
      _
    $region59: #{tpu_custom_call.1} parent=1 // pred_check_branch
      %4552 = sbr.rel (0) target = $region61
    $region60: #{tpu_custom_call.1} parent=1 // pred_region
      %s4554 = ssub.s32 1024, 1024
      %4555 = vsyncadd [#allocation6], %s4554
      %s4556 = sshll.u32 [#allocation13], 4
      %s4557 = int_to_ptr.vmem [resolvable:$true] %s4556
      %4562 = dma.vmem_to_hbm [thread:$0]  %s4557, 1024, %s9, [#allocation6], 128, 128, 8
    $region61: #{tpu_custom_call.1} parent=1 // pred_fallthru
      _
    // Predicated region
    $region62: #{tpu_custom_call.1} parent=1 // pred_check
      _
    $region63: #{tpu_custom_call.1} parent=1 // pred_check_branch
      %4564 = sbr.rel (0) target = $region65
    $region64: #{tpu_custom_call.1} parent=1 // pred_region
      %s4566 = ssub.s32 1024, 1024
      %4567 = vsyncadd [#allocation15], %s4566
      %s4568 = sshll.u32 [#allocation14], 4
      %s4569 = int_to_ptr.vmem [resolvable:$true] %s4568
      %4574 = dma.vmem_to_hbm [thread:$0]  %s4569, 1024, %s10, [#allocation15], 128, 128, 8
    $region65: #{tpu_custom_call.1} parent=1 // pred_fallthru
      _
    // Predicated region
    $region66: #{tpu_custom_call.1} parent=1 // pred_check
      _
    $region67: #{tpu_custom_call.1} parent=1 // pred_check_branch
      %4576 = sbr.rel (0) target = $region69
    $region68: #{tpu_custom_call.1} parent=1 // pred_region
      %s4578 = ssub.s32 128, 128
      %4579 = vsyncadd [#allocation15], %s4578
      %s4581 = sshll.u32 [#allocation16], 4
      %s4582 = int_to_ptr.vmem [resolvable:$true] %s4581
      %4584 = dma.vmem_to_hbm [thread:$0]  %s4582, 128, %s11, [#allocation15]
    $region69: #{tpu_custom_call.1} parent=1 // pred_fallthru
      _
    // Predicated region
    $region70: #{tpu_custom_call.1} parent=1 // pred_check
      _
    $region71: #{tpu_custom_call.1} parent=1 // pred_check_branch
      %4586 = sbr.rel (0) target = $region73
    $region72: #{tpu_custom_call.1} parent=1 // pred_region
      %s4588 = ssub.s32 128, 128
      %4589 = vsyncadd [#allocation18], %s4588
      %s4591 = sshll.u32 [#allocation17], 4
      %s4592 = int_to_ptr.vmem [resolvable:$true] %s4591
      %4594 = dma.vmem_to_hbm [thread:$0]  %s4592, 128, %s12, [#allocation18]
    $region73: #{tpu_custom_call.1} parent=1 // pred_fallthru
      _
    // Predicated region
    $region74: #{tpu_custom_call.1} parent=1 // pred_check
      _
    $region75: #{tpu_custom_call.1} parent=1 // pred_check_branch
      %4596 = sbr.rel (0) target = $region77
    $region76: #{tpu_custom_call.1} parent=1 // pred_region
      %4597 = dma.done [#allocation6], 1024
    $region77: #{tpu_custom_call.1} parent=1 // pred_fallthru
      _
    // Predicated region
    $region78: #{tpu_custom_call.1} parent=1 // pred_check
      _
    $region79: #{tpu_custom_call.1} parent=1 // pred_check_branch
      %4599 = sbr.rel (0) target = $region81
    $region80: #{tpu_custom_call.1} parent=1 // pred_region
      %4600 = dma.done [#allocation15], 1024
    $region81: #{tpu_custom_call.1} parent=1 // pred_fallthru
      _
    // Predicated region
    $region82: #{tpu_custom_call.1} parent=1 // pred_check
      _
    $region83: #{tpu_custom_call.1} parent=1 // pred_check_branch
      %4602 = sbr.rel (0) target = $region85
    $region84: #{tpu_custom_call.1} parent=1 // pred_region
      %4603 = dma.done [#allocation15], 128
    $region85: #{tpu_custom_call.1} parent=1 // pred_fallthru
      _
    // Predicated region
    $region86: #{tpu_custom_call.1} parent=1 // pred_check
      _
    $region87: #{tpu_custom_call.1} parent=1 // pred_check_branch
      %4605 = sbr.rel (0) target = $region89
    $region88: #{tpu_custom_call.1} parent=1 // pred_region
      %4606 = dma.done [#allocation18], 128
    $region89: #{tpu_custom_call.1} parent=1 // pred_fallthru
      _
    %4607 = vsyncpa [#allocation5], 1
    %4608 = vsyncpa [#allocation8], 1
    %4609 = vsyncpa [#allocation11], 1
    %4610 = vsyncpa [#allocation6], 1
    %4611 = vsyncpa [#allocation15], 1
    %4612 = vsyncpa [#allocation18], 1

</llo_original>
